<compile_context>
chip_gen: v6e
topology: v6e:2x2x1
jax: 0.10.0
libtpu: 0.0.40
codegen_flags: <defaults>
</compile_context>

<pallas_src>
import functools

import jax
import jax.numpy as jnp
from jax import lax
from jax.experimental import pallas as pl
from jax.experimental.pallas import tpu as pltpu


# ----------------------------------------------------------------------------
# Config (small synthetic sizes consistent with the module's forward)
# ----------------------------------------------------------------------------
CFG = dict(
    num_hidden=32,            # args[...num_hidden]
    num_hidden_fc=64,         # args[...num_hidden_fc]
    num_word2vec_emb=16,      # args[...num_word2vec_emb]
    num_backbone_filter_out_channel=64,   # ResNet18 layer1 out-channels
    roi_align_size=2,
    num_block=1,
    num_block_padding=8,      # == num_nodes
    img_size=64,              # small stand-in for 512
    feat_map_scale=0.25,      # conv1 stride2 + maxpool stride2 -> /4
)


# ----------------------------------------------------------------------------
# Pallas kernel 1: fused  y = act(x @ w + b)   (used for conv1's im2col matmul)
# ----------------------------------------------------------------------------
def _mm_bias_act_kernel(x_ref, w_ref, b_ref, o_ref, *, relu):
    acc = jnp.dot(x_ref[...], w_ref[...], preferred_element_type=jnp.float32)
    acc = acc + b_ref[...]
    if relu:
        acc = jnp.maximum(acc, 0.0)
    o_ref[...] = acc.astype(o_ref.dtype)


def _pick_tm(M, tm_req=1024):
    """Largest tile <= tm_req that divides M and is a multiple of 8.

    Per the review: only prefer >=2 grid blocks (v7x has two TensorCores) when
    that still leaves tiles of >= 256 rows; v5e/v6e are single-TensorCore so
    the largest divisor tile wins there.
    """
    if M <= 8:
        return M
    cap = min(tm_req, M)
    if M // 2 >= 256:
        cap = min(cap, M // 2)
    best = None
    for t in range(8, cap + 1, 8):
        if M % t == 0:
            best = t
    return best if best is not None else M


def pallas_linear(x, w, b, *, relu=False, out_dtype=jnp.float32, tm_req=1024):
    """x: (M, K), w: (K, N), b: (N,) -> (M, N) in out_dtype.

    Full-extent K/N blocks (no padding copies, no K grid axis), one 'parallel'
    M axis.  Inputs may be bf16; MXU accumulation is always f32.
    """
    M, K = x.shape
    K2, N = w.shape
    assert K == K2
    b2 = jnp.reshape(b.astype(jnp.float32), (1, N))
    tm = _pick_tm(M, tm_req)
    grid = (M // tm,)
    return pl.pallas_call(
        functools.partial(_mm_bias_act_kernel, relu=relu),
        out_shape=jax.ShapeDtypeStruct((M, N), out_dtype),
        grid_spec=pltpu.PrefetchScalarGridSpec(
            num_scalar_prefetch=0,
            grid=grid,
            in_specs=[
                pl.BlockSpec((tm, K), lambda i: (i, 0)),   # x tile
                pl.BlockSpec((K, N), lambda i: (0, 0)),    # whole weight (resident)
                pl.BlockSpec((1, N), lambda i: (0, 0)),    # bias (resident)
            ],
            out_specs=pl.BlockSpec((tm, N), lambda i: (i, 0)),
        ),
        compiler_params=pltpu.CompilerParams(
            dimension_semantics=("parallel",)),
    )(x, w, b2)


def conv2d_im2col(x, wf, b, kh, kw, *, stride=1, pad=0, relu=False):
    """conv1 only (7x7/s2, 3 in-channels): single-pass im2col + Pallas matmul,
    bf16 output.  Note: K=147 pads to 256 lanes in the x block (~43% lane
    waste on this one matmul); acceptable, conv1 runs once per image."""
    patches = lax.conv_general_dilated_patches(
        x, (kh, kw), (stride, stride), [(pad, pad), (pad, pad)],
        dimension_numbers=('NHWC', 'HWIO', 'NHWC'))   # feature order (c,kh,kw)
    B, Ho, Wo, K = patches.shape
    O = wf.shape[1]
    y = pallas_linear(patches.reshape(B * Ho * Wo, K), wf, b,
                      relu=relu, out_dtype=jnp.bfloat16)
    return y.reshape(B, Ho, Wo, O)


# ----------------------------------------------------------------------------
# Pallas kernel 2: 3x3 conv as 9 in-kernel tap matmuls (no HBM im2col),
# fused bias + optional residual-add + ReLU, bf16 in / bf16 out, f32 MXU acc.
# ----------------------------------------------------------------------------
def _conv3x3_kernel(x_ref, w_ref, b_ref, o_ref, *, H, W, relu):
    # x_ref: (1, H+2, W+2, C) padded bf16 image; w_ref: (9, C, O) bf16;
    # b_ref: (1, O) f32; o_ref: (1, H*W, O) bf16.
    C = x_ref.shape[-1]
    O = w_ref.shape[-1]
    acc = jnp.zeros((H * W, O), jnp.float32)
    for t in range(9):                       # static tap loop, patches in VMEM
        dy, dx = divmod(t, 3)
        xt = x_ref[0, dy:dy + H, dx:dx + W, :].reshape(H * W, C)
        acc = acc + jnp.dot(xt, w_ref[t], preferred_element_type=jnp.float32)
    acc = acc + b_ref[...]
    if relu:
        acc = jnp.maximum(acc, 0.0)
    o_ref[0] = acc.astype(o_ref.dtype)


def _conv3x3_res_relu_kernel(x_ref, w_ref, b_ref, r_ref, o_ref, *, H, W):
    C = x_ref.shape[-1]
    O = w_ref.shape[-1]
    acc = jnp.zeros((H * W, O), jnp.float32)
    for t in range(9):
        dy, dx = divmod(t, 3)
        xt = x_ref[0, dy:dy + H, dx:dx + W, :].reshape(H * W, C)
        acc = acc + jnp.dot(xt, w_ref[t], preferred_element_type=jnp.float32)
    # bf16 residual read, upcast on the VPU; fused add + ReLU epilogue.
    acc = acc + b_ref[...] + r_ref[0].astype(jnp.float32)
    o_ref[0] = jnp.maximum(acc, 0.0).astype(o_ref.dtype)


def conv3x3(x, w9, b, *, relu=False, residual=None):
    """3x3 / stride 1 / pad 1 conv.

    x: (B, H, W, C) bf16; w9: (9, C, O) bf16 (tap-major, tap = dy*3+dx);
    b: (O,) f32; residual (optional): (B, H, W, O) bf16.
    Returns (B, H, W, O) bf16.

    Grid is one image per step ('parallel' -> one image per TC on v7x); the
    whole padded image stays resident in VMEM, so the only HBM traffic per
    conv is 1x read + 1x write of the bf16 feature map (plus the 1x pad copy),
    instead of the previous 9x im2col blow-up.
    Note: the 64-wide output stores are masked vst's, but the kernel is
    matmul-bound here so they are hidden (lane-dense out-slab not needed).
    """
    B, H, W, C = x.shape
    O = w9.shape[-1]
    Hp, Wp = H + 2, W + 2
    xp = jnp.pad(x, ((0, 0), (1, 1), (1, 1), (0, 0)))   # 1x copy, not 9x
    b2 = jnp.reshape(b.astype(jnp.float32), (1, O))

    in_specs = [
        pl.BlockSpec((1, Hp, Wp, C), lambda i: (i, 0, 0, 0)),  # padded image
        pl.BlockSpec((9, C, O), lambda i: (0, 0, 0)),          # weights resident
        pl.BlockSpec((1, O), lambda i: (0, 0)),                # bias resident
    ]
    operands = [xp, w9, b2]
    if residual is not None:
        in_specs.append(pl.BlockSpec((1, H * W, O), lambda i: (i, 0, 0)))
        operands.append(residual.reshape(B, H * W, O))          # stays bf16
        kernel = functools.partial(_conv3x3_res_relu_kernel, H=H, W=W)
    else:
        kernel = functools.partial(_conv3x3_kernel, H=H, W=W, relu=relu)

    y = pl.pallas_call(
        kernel,
        out_shape=jax.ShapeDtypeStruct((B, H * W, O), jnp.bfloat16),
        grid_spec=pltpu.PrefetchScalarGridSpec(
            num_scalar_prefetch=0,
            grid=(B,),
            in_specs=in_specs,
            out_specs=pl.BlockSpec((1, H * W, O), lambda i: (i, 0, 0)),
        ),
        compiler_params=pltpu.CompilerParams(
            dimension_semantics=("parallel",)),
    )(*operands)
    return y.reshape(B, H, W, O)


# ----------------------------------------------------------------------------
# Backbone glue
# ----------------------------------------------------------------------------
def fold_bn(w, b, bn, eps=1e-5):
    gamma, beta, mean, var = bn
    scale = gamma / jnp.sqrt(var + eps)
    w2 = w * scale[:, None, None, None]
    b0 = jnp.zeros_like(mean) if b is None else b
    b2 = (b0 - mean) * scale + beta
    return w2, b2


def maxpool_3x3_s2_p1(x):
    neg_inf = jnp.array(-jnp.inf, dtype=x.dtype)
    return lax.reduce_window(x, neg_inf, lax.max,
                             (1, 3, 3, 1), (1, 2, 2, 1),
                             ((0, 0), (1, 1), (1, 1), (0, 0)))


def backbone(x_nhwc_bf16, pp):
    # ResNet18: conv1/bn1/relu/maxpool/layer1 + 3x (conv3x3, bn, relu).
    wf, b = pp['conv1']
    x = conv2d_im2col(x_nhwc_bf16, wf, b, 7, 7, stride=2, pad=3, relu=True)
    x = maxpool_3x3_s2_p1(x)                              # bf16 throughout
    for blk in ('l1b0', 'l1b1'):                          # layer1 BasicBlocks
        identity = x
        w1, b1 = pp[f'{blk}_c1']
        h = conv3x3(x, w1, b1, relu=True)
        w2, b2 = pp[f'{blk}_c2']
        x = conv3x3(h, w2, b2, residual=identity)         # fused add + ReLU
    for blk in ('extra0', 'extra1', 'extra2'):            # the 3 appended convs
        w9, b = pp[blk]
        x = conv3x3(x, w9, b, relu=True)
    return x


# ----------------------------------------------------------------------------
# ROI align (glue, plain JAX)
# ----------------------------------------------------------------------------
def roi_align(feat, boxes, out_size, spatial_scale, sampling=2):
    # TODO(synk): torchvision roi_align with sampling_ratio=-1 uses an adaptive
    # per-ROI sampling grid; a fixed 2x2 bilinear grid per bin (aligned=False)
    # is used here.
    B, H, W, C = feat.shape
    x1 = boxes[..., 0] * spatial_scale
    y1 = boxes[..., 1] * spatial_scale
    x2 = boxes[..., 2] * spatial_scale
    y2 = boxes[..., 3] * spatial_scale
    bin_w = jnp.maximum(x2 - x1, 1.0) / out_size
    bin_h = jnp.maximum(y2 - y1, 1.0) / out_size

    def sample_coords(start, bin_sz):
        p = jnp.arange(out_size, dtype=jnp.float32)
        s = (jnp.arange(sampling, dtype=jnp.float32) + 0.5) / sampling
        return (start[..., None, None]
                + bin_sz[..., None, None]
                * (p[None, None, :, None] + s[None, None, None, :]))

    ys = sample_coords(y1, bin_h)        # (B, N, P, S)
    xs = sample_coords(x1, bin_w)        # (B, N, P, S)
    Nn = boxes.shape[1]
    shape6 = (B, Nn, out_size, sampling, out_size, sampling)
    yy = jnp.broadcast_to(ys[:, :, :, :, None, None], shape6)
    xx = jnp.broadcast_to(xs[:, :, None, None, :, :], shape6)

    valid = (yy >= -1.0) & (yy <= H) & (xx >= -1.0) & (xx <= W)
    yyc = jnp.clip(yy, 0.0, H - 1)
    xxc = jnp.clip(xx, 0.0, W - 1)
    y0f = jnp.floor(yyc)
    x0f = jnp.floor(xxc)
    ly = yyc - y0f
    lx = xxc - x0f
    hy = 1.0 - ly
    hx = 1.0 - lx
    y0 = y0f.astype(jnp.int32)
    x0 = x0f.astype(jnp.int32)
    y1i = jnp.clip(y0 + 1, 0, H - 1)
    x1i = jnp.clip(x0 + 1, 0, W - 1)
    bidx = jnp.arange(B).reshape(B, 1, 1, 1, 1, 1)

    def g(yi, xi):
        return feat[bidx, yi, xi, :]      # (B, N, P, S, P, S, C) bf16 gather

    val = ((hy * hx)[..., None] * g(y0, x0)
           + (hy * lx)[..., None] * g(y0, x1i)
           + (ly * hx)[..., None] * g(y1i, x0)
           + (ly * lx)[..., None] * g(y1i, x1i))          # promoted to f32
    val = jnp.where(valid[..., None], val, 0.0)
    return val.mean(axis=(3, 5))          # (B, N, P, P, C) f32


# ----------------------------------------------------------------------------
# NCGM forward (prepared params)
# ----------------------------------------------------------------------------
def ncgm_forward(pp, geometry, appearance_nchw, content, bounding_boxes, cfg):
    B, N, _ = geometry.shape
    H = cfg['num_hidden']
    F = cfg['num_hidden_fc']

    # geometry_fc: Linear(4, H) + ReLU   (tiny -> plain jnp.dot)
    g = jnp.maximum(geometry.reshape(B * N, 4) @ pp['geo_w'] + pp['geo_b'], 0.0)
    geometry_emb = g.reshape(B, N, H)

    # backbone CNN (Pallas convs, bf16) + ROI align + appearance_fc
    x_nhwc = jnp.transpose(appearance_nchw, (0, 2, 3, 1)).astype(jnp.bfloat16)
    cnn_feat = backbone(x_nhwc, pp)
    align = roi_align(cnn_feat, bounding_boxes,
                      cfg['roi_align_size'], cfg['feat_map_scale'])
    # match torch roi_align output layout (B*N, C, P, P) before flatten
    af = jnp.transpose(align, (0, 1, 4, 2, 3)).reshape(B * N, -1)
    a = jnp.maximum(af @ pp['app_w'] + pp['app_b'], 0.0)
    appearance_emb = a.reshape(B, N, H)

    # content_conv: Conv2d(emb, H, (7,1)) on the raw .view-reinterpreted tensor
    # is exactly a linear over the flat 7*emb features of each node.
    cflat = content.reshape(B * N, -1)
    c = cflat @ pp['content_w'] + pp['content_b']
    content_emb = c.reshape(B, N, H)

    geometry_ccs = geometry_emb
    appearance_ccs = appearance_emb
    content_ccs = content_emb
    # TODO(synk): EgoContextExtractor / CrossContextSynthesizer definitions are
    # not provided with the module; the collaborative blocks are identity here.
    for _ in range(cfg['num_block']):
        pass

    emb = jnp.concatenate([geometry_ccs, appearance_ccs, content_ccs], axis=-1)
    ii, jj = jnp.triu_indices(cfg['num_block_padding'], k=1)
    # emb_pairs[b, i, j] = concat(emb[b, j], emb[b, i]); triu mask keeps i < j
    emb_pairs = jnp.concatenate([emb[:, jj, :], emb[:, ii, :]], axis=-1)
    P = emb_pairs.shape[1]
    ep = emb_pairs.reshape(B * P, -1)                       # (B*P, 6H)

    # fused cell/row/col heads: one 6H x 3F matmul + one batched 2nd layer
    h = jnp.maximum(ep @ pp['head_w1'] + pp['head_b1'], 0.0)   # (B*P, 3F)
    h3 = h.reshape(B * P, 3, F)
    o = jnp.einsum('mgf,gfo->mgo', h3, pp['head_w2']) + pp['head_b2']
    o = o.reshape(B, P, 3, 2)
    cell_output, row_output, col_output = o[:, :, 0], o[:, :, 1], o[:, :, 2]
    return cell_output, row_output, col_output, emb_pairs


# ----------------------------------------------------------------------------
# One-time parameter preparation (BN fold, tap/K repack, bf16 cast, head fuse)
# ----------------------------------------------------------------------------
def prepare_params(p, cfg, conv_dtype=jnp.bfloat16):
    H = cfg['num_hidden']
    pp = {}
    pp['geo_w'], pp['geo_b'] = p['geo_w'], p['geo_b']
    pp['app_w'], pp['app_b'] = p['app_w'], p['app_b']
    # (H, E, 7, 1) -> (E*7, H); matches the torch .view memory reinterpretation
    pp['content_w'] = p['content_w'].reshape(H, -1).T
    pp['content_b'] = p['content_b']

    def fold(w, b, bn):
        if bn is not None:
            w, b = fold_bn(w, b, bn)
        return w, b

    def prep_im2col(w, b, bn):
        w, b = fold(w, b, bn)
        O = w.shape[0]
        # (O, I, kh, kw) -> (I*kh*kw, O); (c, kh, kw) order matches
        # lax.conv_general_dilated_patches feature ordering.
        return (w.reshape(O, -1).T.astype(conv_dtype), b.astype(jnp.float32))

    def prep_tap3x3(w, b, bn):
        w, b = fold(w, b, bn)
        O, C = w.shape[0], w.shape[1]
        # (O, C, 3, 3) -> (9, C, O), tap-major (dy*3+dx) for the tap kernel.
        w9 = jnp.transpose(w, (2, 3, 1, 0)).reshape(9, C, O)
        return (w9.astype(conv_dtype), b.astype(jnp.float32))

    pp['conv1'] = prep_im2col(p['conv1_w'], None, p['bn1'])
    for blk in ('l1b0', 'l1b1'):
        pp[f'{blk}_c1'] = prep_tap3x3(p[f'{blk}_conv1_w'], None, p[f'{blk}_bn1'])
        pp[f'{blk}_c2'] = prep_tap3x3(p[f'{blk}_conv2_w'], None, p[f'{blk}_bn2'])
    for blk in ('extra0', 'extra1', 'extra2'):
        pp[blk] = prep_tap3x3(p[f'{blk}_w'], p[f'{blk}_b'], p[f'{blk}_bn'])

    pp['head_w1'] = jnp.concatenate(
        [p['cell_w1'], p['row_w1'], p['col_w1']], axis=1)     # (6H, 3F)
    pp['head_b1'] = jnp.concatenate(
        [p['cell_b1'], p['row_b1'], p['col_b1']], axis=0)     # (3F,)
    pp['head_w2'] = jnp.stack(
        [p['cell_w2'], p['row_w2'], p['col_w2']], axis=0)     # (3, F, 2)
    pp['head_b2'] = jnp.stack(
        [p['cell_b2'], p['row_b2'], p['col_b2']], axis=0)     # (3, 2)
    return pp


# ----------------------------------------------------------------------------
# Deterministic parameter init (synthetic; no checkpoint loading)
# ----------------------------------------------------------------------------
def init_params(key, cfg):
    H = cfg['num_hidden']
    F = cfg['num_hidden_fc']
    E = cfg['num_word2vec_emb']
    C = cfg['num_backbone_filter_out_channel']
    R = cfg['roi_align_size']
    ks = iter(jax.random.split(key, 64))

    def w(shape, scale=0.05):
        return scale * jax.random.normal(next(ks), shape, jnp.float32)

    def bn(c):
        return (jnp.ones((c,)), jnp.zeros((c,)), jnp.zeros((c,)), jnp.ones((c,)))

    p = dict(
        geo_w=w((4, H)), geo_b=jnp.zeros((H,)),
        content_w=w((H, E, 7, 1)), content_b=jnp.zeros((H,)),
        conv1_w=w((C, 3, 7, 7)), bn1=bn(C),
        app_w=w((R * R * C, H)), app_b=jnp.zeros((H,)),
        cell_w1=w((6 * H, F)), cell_b1=jnp.zeros((F,)),
        cell_w2=w((F, 2)), cell_b2=jnp.zeros((2,)),
        row_w1=w((6 * H, F)), row_b1=jnp.zeros((F,)),
        row_w2=w((F, 2)), row_b2=jnp.zeros((2,)),
        col_w1=w((6 * H, F)), col_b1=jnp.zeros((F,)),
        col_w2=w((F, 2)), col_b2=jnp.zeros((2,)),
    )
    for blk in ('l1b0', 'l1b1'):
        p[f'{blk}_conv1_w'] = w((C, C, 3, 3))
        p[f'{blk}_bn1'] = bn(C)
        p[f'{blk}_conv2_w'] = w((C, C, 3, 3))
        p[f'{blk}_bn2'] = bn(C)
    for blk in ('extra0', 'extra1', 'extra2'):
        p[f'{blk}_w'] = w((C, C, 3, 3))
        p[f'{blk}_b'] = jnp.zeros((C,))
        p[f'{blk}_bn'] = bn(C)
    return p


if __name__ == "__main__":
    key = jax.random.PRNGKey(0)
    kp, kg, ka, kc, kb1, kb2 = jax.random.split(key, 6)

    B = 2
    N = CFG['num_block_padding']          # num_nodes == num_block_padding
    E = CFG['num_word2vec_emb']
    S = CFG['img_size']

    params = init_params(kp, CFG)
    prepared = prepare_params(params, CFG)     # one-time, outside jit

    geometry = jax.random.uniform(kg, (B, N, 4), jnp.float32)
    appearance = jax.random.normal(ka, (B, 3, S, S), jnp.float32)     # NCHW
    content = jax.random.normal(kc, (B, N, 7, E), jnp.float32)
    x1y1 = jax.random.uniform(kb1, (B, N, 2), jnp.float32, 0.0, S * 0.5)
    wh = jax.random.uniform(kb2, (B, N, 2), jnp.float32, S * 0.15, S * 0.4)
    bounding_boxes = jnp.concatenate([x1y1, x1y1 + wh], axis=-1)      # x1,y1,x2,y2

    forward = jax.jit(functools.partial(ncgm_forward, cfg=CFG))
    cell, row, col, emb_pairs = forward(prepared, geometry, appearance,
                                        content, bounding_boxes)
    jax.block_until_ready((cell, row, col, emb_pairs))

    n_pairs = N * (N - 1) // 2
    assert cell.shape == (B, n_pairs, 2)
    assert row.shape == (B, n_pairs, 2)
    assert col.shape == (B, n_pairs, 2)
    assert emb_pairs.shape == (B, n_pairs, 6 * CFG['num_hidden'])
    print("KERNEL_OK")
</pallas_src>

<mosaic_0001>
module attributes {stable_mosaic.version = 11 : i64} {
  func.func private @main(%arg0: i32) attributes {dimension_semantics = [#tpu.dimension_semantics<core_parallel>], iteration_bounds = array<i64: 2>, tpu.core_type = #tpu.core_type<sc_scalar_subcore>, window_params = []} {
    return
  }
}

module attributes {stable_mosaic.version = 11 : i64} {
  func.func private @main(%arg0: i32) attributes {dimension_semantics = [#tpu.dimension_semantics<core_parallel>], iteration_bounds = array<i64: 2>, tpu.core_type = #tpu.core_type<sc_scalar_subcore>, window_params = []} {
    return
  }
}

module attributes {stable_mosaic.version = 11 : i64} {
  func.func @_mm_bias_act_kernel(%arg0: i32, %arg1: memref<1024x147xbf16, #tpu.memory_space<vmem>>, %arg2: memref<147x64xbf16, #tpu.memory_space<vmem>>, %arg3: memref<1x64xf32, #tpu.memory_space<vmem>>, %arg4: memref<1024x64xbf16, #tpu.memory_space<vmem>>) attributes {dimension_semantics = [#tpu.dimension_semantics<parallel>], iteration_bounds = array<i64: 2>, scalar_prefetch = 0 : i64, scratch_operands = 0 : i64, tpu.core_type = #tpu.core_type<tc>, window_params = [{transform_indices = @transform_0, window_bounds = array<i64: 1024, 147>}, {pipeline_mode = #tpu.pipeline_mode<synchronous>, transform_indices = @transform_1, window_bounds = array<i64: 147, 64>}, {pipeline_mode = #tpu.pipeline_mode<synchronous>, transform_indices = @transform_2, window_bounds = array<i64: 1, 64>}, {transform_indices = @transform_3, window_bounds = array<i64: 1024, 64>}]} {
    %c0 = arith.constant 0 : index
    %c0_0 = arith.constant 0 : index
    %0 = vector.load %arg1[%c0, %c0_0] : memref<1024x147xbf16, #tpu.memory_space<vmem>>, vector<1024x147xbf16>
    %c0_1 = arith.constant 0 : index
    %c0_2 = arith.constant 0 : index
    %1 = vector.load %arg2[%c0_1, %c0_2] : memref<147x64xbf16, #tpu.memory_space<vmem>>, vector<147x64xbf16>
    %cst = arith.constant dense<0.000000e+00> : vector<1024x64xf32>
    %2 = tpu.matmul %0, %1, %cst {dimension_numbers = #tpu.dot_dimension_numbers<[1], [0], [0], [1], [0, 0, 1, 1], [], []>} : vector<1024x147xbf16>, vector<147x64xbf16>, vector<1024x64xf32> -> vector<1024x64xf32>
    %c0_3 = arith.constant 0 : index
    %c0_4 = arith.constant 0 : index
    %3 = vector.load %arg3[%c0_3, %c0_4] : memref<1x64xf32, #tpu.memory_space<vmem>>, vector<1x64xf32>
    %4 = vector.broadcast %3 : vector<1x64xf32> to vector<1024x64xf32>
    %5 = arith.addf %2, %4 : vector<1024x64xf32>
    %cst_5 = arith.constant 0.000000e+00 : f32
    %6 = vector.broadcast %cst_5 : f32 to vector<1024x64xf32>
    %7 = arith.maximumf %5, %6 : vector<1024x64xf32>
    %8 = arith.truncf %7 : vector<1024x64xf32> to vector<1024x64xbf16>
    %c0_6 = arith.constant 0 : index
    %c0_7 = arith.constant 0 : index
    %9 = vector.load %arg4[%c0_6, %c0_7] : memref<1024x64xbf16, #tpu.memory_space<vmem>>, vector<1024x64xbf16>
    tpu.vector_store %arg4[%c0_6, %c0_7], %8 {strides = array<i32>} : memref<1024x64xbf16, #tpu.memory_space<vmem>>, vector<1024x64xbf16>,
    return
  }
  func.func @transform_0(%arg0: i32) -> (i32, i32) {
    %c0_i32 = arith.constant 0 : i32
    %c0_i32_0 = arith.constant 0 : i32
    return %arg0, %c0_i32 : i32, i32
  }
  func.func @transform_1(%arg0: i32) -> (i32, i32) {
    %c0_i32 = arith.constant 0 : i32
    %c0_i32_0 = arith.constant 0 : i32
    %c0_i32_1 = arith.constant 0 : i32
    return %c0_i32, %c0_i32_0 : i32, i32
  }
  func.func @transform_2(%arg0: i32) -> (i32, i32) {
    %c0_i32 = arith.constant 0 : i32
    %c0_i32_0 = arith.constant 0 : i32
    %c0_i32_1 = arith.constant 0 : i32
    return %c0_i32, %c0_i32_0 : i32, i32
  }
  func.func @transform_3(%arg0: i32) -> (i32, i32) {
    %c0_i32 = arith.constant 0 : i32
    %c0_i32_0 = arith.constant 0 : i32
    return %arg0, %c0_i32 : i32, i32
  }
}

module attributes {stable_mosaic.version = 11 : i64} {
  func.func @_conv3x3_kernel(%arg0: i32, %arg1: memref<1x18x18x64xbf16, #tpu.memory_space<vmem>>, %arg2: memref<9x64x64xbf16, #tpu.memory_space<vmem>>, %arg3: memref<1x64xf32, #tpu.memory_space<vmem>>, %arg4: memref<1x256x64xbf16, #tpu.memory_space<vmem>>) attributes {dimension_semantics = [#tpu.dimension_semantics<parallel>], iteration_bounds = array<i64: 2>, scalar_prefetch = 0 : i64, scratch_operands = 0 : i64, tpu.core_type = #tpu.core_type<tc>, window_params = [{transform_indices = @transform_0, window_bounds = array<i64: 1, 18, 18, 64>}, {pipeline_mode = #tpu.pipeline_mode<synchronous>, transform_indices = @transform_1, window_bounds = array<i64: 9, 64, 64>}, {pipeline_mode = #tpu.pipeline_mode<synchronous>, transform_indices = @transform_2, window_bounds = array<i64: 1, 64>}, {transform_indices = @transform_3, window_bounds = array<i64: 1, 256, 64>}]} {
    %cst = arith.constant 0.000000e+00 : f32
    %0 = vector.broadcast %cst : f32 to vector<256x64xf32>
    %c0 = arith.constant 0 : index
    %c0_0 = arith.constant 0 : index
    %c0_1 = arith.constant 0 : index
    %c0_2 = arith.constant 0 : index
    %1 = vector.load %arg1[%c0, %c0_0, %c0_1, %c0_2] : memref<1x18x18x64xbf16, #tpu.memory_space<vmem>>, vector<1x16x16x64xbf16>
    %2 = vector.shape_cast %1 : vector<1x16x16x64xbf16> to vector<16x16x64xbf16>
    %3 = vector.shape_cast %2 : vector<16x16x64xbf16> to vector<256x64xbf16>
    %c0_3 = arith.constant 0 : index
    %c0_4 = arith.constant 0 : index
    %c0_5 = arith.constant 0 : index
    %4 = vector.load %arg2[%c0_3, %c0_4, %c0_5] : memref<9x64x64xbf16, #tpu.memory_space<vmem>>, vector<1x64x64xbf16>
    %5 = vector.shape_cast %4 : vector<1x64x64xbf16> to vector<64x64xbf16>
    %cst_6 = arith.constant dense<0.000000e+00> : vector<256x64xf32>
    %6 = tpu.matmul %3, %5, %cst_6 {dimension_numbers = #tpu.dot_dimension_numbers<[1], [0], [0], [1], [0, 0, 1, 1], [], []>} : vector<256x64xbf16>, vector<64x64xbf16>, vector<256x64xf32> -> vector<256x64xf32>
    %7 = arith.addf %0, %6 : vector<256x64xf32>
    %c0_7 = arith.constant 0 : index
    %c0_8 = arith.constant 0 : index
    %c1 = arith.constant 1 : index
    %c0_9 = arith.constant 0 : index
    %8 = vector.load %arg1[%c0_7, %c0_8, %c1, %c0_9] : memref<1x18x18x64xbf16, #tpu.memory_space<vmem>>, vector<1x16x16x64xbf16>
    %9 = vector.shape_cast %8 : vector<1x16x16x64xbf16> to vector<16x16x64xbf16>
    %10 = vector.shape_cast %9 : vector<16x16x64xbf16> to vector<256x64xbf16>
    %c1_10 = arith.constant 1 : index
    %c0_11 = arith.constant 0 : index
    %c0_12 = arith.constant 0 : index
    %11 = vector.load %arg2[%c1_10, %c0_11, %c0_12] : memref<9x64x64xbf16, #tpu.memory_space<vmem>>, vector<1x64x64xbf16>
    %12 = vector.shape_cast %11 : vector<1x64x64xbf16> to vector<64x64xbf16>
    %cst_13 = arith.constant dense<0.000000e+00> : vector<256x64xf32>
    %13 = tpu.matmul %10, %12, %cst_13 {dimension_numbers = #tpu.dot_dimension_numbers<[1], [0], [0], [1], [0, 0, 1, 1], [], []>} : vector<256x64xbf16>, vector<64x64xbf16>, vector<256x64xf32> -> vector<256x64xf32>
    %14 = arith.addf %7, %13 : vector<256x64xf32>
    %c0_14 = arith.constant 0 : index
    %c0_15 = arith.constant 0 : index
    %c2 = arith.constant 2 : index
    %c0_16 = arith.constant 0 : index
    %15 = vector.load %arg1[%c0_14, %c0_15, %c2, %c0_16] : memref<1x18x18x64xbf16, #tpu.memory_space<vmem>>, vector<1x16x16x64xbf16>
    %16 = vector.shape_cast %15 : vector<1x16x16x64xbf16> to vector<16x16x64xbf16>
    %17 = vector.shape_cast %16 : vector<16x16x64xbf16> to vector<256x64xbf16>
    %c2_17 = arith.constant 2 : index
    %c0_18 = arith.constant 0 : index
    %c0_19 = arith.constant 0 : index
    %18 = vector.load %arg2[%c2_17, %c0_18, %c0_19] : memref<9x64x64xbf16, #tpu.memory_space<vmem>>, vector<1x64x64xbf16>
    %19 = vector.shape_cast %18 : vector<1x64x64xbf16> to vector<64x64xbf16>
    %cst_20 = arith.constant dense<0.000000e+00> : vector<256x64xf32>
    %20 = tpu.matmul %17, %19, %cst_20 {dimension_numbers = #tpu.dot_dimension_numbers<[1], [0], [0], [1], [0, 0, 1, 1], [], []>} : vector<256x64xbf16>, vector<64x64xbf16>, vector<256x64xf32> -> vector<256x64xf32>
    %21 = arith.addf %14, %20 : vector<256x64xf32>
    %c0_21 = arith.constant 0 : index
    %c1_22 = arith.constant 1 : index
    %c0_23 = arith.constant 0 : index
    %c0_24 = arith.constant 0 : index
    %22 = vector.load %arg1[%c0_21, %c1_22, %c0_23, %c0_24] : memref<1x18x18x64xbf16, #tpu.memory_space<vmem>>, vector<1x16x16x64xbf16>
    %23 = vector.shape_cast %22 : vector<1x16x16x64xbf16> to vector<16x16x64xbf16>
    %24 = vector.shape_cast %23 : vector<16x16x64xbf16> to vector<256x64xbf16>
    %c3 = arith.constant 3 : index
    %c0_25 = arith.constant 0 : index
    %c0_26 = arith.constant 0 : index
    %25 = vector.load %arg2[%c3, %c0_25, %c0_26] : memref<9x64x64xbf16, #tpu.memory_space<vmem>>, vector<1x64x64xbf16>
    %26 = vector.shape_cast %25 : vector<1x64x64xbf16> to vector<64x64xbf16>
    %cst_27 = arith.constant dense<0.000000e+00> : vector<256x64xf32>
    %27 = tpu.matmul %24, %26, %cst_27 {dimension_numbers = #tpu.dot_dimension_numbers<[1], [0], [0], [1], [0, 0, 1, 1], [], []>} : vector<256x64xbf16>, vector<64x64xbf16>, vector<256x64xf32> -> vector<256x64xf32>
    %28 = arith.addf %21, %27 : vector<256x64xf32>
    %c0_28 = arith.constant 0 : index
    %c1_29 = arith.constant 1 : index
    %c1_30 = arith.constant 1 : index
    %c0_31 = arith.constant 0 : index
    %29 = vector.load %arg1[%c0_28, %c1_29, %c1_30, %c0_31] : memref<1x18x18x64xbf16, #tpu.memory_space<vmem>>, vector<1x16x16x64xbf16>
    %30 = vector.shape_cast %29 : vector<1x16x16x64xbf16> to vector<16x16x64xbf16>
    %31 = vector.shape_cast %30 : vector<16x16x64xbf16> to vector<256x64xbf16>
    %c4 = arith.constant 4 : index
    %c0_32 = arith.constant 0 : index
    %c0_33 = arith.constant 0 : index
    %32 = vector.load %arg2[%c4, %c0_32, %c0_33] : memref<9x64x64xbf16, #tpu.memory_space<vmem>>, vector<1x64x64xbf16>
    %33 = vector.shape_cast %32 : vector<1x64x64xbf16> to vector<64x64xbf16>
    %cst_34 = arith.constant dense<0.000000e+00> : vector<256x64xf32>
    %34 = tpu.matmul %31, %33, %cst_34 {dimension_numbers = #tpu.dot_dimension_numbers<[1], [0], [0], [1], [0, 0, 1, 1], [], []>} : vector<256x64xbf16>, vector<64x64xbf16>, vector<256x64xf32> -> vector<256x64xf32>
    %35 = arith.addf %28, %34 : vector<256x64xf32>
    %c0_35 = arith.constant 0 : index
    %c1_36 = arith.constant 1 : index
    %c2_37 = arith.constant 2 : index
    %c0_38 = arith.constant 0 : index
    %36 = vector.load %arg1[%c0_35, %c1_36, %c2_37, %c0_38] : memref<1x18x18x64xbf16, #tpu.memory_space<vmem>>, vector<1x16x16x64xbf16>
    %37 = vector.shape_cast %36 : vector<1x16x16x64xbf16> to vector<16x16x64xbf16>
    %38 = vector.shape_cast %37 : vector<16x16x64xbf16> to vector<256x64xbf16>
    %c5 = arith.constant 5 : index
    %c0_39 = arith.constant 0 : index
    %c0_40 = arith.constant 0 : index
    %39 = vector.load %arg2[%c5, %c0_39, %c0_40] : memref<9x64x64xbf16, #tpu.memory_space<vmem>>, vector<1x64x64xbf16>
    %40 = vector.shape_cast %39 : vector<1x64x64xbf16> to vector<64x64xbf16>
    %cst_41 = arith.constant dense<0.000000e+00> : vector<256x64xf32>
    %41 = tpu.matmul %38, %40, %cst_41 {dimension_numbers = #tpu.dot_dimension_numbers<[1], [0], [0], [1], [0, 0, 1, 1], [], []>} : vector<256x64xbf16>, vector<64x64xbf16>, vector<256x64xf32> -> vector<256x64xf32>
    %42 = arith.addf %35, %41 : vector<256x64xf32>
    %c0_42 = arith.constant 0 : index
    %c2_43 = arith.constant 2 : index
    %c0_44 = arith.constant 0 : index
    %c0_45 = arith.constant 0 : index
    %43 = vector.load %arg1[%c0_42, %c2_43, %c0_44, %c0_45] : memref<1x18x18x64xbf16, #tpu.memory_space<vmem>>, vector<1x16x16x64xbf16>
    %44 = vector.shape_cast %43 : vector<1x16x16x64xbf16> to vector<16x16x64xbf16>
    %45 = vector.shape_cast %44 : vector<16x16x64xbf16> to vector<256x64xbf16>
    %c6 = arith.constant 6 : index
    %c0_46 = arith.constant 0 : index
    %c0_47 = arith.constant 0 : index
    %46 = vector.load %arg2[%c6, %c0_46, %c0_47] : memref<9x64x64xbf16, #tpu.memory_space<vmem>>, vector<1x64x64xbf16>
    %47 = vector.shape_cast %46 : vector<1x64x64xbf16> to vector<64x64xbf16>
    %cst_48 = arith.constant dense<0.000000e+00> : vector<256x64xf32>
    %48 = tpu.matmul %45, %47, %cst_48 {dimension_numbers = #tpu.dot_dimension_numbers<[1], [0], [0], [1], [0, 0, 1, 1], [], []>} : vector<256x64xbf16>, vector<64x64xbf16>, vector<256x64xf32> -> vector<256x64xf32>
    %49 = arith.addf %42, %48 : vector<256x64xf32>
    %c0_49 = arith.constant 0 : index
    %c2_50 = arith.constant 2 : index
    %c1_51 = arith.constant 1 : index
    %c0_52 = arith.constant 0 : index
    %50 = vector.load %arg1[%c0_49, %c2_50, %c1_51, %c0_52] : memref<1x18x18x64xbf16, #tpu.memory_space<vmem>>, vector<1x16x16x64xbf16>
    %51 = vector.shape_cast %50 : vector<1x16x16x64xbf16> to vector<16x16x64xbf16>
    %52 = vector.shape_cast %51 : vector<16x16x64xbf16> to vector<256x64xbf16>
    %c7 = arith.constant 7 : index
    %c0_53 = arith.constant 0 : index
    %c0_54 = arith.constant 0 : index
    %53 = vector.load %arg2[%c7, %c0_53, %c0_54] : memref<9x64x64xbf16, #tpu.memory_space<vmem>>, vector<1x64x64xbf16>
    %54 = vector.shape_cast %53 : vector<1x64x64xbf16> to vector<64x64xbf16>
    %cst_55 = arith.constant dense<0.000000e+00> : vector<256x64xf32>
    %55 = tpu.matmul %52, %54, %cst_55 {dimension_numbers = #tpu.dot_dimension_numbers<[1], [0], [0], [1], [0, 0, 1, 1], [], []>} : vector<256x64xbf16>, vector<64x64xbf16>, vector<256x64xf32> -> vector<256x64xf32>
    %56 = arith.addf %49, %55 : vector<256x64xf32>
    %c0_56 = arith.constant 0 : index
    %c2_57 = arith.constant 2 : index
    %c2_58 = arith.constant 2 : index
    %c0_59 = arith.constant 0 : index
    %57 = vector.load %arg1[%c0_56, %c2_57, %c2_58, %c0_59] : memref<1x18x18x64xbf16, #tpu.memory_space<vmem>>, vector<1x16x16x64xbf16>
    %58 = vector.shape_cast %57 : vector<1x16x16x64xbf16> to vector<16x16x64xbf16>
    %59 = vector.shape_cast %58 : vector<16x16x64xbf16> to vector<256x64xbf16>
    %c8 = arith.constant 8 : index
    %c0_60 = arith.constant 0 : index
    %c0_61 = arith.constant 0 : index
    %60 = vector.load %arg2[%c8, %c0_60, %c0_61] : memref<9x64x64xbf16, #tpu.memory_space<vmem>>, vector<1x64x64xbf16>
    %61 = vector.shape_cast %60 : vector<1x64x64xbf16> to vector<64x64xbf16>
    %cst_62 = arith.constant dense<0.000000e+00> : vector<256x64xf32>
    %62 = tpu.matmul %59, %61, %cst_62 {dimension_numbers = #tpu.dot_dimension_numbers<[1], [0], [0], [1], [0, 0, 1, 1], [], []>} : vector<256x64xbf16>, vector<64x64xbf16>, vector<256x64xf32> -> vector<256x64xf32>
    %63 = arith.addf %56, %62 : vector<256x64xf32>
    %c0_63 = arith.constant 0 : index
    %c0_64 = arith.constant 0 : index
    %64 = vector.load %arg3[%c0_63, %c0_64] : memref<1x64xf32, #tpu.memory_space<vmem>>, vector<1x64xf32>
    %65 = vector.broadcast %64 : vector<1x64xf32> to vector<256x64xf32>
    %66 = arith.addf %63, %65 : vector<256x64xf32>
    %cst_65 = arith.constant 0.000000e+00 : f32
    %67 = vector.broadcast %cst_65 : f32 to vector<256x64xf32>
    %68 = arith.maximumf %66, %67 : vector<256x64xf32>
    %69 = arith.truncf %68 : vector<256x64xf32> to vector<256x64xbf16>
    %c0_66 = arith.constant 0 : index
    %c0_67 = arith.constant 0 : index
    %c0_68 = arith.constant 0 : index
    %70 = vector.load %arg4[%c0_66, %c0_67, %c0_68] : memref<1x256x64xbf16, #tpu.memory_space<vmem>>, vector<1x256x64xbf16>
    %71 = vector.shape_cast %70 : vector<1x256x64xbf16> to vector<256x64xbf16>
    %72 = vector.shape_cast %69 : vector<256x64xbf16> to vector<1x256x64xbf16>
    tpu.vector_store %arg4[%c0_66, %c0_67, %c0_68], %72 {strides = array<i32>} : memref<1x256x64xbf16, #tpu.memory_space<vmem>>, vector<1x256x64xbf16>,
    return
  }
  func.func @transform_0(%arg0: i32) -> (i32, i32, i32, i32) {
    %c0_i32 = arith.constant 0 : i32
    %c0_i32_0 = arith.constant 0 : i32
    %c0_i32_1 = arith.constant 0 : i32
    %c0_i32_2 = arith.constant 0 : i32
    return %arg0, %c0_i32, %c0_i32_0, %c0_i32_1 : i32, i32, i32, i32
  }
  func.func @transform_1(%arg0: i32) -> (i32, i32, i32) {
    %c0_i32 = arith.constant 0 : i32
    %c0_i32_0 = arith.constant 0 : i32
    %c0_i32_1 = arith.constant 0 : i32
    %c0_i32_2 = arith.constant 0 : i32
    return %c0_i32, %c0_i32_0, %c0_i32_1 : i32, i32, i32
  }
  func.func @transform_2(%arg0: i32) -> (i32, i32) {
    %c0_i32 = arith.constant 0 : i32
    %c0_i32_0 = arith.constant 0 : i32
    %c0_i32_1 = arith.constant 0 : i32
    return %c0_i32, %c0_i32_0 : i32, i32
  }
  func.func @transform_3(%arg0: i32) -> (i32, i32, i32) {
    %c0_i32 = arith.constant 0 : i32
    %c0_i32_0 = arith.constant 0 : i32
    %c0_i32_1 = arith.constant 0 : i32
    return %arg0, %c0_i32, %c0_i32_0 : i32, i32, i32
  }
}

module attributes {stable_mosaic.version = 11 : i64} {
  func.func @_conv3x3_res_relu_kernel(%arg0: i32, %arg1: memref<1x18x18x64xbf16, #tpu.memory_space<vmem>>, %arg2: memref<9x64x64xbf16, #tpu.memory_space<vmem>>, %arg3: memref<1x64xf32, #tpu.memory_space<vmem>>, %arg4: memref<1x256x64xbf16, #tpu.memory_space<vmem>>, %arg5: memref<1x256x64xbf16, #tpu.memory_space<vmem>>) attributes {dimension_semantics = [#tpu.dimension_semantics<parallel>], iteration_bounds = array<i64: 2>, scalar_prefetch = 0 : i64, scratch_operands = 0 : i64, tpu.core_type = #tpu.core_type<tc>, window_params = [{transform_indices = @transform_0, window_bounds = array<i64: 1, 18, 18, 64>}, {pipeline_mode = #tpu.pipeline_mode<synchronous>, transform_indices = @transform_1, window_bounds = array<i64: 9, 64, 64>}, {pipeline_mode = #tpu.pipeline_mode<synchronous>, transform_indices = @transform_2, window_bounds = array<i64: 1, 64>}, {transform_indices = @transform_3, window_bounds = array<i64: 1, 256, 64>}, {transform_indices = @transform_4, window_bounds = array<i64: 1, 256, 64>}]} {
    %cst = arith.constant 0.000000e+00 : f32
    %0 = vector.broadcast %cst : f32 to vector<256x64xf32>
    %c0 = arith.constant 0 : index
    %c0_0 = arith.constant 0 : index
    %c0_1 = arith.constant 0 : index
    %c0_2 = arith.constant 0 : index
    %1 = vector.load %arg1[%c0, %c0_0, %c0_1, %c0_2] : memref<1x18x18x64xbf16, #tpu.memory_space<vmem>>, vector<1x16x16x64xbf16>
    %2 = vector.shape_cast %1 : vector<1x16x16x64xbf16> to vector<16x16x64xbf16>
    %3 = vector.shape_cast %2 : vector<16x16x64xbf16> to vector<256x64xbf16>
    %c0_3 = arith.constant 0 : index
    %c0_4 = arith.constant 0 : index
    %c0_5 = arith.constant 0 : index
    %4 = vector.load %arg2[%c0_3, %c0_4, %c0_5] : memref<9x64x64xbf16, #tpu.memory_space<vmem>>, vector<1x64x64xbf16>
    %5 = vector.shape_cast %4 : vector<1x64x64xbf16> to vector<64x64xbf16>
    %cst_6 = arith.constant dense<0.000000e+00> : vector<256x64xf32>
    %6 = tpu.matmul %3, %5, %cst_6 {dimension_numbers = #tpu.dot_dimension_numbers<[1], [0], [0], [1], [0, 0, 1, 1], [], []>} : vector<256x64xbf16>, vector<64x64xbf16>, vector<256x64xf32> -> vector<256x64xf32>
    %7 = arith.addf %0, %6 : vector<256x64xf32>
    %c0_7 = arith.constant 0 : index
    %c0_8 = arith.constant 0 : index
    %c1 = arith.constant 1 : index
    %c0_9 = arith.constant 0 : index
    %8 = vector.load %arg1[%c0_7, %c0_8, %c1, %c0_9] : memref<1x18x18x64xbf16, #tpu.memory_space<vmem>>, vector<1x16x16x64xbf16>
    %9 = vector.shape_cast %8 : vector<1x16x16x64xbf16> to vector<16x16x64xbf16>
    %10 = vector.shape_cast %9 : vector<16x16x64xbf16> to vector<256x64xbf16>
    %c1_10 = arith.constant 1 : index
    %c0_11 = arith.constant 0 : index
    %c0_12 = arith.constant 0 : index
    %11 = vector.load %arg2[%c1_10, %c0_11, %c0_12] : memref<9x64x64xbf16, #tpu.memory_space<vmem>>, vector<1x64x64xbf16>
    %12 = vector.shape_cast %11 : vector<1x64x64xbf16> to vector<64x64xbf16>
    %cst_13 = arith.constant dense<0.000000e+00> : vector<256x64xf32>
    %13 = tpu.matmul %10, %12, %cst_13 {dimension_numbers = #tpu.dot_dimension_numbers<[1], [0], [0], [1], [0, 0, 1, 1], [], []>} : vector<256x64xbf16>, vector<64x64xbf16>, vector<256x64xf32> -> vector<256x64xf32>
    %14 = arith.addf %7, %13 : vector<256x64xf32>
    %c0_14 = arith.constant 0 : index
    %c0_15 = arith.constant 0 : index
    %c2 = arith.constant 2 : index
    %c0_16 = arith.constant 0 : index
    %15 = vector.load %arg1[%c0_14, %c0_15, %c2, %c0_16] : memref<1x18x18x64xbf16, #tpu.memory_space<vmem>>, vector<1x16x16x64xbf16>
    %16 = vector.shape_cast %15 : vector<1x16x16x64xbf16> to vector<16x16x64xbf16>
    %17 = vector.shape_cast %16 : vector<16x16x64xbf16> to vector<256x64xbf16>
    %c2_17 = arith.constant 2 : index
    %c0_18 = arith.constant 0 : index
    %c0_19 = arith.constant 0 : index
    %18 = vector.load %arg2[%c2_17, %c0_18, %c0_19] : memref<9x64x64xbf16, #tpu.memory_space<vmem>>, vector<1x64x64xbf16>
    %19 = vector.shape_cast %18 : vector<1x64x64xbf16> to vector<64x64xbf16>
    %cst_20 = arith.constant dense<0.000000e+00> : vector<256x64xf32>
    %20 = tpu.matmul %17, %19, %cst_20 {dimension_numbers = #tpu.dot_dimension_numbers<[1], [0], [0], [1], [0, 0, 1, 1], [], []>} : vector<256x64xbf16>, vector<64x64xbf16>, vector<256x64xf32> -> vector<256x64xf32>
    %21 = arith.addf %14, %20 : vector<256x64xf32>
    %c0_21 = arith.constant 0 : index
    %c1_22 = arith.constant 1 : index
    %c0_23 = arith.constant 0 : index
    %c0_24 = arith.constant 0 : index
    %22 = vector.load %arg1[%c0_21, %c1_22, %c0_23, %c0_24] : memref<1x18x18x64xbf16, #tpu.memory_space<vmem>>, vector<1x16x16x64xbf16>
    %23 = vector.shape_cast %22 : vector<1x16x16x64xbf16> to vector<16x16x64xbf16>
    %24 = vector.shape_cast %23 : vector<16x16x64xbf16> to vector<256x64xbf16>
    %c3 = arith.constant 3 : index
    %c0_25 = arith.constant 0 : index
    %c0_26 = arith.constant 0 : index
    %25 = vector.load %arg2[%c3, %c0_25, %c0_26] : memref<9x64x64xbf16, #tpu.memory_space<vmem>>, vector<1x64x64xbf16>
    %26 = vector.shape_cast %25 : vector<1x64x64xbf16> to vector<64x64xbf16>
    %cst_27 = arith.constant dense<0.000000e+00> : vector<256x64xf32>
    %27 = tpu.matmul %24, %26, %cst_27 {dimension_numbers = #tpu.dot_dimension_numbers<[1], [0], [0], [1], [0, 0, 1, 1], [], []>} : vector<256x64xbf16>, vector<64x64xbf16>, vector<256x64xf32> -> vector<256x64xf32>
    %28 = arith.addf %21, %27 : vector<256x64xf32>
    %c0_28 = arith.constant 0 : index
    %c1_29 = arith.constant 1 : index
    %c1_30 = arith.constant 1 : index
    %c0_31 = arith.constant 0 : index
    %29 = vector.load %arg1[%c0_28, %c1_29, %c1_30, %c0_31] : memref<1x18x18x64xbf16, #tpu.memory_space<vmem>>, vector<1x16x16x64xbf16>
    %30 = vector.shape_cast %29 : vector<1x16x16x64xbf16> to vector<16x16x64xbf16>
    %31 = vector.shape_cast %30 : vector<16x16x64xbf16> to vector<256x64xbf16>
    %c4 = arith.constant 4 : index
    %c0_32 = arith.constant 0 : index
    %c0_33 = arith.constant 0 : index
    %32 = vector.load %arg2[%c4, %c0_32, %c0_33] : memref<9x64x64xbf16, #tpu.memory_space<vmem>>, vector<1x64x64xbf16>
    %33 = vector.shape_cast %32 : vector<1x64x64xbf16> to vector<64x64xbf16>
    %cst_34 = arith.constant dense<0.000000e+00> : vector<256x64xf32>
    %34 = tpu.matmul %31, %33, %cst_34 {dimension_numbers = #tpu.dot_dimension_numbers<[1], [0], [0], [1], [0, 0, 1, 1], [], []>} : vector<256x64xbf16>, vector<64x64xbf16>, vector<256x64xf32> -> vector<256x64xf32>
    %35 = arith.addf %28, %34 : vector<256x64xf32>
    %c0_35 = arith.constant 0 : index
    %c1_36 = arith.constant 1 : index
    %c2_37 = arith.constant 2 : index
    %c0_38 = arith.constant 0 : index
    %36 = vector.load %arg1[%c0_35, %c1_36, %c2_37, %c0_38] : memref<1x18x18x64xbf16, #tpu.memory_space<vmem>>, vector<1x16x16x64xbf16>
    %37 = vector.shape_cast %36 : vector<1x16x16x64xbf16> to vector<16x16x64xbf16>
    %38 = vector.shape_cast %37 : vector<16x16x64xbf16> to vector<256x64xbf16>
    %c5 = arith.constant 5 : index
    %c0_39 = arith.constant 0 : index
    %c0_40 = arith.constant 0 : index
    %39 = vector.load %arg2[%c5, %c0_39, %c0_40] : memref<9x64x64xbf16, #tpu.memory_space<vmem>>, vector<1x64x64xbf16>
    %40 = vector.shape_cast %39 : vector<1x64x64xbf16> to vector<64x64xbf16>
    %cst_41 = arith.constant dense<0.000000e+00> : vector<256x64xf32>
    %41 = tpu.matmul %38, %40, %cst_41 {dimension_numbers = #tpu.dot_dimension_numbers<[1], [0], [0], [1], [0, 0, 1, 1], [], []>} : vector<256x64xbf16>, vector<64x64xbf16>, vector<256x64xf32> -> vector<256x64xf32>
    %42 = arith.addf %35, %41 : vector<256x64xf32>
    %c0_42 = arith.constant 0 : index
    %c2_43 = arith.constant 2 : index
    %c0_44 = arith.constant 0 : index
    %c0_45 = arith.constant 0 : index
    %43 = vector.load %arg1[%c0_42, %c2_43, %c0_44, %c0_45] : memref<1x18x18x64xbf16, #tpu.memory_space<vmem>>, vector<1x16x16x64xbf16>
    %44 = vector.shape_cast %43 : vector<1x16x16x64xbf16> to vector<16x16x64xbf16>
    %45 = vector.shape_cast %44 : vector<16x16x64xbf16> to vector<256x64xbf16>
    %c6 = arith.constant 6 : index
    %c0_46 = arith.constant 0 : index
    %c0_47 = arith.constant 0 : index
    %46 = vector.load %arg2[%c6, %c0_46, %c0_47] : memref<9x64x64xbf16, #tpu.memory_space<vmem>>, vector<1x64x64xbf16>
    %47 = vector.shape_cast %46 : vector<1x64x64xbf16> to vector<64x64xbf16>
    %cst_48 = arith.constant dense<0.000000e+00> : vector<256x64xf32>
    %48 = tpu.matmul %45, %47, %cst_48 {dimension_numbers = #tpu.dot_dimension_numbers<[1], [0], [0], [1], [0, 0, 1, 1], [], []>} : vector<256x64xbf16>, vector<64x64xbf16>, vector<256x64xf32> -> vector<256x64xf32>
    %49 = arith.addf %42, %48 : vector<256x64xf32>
    %c0_49 = arith.constant 0 : index
    %c2_50 = arith.constant 2 : index
    %c1_51 = arith.constant 1 : index
    %c0_52 = arith.constant 0 : index
    %50 = vector.load %arg1[%c0_49, %c2_50, %c1_51, %c0_52] : memref<1x18x18x64xbf16, #tpu.memory_space<vmem>>, vector<1x16x16x64xbf16>
    %51 = vector.shape_cast %50 : vector<1x16x16x64xbf16> to vector<16x16x64xbf16>
    %52 = vector.shape_cast %51 : vector<16x16x64xbf16> to vector<256x64xbf16>
    %c7 = arith.constant 7 : index
    %c0_53 = arith.constant 0 : index
    %c0_54 = arith.constant 0 : index
    %53 = vector.load %arg2[%c7, %c0_53, %c0_54] : memref<9x64x64xbf16, #tpu.memory_space<vmem>>, vector<1x64x64xbf16>
    %54 = vector.shape_cast %53 : vector<1x64x64xbf16> to vector<64x64xbf16>
    %cst_55 = arith.constant dense<0.000000e+00> : vector<256x64xf32>
    %55 = tpu.matmul %52, %54, %cst_55 {dimension_numbers = #tpu.dot_dimension_numbers<[1], [0], [0], [1], [0, 0, 1, 1], [], []>} : vector<256x64xbf16>, vector<64x64xbf16>, vector<256x64xf32> -> vector<256x64xf32>
    %56 = arith.addf %49, %55 : vector<256x64xf32>
    %c0_56 = arith.constant 0 : index
    %c2_57 = arith.constant 2 : index
    %c2_58 = arith.constant 2 : index
    %c0_59 = arith.constant 0 : index
    %57 = vector.load %arg1[%c0_56, %c2_57, %c2_58, %c0_59] : memref<1x18x18x64xbf16, #tpu.memory_space<vmem>>, vector<1x16x16x64xbf16>
    %58 = vector.shape_cast %57 : vector<1x16x16x64xbf16> to vector<16x16x64xbf16>
    %59 = vector.shape_cast %58 : vector<16x16x64xbf16> to vector<256x64xbf16>
    %c8 = arith.constant 8 : index
    %c0_60 = arith.constant 0 : index
    %c0_61 = arith.constant 0 : index
    %60 = vector.load %arg2[%c8, %c0_60, %c0_61] : memref<9x64x64xbf16, #tpu.memory_space<vmem>>, vector<1x64x64xbf16>
    %61 = vector.shape_cast %60 : vector<1x64x64xbf16> to vector<64x64xbf16>
    %cst_62 = arith.constant dense<0.000000e+00> : vector<256x64xf32>
    %62 = tpu.matmul %59, %61, %cst_62 {dimension_numbers = #tpu.dot_dimension_numbers<[1], [0], [0], [1], [0, 0, 1, 1], [], []>} : vector<256x64xbf16>, vector<64x64xbf16>, vector<256x64xf32> -> vector<256x64xf32>
    %63 = arith.addf %56, %62 : vector<256x64xf32>
    %c0_63 = arith.constant 0 : index
    %c0_64 = arith.constant 0 : index
    %64 = vector.load %arg3[%c0_63, %c0_64] : memref<1x64xf32, #tpu.memory_space<vmem>>, vector<1x64xf32>
    %65 = vector.broadcast %64 : vector<1x64xf32> to vector<256x64xf32>
    %66 = arith.addf %63, %65 : vector<256x64xf32>
    %c0_65 = arith.constant 0 : index
    %c0_66 = arith.constant 0 : index
    %c0_67 = arith.constant 0 : index
    %67 = vector.load %arg4[%c0_65, %c0_66, %c0_67] : memref<1x256x64xbf16, #tpu.memory_space<vmem>>, vector<1x256x64xbf16>
    %68 = vector.shape_cast %67 : vector<1x256x64xbf16> to vector<256x64xbf16>
    %69 = arith.extf %68 : vector<256x64xbf16> to vector<256x64xf32>
    %70 = arith.addf %66, %69 : vector<256x64xf32>
    %cst_68 = arith.constant 0.000000e+00 : f32
    %71 = vector.broadcast %cst_68 : f32 to vector<256x64xf32>
    %72 = arith.maximumf %70, %71 : vector<256x64xf32>
    %73 = arith.truncf %72 : vector<256x64xf32> to vector<256x64xbf16>
    %c0_69 = arith.constant 0 : index
    %c0_70 = arith.constant 0 : index
    %c0_71 = arith.constant 0 : index
    %74 = vector.load %arg5[%c0_69, %c0_70, %c0_71] : memref<1x256x64xbf16, #tpu.memory_space<vmem>>, vector<1x256x64xbf16>
    %75 = vector.shape_cast %74 : vector<1x256x64xbf16> to vector<256x64xbf16>
    %76 = vector.shape_cast %73 : vector<256x64xbf16> to vector<1x256x64xbf16>
    tpu.vector_store %arg5[%c0_69, %c0_70, %c0_71], %76 {strides = array<i32>} : memref<1x256x64xbf16, #tpu.memory_space<vmem>>, vector<1x256x64xbf16>,
    return
  }
  func.func @transform_0(%arg0: i32) -> (i32, i32, i32, i32) {
    %c0_i32 = arith.constant 0 : i32
    %c0_i32_0 = arith.constant 0 : i32
    %c0_i32_1 = arith.constant 0 : i32
    %c0_i32_2 = arith.constant 0 : i32
    return %arg0, %c0_i32, %c0_i32_0, %c0_i32_1 : i32, i32, i32, i32
  }
  func.func @transform_1(%arg0: i32) -> (i32, i32, i32) {
    %c0_i32 = arith.constant 0 : i32
    %c0_i32_0 = arith.constant 0 : i32
    %c0_i32_1 = arith.constant 0 : i32
    %c0_i32_2 = arith.constant 0 : i32
    return %c0_i32, %c0_i32_0, %c0_i32_1 : i32, i32, i32
  }
  func.func @transform_2(%arg0: i32) -> (i32, i32) {
    %c0_i32 = arith.constant 0 : i32
    %c0_i32_0 = arith.constant 0 : i32
    %c0_i32_1 = arith.constant 0 : i32
    return %c0_i32, %c0_i32_0 : i32, i32
  }
  func.func @transform_3(%arg0: i32) -> (i32, i32, i32) {
    %c0_i32 = arith.constant 0 : i32
    %c0_i32_0 = arith.constant 0 : i32
    %c0_i32_1 = arith.constant 0 : i32
    return %arg0, %c0_i32, %c0_i32_0 : i32, i32, i32
  }
  func.func @transform_4(%arg0: i32) -> (i32, i32, i32) {
    %c0_i32 = arith.constant 0 : i32
    %c0_i32_0 = arith.constant 0 : i32
    %c0_i32_1 = arith.constant 0 : i32
    return %arg0, %c0_i32, %c0_i32_0 : i32, i32, i32
  }
}

</mosaic_0001>

<llo_original>
// kernel: ncgm_forward.8
$region0: #{ncgm_forward.8}
  #allocation0 [shape = 'u32[]', space=smem, size = 0x4, offset = 0x4, fixed_abs, tag = 'smem constant byte address 0x4 - core index']
  #allocation1 [shape = 'u32[144,128]{1,0:T(1,128)}', space=vmem, size = 0x12000, scoped, tag = 'internal scratch']
  %s0 = inlined_call_operand.vmem [shape: bf16[2048,147], index: 0, kind: input, shape index: {}]
  %s1 = inlined_call_operand.vmem [shape: bf16[147,64], index: 1, kind: input, shape index: {}]
  %s2 = inlined_call_operand.vmem [shape: f32[1,64], index: 2, kind: input, shape index: {}]
  %s3 = inlined_call_operand.vmem [shape: bf16[2048,64], index: 3, kind: output, shape index: {}]
  %s4 = sld [smem:[#allocation0]]
  $region45: #{ncgm_forward.8} parent=0
    _
  %s6 = ssub.s32 1, %s4
  %s7 = scalar_select 0, %s6, %s4
  loop: start=0, step=1, limit=4
  $region2: #{ncgm_forward.8} parent=0 // loop_pre_header
    _
  $region3: #{ncgm_forward.8} parent=0 // loop_header
    %s9 = sphi 0, %s13
    %p10 = scmp.ge.s32.totalorder %s9, 4
    %s19 = sphi 0, %s21
    %s22 = sphi 0, %s19
    %s23 = sphi 0, %s22
    %s39 = sphi 0, %s23
    %s43 = sphi 0, %s43
    %s45 = sphi 0, %s43
    %s46 = sphi 0, %s45
    %s60 = sphi 0, %s46
    %s64 = sphi 0, %s64
    %s66 = sphi 0, %s64
    %s67 = sphi 0, %s66
    %s81 = sphi 0, %s67
    %s87 = sphi 0, %s89
    %s90 = sphi 0, %s87
    %s91 = sphi 0, %s90
    %s107 = sphi 0, %s91
  $region4: #{ncgm_forward.8} parent=0 // loop_header_branch
    %12 = sbr.rel (%p10) target = $region8
  $region5: #{ncgm_forward.8} parent=0 // loop_body
    %s14 = ssub.s32 %s9, 1
    %s15 = ssub.s32 %s9, 2
    %s16 = sadd.s32 %s9, 1
    %s17 = ssub.s32 %s9, %s16
    %p18 = scmp.eq.s32.totalorder %s17, 0
    %s20 = sadd.s32 %s19, 1
    %s21 = scalar_select %p18, %s19, %s20
    %p24 = pneg %p18
    %p25 = scmp.eq.s32.totalorder %s9, 1
    %p26 = por %p24, %p25
    %p27 = scmp.ne.s32.totalorder %s19, %s22
    %p28 = scmp.eq.s32.totalorder %s9, 0
    %p29 = por %p27, %p28
    %p30 = scmp.ne.s32.totalorder %s19, %s22
    %p31 = scmp.eq.s32.totalorder %s14, 1
    %p32 = por %p30, %p31
    %p33 = scmp.ne.s32.totalorder %s22, %s23
    %p34 = scmp.eq.s32.totalorder %s14, 0
    %p35 = por %p33, %p34
    %p36 = scmp.ne.s32.totalorder %s22, %s23
    %p37 = scmp.eq.s32.totalorder %s15, 1
    %p38 = por %p36, %p37
    %p40 = scmp.ne.s32.totalorder %s23, %s39
    %p41 = scmp.eq.s32.totalorder %s15, 0
    %p42 = por %p40, %p41
    %s44 = sadd.s32 %s43, 1
    %p47 = scmp.eq.s32.totalorder %s9, 1
    %p48 = scmp.ne.s32.totalorder %s43, %s45
    %p49 = scmp.eq.s32.totalorder %s9, 0
    %p50 = por %p48, %p49
    %p51 = scmp.ne.s32.totalorder %s43, %s45
    %p52 = scmp.eq.s32.totalorder %s14, 1
    %p53 = por %p51, %p52
    %p54 = scmp.ne.s32.totalorder %s45, %s46
    %p55 = scmp.eq.s32.totalorder %s14, 0
    %p56 = por %p54, %p55
    %p57 = scmp.ne.s32.totalorder %s45, %s46
    %p58 = scmp.eq.s32.totalorder %s15, 1
    %p59 = por %p57, %p58
    %p61 = scmp.ne.s32.totalorder %s46, %s60
    %p62 = scmp.eq.s32.totalorder %s15, 0
    %p63 = por %p61, %p62
    %s65 = sadd.s32 %s64, 1
    %p68 = scmp.eq.s32.totalorder %s9, 1
    %p69 = scmp.ne.s32.totalorder %s64, %s66
    %p70 = scmp.eq.s32.totalorder %s9, 0
    %p71 = por %p69, %p70
    %p72 = scmp.ne.s32.totalorder %s64, %s66
    %p73 = scmp.eq.s32.totalorder %s14, 1
    %p74 = por %p72, %p73
    %p75 = scmp.ne.s32.totalorder %s66, %s67
    %p76 = scmp.eq.s32.totalorder %s14, 0
    %p77 = por %p75, %p76
    %p78 = scmp.ne.s32.totalorder %s66, %s67
    %p79 = scmp.eq.s32.totalorder %s15, 1
    %p80 = por %p78, %p79
    %p82 = scmp.ne.s32.totalorder %s67, %s81
    %p83 = scmp.eq.s32.totalorder %s15, 0
    %p84 = por %p82, %p83
    %s85 = ssub.s32 %s9, %s16
    %p86 = scmp.eq.s32.totalorder %s85, 0
    %s88 = sadd.s32 %s87, 1
    %s89 = scalar_select %p86, %s87, %s88
    %p92 = pneg %p86
    %p93 = scmp.eq.s32.totalorder %s9, 1
    %p94 = por %p92, %p93
    %p95 = scmp.ne.s32.totalorder %s87, %s90
    %p96 = scmp.eq.s32.totalorder %s9, 0
    %p97 = por %p95, %p96
    %p98 = scmp.ne.s32.totalorder %s87, %s90
    %p99 = scmp.eq.s32.totalorder %s14, 1
    %p100 = por %p98, %p99
    %p101 = scmp.ne.s32.totalorder %s90, %s91
    %p102 = scmp.eq.s32.totalorder %s14, 0
    %p103 = por %p101, %p102
    %p104 = scmp.ne.s32.totalorder %s90, %s91
    %p105 = scmp.eq.s32.totalorder %s15, 1
    %p106 = por %p104, %p105
    %p108 = scmp.ne.s32.totalorder %s91, %s107
    %p109 = scmp.eq.s32.totalorder %s15, 0
    %p110 = por %p108, %p109
    %p111 = scmp.le.s32.totalorder 1, %s9
    %p112 = scmp.lt.s32.totalorder %s9, 3
    %p113 = pnand %p111, %p112
    %p114 = pneg %p113
    // Predicated region
    $region9: #{ncgm_forward.8} parent=5 // pred_check
      _
    $region10: #{ncgm_forward.8} parent=5 // pred_check_branch
      %116 = sbr.rel (%p113) target = $region12
    $region11: #{ncgm_forward.8} parent=5 // pred_region
      %s117 = ssub.s32 %s9, 1
      // Predicated region
      $region13: #{ncgm_forward.8} parent=11 // pred_check
        %p118 = pneg %p56
      $region14: #{ncgm_forward.8} parent=11 // pred_check_branch
        %120 = sbr.rel (%p118) target = $region16
      $region15: #{ncgm_forward.8} parent=11 // pred_region
        _
      $region16: #{ncgm_forward.8} parent=11 // pred_fallthru
        _
      // Predicated region
      $region17: #{ncgm_forward.8} parent=11 // pred_check
        %p121 = pneg %p77
      $region18: #{ncgm_forward.8} parent=11 // pred_check_branch
        %123 = sbr.rel (%p121) target = $region20
      $region19: #{ncgm_forward.8} parent=11 // pred_region
        _
      $region20: #{ncgm_forward.8} parent=11 // pred_fallthru
        _
    $region12: #{ncgm_forward.8} parent=5 // pred_fallthru
      _
    %p124 = scmp.lt.s32.totalorder %s9, 2
    // Predicated region
    $region21: #{ncgm_forward.8} parent=5 // pred_check
      %p125 = pneg %p124
    $region22: #{ncgm_forward.8} parent=5 // pred_check_branch
      %127 = sbr.rel (%p125) target = $region24
    $region23: #{ncgm_forward.8} parent=5 // pred_region
      // Predicated region
      $region25: #{ncgm_forward.8} parent=23 // pred_check
        %p128 = pneg %p29
      $region26: #{ncgm_forward.8} parent=23 // pred_check_branch
        %130 = sbr.rel (%p128) target = $region28
      $region27: #{ncgm_forward.8} parent=23 // pred_region
        %s131 = smul.u32 128, %s9
        %p132 = scmp.lt.s32.totalorder %s131, 255
        %s133 = scalar_select %p132, %s131, 255
        %s134 = smul.addr %s133, 2
        %s135 = smul.addr %s134, 4
        %s136 = scalar_lea.vmem %s0, %s135
        %s137 = smul.u32 128, %s9
      $region28: #{ncgm_forward.8} parent=23 // pred_fallthru
        _
    $region24: #{ncgm_forward.8} parent=5 // pred_fallthru
      _
    %p138 = scmp.le.s32.totalorder 1, %s9
    %p139 = scmp.lt.s32.totalorder %s9, 3
    %p140 = pnand %p138, %p139
    %p141 = pneg %p140
    // Predicated region
    $region29: #{ncgm_forward.8} parent=5 // pred_check
      _
    $region30: #{ncgm_forward.8} parent=5 // pred_check_branch
      %143 = sbr.rel (%p140) target = $region32
    $region31: #{ncgm_forward.8} parent=5 // pred_region
      %s144 = ssub.s32 %s9, 1
      %s145 = smul.u32 128, %s14
      %p146 = scmp.lt.s32.totalorder %s145, 255
      %s147 = scalar_select %p146, %s145, 255
      %s148 = smul.addr %s147, 2
      %s149 = smul.addr %s148, 4
      %s150 = scalar_lea.vmem %s0, %s149
      %p151 = pneg %p35
      %p152 = pneg %p32
      %p153 = pneg %p56
      %p154 = pneg %p53
      %p155 = pneg %p77
      %p156 = pneg %p74
      %p157 = pneg %p103
      %p158 = pneg %p100
      %s159 = smul.u32 128, %s14
      %p160 = scmp.lt.s32.totalorder %s159, 255
      %s161 = scalar_select %p160, %s159, 255
      %s162 = smul.addr %s161, 4
      %s163 = scalar_lea.vmem %s3, %s162
      %s164 = smul.u32 128, %s14
      %p165 = scmp.lt.s32.totalorder %s164, 255
      %s166 = scalar_select %p165, %s164, 255
      %s167 = smul.addr %s166, 2
      %s168 = smul.addr %s167, 4
      %s169 = scalar_lea.vmem %s0, %s168
      %s170 = smul.u32 128, %s14
      %s171 = smul.u32 128, %s14
      %p172 = scmp.lt.s32.totalorder %s171, 255
      %s173 = scalar_select %p172, %s171, 255
      %s174 = smul.addr %s173, 4
      %s175 = scalar_lea.vmem %s3, %s174
      %s176 = smul.u32 128, %s14
      %v178 = vld [vmem:[%s169] sm:$0xff]
      %v179 = vld [vmem:[%s169 + $0x8] sm:$0xff]
      %v180 = vld [vmem:[%s169 + $0x10] sm:$0xff]
      %v181 = vld [vmem:[%s169 + $0x18] sm:$0xff]
      %v182 = vld [vmem:[%s169 + $0x20] sm:$0xff]
      %v183 = vld [vmem:[%s169 + $0x28] sm:$0xff]
      %v184 = vld [vmem:[%s169 + $0x30] sm:$0xff]
      %v185 = vld [vmem:[%s169 + $0x38] sm:$0xff]
      %v186 = vld [vmem:[%s169 + $0x40] sm:$0xff]
      %v187 = vld [vmem:[%s169 + $0x48] sm:$0xff]
      %v188 = vld [vmem:[%s169 + $0x50] sm:$0xff]
      %v189 = vld [vmem:[%s169 + $0x58] sm:$0xff]
      %v190 = vld [vmem:[%s169 + $0x60] sm:$0xff]
      %v191 = vld [vmem:[%s169 + $0x68] sm:$0xff]
      %v192 = vld [vmem:[%s169 + $0x70] sm:$0xff]
      %v193 = vld [vmem:[%s169 + $0x78] sm:$0xff]
      %v194 = vld [vmem:[%s169 + $0x80] sm:$0xff]
      %v195 = vld [vmem:[%s169 + $0x88] sm:$0xff]
      %v196 = vld [vmem:[%s169 + $0x90] sm:$0xff]
      %v197 = vld [vmem:[%s169 + $0x98] sm:$0xff]
      %v198 = vld [vmem:[%s169 + $0xa0] sm:$0xff]
      %v199 = vld [vmem:[%s169 + $0xa8] sm:$0xff]
      %v200 = vld [vmem:[%s169 + $0xb0] sm:$0xff]
      %v201 = vld [vmem:[%s169 + $0xb8] sm:$0xff]
      %v202 = vld [vmem:[%s169 + $0xc0] sm:$0xff]
      %v203 = vld [vmem:[%s169 + $0xc8] sm:$0xff]
      %v204 = vld [vmem:[%s169 + $0xd0] sm:$0xff]
      %v205 = vld [vmem:[%s169 + $0xd8] sm:$0xff]
      %v206 = vld [vmem:[%s169 + $0xe0] sm:$0xff]
      %v207 = vld [vmem:[%s169 + $0xe8] sm:$0xff]
      %v208 = vld [vmem:[%s169 + $0xf0] sm:$0xff]
      %v209 = vld [vmem:[%s169 + $0xf8] sm:$0xff]
      %v210 = vld [vmem:[%s169 + $0x100] sm:$0xff]
      %v211 = vld [vmem:[%s169 + $0x108] sm:$0xff]
      %v212 = vld [vmem:[%s169 + $0x110] sm:$0xff]
      %v213 = vld [vmem:[%s169 + $0x118] sm:$0xff]
      %v214 = vld [vmem:[%s169 + $0x120] sm:$0xff]
      %v215 = vld [vmem:[%s169 + $0x128] sm:$0xff]
      %v216 = vld [vmem:[%s169 + $0x130] sm:$0xff]
      %v217 = vld [vmem:[%s169 + $0x138] sm:$0xff]
      %v218 = vld [vmem:[%s169 + $0x140] sm:$0xff]
      %v219 = vld [vmem:[%s169 + $0x148] sm:$0xff]
      %v220 = vld [vmem:[%s169 + $0x150] sm:$0xff]
      %v221 = vld [vmem:[%s169 + $0x158] sm:$0xff]
      %v222 = vld [vmem:[%s169 + $0x160] sm:$0xff]
      %v223 = vld [vmem:[%s169 + $0x168] sm:$0xff]
      %v224 = vld [vmem:[%s169 + $0x170] sm:$0xff]
      %v225 = vld [vmem:[%s169 + $0x178] sm:$0xff]
      %v226 = vld [vmem:[%s169 + $0x180] sm:$0xff]
      %v227 = vld [vmem:[%s169 + $0x188] sm:$0xff]
      %v228 = vld [vmem:[%s169 + $0x190] sm:$0xff]
      %v229 = vld [vmem:[%s169 + $0x198] sm:$0xff]
      %v230 = vld [vmem:[%s169 + $0x1a0] sm:$0xff]
      %v231 = vld [vmem:[%s169 + $0x1a8] sm:$0xff]
      %v232 = vld [vmem:[%s169 + $0x1b0] sm:$0xff]
      %v233 = vld [vmem:[%s169 + $0x1b8] sm:$0xff]
      %v234 = vld [vmem:[%s169 + $0x1c0] sm:$0xff]
      %v235 = vld [vmem:[%s169 + $0x1c8] sm:$0xff]
      %v236 = vld [vmem:[%s169 + $0x1d0] sm:$0xff]
      %v237 = vld [vmem:[%s169 + $0x1d8] sm:$0xff]
      %v238 = vld [vmem:[%s169 + $0x1e0] sm:$0xff]
      %v239 = vld [vmem:[%s169 + $0x1e8] sm:$0xff]
      %v240 = vld [vmem:[%s169 + $0x1f0] sm:$0xff]
      %v241 = vld [vmem:[%s169 + $0x1f8] sm:$0xff]
      %v242 = vld [vmem:[%s169 + $0x200] sm:$0xff]
      %v243 = vld [vmem:[%s169 + $0x208] sm:$0xff]
      %v244 = vld [vmem:[%s169 + $0x210] sm:$0xff]
      %v245 = vld [vmem:[%s169 + $0x218] sm:$0xff]
      %v246 = vld [vmem:[%s169 + $0x220] sm:$0xff]
      %v247 = vld [vmem:[%s169 + $0x228] sm:$0xff]
      %v248 = vld [vmem:[%s169 + $0x230] sm:$0xff]
      %v249 = vld [vmem:[%s169 + $0x238] sm:$0xff]
      %v250 = vld [vmem:[%s169 + $0x240] sm:$0xff]
      %v251 = vld [vmem:[%s169 + $0x248] sm:$0xff]
      %v252 = vld [vmem:[%s169 + $0x250] sm:$0xff]
      %v253 = vld [vmem:[%s169 + $0x258] sm:$0xff]
      %v254 = vld [vmem:[%s169 + $0x260] sm:$0xff]
      %v255 = vld [vmem:[%s169 + $0x268] sm:$0xff]
      %v256 = vld [vmem:[%s169 + $0x270] sm:$0xff]
      %v257 = vld [vmem:[%s169 + $0x278] sm:$0xff]
      %v258 = vld [vmem:[%s169 + $0x280] sm:$0xff]
      %v259 = vld [vmem:[%s169 + $0x288] sm:$0xff]
      %v260 = vld [vmem:[%s169 + $0x290] sm:$0xff]
      %v261 = vld [vmem:[%s169 + $0x298] sm:$0xff]
      %v262 = vld [vmem:[%s169 + $0x2a0] sm:$0xff]
      %v263 = vld [vmem:[%s169 + $0x2a8] sm:$0xff]
      %v264 = vld [vmem:[%s169 + $0x2b0] sm:$0xff]
      %v265 = vld [vmem:[%s169 + $0x2b8] sm:$0xff]
      %v266 = vld [vmem:[%s169 + $0x2c0] sm:$0xff]
      %v267 = vld [vmem:[%s169 + $0x2c8] sm:$0xff]
      %v268 = vld [vmem:[%s169 + $0x2d0] sm:$0xff]
      %v269 = vld [vmem:[%s169 + $0x2d8] sm:$0xff]
      %v270 = vld [vmem:[%s169 + $0x2e0] sm:$0xff]
      %v271 = vld [vmem:[%s169 + $0x2e8] sm:$0xff]
      %v272 = vld [vmem:[%s169 + $0x2f0] sm:$0xff]
      %v273 = vld [vmem:[%s169 + $0x2f8] sm:$0xff]
      %v274 = vld [vmem:[%s169 + $0x300] sm:$0xff]
      %v275 = vld [vmem:[%s169 + $0x308] sm:$0xff]
      %v276 = vld [vmem:[%s169 + $0x310] sm:$0xff]
      %v277 = vld [vmem:[%s169 + $0x318] sm:$0xff]
      %v278 = vld [vmem:[%s169 + $0x320] sm:$0xff]
      %v279 = vld [vmem:[%s169 + $0x328] sm:$0xff]
      %v280 = vld [vmem:[%s169 + $0x330] sm:$0xff]
      %v281 = vld [vmem:[%s169 + $0x338] sm:$0xff]
      %v282 = vld [vmem:[%s169 + $0x340] sm:$0xff]
      %v283 = vld [vmem:[%s169 + $0x348] sm:$0xff]
      %v284 = vld [vmem:[%s169 + $0x350] sm:$0xff]
      %v285 = vld [vmem:[%s169 + $0x358] sm:$0xff]
      %v286 = vld [vmem:[%s169 + $0x360] sm:$0xff]
      %v287 = vld [vmem:[%s169 + $0x368] sm:$0xff]
      %v288 = vld [vmem:[%s169 + $0x370] sm:$0xff]
      %v289 = vld [vmem:[%s169 + $0x378] sm:$0xff]
      %v290 = vld [vmem:[%s169 + $0x380] sm:$0xff]
      %v291 = vld [vmem:[%s169 + $0x388] sm:$0xff]
      %v292 = vld [vmem:[%s169 + $0x390] sm:$0xff]
      %v293 = vld [vmem:[%s169 + $0x398] sm:$0xff]
      %v294 = vld [vmem:[%s169 + $0x3a0] sm:$0xff]
      %v295 = vld [vmem:[%s169 + $0x3a8] sm:$0xff]
      %v296 = vld [vmem:[%s169 + $0x3b0] sm:$0xff]
      %v297 = vld [vmem:[%s169 + $0x3b8] sm:$0xff]
      %v298 = vld [vmem:[%s169 + $0x3c0] sm:$0xff]
      %v299 = vld [vmem:[%s169 + $0x3c8] sm:$0xff]
      %v300 = vld [vmem:[%s169 + $0x3d0] sm:$0xff]
      %v301 = vld [vmem:[%s169 + $0x3d8] sm:$0xff]
      %v302 = vld [vmem:[%s169 + $0x3e0] sm:$0xff]
      %v303 = vld [vmem:[%s169 + $0x3e8] sm:$0xff]
      %v304 = vld [vmem:[%s169 + $0x3f0] sm:$0xff]
      %v305 = vld [vmem:[%s169 + $0x3f8] sm:$0xff]
      %v306 = vld [vmem:[%s1] sm:$0xf]
      %v307 = vld [vmem:[%s1 + $0x4] sm:$0xf]
      %v308 = vld [vmem:[%s1 + $0x8] sm:$0xf]
      %v309 = vld [vmem:[%s1 + $0xc] sm:$0xf]
      %v310 = vld [vmem:[%s1 + $0x10] sm:$0xf]
      %v311 = vld [vmem:[%s1 + $0x14] sm:$0xf]
      %v312 = vld [vmem:[%s1 + $0x18] sm:$0xf]
      %v313 = vld [vmem:[%s1 + $0x1c] sm:$0xf]
      %v314 = vld [vmem:[%s1 + $0x20] sm:$0xf]
      %v315 = vld [vmem:[%s1 + $0x24] sm:$0xf]
      %v316 = vld [vmem:[%s1 + $0x28] sm:$0xf]
      %v317 = vld [vmem:[%s1 + $0x2c] sm:$0xf]
      %v318 = vld [vmem:[%s1 + $0x30] sm:$0xf]
      %v319 = vld [vmem:[%s1 + $0x34] sm:$0xf]
      %v320 = vld [vmem:[%s1 + $0x38] sm:$0xf]
      %v321 = vld [vmem:[%s1 + $0x3c] sm:$0xf]
      %v322 = vld [vmem:[%s1 + $0x40] sm:$0xf]
      %v323 = vld [vmem:[%s1 + $0x44] sm:$0xf]
      %v324 = vld [vmem:[%s1 + $0x48] sm:$0x3]
      %v325 = vld [vmem:[%s2] sm:$0x1]
      %v327 = vlaneseq
      %v328 = vshrl.u32 %v327, 7
      %v329 = vsub.s32 0, %v328
      %v330 = vrot.slane %v325, %v329
      %v460 = vunpack.c.l.b16 %v178
      %v461 = vunpack.c.h.b16 %v178
      %v462 = vunpack.c.l.b16 %v179
      %v463 = vunpack.c.h.b16 %v179
      %v464 = vunpack.c.l.b16 %v180
      %v465 = vunpack.c.h.b16 %v180
      %v466 = vunpack.c.l.b16 %v181
      %v467 = vunpack.c.h.b16 %v181
      %v468 = vunpack.c.l.b16 %v182
      %v469 = vunpack.c.h.b16 %v182
      %v470 = vunpack.c.l.b16 %v183
      %v471 = vunpack.c.h.b16 %v183
      %v472 = vunpack.c.l.b16 %v184
      %v473 = vunpack.c.h.b16 %v184
      %v474 = vunpack.c.l.b16 %v185
      %v475 = vunpack.c.h.b16 %v185
      %v476 = vunpack.c.l.b16 %v186
      %v477 = vunpack.c.h.b16 %v186
      %v478 = vunpack.c.l.b16 %v187
      %v479 = vunpack.c.h.b16 %v187
      %v480 = vunpack.c.l.b16 %v188
      %v481 = vunpack.c.h.b16 %v188
      %v482 = vunpack.c.l.b16 %v189
      %v483 = vunpack.c.h.b16 %v189
      %v484 = vunpack.c.l.b16 %v190
      %v485 = vunpack.c.h.b16 %v190
      %v486 = vunpack.c.l.b16 %v191
      %v487 = vunpack.c.h.b16 %v191
      %v488 = vunpack.c.l.b16 %v192
      %v489 = vunpack.c.h.b16 %v192
      %v490 = vunpack.c.l.b16 %v193
      %v491 = vunpack.c.h.b16 %v193
      %v492 = vunpack.c.l.b16 %v194
      %v493 = vunpack.c.h.b16 %v194
      %v494 = vunpack.c.l.b16 %v195
      %v495 = vunpack.c.h.b16 %v195
      %v496 = vunpack.c.l.b16 %v196
      %v497 = vunpack.c.h.b16 %v196
      %v498 = vunpack.c.l.b16 %v197
      %v499 = vunpack.c.h.b16 %v197
      %v500 = vunpack.c.l.b16 %v198
      %v501 = vunpack.c.h.b16 %v198
      %v502 = vunpack.c.l.b16 %v199
      %v503 = vunpack.c.h.b16 %v199
      %v504 = vunpack.c.l.b16 %v200
      %v505 = vunpack.c.h.b16 %v200
      %v506 = vunpack.c.l.b16 %v201
      %v507 = vunpack.c.h.b16 %v201
      %v508 = vunpack.c.l.b16 %v202
      %v509 = vunpack.c.h.b16 %v202
      %v510 = vunpack.c.l.b16 %v203
      %v511 = vunpack.c.h.b16 %v203
      %v512 = vunpack.c.l.b16 %v204
      %v513 = vunpack.c.h.b16 %v204
      %v514 = vunpack.c.l.b16 %v205
      %v515 = vunpack.c.h.b16 %v205
      %v516 = vunpack.c.l.b16 %v206
      %v517 = vunpack.c.h.b16 %v206
      %v518 = vunpack.c.l.b16 %v207
      %v519 = vunpack.c.h.b16 %v207
      %v520 = vunpack.c.l.b16 %v208
      %v521 = vunpack.c.h.b16 %v208
      %v522 = vunpack.c.l.b16 %v209
      %v523 = vunpack.c.h.b16 %v209
      %v524 = vunpack.c.l.b16 %v210
      %v525 = vunpack.c.h.b16 %v210
      %v526 = vunpack.c.l.b16 %v211
      %v527 = vunpack.c.h.b16 %v211
      %v528 = vunpack.c.l.b16 %v212
      %v529 = vunpack.c.h.b16 %v212
      %v530 = vunpack.c.l.b16 %v213
      %v531 = vunpack.c.h.b16 %v213
      %v532 = vunpack.c.l.b16 %v214
      %v533 = vunpack.c.h.b16 %v214
      %v534 = vunpack.c.l.b16 %v215
      %v535 = vunpack.c.h.b16 %v215
      %v536 = vunpack.c.l.b16 %v216
      %v537 = vunpack.c.h.b16 %v216
      %v538 = vunpack.c.l.b16 %v217
      %v539 = vunpack.c.h.b16 %v217
      %v540 = vunpack.c.l.b16 %v218
      %v541 = vunpack.c.h.b16 %v218
      %v542 = vunpack.c.l.b16 %v219
      %v543 = vunpack.c.h.b16 %v219
      %v544 = vunpack.c.l.b16 %v220
      %v545 = vunpack.c.h.b16 %v220
      %v546 = vunpack.c.l.b16 %v221
      %v547 = vunpack.c.h.b16 %v221
      %v548 = vunpack.c.l.b16 %v222
      %v549 = vunpack.c.h.b16 %v222
      %v550 = vunpack.c.l.b16 %v223
      %v551 = vunpack.c.h.b16 %v223
      %v552 = vunpack.c.l.b16 %v224
      %v553 = vunpack.c.h.b16 %v224
      %v554 = vunpack.c.l.b16 %v225
      %v555 = vunpack.c.h.b16 %v225
      %v556 = vunpack.c.l.b16 %v226
      %v557 = vunpack.c.h.b16 %v226
      %v558 = vunpack.c.l.b16 %v227
      %v559 = vunpack.c.h.b16 %v227
      %v560 = vunpack.c.l.b16 %v228
      %v561 = vunpack.c.h.b16 %v228
      %v562 = vunpack.c.l.b16 %v229
      %v563 = vunpack.c.h.b16 %v229
      %v564 = vunpack.c.l.b16 %v230
      %v565 = vunpack.c.h.b16 %v230
      %v566 = vunpack.c.l.b16 %v231
      %v567 = vunpack.c.h.b16 %v231
      %v568 = vunpack.c.l.b16 %v232
      %v569 = vunpack.c.h.b16 %v232
      %v570 = vunpack.c.l.b16 %v233
      %v571 = vunpack.c.h.b16 %v233
      %v572 = vunpack.c.l.b16 %v234
      %v573 = vunpack.c.h.b16 %v234
      %v574 = vunpack.c.l.b16 %v235
      %v575 = vunpack.c.h.b16 %v235
      %v576 = vunpack.c.l.b16 %v236
      %v577 = vunpack.c.h.b16 %v236
      %v578 = vunpack.c.l.b16 %v237
      %v579 = vunpack.c.h.b16 %v237
      %v580 = vunpack.c.l.b16 %v238
      %v581 = vunpack.c.h.b16 %v238
      %v582 = vunpack.c.l.b16 %v239
      %v583 = vunpack.c.h.b16 %v239
      %v584 = vunpack.c.l.b16 %v240
      %v585 = vunpack.c.h.b16 %v240
      %v586 = vunpack.c.l.b16 %v241
      %v587 = vunpack.c.h.b16 %v241
      %v588 = vunpack.c.l.b16 %v242
      %v589 = vunpack.c.h.b16 %v242
      %v590 = vunpack.c.l.b16 %v243
      %v591 = vunpack.c.h.b16 %v243
      %v592 = vunpack.c.l.b16 %v244
      %v593 = vunpack.c.h.b16 %v244
      %v594 = vunpack.c.l.b16 %v245
      %v595 = vunpack.c.h.b16 %v245
      %v596 = vunpack.c.l.b16 %v246
      %v597 = vunpack.c.h.b16 %v246
      %v598 = vunpack.c.l.b16 %v247
      %v599 = vunpack.c.h.b16 %v247
      %v600 = vunpack.c.l.b16 %v248
      %v601 = vunpack.c.h.b16 %v248
      %v602 = vunpack.c.l.b16 %v249
      %v603 = vunpack.c.h.b16 %v249
      %v604 = vunpack.c.l.b16 %v250
      %v605 = vunpack.c.h.b16 %v250
      %v606 = vunpack.c.l.b16 %v251
      %v607 = vunpack.c.h.b16 %v251
      %v608 = vunpack.c.l.b16 %v252
      %v609 = vunpack.c.h.b16 %v252
      %v610 = vunpack.c.l.b16 %v253
      %v611 = vunpack.c.h.b16 %v253
      %v612 = vunpack.c.l.b16 %v254
      %v613 = vunpack.c.h.b16 %v254
      %v614 = vunpack.c.l.b16 %v255
      %v615 = vunpack.c.h.b16 %v255
      %v616 = vunpack.c.l.b16 %v256
      %v617 = vunpack.c.h.b16 %v256
      %v618 = vunpack.c.l.b16 %v257
      %v619 = vunpack.c.h.b16 %v257
      %v620 = vunpack.c.l.b16 %v258
      %v621 = vunpack.c.h.b16 %v258
      %v622 = vunpack.c.l.b16 %v259
      %v623 = vunpack.c.h.b16 %v259
      %v624 = vunpack.c.l.b16 %v260
      %v625 = vunpack.c.h.b16 %v260
      %v626 = vunpack.c.l.b16 %v261
      %v627 = vunpack.c.h.b16 %v261
      %v628 = vunpack.c.l.b16 %v262
      %v629 = vunpack.c.h.b16 %v262
      %v630 = vunpack.c.l.b16 %v263
      %v631 = vunpack.c.h.b16 %v263
      %v632 = vunpack.c.l.b16 %v264
      %v633 = vunpack.c.h.b16 %v264
      %v634 = vunpack.c.l.b16 %v265
      %v635 = vunpack.c.h.b16 %v265
      %v636 = vunpack.c.l.b16 %v266
      %v637 = vunpack.c.h.b16 %v266
      %v638 = vunpack.c.l.b16 %v267
      %v639 = vunpack.c.h.b16 %v267
      %v640 = vunpack.c.l.b16 %v268
      %v641 = vunpack.c.h.b16 %v268
      %v642 = vunpack.c.l.b16 %v269
      %v643 = vunpack.c.h.b16 %v269
      %v644 = vunpack.c.l.b16 %v270
      %v645 = vunpack.c.h.b16 %v270
      %v646 = vunpack.c.l.b16 %v271
      %v647 = vunpack.c.h.b16 %v271
      %v648 = vunpack.c.l.b16 %v272
      %v649 = vunpack.c.h.b16 %v272
      %v650 = vunpack.c.l.b16 %v273
      %v651 = vunpack.c.h.b16 %v273
      %v652 = vunpack.c.l.b16 %v274
      %v653 = vunpack.c.h.b16 %v274
      %v654 = vunpack.c.l.b16 %v275
      %v655 = vunpack.c.h.b16 %v275
      %v656 = vunpack.c.l.b16 %v276
      %v657 = vunpack.c.h.b16 %v276
      %v658 = vunpack.c.l.b16 %v277
      %v659 = vunpack.c.h.b16 %v277
      %v660 = vunpack.c.l.b16 %v278
      %v661 = vunpack.c.h.b16 %v278
      %v662 = vunpack.c.l.b16 %v279
      %v663 = vunpack.c.h.b16 %v279
      %v664 = vunpack.c.l.b16 %v280
      %v665 = vunpack.c.h.b16 %v280
      %v666 = vunpack.c.l.b16 %v281
      %v667 = vunpack.c.h.b16 %v281
      %v668 = vunpack.c.l.b16 %v282
      %v669 = vunpack.c.h.b16 %v282
      %v670 = vunpack.c.l.b16 %v283
      %v671 = vunpack.c.h.b16 %v283
      %v672 = vunpack.c.l.b16 %v284
      %v673 = vunpack.c.h.b16 %v284
      %v674 = vunpack.c.l.b16 %v285
      %v675 = vunpack.c.h.b16 %v285
      %v676 = vunpack.c.l.b16 %v286
      %v677 = vunpack.c.h.b16 %v286
      %v678 = vunpack.c.l.b16 %v287
      %v679 = vunpack.c.h.b16 %v287
      %v680 = vunpack.c.l.b16 %v288
      %v681 = vunpack.c.h.b16 %v288
      %v682 = vunpack.c.l.b16 %v289
      %v683 = vunpack.c.h.b16 %v289
      %v684 = vunpack.c.l.b16 %v290
      %v685 = vunpack.c.h.b16 %v290
      %v686 = vunpack.c.l.b16 %v291
      %v687 = vunpack.c.h.b16 %v291
      %v688 = vunpack.c.l.b16 %v292
      %v689 = vunpack.c.h.b16 %v292
      %v690 = vunpack.c.l.b16 %v293
      %v691 = vunpack.c.h.b16 %v293
      %v692 = vunpack.c.l.b16 %v294
      %v693 = vunpack.c.h.b16 %v294
      %v694 = vunpack.c.l.b16 %v295
      %v695 = vunpack.c.h.b16 %v295
      %v696 = vunpack.c.l.b16 %v296
      %v697 = vunpack.c.h.b16 %v296
      %v698 = vunpack.c.l.b16 %v297
      %v699 = vunpack.c.h.b16 %v297
      %v700 = vunpack.c.l.b16 %v298
      %v701 = vunpack.c.h.b16 %v298
      %v702 = vunpack.c.l.b16 %v299
      %v703 = vunpack.c.h.b16 %v299
      %v704 = vunpack.c.l.b16 %v300
      %v705 = vunpack.c.h.b16 %v300
      %v706 = vunpack.c.l.b16 %v301
      %v707 = vunpack.c.h.b16 %v301
      %v708 = vunpack.c.l.b16 %v302
      %v709 = vunpack.c.h.b16 %v302
      %v710 = vunpack.c.l.b16 %v303
      %v711 = vunpack.c.h.b16 %v303
      %v712 = vunpack.c.l.b16 %v304
      %v713 = vunpack.c.h.b16 %v304
      %v714 = vunpack.c.l.b16 %v305
      %v715 = vunpack.c.h.b16 %v305
      %v716 = vpack.c.b16 %v462, %v460
      %v717 = vpack.c.b16 %v463, %v461
      %v718 = vpack.c.b16 %v466, %v464
      %v719 = vpack.c.b16 %v467, %v465
      %v720 = vpack.c.b16 %v470, %v468
      %v721 = vpack.c.b16 %v471, %v469
      %v722 = vpack.c.b16 %v474, %v472
      %v723 = vpack.c.b16 %v475, %v473
      %v724 = vpack.c.b16 %v478, %v476
      %v725 = vpack.c.b16 %v479, %v477
      %v726 = vpack.c.b16 %v482, %v480
      %v727 = vpack.c.b16 %v483, %v481
      %v728 = vpack.c.b16 %v486, %v484
      %v729 = vpack.c.b16 %v487, %v485
      %v730 = vpack.c.b16 %v490, %v488
      %v731 = vpack.c.b16 %v491, %v489
      %v732 = vpack.c.b16 %v494, %v492
      %v733 = vpack.c.b16 %v495, %v493
      %v734 = vpack.c.b16 %v498, %v496
      %v735 = vpack.c.b16 %v499, %v497
      %v736 = vpack.c.b16 %v502, %v500
      %v737 = vpack.c.b16 %v503, %v501
      %v738 = vpack.c.b16 %v506, %v504
      %v739 = vpack.c.b16 %v507, %v505
      %v740 = vpack.c.b16 %v510, %v508
      %v741 = vpack.c.b16 %v511, %v509
      %v742 = vpack.c.b16 %v514, %v512
      %v743 = vpack.c.b16 %v515, %v513
      %v744 = vpack.c.b16 %v518, %v516
      %v745 = vpack.c.b16 %v519, %v517
      %v746 = vpack.c.b16 %v522, %v520
      %v747 = vpack.c.b16 %v523, %v521
      %v748 = vpack.c.b16 %v526, %v524
      %v749 = vpack.c.b16 %v527, %v525
      %v750 = vpack.c.b16 %v530, %v528
      %v751 = vpack.c.b16 %v531, %v529
      %v752 = vpack.c.b16 %v534, %v532
      %v753 = vpack.c.b16 %v535, %v533
      %v754 = vpack.c.b16 %v538, %v536
      %v755 = vpack.c.b16 %v539, %v537
      %v756 = vpack.c.b16 %v542, %v540
      %v757 = vpack.c.b16 %v543, %v541
      %v758 = vpack.c.b16 %v546, %v544
      %v759 = vpack.c.b16 %v547, %v545
      %v760 = vpack.c.b16 %v550, %v548
      %v761 = vpack.c.b16 %v551, %v549
      %v762 = vpack.c.b16 %v554, %v552
      %v763 = vpack.c.b16 %v555, %v553
      %v764 = vpack.c.b16 %v558, %v556
      %v765 = vpack.c.b16 %v559, %v557
      %v766 = vpack.c.b16 %v562, %v560
      %v767 = vpack.c.b16 %v563, %v561
      %v768 = vpack.c.b16 %v566, %v564
      %v769 = vpack.c.b16 %v567, %v565
      %v770 = vpack.c.b16 %v570, %v568
      %v771 = vpack.c.b16 %v571, %v569
      %v772 = vpack.c.b16 %v574, %v572
      %v773 = vpack.c.b16 %v575, %v573
      %v774 = vpack.c.b16 %v578, %v576
      %v775 = vpack.c.b16 %v579, %v577
      %v776 = vpack.c.b16 %v582, %v580
      %v777 = vpack.c.b16 %v583, %v581
      %v778 = vpack.c.b16 %v586, %v584
      %v779 = vpack.c.b16 %v587, %v585
      %v780 = vpack.c.b16 %v590, %v588
      %v781 = vpack.c.b16 %v591, %v589
      %v782 = vpack.c.b16 %v594, %v592
      %v783 = vpack.c.b16 %v595, %v593
      %v784 = vpack.c.b16 %v598, %v596
      %v785 = vpack.c.b16 %v599, %v597
      %v786 = vpack.c.b16 %v602, %v600
      %v787 = vpack.c.b16 %v603, %v601
      %v788 = vpack.c.b16 %v606, %v604
      %v789 = vpack.c.b16 %v607, %v605
      %v790 = vpack.c.b16 %v610, %v608
      %v791 = vpack.c.b16 %v611, %v609
      %v792 = vpack.c.b16 %v614, %v612
      %v793 = vpack.c.b16 %v615, %v613
      %v794 = vpack.c.b16 %v618, %v616
      %v795 = vpack.c.b16 %v619, %v617
      %v796 = vpack.c.b16 %v622, %v620
      %v797 = vpack.c.b16 %v623, %v621
      %v798 = vpack.c.b16 %v626, %v624
      %v799 = vpack.c.b16 %v627, %v625
      %v800 = vpack.c.b16 %v630, %v628
      %v801 = vpack.c.b16 %v631, %v629
      %v802 = vpack.c.b16 %v634, %v632
      %v803 = vpack.c.b16 %v635, %v633
      %v804 = vpack.c.b16 %v638, %v636
      %v805 = vpack.c.b16 %v639, %v637
      %v806 = vpack.c.b16 %v642, %v640
      %v807 = vpack.c.b16 %v643, %v641
      %v808 = vpack.c.b16 %v646, %v644
      %v809 = vpack.c.b16 %v647, %v645
      %v810 = vpack.c.b16 %v650, %v648
      %v811 = vpack.c.b16 %v651, %v649
      %v812 = vpack.c.b16 %v654, %v652
      %v813 = vpack.c.b16 %v655, %v653
      %v814 = vpack.c.b16 %v658, %v656
      %v815 = vpack.c.b16 %v659, %v657
      %v816 = vpack.c.b16 %v662, %v660
      %v817 = vpack.c.b16 %v663, %v661
      %v818 = vpack.c.b16 %v666, %v664
      %v819 = vpack.c.b16 %v667, %v665
      %v820 = vpack.c.b16 %v670, %v668
      %v821 = vpack.c.b16 %v671, %v669
      %v822 = vpack.c.b16 %v674, %v672
      %v823 = vpack.c.b16 %v675, %v673
      %v824 = vpack.c.b16 %v678, %v676
      %v825 = vpack.c.b16 %v679, %v677
      %v826 = vpack.c.b16 %v682, %v680
      %v827 = vpack.c.b16 %v683, %v681
      %v828 = vpack.c.b16 %v686, %v684
      %v829 = vpack.c.b16 %v687, %v685
      %v830 = vpack.c.b16 %v690, %v688
      %v831 = vpack.c.b16 %v691, %v689
      %v832 = vpack.c.b16 %v694, %v692
      %v833 = vpack.c.b16 %v695, %v693
      %v834 = vpack.c.b16 %v698, %v696
      %v835 = vpack.c.b16 %v699, %v697
      %v836 = vpack.c.b16 %v702, %v700
      %v837 = vpack.c.b16 %v703, %v701
      %v838 = vpack.c.b16 %v706, %v704
      %v839 = vpack.c.b16 %v707, %v705
      %v840 = vpack.c.b16 %v710, %v708
      %v841 = vpack.c.b16 %v711, %v709
      %v842 = vpack.c.b16 %v714, %v712
      %v843 = vpack.c.b16 %v715, %v713
      %v927 = vunpack.c.l.b16 %v306
      %v928 = vunpack.c.l.b16 %v307
      %v929 = vunpack.c.l.b16 %v308
      %v930 = vunpack.c.l.b16 %v309
      %v931 = vunpack.c.l.b16 %v310
      %v932 = vunpack.c.l.b16 %v311
      %v933 = vunpack.c.l.b16 %v312
      %v934 = vunpack.c.l.b16 %v313
      %v935 = vunpack.c.l.b16 %v314
      %v936 = vunpack.c.l.b16 %v315
      %v937 = vunpack.c.l.b16 %v316
      %v938 = vunpack.c.l.b16 %v317
      %v939 = vunpack.c.l.b16 %v318
      %v940 = vunpack.c.l.b16 %v319
      %v941 = vunpack.c.l.b16 %v320
      %v942 = vunpack.c.l.b16 %v321
      %v943 = vunpack.c.l.b16 %v322
      %v944 = vunpack.c.l.b16 %v323
      %v945 = vunpack.c.l.b16 %v324
      %v946 = vpack.c.b16 %v928, %v927
      %v947 = vpack.c.b16 %v930, %v929
      %v948 = vpack.c.b16 %v932, %v931
      %v949 = vpack.c.b16 %v934, %v933
      %v950 = vpack.c.b16 %v936, %v935
      %v951 = vpack.c.b16 %v938, %v937
      %v952 = vpack.c.b16 %v940, %v939
      %v953 = vpack.c.b16 %v942, %v941
      %v954 = vpack.c.b16 %v944, %v943
      %v955 = vpack.c.b16 %v945, %v945
      %vm965 = vcmask 154624
      %v967 = vsel %vm965, %v717, 0
      %v970 = vsel %vm965, %v719, 0
      %v973 = vsel %vm965, %v721, 0
      %v976 = vsel %vm965, %v723, 0
      %v979 = vsel %vm965, %v725, 0
      %v982 = vsel %vm965, %v727, 0
      %v985 = vsel %vm965, %v729, 0
      %v988 = vsel %vm965, %v731, 0
      %v991 = vsel %vm965, %v733, 0
      %v994 = vsel %vm965, %v735, 0
      %v997 = vsel %vm965, %v737, 0
      %v1000 = vsel %vm965, %v739, 0
      %v1003 = vsel %vm965, %v741, 0
      %v1006 = vsel %vm965, %v743, 0
      %v1009 = vsel %vm965, %v745, 0
      %v1012 = vsel %vm965, %v747, 0
      %v1015 = vsel %vm965, %v749, 0
      %v1018 = vsel %vm965, %v751, 0
      %v1021 = vsel %vm965, %v753, 0
      %v1024 = vsel %vm965, %v755, 0
      %v1027 = vsel %vm965, %v757, 0
      %v1030 = vsel %vm965, %v759, 0
      %v1033 = vsel %vm965, %v761, 0
      %v1036 = vsel %vm965, %v763, 0
      %v1039 = vsel %vm965, %v765, 0
      %v1042 = vsel %vm965, %v767, 0
      %v1045 = vsel %vm965, %v769, 0
      %v1048 = vsel %vm965, %v771, 0
      %v1051 = vsel %vm965, %v773, 0
      %v1054 = vsel %vm965, %v775, 0
      %v1057 = vsel %vm965, %v777, 0
      %v1060 = vsel %vm965, %v779, 0
      %v1063 = vsel %vm965, %v781, 0
      %v1066 = vsel %vm965, %v783, 0
      %v1069 = vsel %vm965, %v785, 0
      %v1072 = vsel %vm965, %v787, 0
      %v1075 = vsel %vm965, %v789, 0
      %v1078 = vsel %vm965, %v791, 0
      %v1081 = vsel %vm965, %v793, 0
      %v1084 = vsel %vm965, %v795, 0
      %v1087 = vsel %vm965, %v797, 0
      %v1090 = vsel %vm965, %v799, 0
      %v1093 = vsel %vm965, %v801, 0
      %v1096 = vsel %vm965, %v803, 0
      %v1099 = vsel %vm965, %v805, 0
      %v1102 = vsel %vm965, %v807, 0
      %v1105 = vsel %vm965, %v809, 0
      %v1108 = vsel %vm965, %v811, 0
      %v1111 = vsel %vm965, %v813, 0
      %v1114 = vsel %vm965, %v815, 0
      %v1117 = vsel %vm965, %v817, 0
      %v1120 = vsel %vm965, %v819, 0
      %v1123 = vsel %vm965, %v821, 0
      %v1126 = vsel %vm965, %v823, 0
      %v1129 = vsel %vm965, %v825, 0
      %v1132 = vsel %vm965, %v827, 0
      %v1135 = vsel %vm965, %v829, 0
      %v1138 = vsel %vm965, %v831, 0
      %v1141 = vsel %vm965, %v833, 0
      %v1144 = vsel %vm965, %v835, 0
      %v1147 = vsel %vm965, %v837, 0
      %v1150 = vsel %vm965, %v839, 0
      %v1153 = vsel %vm965, %v841, 0
      %v1156 = vsel %vm965, %v843, 0
      %vm1158 = vcmask 1040384
      %vm1159 = vcmask 1041408
      %v1160 = vsel %vm1158, 4294967295, 65535
      %v1161 = vsel %vm1159, %v1160, 0
      %v1163 = vand.u32 %v955, %v1161
      %1165 = vmatprep.subr.bf16.mxu0 0
      %1166 = vmatpush1.bf16.msra.mxu0 %v953
      %1167 = vmatprep.subr.bf16.mxu0 0
      %1168 = vmatpush1.bf16.msra.mxu0 %v952
      %1169 = vmatprep.subr.bf16.mxu0 0
      %1170 = vmatpush1.bf16.msra.mxu0 %v951
      %1171 = vmatprep.subr.bf16.mxu0 0
      %1172 = vmatpush1.bf16.msra.mxu0 %v950
      %1173 = vmatprep.subr.bf16.mxu0 0
      %1174 = vmatpush1.bf16.msra.mxu0 %v949
      %1175 = vmatprep.subr.bf16.mxu0 0
      %1176 = vmatpush1.bf16.msra.mxu0 %v948
      %1177 = vmatprep.subr.bf16.mxu0 0
      %1178 = vmatpush1.bf16.msra.mxu0 %v947
      %1179 = vmatprep.subr.bf16.mxu0 0
      %1180 = vmatpush1.bf16.msra.mxu0 %v946
      %1181 = vmatprep.subr.bf16.mxu0 0
      %1182 = vmatpush2.bf16.msra.mxu0 0
      %1183 = vmatprep.subr.bf16.mxu0 0
      %1184 = vmatpush2.bf16.msra.mxu0 0
      %1185 = vmatprep.subr.bf16.mxu0 0
      %1186 = vmatpush2.bf16.msra.mxu0 0
      %1187 = vmatprep.subr.bf16.mxu0 0
      %1188 = vmatpush2.bf16.msra.mxu0 0
      %1189 = vmatprep.subr.bf16.mxu0 0
      %1190 = vmatpush2.bf16.msra.mxu0 0
      %1191 = vmatprep.subr.bf16.mxu0 0
      %1192 = vmatpush2.bf16.msra.mxu0 0
      %1193 = vmatprep.subr.bf16.mxu0 0
      %1194 = vmatpush2.bf16.msra.mxu0 %v1163
      %1195 = vmatprep.subr.bf16.mxu0 0
      %1196 = vmatpush2.bf16.msra.mxu0 %v954
      %1197 = vmatprep.mubr.bf16.mxu0 %v967
      %1198 = vmatmul.mubr.bf16.gmra.mxu0 %v716
      %v1199 = vpop.f32.mrf.mxu0
      %v1200 = vadd.f32 %v330, %v1199
      %v1201 = vpop.f32.mrf.mxu0
      %v1202 = vpop.f32.mrf.mxu0
      %v1203 = vadd.f32 %v330, %v1202
      %v1204 = vpop.f32.mrf.mxu0
      %1205 = vmatprep.mubr.bf16.mxu0 %v970
      %1206 = vmatmul.mubr.bf16.gmra.mxu0 %v718
      %v1207 = vpop.f32.mrf.mxu0
      %v1208 = vadd.f32 %v330, %v1207
      %v1209 = vpop.f32.mrf.mxu0
      %v1210 = vpop.f32.mrf.mxu0
      %v1211 = vadd.f32 %v330, %v1210
      %v1212 = vpop.f32.mrf.mxu0
      %1213 = vmatprep.mubr.bf16.mxu0 %v973
      %1214 = vmatmul.mubr.bf16.gmra.mxu0 %v720
      %v1215 = vpop.f32.mrf.mxu0
      %v1216 = vadd.f32 %v330, %v1215
      %v1217 = vpop.f32.mrf.mxu0
      %v1218 = vpop.f32.mrf.mxu0
      %v1219 = vadd.f32 %v330, %v1218
      %v1220 = vpop.f32.mrf.mxu0
      %1221 = vmatprep.mubr.bf16.mxu0 %v976
      %1222 = vmatmul.mubr.bf16.gmra.mxu0 %v722
      %v1223 = vpop.f32.mrf.mxu0
      %v1224 = vadd.f32 %v330, %v1223
      %v1225 = vpop.f32.mrf.mxu0
      %v1226 = vpop.f32.mrf.mxu0
      %v1227 = vadd.f32 %v330, %v1226
      %v1228 = vpop.f32.mrf.mxu0
      %1229 = vmatprep.mubr.bf16.mxu0 %v979
      %1230 = vmatmul.mubr.bf16.gmra.mxu0 %v724
      %v1231 = vpop.f32.mrf.mxu0
      %v1232 = vadd.f32 %v330, %v1231
      %v1233 = vpop.f32.mrf.mxu0
      %v1234 = vpop.f32.mrf.mxu0
      %v1235 = vadd.f32 %v330, %v1234
      %v1236 = vpop.f32.mrf.mxu0
      %1237 = vmatprep.mubr.bf16.mxu0 %v982
      %1238 = vmatmul.mubr.bf16.gmra.mxu0 %v726
      %v1239 = vpop.f32.mrf.mxu0
      %v1240 = vadd.f32 %v330, %v1239
      %v1241 = vpop.f32.mrf.mxu0
      %v1242 = vpop.f32.mrf.mxu0
      %v1243 = vadd.f32 %v330, %v1242
      %v1244 = vpop.f32.mrf.mxu0
      %1245 = vmatprep.mubr.bf16.mxu0 %v985
      %1246 = vmatmul.mubr.bf16.gmra.mxu0 %v728
      %v1247 = vpop.f32.mrf.mxu0
      %v1248 = vadd.f32 %v330, %v1247
      %v1249 = vpop.f32.mrf.mxu0
      %v1250 = vpop.f32.mrf.mxu0
      %v1251 = vadd.f32 %v330, %v1250
      %v1252 = vpop.f32.mrf.mxu0
      %1253 = vmatprep.mubr.bf16.mxu0 %v988
      %1254 = vmatmul.mubr.bf16.gmra.mxu0 %v730
      %v1255 = vpop.f32.mrf.mxu0
      %v1256 = vadd.f32 %v330, %v1255
      %v1257 = vpop.f32.mrf.mxu0
      %v1258 = vpop.f32.mrf.mxu0
      %v1259 = vadd.f32 %v330, %v1258
      %v1260 = vpop.f32.mrf.mxu0
      %1261 = vmatprep.mubr.bf16.mxu0 %v991
      %1262 = vmatmul.mubr.bf16.gmra.mxu0 %v732
      %v1263 = vpop.f32.mrf.mxu0
      %v1264 = vadd.f32 %v330, %v1263
      %v1265 = vpop.f32.mrf.mxu0
      %v1266 = vpop.f32.mrf.mxu0
      %v1267 = vadd.f32 %v330, %v1266
      %v1268 = vpop.f32.mrf.mxu0
      %1269 = vmatprep.mubr.bf16.mxu0 %v994
      %1270 = vmatmul.mubr.bf16.gmra.mxu0 %v734
      %v1271 = vpop.f32.mrf.mxu0
      %v1272 = vadd.f32 %v330, %v1271
      %v1273 = vpop.f32.mrf.mxu0
      %v1274 = vpop.f32.mrf.mxu0
      %v1275 = vadd.f32 %v330, %v1274
      %v1276 = vpop.f32.mrf.mxu0
      %1277 = vmatprep.mubr.bf16.mxu0 %v997
      %1278 = vmatmul.mubr.bf16.gmra.mxu0 %v736
      %v1279 = vpop.f32.mrf.mxu0
      %v1280 = vadd.f32 %v330, %v1279
      %v1281 = vpop.f32.mrf.mxu0
      %v1282 = vpop.f32.mrf.mxu0
      %v1283 = vadd.f32 %v330, %v1282
      %v1284 = vpop.f32.mrf.mxu0
      %1285 = vmatprep.mubr.bf16.mxu0 %v1000
      %1286 = vmatmul.mubr.bf16.gmra.mxu0 %v738
      %v1287 = vpop.f32.mrf.mxu0
      %v1288 = vadd.f32 %v330, %v1287
      %v1289 = vpop.f32.mrf.mxu0
      %v1290 = vpop.f32.mrf.mxu0
      %v1291 = vadd.f32 %v330, %v1290
      %v1292 = vpop.f32.mrf.mxu0
      %1293 = vmatprep.mubr.bf16.mxu0 %v1003
      %1294 = vmatmul.mubr.bf16.gmra.mxu0 %v740
      %v1295 = vpop.f32.mrf.mxu0
      %v1296 = vadd.f32 %v330, %v1295
      %v1297 = vpop.f32.mrf.mxu0
      %v1298 = vpop.f32.mrf.mxu0
      %v1299 = vadd.f32 %v330, %v1298
      %v1300 = vpop.f32.mrf.mxu0
      %1301 = vmatprep.mubr.bf16.mxu0 %v1006
      %1302 = vmatmul.mubr.bf16.gmra.mxu0 %v742
      %v1303 = vpop.f32.mrf.mxu0
      %v1304 = vadd.f32 %v330, %v1303
      %v1305 = vpop.f32.mrf.mxu0
      %v1306 = vpop.f32.mrf.mxu0
      %v1307 = vadd.f32 %v330, %v1306
      %v1308 = vpop.f32.mrf.mxu0
      %1309 = vmatprep.mubr.bf16.mxu0 %v1009
      %1310 = vmatmul.mubr.bf16.gmra.mxu0 %v744
      %v1311 = vpop.f32.mrf.mxu0
      %v1312 = vadd.f32 %v330, %v1311
      %v1313 = vpop.f32.mrf.mxu0
      %v1314 = vpop.f32.mrf.mxu0
      %v1315 = vadd.f32 %v330, %v1314
      %v1316 = vpop.f32.mrf.mxu0
      %1317 = vmatprep.mubr.bf16.mxu0 %v1012
      %1318 = vmatmul.mubr.bf16.gmra.mxu0 %v746
      %v1319 = vpop.f32.mrf.mxu0
      %v1320 = vadd.f32 %v330, %v1319
      %v1321 = vpop.f32.mrf.mxu0
      %v1322 = vpop.f32.mrf.mxu0
      %v1323 = vadd.f32 %v330, %v1322
      %v1324 = vpop.f32.mrf.mxu0
      %1325 = vmatprep.mubr.bf16.mxu0 %v1015
      %1326 = vmatmul.mubr.bf16.gmra.mxu0 %v748
      %v1327 = vpop.f32.mrf.mxu0
      %v1328 = vadd.f32 %v330, %v1327
      %v1329 = vpop.f32.mrf.mxu0
      %v1330 = vpop.f32.mrf.mxu0
      %v1331 = vadd.f32 %v330, %v1330
      %v1332 = vpop.f32.mrf.mxu0
      %1333 = vmatprep.mubr.bf16.mxu0 %v1018
      %1334 = vmatmul.mubr.bf16.gmra.mxu0 %v750
      %v1335 = vpop.f32.mrf.mxu0
      %v1336 = vadd.f32 %v330, %v1335
      %v1337 = vpop.f32.mrf.mxu0
      %v1338 = vpop.f32.mrf.mxu0
      %v1339 = vadd.f32 %v330, %v1338
      %v1340 = vpop.f32.mrf.mxu0
      %1341 = vmatprep.mubr.bf16.mxu0 %v1021
      %1342 = vmatmul.mubr.bf16.gmra.mxu0 %v752
      %v1343 = vpop.f32.mrf.mxu0
      %v1344 = vadd.f32 %v330, %v1343
      %v1345 = vpop.f32.mrf.mxu0
      %v1346 = vpop.f32.mrf.mxu0
      %v1347 = vadd.f32 %v330, %v1346
      %v1348 = vpop.f32.mrf.mxu0
      %1349 = vmatprep.mubr.bf16.mxu0 %v1024
      %1350 = vmatmul.mubr.bf16.gmra.mxu0 %v754
      %v1351 = vpop.f32.mrf.mxu0
      %v1352 = vadd.f32 %v330, %v1351
      %v1353 = vpop.f32.mrf.mxu0
      %v1354 = vpop.f32.mrf.mxu0
      %v1355 = vadd.f32 %v330, %v1354
      %v1356 = vpop.f32.mrf.mxu0
      %1357 = vmatprep.mubr.bf16.mxu0 %v1027
      %1358 = vmatmul.mubr.bf16.gmra.mxu0 %v756
      %v1359 = vpop.f32.mrf.mxu0
      %v1360 = vadd.f32 %v330, %v1359
      %v1361 = vpop.f32.mrf.mxu0
      %v1362 = vpop.f32.mrf.mxu0
      %v1363 = vadd.f32 %v330, %v1362
      %v1364 = vpop.f32.mrf.mxu0
      %1365 = vmatprep.mubr.bf16.mxu0 %v1030
      %1366 = vmatmul.mubr.bf16.gmra.mxu0 %v758
      %v1367 = vpop.f32.mrf.mxu0
      %v1368 = vadd.f32 %v330, %v1367
      %v1369 = vpop.f32.mrf.mxu0
      %v1370 = vpop.f32.mrf.mxu0
      %v1371 = vadd.f32 %v330, %v1370
      %v1372 = vpop.f32.mrf.mxu0
      %1373 = vmatprep.mubr.bf16.mxu0 %v1033
      %1374 = vmatmul.mubr.bf16.gmra.mxu0 %v760
      %v1375 = vpop.f32.mrf.mxu0
      %v1376 = vadd.f32 %v330, %v1375
      %v1377 = vpop.f32.mrf.mxu0
      %v1378 = vpop.f32.mrf.mxu0
      %v1379 = vadd.f32 %v330, %v1378
      %v1380 = vpop.f32.mrf.mxu0
      %1381 = vmatprep.mubr.bf16.mxu0 %v1036
      %1382 = vmatmul.mubr.bf16.gmra.mxu0 %v762
      %v1383 = vpop.f32.mrf.mxu0
      %v1384 = vadd.f32 %v330, %v1383
      %v1385 = vpop.f32.mrf.mxu0
      %v1386 = vpop.f32.mrf.mxu0
      %v1387 = vadd.f32 %v330, %v1386
      %v1388 = vpop.f32.mrf.mxu0
      %1389 = vmatprep.mubr.bf16.mxu0 %v1039
      %1390 = vmatmul.mubr.bf16.gmra.mxu0 %v764
      %v1391 = vpop.f32.mrf.mxu0
      %v1392 = vadd.f32 %v330, %v1391
      %v1393 = vpop.f32.mrf.mxu0
      %v1394 = vpop.f32.mrf.mxu0
      %v1395 = vadd.f32 %v330, %v1394
      %v1396 = vpop.f32.mrf.mxu0
      %1397 = vmatprep.mubr.bf16.mxu0 %v1042
      %1398 = vmatmul.mubr.bf16.gmra.mxu0 %v766
      %v1399 = vpop.f32.mrf.mxu0
      %v1400 = vadd.f32 %v330, %v1399
      %v1401 = vpop.f32.mrf.mxu0
      %v1402 = vpop.f32.mrf.mxu0
      %v1403 = vadd.f32 %v330, %v1402
      %v1404 = vpop.f32.mrf.mxu0
      %1405 = vmatprep.mubr.bf16.mxu0 %v1045
      %1406 = vmatmul.mubr.bf16.gmra.mxu0 %v768
      %v1407 = vpop.f32.mrf.mxu0
      %v1408 = vadd.f32 %v330, %v1407
      %v1409 = vpop.f32.mrf.mxu0
      %v1410 = vpop.f32.mrf.mxu0
      %v1411 = vadd.f32 %v330, %v1410
      %v1412 = vpop.f32.mrf.mxu0
      %1413 = vmatprep.mubr.bf16.mxu0 %v1048
      %1414 = vmatmul.mubr.bf16.gmra.mxu0 %v770
      %v1415 = vpop.f32.mrf.mxu0
      %v1416 = vadd.f32 %v330, %v1415
      %v1417 = vpop.f32.mrf.mxu0
      %v1418 = vpop.f32.mrf.mxu0
      %v1419 = vadd.f32 %v330, %v1418
      %v1420 = vpop.f32.mrf.mxu0
      %1421 = vmatprep.mubr.bf16.mxu0 %v1051
      %1422 = vmatmul.mubr.bf16.gmra.mxu0 %v772
      %v1423 = vpop.f32.mrf.mxu0
      %v1424 = vadd.f32 %v330, %v1423
      %v1425 = vpop.f32.mrf.mxu0
      %v1426 = vpop.f32.mrf.mxu0
      %v1427 = vadd.f32 %v330, %v1426
      %v1428 = vpop.f32.mrf.mxu0
      %1429 = vmatprep.mubr.bf16.mxu0 %v1054
      %1430 = vmatmul.mubr.bf16.gmra.mxu0 %v774
      %v1431 = vpop.f32.mrf.mxu0
      %v1432 = vadd.f32 %v330, %v1431
      %v1433 = vpop.f32.mrf.mxu0
      %v1434 = vpop.f32.mrf.mxu0
      %v1435 = vadd.f32 %v330, %v1434
      %v1436 = vpop.f32.mrf.mxu0
      %1437 = vmatprep.mubr.bf16.mxu0 %v1057
      %1438 = vmatmul.mubr.bf16.gmra.mxu0 %v776
      %v1439 = vpop.f32.mrf.mxu0
      %v1440 = vadd.f32 %v330, %v1439
      %v1441 = vpop.f32.mrf.mxu0
      %v1442 = vpop.f32.mrf.mxu0
      %v1443 = vadd.f32 %v330, %v1442
      %v1444 = vpop.f32.mrf.mxu0
      %1445 = vmatprep.mubr.bf16.mxu0 %v1060
      %1446 = vmatmul.mubr.bf16.gmra.mxu0 %v778
      %v1447 = vpop.f32.mrf.mxu0
      %v1448 = vadd.f32 %v330, %v1447
      %v1449 = vpop.f32.mrf.mxu0
      %v1450 = vpop.f32.mrf.mxu0
      %v1451 = vadd.f32 %v330, %v1450
      %v1452 = vpop.f32.mrf.mxu0
      %1453 = vmatprep.mubr.bf16.mxu0 %v1063
      %1454 = vmatmul.mubr.bf16.gmra.mxu0 %v780
      %v1455 = vpop.f32.mrf.mxu0
      %v1456 = vadd.f32 %v330, %v1455
      %v1457 = vpop.f32.mrf.mxu0
      %v1458 = vpop.f32.mrf.mxu0
      %v1459 = vadd.f32 %v330, %v1458
      %v1460 = vpop.f32.mrf.mxu0
      %1461 = vmatprep.mubr.bf16.mxu0 %v1066
      %1462 = vmatmul.mubr.bf16.gmra.mxu0 %v782
      %v1463 = vpop.f32.mrf.mxu0
      %v1464 = vadd.f32 %v330, %v1463
      %v1465 = vpop.f32.mrf.mxu0
      %v1466 = vpop.f32.mrf.mxu0
      %v1467 = vadd.f32 %v330, %v1466
      %v1468 = vpop.f32.mrf.mxu0
      %1469 = vmatprep.mubr.bf16.mxu0 %v1069
      %1470 = vmatmul.mubr.bf16.gmra.mxu0 %v784
      %v1471 = vpop.f32.mrf.mxu0
      %v1472 = vadd.f32 %v330, %v1471
      %v1473 = vpop.f32.mrf.mxu0
      %v1474 = vpop.f32.mrf.mxu0
      %v1475 = vadd.f32 %v330, %v1474
      %v1476 = vpop.f32.mrf.mxu0
      %1477 = vmatprep.mubr.bf16.mxu0 %v1072
      %1478 = vmatmul.mubr.bf16.gmra.mxu0 %v786
      %v1479 = vpop.f32.mrf.mxu0
      %v1480 = vadd.f32 %v330, %v1479
      %v1481 = vpop.f32.mrf.mxu0
      %v1482 = vpop.f32.mrf.mxu0
      %v1483 = vadd.f32 %v330, %v1482
      %v1484 = vpop.f32.mrf.mxu0
      %1485 = vmatprep.mubr.bf16.mxu0 %v1075
      %1486 = vmatmul.mubr.bf16.gmra.mxu0 %v788
      %v1487 = vpop.f32.mrf.mxu0
      %v1488 = vadd.f32 %v330, %v1487
      %v1489 = vpop.f32.mrf.mxu0
      %v1490 = vpop.f32.mrf.mxu0
      %v1491 = vadd.f32 %v330, %v1490
      %v1492 = vpop.f32.mrf.mxu0
      %1493 = vmatprep.mubr.bf16.mxu0 %v1078
      %1494 = vmatmul.mubr.bf16.gmra.mxu0 %v790
      %v1495 = vpop.f32.mrf.mxu0
      %v1496 = vadd.f32 %v330, %v1495
      %v1497 = vpop.f32.mrf.mxu0
      %v1498 = vpop.f32.mrf.mxu0
      %v1499 = vadd.f32 %v330, %v1498
      %v1500 = vpop.f32.mrf.mxu0
      %1501 = vmatprep.mubr.bf16.mxu0 %v1081
      %1502 = vmatmul.mubr.bf16.gmra.mxu0 %v792
      %v1503 = vpop.f32.mrf.mxu0
      %v1504 = vadd.f32 %v330, %v1503
      %v1505 = vpop.f32.mrf.mxu0
      %v1506 = vpop.f32.mrf.mxu0
      %v1507 = vadd.f32 %v330, %v1506
      %v1508 = vpop.f32.mrf.mxu0
      %1509 = vmatprep.mubr.bf16.mxu0 %v1084
      %1510 = vmatmul.mubr.bf16.gmra.mxu0 %v794
      %v1511 = vpop.f32.mrf.mxu0
      %v1512 = vadd.f32 %v330, %v1511
      %v1513 = vpop.f32.mrf.mxu0
      %v1514 = vpop.f32.mrf.mxu0
      %v1515 = vadd.f32 %v330, %v1514
      %v1516 = vpop.f32.mrf.mxu0
      %1517 = vmatprep.mubr.bf16.mxu0 %v1087
      %1518 = vmatmul.mubr.bf16.gmra.mxu0 %v796
      %v1519 = vpop.f32.mrf.mxu0
      %v1520 = vadd.f32 %v330, %v1519
      %v1521 = vpop.f32.mrf.mxu0
      %v1522 = vpop.f32.mrf.mxu0
      %v1523 = vadd.f32 %v330, %v1522
      %v1524 = vpop.f32.mrf.mxu0
      %1525 = vmatprep.mubr.bf16.mxu0 %v1090
      %1526 = vmatmul.mubr.bf16.gmra.mxu0 %v798
      %v1527 = vpop.f32.mrf.mxu0
      %v1528 = vadd.f32 %v330, %v1527
      %v1529 = vpop.f32.mrf.mxu0
      %v1530 = vpop.f32.mrf.mxu0
      %v1531 = vadd.f32 %v330, %v1530
      %v1532 = vpop.f32.mrf.mxu0
      %1533 = vmatprep.mubr.bf16.mxu0 %v1093
      %1534 = vmatmul.mubr.bf16.gmra.mxu0 %v800
      %v1535 = vpop.f32.mrf.mxu0
      %v1536 = vadd.f32 %v330, %v1535
      %v1537 = vpop.f32.mrf.mxu0
      %v1538 = vpop.f32.mrf.mxu0
      %v1539 = vadd.f32 %v330, %v1538
      %v1540 = vpop.f32.mrf.mxu0
      %1541 = vmatprep.mubr.bf16.mxu0 %v1096
      %1542 = vmatmul.mubr.bf16.gmra.mxu0 %v802
      %v1543 = vpop.f32.mrf.mxu0
      %v1544 = vadd.f32 %v330, %v1543
      %v1545 = vpop.f32.mrf.mxu0
      %v1546 = vpop.f32.mrf.mxu0
      %v1547 = vadd.f32 %v330, %v1546
      %v1548 = vpop.f32.mrf.mxu0
      %1549 = vmatprep.mubr.bf16.mxu0 %v1099
      %1550 = vmatmul.mubr.bf16.gmra.mxu0 %v804
      %v1551 = vpop.f32.mrf.mxu0
      %v1552 = vadd.f32 %v330, %v1551
      %v1553 = vpop.f32.mrf.mxu0
      %v1554 = vpop.f32.mrf.mxu0
      %v1555 = vadd.f32 %v330, %v1554
      %v1556 = vpop.f32.mrf.mxu0
      %1557 = vmatprep.mubr.bf16.mxu0 %v1102
      %1558 = vmatmul.mubr.bf16.gmra.mxu0 %v806
      %v1559 = vpop.f32.mrf.mxu0
      %v1560 = vadd.f32 %v330, %v1559
      %v1561 = vpop.f32.mrf.mxu0
      %v1562 = vpop.f32.mrf.mxu0
      %v1563 = vadd.f32 %v330, %v1562
      %v1564 = vpop.f32.mrf.mxu0
      %1565 = vmatprep.mubr.bf16.mxu0 %v1105
      %1566 = vmatmul.mubr.bf16.gmra.mxu0 %v808
      %v1567 = vpop.f32.mrf.mxu0
      %v1568 = vadd.f32 %v330, %v1567
      %v1569 = vpop.f32.mrf.mxu0
      %v1570 = vpop.f32.mrf.mxu0
      %v1571 = vadd.f32 %v330, %v1570
      %v1572 = vpop.f32.mrf.mxu0
      %1573 = vmatprep.mubr.bf16.mxu0 %v1108
      %1574 = vmatmul.mubr.bf16.gmra.mxu0 %v810
      %v1575 = vpop.f32.mrf.mxu0
      %v1576 = vadd.f32 %v330, %v1575
      %v1577 = vpop.f32.mrf.mxu0
      %v1578 = vpop.f32.mrf.mxu0
      %v1579 = vadd.f32 %v330, %v1578
      %v1580 = vpop.f32.mrf.mxu0
      %1581 = vmatprep.mubr.bf16.mxu0 %v1111
      %1582 = vmatmul.mubr.bf16.gmra.mxu0 %v812
      %v1583 = vpop.f32.mrf.mxu0
      %v1584 = vadd.f32 %v330, %v1583
      %v1585 = vpop.f32.mrf.mxu0
      %v1586 = vpop.f32.mrf.mxu0
      %v1587 = vadd.f32 %v330, %v1586
      %v1588 = vpop.f32.mrf.mxu0
      %1589 = vmatprep.mubr.bf16.mxu0 %v1114
      %1590 = vmatmul.mubr.bf16.gmra.mxu0 %v814
      %v1591 = vpop.f32.mrf.mxu0
      %v1592 = vadd.f32 %v330, %v1591
      %v1593 = vpop.f32.mrf.mxu0
      %v1594 = vpop.f32.mrf.mxu0
      %v1595 = vadd.f32 %v330, %v1594
      %v1596 = vpop.f32.mrf.mxu0
      %1597 = vmatprep.mubr.bf16.mxu0 %v1117
      %1598 = vmatmul.mubr.bf16.gmra.mxu0 %v816
      %v1599 = vpop.f32.mrf.mxu0
      %v1600 = vadd.f32 %v330, %v1599
      %v1601 = vpop.f32.mrf.mxu0
      %v1602 = vpop.f32.mrf.mxu0
      %v1603 = vadd.f32 %v330, %v1602
      %v1604 = vpop.f32.mrf.mxu0
      %1605 = vmatprep.mubr.bf16.mxu0 %v1120
      %1606 = vmatmul.mubr.bf16.gmra.mxu0 %v818
      %v1607 = vpop.f32.mrf.mxu0
      %v1608 = vadd.f32 %v330, %v1607
      %v1609 = vpop.f32.mrf.mxu0
      %v1610 = vpop.f32.mrf.mxu0
      %v1611 = vadd.f32 %v330, %v1610
      %v1612 = vpop.f32.mrf.mxu0
      %1613 = vmatprep.mubr.bf16.mxu0 %v1123
      %1614 = vmatmul.mubr.bf16.gmra.mxu0 %v820
      %v1615 = vpop.f32.mrf.mxu0
      %v1616 = vadd.f32 %v330, %v1615
      %v1617 = vpop.f32.mrf.mxu0
      %v1618 = vpop.f32.mrf.mxu0
      %v1619 = vadd.f32 %v330, %v1618
      %v1620 = vpop.f32.mrf.mxu0
      %1621 = vmatprep.mubr.bf16.mxu0 %v1126
      %1622 = vmatmul.mubr.bf16.gmra.mxu0 %v822
      %v1623 = vpop.f32.mrf.mxu0
      %v1624 = vadd.f32 %v330, %v1623
      %v1625 = vpop.f32.mrf.mxu0
      %v1626 = vpop.f32.mrf.mxu0
      %v1627 = vadd.f32 %v330, %v1626
      %v1628 = vpop.f32.mrf.mxu0
      %1629 = vmatprep.mubr.bf16.mxu0 %v1129
      %1630 = vmatmul.mubr.bf16.gmra.mxu0 %v824
      %v1631 = vpop.f32.mrf.mxu0
      %v1632 = vadd.f32 %v330, %v1631
      %v1633 = vpop.f32.mrf.mxu0
      %v1634 = vpop.f32.mrf.mxu0
      %v1635 = vadd.f32 %v330, %v1634
      %v1636 = vpop.f32.mrf.mxu0
      %1637 = vmatprep.mubr.bf16.mxu0 %v1132
      %1638 = vmatmul.mubr.bf16.gmra.mxu0 %v826
      %v1639 = vpop.f32.mrf.mxu0
      %v1640 = vadd.f32 %v330, %v1639
      %v1641 = vpop.f32.mrf.mxu0
      %v1642 = vpop.f32.mrf.mxu0
      %v1643 = vadd.f32 %v330, %v1642
      %v1644 = vpop.f32.mrf.mxu0
      %1645 = vmatprep.mubr.bf16.mxu0 %v1135
      %1646 = vmatmul.mubr.bf16.gmra.mxu0 %v828
      %v1647 = vpop.f32.mrf.mxu0
      %v1648 = vadd.f32 %v330, %v1647
      %v1649 = vpop.f32.mrf.mxu0
      %v1650 = vpop.f32.mrf.mxu0
      %v1651 = vadd.f32 %v330, %v1650
      %v1652 = vpop.f32.mrf.mxu0
      %1653 = vmatprep.mubr.bf16.mxu0 %v1138
      %1654 = vmatmul.mubr.bf16.gmra.mxu0 %v830
      %v1655 = vpop.f32.mrf.mxu0
      %v1656 = vadd.f32 %v330, %v1655
      %v1657 = vpop.f32.mrf.mxu0
      %v1658 = vpop.f32.mrf.mxu0
      %v1659 = vadd.f32 %v330, %v1658
      %v1660 = vpop.f32.mrf.mxu0
      %1661 = vmatprep.mubr.bf16.mxu0 %v1141
      %1662 = vmatmul.mubr.bf16.gmra.mxu0 %v832
      %v1663 = vpop.f32.mrf.mxu0
      %v1664 = vadd.f32 %v330, %v1663
      %v1665 = vpop.f32.mrf.mxu0
      %v1666 = vpop.f32.mrf.mxu0
      %v1667 = vadd.f32 %v330, %v1666
      %v1668 = vpop.f32.mrf.mxu0
      %1669 = vmatprep.mubr.bf16.mxu0 %v1144
      %1670 = vmatmul.mubr.bf16.gmra.mxu0 %v834
      %v1671 = vpop.f32.mrf.mxu0
      %v1672 = vadd.f32 %v330, %v1671
      %v1673 = vpop.f32.mrf.mxu0
      %v1674 = vpop.f32.mrf.mxu0
      %v1675 = vadd.f32 %v330, %v1674
      %v1676 = vpop.f32.mrf.mxu0
      %1677 = vmatprep.mubr.bf16.mxu0 %v1147
      %1678 = vmatmul.mubr.bf16.gmra.mxu0 %v836
      %v1679 = vpop.f32.mrf.mxu0
      %v1680 = vadd.f32 %v330, %v1679
      %v1681 = vpop.f32.mrf.mxu0
      %v1682 = vpop.f32.mrf.mxu0
      %v1683 = vadd.f32 %v330, %v1682
      %v1684 = vpop.f32.mrf.mxu0
      %1685 = vmatprep.mubr.bf16.mxu0 %v1150
      %1686 = vmatmul.mubr.bf16.gmra.mxu0 %v838
      %v1687 = vpop.f32.mrf.mxu0
      %v1688 = vadd.f32 %v330, %v1687
      %v1689 = vpop.f32.mrf.mxu0
      %v1690 = vpop.f32.mrf.mxu0
      %v1691 = vadd.f32 %v330, %v1690
      %v1692 = vpop.f32.mrf.mxu0
      %1693 = vmatprep.mubr.bf16.mxu0 %v1153
      %1694 = vmatmul.mubr.bf16.gmra.mxu0 %v840
      %v1695 = vpop.f32.mrf.mxu0
      %v1696 = vadd.f32 %v330, %v1695
      %v1697 = vpop.f32.mrf.mxu0
      %v1698 = vpop.f32.mrf.mxu0
      %v1699 = vadd.f32 %v330, %v1698
      %v1700 = vpop.f32.mrf.mxu0
      %1701 = vmatprep.mubr.bf16.mxu0 %v1156
      %1702 = vmatmul.mubr.bf16.gmra.mxu0 %v842
      %v1703 = vpop.f32.mrf.mxu0
      %v1704 = vadd.f32 %v330, %v1703
      %v1705 = vpop.f32.mrf.mxu0
      %v1706 = vpop.f32.mrf.mxu0
      %v1707 = vadd.f32 %v330, %v1706
      %v1708 = vpop.f32.mrf.mxu0
      %1709 = vdwg.mxu0
      %v1710 = vmax.f32 %v1200, 0.0
      %v1711 = vmax.f32 %v1203, 0.0
      %v1712 = vmax.f32 %v1208, 0.0
      %v1713 = vmax.f32 %v1211, 0.0
      %v1714 = vmax.f32 %v1216, 0.0
      %v1715 = vmax.f32 %v1219, 0.0
      %v1716 = vmax.f32 %v1224, 0.0
      %v1717 = vmax.f32 %v1227, 0.0
      %v1718 = vmax.f32 %v1232, 0.0
      %v1719 = vmax.f32 %v1235, 0.0
      %v1720 = vmax.f32 %v1240, 0.0
      %v1721 = vmax.f32 %v1243, 0.0
      %v1722 = vmax.f32 %v1248, 0.0
      %v1723 = vmax.f32 %v1251, 0.0
      %v1724 = vmax.f32 %v1256, 0.0
      %v1725 = vmax.f32 %v1259, 0.0
      %v1726 = vmax.f32 %v1264, 0.0
      %v1727 = vmax.f32 %v1267, 0.0
      %v1728 = vmax.f32 %v1272, 0.0
      %v1729 = vmax.f32 %v1275, 0.0
      %v1730 = vmax.f32 %v1280, 0.0
      %v1731 = vmax.f32 %v1283, 0.0
      %v1732 = vmax.f32 %v1288, 0.0
      %v1733 = vmax.f32 %v1291, 0.0
      %v1734 = vmax.f32 %v1296, 0.0
      %v1735 = vmax.f32 %v1299, 0.0
      %v1736 = vmax.f32 %v1304, 0.0
      %v1737 = vmax.f32 %v1307, 0.0
      %v1738 = vmax.f32 %v1312, 0.0
      %v1739 = vmax.f32 %v1315, 0.0
      %v1740 = vmax.f32 %v1320, 0.0
      %v1741 = vmax.f32 %v1323, 0.0
      %v1742 = vmax.f32 %v1328, 0.0
      %v1743 = vmax.f32 %v1331, 0.0
      %v1744 = vmax.f32 %v1336, 0.0
      %v1745 = vmax.f32 %v1339, 0.0
      %v1746 = vmax.f32 %v1344, 0.0
      %v1747 = vmax.f32 %v1347, 0.0
      %v1748 = vmax.f32 %v1352, 0.0
      %v1749 = vmax.f32 %v1355, 0.0
      %v1750 = vmax.f32 %v1360, 0.0
      %v1751 = vmax.f32 %v1363, 0.0
      %v1752 = vmax.f32 %v1368, 0.0
      %v1753 = vmax.f32 %v1371, 0.0
      %v1754 = vmax.f32 %v1376, 0.0
      %v1755 = vmax.f32 %v1379, 0.0
      %v1756 = vmax.f32 %v1384, 0.0
      %v1757 = vmax.f32 %v1387, 0.0
      %v1758 = vmax.f32 %v1392, 0.0
      %v1759 = vmax.f32 %v1395, 0.0
      %v1760 = vmax.f32 %v1400, 0.0
      %v1761 = vmax.f32 %v1403, 0.0
      %v1762 = vmax.f32 %v1408, 0.0
      %v1763 = vmax.f32 %v1411, 0.0
      %v1764 = vmax.f32 %v1416, 0.0
      %v1765 = vmax.f32 %v1419, 0.0
      %v1766 = vmax.f32 %v1424, 0.0
      %v1767 = vmax.f32 %v1427, 0.0
      %v1768 = vmax.f32 %v1432, 0.0
      %v1769 = vmax.f32 %v1435, 0.0
      %v1770 = vmax.f32 %v1440, 0.0
      %v1771 = vmax.f32 %v1443, 0.0
      %v1772 = vmax.f32 %v1448, 0.0
      %v1773 = vmax.f32 %v1451, 0.0
      %v1774 = vmax.f32 %v1456, 0.0
      %v1775 = vmax.f32 %v1459, 0.0
      %v1776 = vmax.f32 %v1464, 0.0
      %v1777 = vmax.f32 %v1467, 0.0
      %v1778 = vmax.f32 %v1472, 0.0
      %v1779 = vmax.f32 %v1475, 0.0
      %v1780 = vmax.f32 %v1480, 0.0
      %v1781 = vmax.f32 %v1483, 0.0
      %v1782 = vmax.f32 %v1488, 0.0
      %v1783 = vmax.f32 %v1491, 0.0
      %v1784 = vmax.f32 %v1496, 0.0
      %v1785 = vmax.f32 %v1499, 0.0
      %v1786 = vmax.f32 %v1504, 0.0
      %v1787 = vmax.f32 %v1507, 0.0
      %v1788 = vmax.f32 %v1512, 0.0
      %v1789 = vmax.f32 %v1515, 0.0
      %v1790 = vmax.f32 %v1520, 0.0
      %v1791 = vmax.f32 %v1523, 0.0
      %v1792 = vmax.f32 %v1528, 0.0
      %v1793 = vmax.f32 %v1531, 0.0
      %v1794 = vmax.f32 %v1536, 0.0
      %v1795 = vmax.f32 %v1539, 0.0
      %v1796 = vmax.f32 %v1544, 0.0
      %v1797 = vmax.f32 %v1547, 0.0
      %v1798 = vmax.f32 %v1552, 0.0
      %v1799 = vmax.f32 %v1555, 0.0
      %v1800 = vmax.f32 %v1560, 0.0
      %v1801 = vmax.f32 %v1563, 0.0
      %v1802 = vmax.f32 %v1568, 0.0
      %v1803 = vmax.f32 %v1571, 0.0
      %v1804 = vmax.f32 %v1576, 0.0
      %v1805 = vmax.f32 %v1579, 0.0
      %v1806 = vmax.f32 %v1584, 0.0
      %v1807 = vmax.f32 %v1587, 0.0
      %v1808 = vmax.f32 %v1592, 0.0
      %v1809 = vmax.f32 %v1595, 0.0
      %v1810 = vmax.f32 %v1600, 0.0
      %v1811 = vmax.f32 %v1603, 0.0
      %v1812 = vmax.f32 %v1608, 0.0
      %v1813 = vmax.f32 %v1611, 0.0
      %v1814 = vmax.f32 %v1616, 0.0
      %v1815 = vmax.f32 %v1619, 0.0
      %v1816 = vmax.f32 %v1624, 0.0
      %v1817 = vmax.f32 %v1627, 0.0
      %v1818 = vmax.f32 %v1632, 0.0
      %v1819 = vmax.f32 %v1635, 0.0
      %v1820 = vmax.f32 %v1640, 0.0
      %v1821 = vmax.f32 %v1643, 0.0
      %v1822 = vmax.f32 %v1648, 0.0
      %v1823 = vmax.f32 %v1651, 0.0
      %v1824 = vmax.f32 %v1656, 0.0
      %v1825 = vmax.f32 %v1659, 0.0
      %v1826 = vmax.f32 %v1664, 0.0
      %v1827 = vmax.f32 %v1667, 0.0
      %v1828 = vmax.f32 %v1672, 0.0
      %v1829 = vmax.f32 %v1675, 0.0
      %v1830 = vmax.f32 %v1680, 0.0
      %v1831 = vmax.f32 %v1683, 0.0
      %v1832 = vmax.f32 %v1688, 0.0
      %v1833 = vmax.f32 %v1691, 0.0
      %v1834 = vmax.f32 %v1696, 0.0
      %v1835 = vmax.f32 %v1699, 0.0
      %v1836 = vmax.f32 %v1704, 0.0
      %v1837 = vmax.f32 %v1707, 0.0
      %v1838 = vpack.c.bf16 %v1711, %v1710
      %v1839 = vpack.c.bf16 %v1713, %v1712
      %v1840 = vpack.c.bf16 %v1715, %v1714
      %v1841 = vpack.c.bf16 %v1717, %v1716
      %v1842 = vpack.c.bf16 %v1719, %v1718
      %v1843 = vpack.c.bf16 %v1721, %v1720
      %v1844 = vpack.c.bf16 %v1723, %v1722
      %v1845 = vpack.c.bf16 %v1725, %v1724
      %v1846 = vpack.c.bf16 %v1727, %v1726
      %v1847 = vpack.c.bf16 %v1729, %v1728
      %v1848 = vpack.c.bf16 %v1731, %v1730
      %v1849 = vpack.c.bf16 %v1733, %v1732
      %v1850 = vpack.c.bf16 %v1735, %v1734
      %v1851 = vpack.c.bf16 %v1737, %v1736
      %v1852 = vpack.c.bf16 %v1739, %v1738
      %v1853 = vpack.c.bf16 %v1741, %v1740
      %v1854 = vpack.c.bf16 %v1743, %v1742
      %v1855 = vpack.c.bf16 %v1745, %v1744
      %v1856 = vpack.c.bf16 %v1747, %v1746
      %v1857 = vpack.c.bf16 %v1749, %v1748
      %v1858 = vpack.c.bf16 %v1751, %v1750
      %v1859 = vpack.c.bf16 %v1753, %v1752
      %v1860 = vpack.c.bf16 %v1755, %v1754
      %v1861 = vpack.c.bf16 %v1757, %v1756
      %v1862 = vpack.c.bf16 %v1759, %v1758
      %v1863 = vpack.c.bf16 %v1761, %v1760
      %v1864 = vpack.c.bf16 %v1763, %v1762
      %v1865 = vpack.c.bf16 %v1765, %v1764
      %v1866 = vpack.c.bf16 %v1767, %v1766
      %v1867 = vpack.c.bf16 %v1769, %v1768
      %v1868 = vpack.c.bf16 %v1771, %v1770
      %v1869 = vpack.c.bf16 %v1773, %v1772
      %v1870 = vpack.c.bf16 %v1775, %v1774
      %v1871 = vpack.c.bf16 %v1777, %v1776
      %v1872 = vpack.c.bf16 %v1779, %v1778
      %v1873 = vpack.c.bf16 %v1781, %v1780
      %v1874 = vpack.c.bf16 %v1783, %v1782
      %v1875 = vpack.c.bf16 %v1785, %v1784
      %v1876 = vpack.c.bf16 %v1787, %v1786
      %v1877 = vpack.c.bf16 %v1789, %v1788
      %v1878 = vpack.c.bf16 %v1791, %v1790
      %v1879 = vpack.c.bf16 %v1793, %v1792
      %v1880 = vpack.c.bf16 %v1795, %v1794
      %v1881 = vpack.c.bf16 %v1797, %v1796
      %v1882 = vpack.c.bf16 %v1799, %v1798
      %v1883 = vpack.c.bf16 %v1801, %v1800
      %v1884 = vpack.c.bf16 %v1803, %v1802
      %v1885 = vpack.c.bf16 %v1805, %v1804
      %v1886 = vpack.c.bf16 %v1807, %v1806
      %v1887 = vpack.c.bf16 %v1809, %v1808
      %v1888 = vpack.c.bf16 %v1811, %v1810
      %v1889 = vpack.c.bf16 %v1813, %v1812
      %v1890 = vpack.c.bf16 %v1815, %v1814
      %v1891 = vpack.c.bf16 %v1817, %v1816
      %v1892 = vpack.c.bf16 %v1819, %v1818
      %v1893 = vpack.c.bf16 %v1821, %v1820
      %v1894 = vpack.c.bf16 %v1823, %v1822
      %v1895 = vpack.c.bf16 %v1825, %v1824
      %v1896 = vpack.c.bf16 %v1827, %v1826
      %v1897 = vpack.c.bf16 %v1829, %v1828
      %v1898 = vpack.c.bf16 %v1831, %v1830
      %v1899 = vpack.c.bf16 %v1833, %v1832
      %v1900 = vpack.c.bf16 %v1835, %v1834
      %v1901 = vpack.c.bf16 %v1837, %v1836
      %v1966 = vunpack.c.l.b16 %v1838
      %v1967 = vunpack.c.h.b16 %v1838
      %v1968 = vunpack.c.l.b16 %v1839
      %v1969 = vunpack.c.h.b16 %v1839
      %v1970 = vunpack.c.l.b16 %v1840
      %v1971 = vunpack.c.h.b16 %v1840
      %v1972 = vunpack.c.l.b16 %v1841
      %v1973 = vunpack.c.h.b16 %v1841
      %v1974 = vunpack.c.l.b16 %v1842
      %v1975 = vunpack.c.h.b16 %v1842
      %v1976 = vunpack.c.l.b16 %v1843
      %v1977 = vunpack.c.h.b16 %v1843
      %v1978 = vunpack.c.l.b16 %v1844
      %v1979 = vunpack.c.h.b16 %v1844
      %v1980 = vunpack.c.l.b16 %v1845
      %v1981 = vunpack.c.h.b16 %v1845
      %v1982 = vunpack.c.l.b16 %v1846
      %v1983 = vunpack.c.h.b16 %v1846
      %v1984 = vunpack.c.l.b16 %v1847
      %v1985 = vunpack.c.h.b16 %v1847
      %v1986 = vunpack.c.l.b16 %v1848
      %v1987 = vunpack.c.h.b16 %v1848
      %v1988 = vunpack.c.l.b16 %v1849
      %v1989 = vunpack.c.h.b16 %v1849
      %v1990 = vunpack.c.l.b16 %v1850
      %v1991 = vunpack.c.h.b16 %v1850
      %v1992 = vunpack.c.l.b16 %v1851
      %v1993 = vunpack.c.h.b16 %v1851
      %v1994 = vunpack.c.l.b16 %v1852
      %v1995 = vunpack.c.h.b16 %v1852
      %v1996 = vunpack.c.l.b16 %v1853
      %v1997 = vunpack.c.h.b16 %v1853
      %v1998 = vunpack.c.l.b16 %v1854
      %v1999 = vunpack.c.h.b16 %v1854
      %v2000 = vunpack.c.l.b16 %v1855
      %v2001 = vunpack.c.h.b16 %v1855
      %v2002 = vunpack.c.l.b16 %v1856
      %v2003 = vunpack.c.h.b16 %v1856
      %v2004 = vunpack.c.l.b16 %v1857
      %v2005 = vunpack.c.h.b16 %v1857
      %v2006 = vunpack.c.l.b16 %v1858
      %v2007 = vunpack.c.h.b16 %v1858
      %v2008 = vunpack.c.l.b16 %v1859
      %v2009 = vunpack.c.h.b16 %v1859
      %v2010 = vunpack.c.l.b16 %v1860
      %v2011 = vunpack.c.h.b16 %v1860
      %v2012 = vunpack.c.l.b16 %v1861
      %v2013 = vunpack.c.h.b16 %v1861
      %v2014 = vunpack.c.l.b16 %v1862
      %v2015 = vunpack.c.h.b16 %v1862
      %v2016 = vunpack.c.l.b16 %v1863
      %v2017 = vunpack.c.h.b16 %v1863
      %v2018 = vunpack.c.l.b16 %v1864
      %v2019 = vunpack.c.h.b16 %v1864
      %v2020 = vunpack.c.l.b16 %v1865
      %v2021 = vunpack.c.h.b16 %v1865
      %v2022 = vunpack.c.l.b16 %v1866
      %v2023 = vunpack.c.h.b16 %v1866
      %v2024 = vunpack.c.l.b16 %v1867
      %v2025 = vunpack.c.h.b16 %v1867
      %v2026 = vunpack.c.l.b16 %v1868
      %v2027 = vunpack.c.h.b16 %v1868
      %v2028 = vunpack.c.l.b16 %v1869
      %v2029 = vunpack.c.h.b16 %v1869
      %v2030 = vunpack.c.l.b16 %v1870
      %v2031 = vunpack.c.h.b16 %v1870
      %v2032 = vunpack.c.l.b16 %v1871
      %v2033 = vunpack.c.h.b16 %v1871
      %v2034 = vunpack.c.l.b16 %v1872
      %v2035 = vunpack.c.h.b16 %v1872
      %v2036 = vunpack.c.l.b16 %v1873
      %v2037 = vunpack.c.h.b16 %v1873
      %v2038 = vunpack.c.l.b16 %v1874
      %v2039 = vunpack.c.h.b16 %v1874
      %v2040 = vunpack.c.l.b16 %v1875
      %v2041 = vunpack.c.h.b16 %v1875
      %v2042 = vunpack.c.l.b16 %v1876
      %v2043 = vunpack.c.h.b16 %v1876
      %v2044 = vunpack.c.l.b16 %v1877
      %v2045 = vunpack.c.h.b16 %v1877
      %v2046 = vunpack.c.l.b16 %v1878
      %v2047 = vunpack.c.h.b16 %v1878
      %v2048 = vunpack.c.l.b16 %v1879
      %v2049 = vunpack.c.h.b16 %v1879
      %v2050 = vunpack.c.l.b16 %v1880
      %v2051 = vunpack.c.h.b16 %v1880
      %v2052 = vunpack.c.l.b16 %v1881
      %v2053 = vunpack.c.h.b16 %v1881
      %v2054 = vunpack.c.l.b16 %v1882
      %v2055 = vunpack.c.h.b16 %v1882
      %v2056 = vunpack.c.l.b16 %v1883
      %v2057 = vunpack.c.h.b16 %v1883
      %v2058 = vunpack.c.l.b16 %v1884
      %v2059 = vunpack.c.h.b16 %v1884
      %v2060 = vunpack.c.l.b16 %v1885
      %v2061 = vunpack.c.h.b16 %v1885
      %v2062 = vunpack.c.l.b16 %v1886
      %v2063 = vunpack.c.h.b16 %v1886
      %v2064 = vunpack.c.l.b16 %v1887
      %v2065 = vunpack.c.h.b16 %v1887
      %v2066 = vunpack.c.l.b16 %v1888
      %v2067 = vunpack.c.h.b16 %v1888
      %v2068 = vunpack.c.l.b16 %v1889
      %v2069 = vunpack.c.h.b16 %v1889
      %v2070 = vunpack.c.l.b16 %v1890
      %v2071 = vunpack.c.h.b16 %v1890
      %v2072 = vunpack.c.l.b16 %v1891
      %v2073 = vunpack.c.h.b16 %v1891
      %v2074 = vunpack.c.l.b16 %v1892
      %v2075 = vunpack.c.h.b16 %v1892
      %v2076 = vunpack.c.l.b16 %v1893
      %v2077 = vunpack.c.h.b16 %v1893
      %v2078 = vunpack.c.l.b16 %v1894
      %v2079 = vunpack.c.h.b16 %v1894
      %v2080 = vunpack.c.l.b16 %v1895
      %v2081 = vunpack.c.h.b16 %v1895
      %v2082 = vunpack.c.l.b16 %v1896
      %v2083 = vunpack.c.h.b16 %v1896
      %v2084 = vunpack.c.l.b16 %v1897
      %v2085 = vunpack.c.h.b16 %v1897
      %v2086 = vunpack.c.l.b16 %v1898
      %v2087 = vunpack.c.h.b16 %v1898
      %v2088 = vunpack.c.l.b16 %v1899
      %v2089 = vunpack.c.h.b16 %v1899
      %v2090 = vunpack.c.l.b16 %v1900
      %v2091 = vunpack.c.h.b16 %v1900
      %v2092 = vunpack.c.l.b16 %v1901
      %v2093 = vunpack.c.h.b16 %v1901
      %v2094 = vpack.c.b16 %v1966, %v1966
      %v2095 = vpack.c.b16 %v1967, %v1967
      %v2096 = vpack.c.b16 %v1968, %v1968
      %v2097 = vpack.c.b16 %v1969, %v1969
      %v2098 = vpack.c.b16 %v1970, %v1970
      %v2099 = vpack.c.b16 %v1971, %v1971
      %v2100 = vpack.c.b16 %v1972, %v1972
      %v2101 = vpack.c.b16 %v1973, %v1973
      %v2102 = vpack.c.b16 %v1974, %v1974
      %v2103 = vpack.c.b16 %v1975, %v1975
      %v2104 = vpack.c.b16 %v1976, %v1976
      %v2105 = vpack.c.b16 %v1977, %v1977
      %v2106 = vpack.c.b16 %v1978, %v1978
      %v2107 = vpack.c.b16 %v1979, %v1979
      %v2108 = vpack.c.b16 %v1980, %v1980
      %v2109 = vpack.c.b16 %v1981, %v1981
      %v2110 = vpack.c.b16 %v1982, %v1982
      %v2111 = vpack.c.b16 %v1983, %v1983
      %v2112 = vpack.c.b16 %v1984, %v1984
      %v2113 = vpack.c.b16 %v1985, %v1985
      %v2114 = vpack.c.b16 %v1986, %v1986
      %v2115 = vpack.c.b16 %v1987, %v1987
      %v2116 = vpack.c.b16 %v1988, %v1988
      %v2117 = vpack.c.b16 %v1989, %v1989
      %v2118 = vpack.c.b16 %v1990, %v1990
      %v2119 = vpack.c.b16 %v1991, %v1991
      %v2120 = vpack.c.b16 %v1992, %v1992
      %v2121 = vpack.c.b16 %v1993, %v1993
      %v2122 = vpack.c.b16 %v1994, %v1994
      %v2123 = vpack.c.b16 %v1995, %v1995
      %v2124 = vpack.c.b16 %v1996, %v1996
      %v2125 = vpack.c.b16 %v1997, %v1997
      %v2126 = vpack.c.b16 %v1998, %v1998
      %v2127 = vpack.c.b16 %v1999, %v1999
      %v2128 = vpack.c.b16 %v2000, %v2000
      %v2129 = vpack.c.b16 %v2001, %v2001
      %v2130 = vpack.c.b16 %v2002, %v2002
      %v2131 = vpack.c.b16 %v2003, %v2003
      %v2132 = vpack.c.b16 %v2004, %v2004
      %v2133 = vpack.c.b16 %v2005, %v2005
      %v2134 = vpack.c.b16 %v2006, %v2006
      %v2135 = vpack.c.b16 %v2007, %v2007
      %v2136 = vpack.c.b16 %v2008, %v2008
      %v2137 = vpack.c.b16 %v2009, %v2009
      %v2138 = vpack.c.b16 %v2010, %v2010
      %v2139 = vpack.c.b16 %v2011, %v2011
      %v2140 = vpack.c.b16 %v2012, %v2012
      %v2141 = vpack.c.b16 %v2013, %v2013
      %v2142 = vpack.c.b16 %v2014, %v2014
      %v2143 = vpack.c.b16 %v2015, %v2015
      %v2144 = vpack.c.b16 %v2016, %v2016
      %v2145 = vpack.c.b16 %v2017, %v2017
      %v2146 = vpack.c.b16 %v2018, %v2018
      %v2147 = vpack.c.b16 %v2019, %v2019
      %v2148 = vpack.c.b16 %v2020, %v2020
      %v2149 = vpack.c.b16 %v2021, %v2021
      %v2150 = vpack.c.b16 %v2022, %v2022
      %v2151 = vpack.c.b16 %v2023, %v2023
      %v2152 = vpack.c.b16 %v2024, %v2024
      %v2153 = vpack.c.b16 %v2025, %v2025
      %v2154 = vpack.c.b16 %v2026, %v2026
      %v2155 = vpack.c.b16 %v2027, %v2027
      %v2156 = vpack.c.b16 %v2028, %v2028
      %v2157 = vpack.c.b16 %v2029, %v2029
      %v2158 = vpack.c.b16 %v2030, %v2030
      %v2159 = vpack.c.b16 %v2031, %v2031
      %v2160 = vpack.c.b16 %v2032, %v2032
      %v2161 = vpack.c.b16 %v2033, %v2033
      %v2162 = vpack.c.b16 %v2034, %v2034
      %v2163 = vpack.c.b16 %v2035, %v2035
      %v2164 = vpack.c.b16 %v2036, %v2036
      %v2165 = vpack.c.b16 %v2037, %v2037
      %v2166 = vpack.c.b16 %v2038, %v2038
      %v2167 = vpack.c.b16 %v2039, %v2039
      %v2168 = vpack.c.b16 %v2040, %v2040
      %v2169 = vpack.c.b16 %v2041, %v2041
      %v2170 = vpack.c.b16 %v2042, %v2042
      %v2171 = vpack.c.b16 %v2043, %v2043
      %v2172 = vpack.c.b16 %v2044, %v2044
      %v2173 = vpack.c.b16 %v2045, %v2045
      %v2174 = vpack.c.b16 %v2046, %v2046
      %v2175 = vpack.c.b16 %v2047, %v2047
      %v2176 = vpack.c.b16 %v2048, %v2048
      %v2177 = vpack.c.b16 %v2049, %v2049
      %v2178 = vpack.c.b16 %v2050, %v2050
      %v2179 = vpack.c.b16 %v2051, %v2051
      %v2180 = vpack.c.b16 %v2052, %v2052
      %v2181 = vpack.c.b16 %v2053, %v2053
      %v2182 = vpack.c.b16 %v2054, %v2054
      %v2183 = vpack.c.b16 %v2055, %v2055
      %v2184 = vpack.c.b16 %v2056, %v2056
      %v2185 = vpack.c.b16 %v2057, %v2057
      %v2186 = vpack.c.b16 %v2058, %v2058
      %v2187 = vpack.c.b16 %v2059, %v2059
      %v2188 = vpack.c.b16 %v2060, %v2060
      %v2189 = vpack.c.b16 %v2061, %v2061
      %v2190 = vpack.c.b16 %v2062, %v2062
      %v2191 = vpack.c.b16 %v2063, %v2063
      %v2192 = vpack.c.b16 %v2064, %v2064
      %v2193 = vpack.c.b16 %v2065, %v2065
      %v2194 = vpack.c.b16 %v2066, %v2066
      %v2195 = vpack.c.b16 %v2067, %v2067
      %v2196 = vpack.c.b16 %v2068, %v2068
      %v2197 = vpack.c.b16 %v2069, %v2069
      %v2198 = vpack.c.b16 %v2070, %v2070
      %v2199 = vpack.c.b16 %v2071, %v2071
      %v2200 = vpack.c.b16 %v2072, %v2072
      %v2201 = vpack.c.b16 %v2073, %v2073
      %v2202 = vpack.c.b16 %v2074, %v2074
      %v2203 = vpack.c.b16 %v2075, %v2075
      %v2204 = vpack.c.b16 %v2076, %v2076
      %v2205 = vpack.c.b16 %v2077, %v2077
      %v2206 = vpack.c.b16 %v2078, %v2078
      %v2207 = vpack.c.b16 %v2079, %v2079
      %v2208 = vpack.c.b16 %v2080, %v2080
      %v2209 = vpack.c.b16 %v2081, %v2081
      %v2210 = vpack.c.b16 %v2082, %v2082
      %v2211 = vpack.c.b16 %v2083, %v2083
      %v2212 = vpack.c.b16 %v2084, %v2084
      %v2213 = vpack.c.b16 %v2085, %v2085
      %v2214 = vpack.c.b16 %v2086, %v2086
      %v2215 = vpack.c.b16 %v2087, %v2087
      %v2216 = vpack.c.b16 %v2088, %v2088
      %v2217 = vpack.c.b16 %v2089, %v2089
      %v2218 = vpack.c.b16 %v2090, %v2090
      %v2219 = vpack.c.b16 %v2091, %v2091
      %v2220 = vpack.c.b16 %v2092, %v2092
      %v2221 = vpack.c.b16 %v2093, %v2093
      %vm2350 = vcmask 519168
      %2351 = vst.msk [vmem:[%s175] sm:$0xf] %vm2350, %v2094
      %2352 = vst.msk [vmem:[%s175 + $0x4] sm:$0xf] %vm2350, %v2095
      %2353 = vst.msk [vmem:[%s175 + $0x8] sm:$0xf] %vm2350, %v2096
      %2354 = vst.msk [vmem:[%s175 + $0xc] sm:$0xf] %vm2350, %v2097
      %2355 = vst.msk [vmem:[%s175 + $0x10] sm:$0xf] %vm2350, %v2098
      %2356 = vst.msk [vmem:[%s175 + $0x14] sm:$0xf] %vm2350, %v2099
      %2357 = vst.msk [vmem:[%s175 + $0x18] sm:$0xf] %vm2350, %v2100
      %2358 = vst.msk [vmem:[%s175 + $0x1c] sm:$0xf] %vm2350, %v2101
      %2359 = vst.msk [vmem:[%s175 + $0x20] sm:$0xf] %vm2350, %v2102
      %2360 = vst.msk [vmem:[%s175 + $0x24] sm:$0xf] %vm2350, %v2103
      %2361 = vst.msk [vmem:[%s175 + $0x28] sm:$0xf] %vm2350, %v2104
      %2362 = vst.msk [vmem:[%s175 + $0x2c] sm:$0xf] %vm2350, %v2105
      %2363 = vst.msk [vmem:[%s175 + $0x30] sm:$0xf] %vm2350, %v2106
      %2364 = vst.msk [vmem:[%s175 + $0x34] sm:$0xf] %vm2350, %v2107
      %2365 = vst.msk [vmem:[%s175 + $0x38] sm:$0xf] %vm2350, %v2108
      %2366 = vst.msk [vmem:[%s175 + $0x3c] sm:$0xf] %vm2350, %v2109
      %2367 = vst.msk [vmem:[%s175 + $0x40] sm:$0xf] %vm2350, %v2110
      %2368 = vst.msk [vmem:[%s175 + $0x44] sm:$0xf] %vm2350, %v2111
      %2369 = vst.msk [vmem:[%s175 + $0x48] sm:$0xf] %vm2350, %v2112
      %2370 = vst.msk [vmem:[%s175 + $0x4c] sm:$0xf] %vm2350, %v2113
      %2371 = vst.msk [vmem:[%s175 + $0x50] sm:$0xf] %vm2350, %v2114
      %2372 = vst.msk [vmem:[%s175 + $0x54] sm:$0xf] %vm2350, %v2115
      %2373 = vst.msk [vmem:[%s175 + $0x58] sm:$0xf] %vm2350, %v2116
      %2374 = vst.msk [vmem:[%s175 + $0x5c] sm:$0xf] %vm2350, %v2117
      %2375 = vst.msk [vmem:[%s175 + $0x60] sm:$0xf] %vm2350, %v2118
      %2376 = vst.msk [vmem:[%s175 + $0x64] sm:$0xf] %vm2350, %v2119
      %2377 = vst.msk [vmem:[%s175 + $0x68] sm:$0xf] %vm2350, %v2120
      %2378 = vst.msk [vmem:[%s175 + $0x6c] sm:$0xf] %vm2350, %v2121
      %2379 = vst.msk [vmem:[%s175 + $0x70] sm:$0xf] %vm2350, %v2122
      %2380 = vst.msk [vmem:[%s175 + $0x74] sm:$0xf] %vm2350, %v2123
      %2381 = vst.msk [vmem:[%s175 + $0x78] sm:$0xf] %vm2350, %v2124
      %2382 = vst.msk [vmem:[%s175 + $0x7c] sm:$0xf] %vm2350, %v2125
      %2383 = vst.msk [vmem:[%s175 + $0x80] sm:$0xf] %vm2350, %v2126
      %2384 = vst.msk [vmem:[%s175 + $0x84] sm:$0xf] %vm2350, %v2127
      %2385 = vst.msk [vmem:[%s175 + $0x88] sm:$0xf] %vm2350, %v2128
      %2386 = vst.msk [vmem:[%s175 + $0x8c] sm:$0xf] %vm2350, %v2129
      %2387 = vst.msk [vmem:[%s175 + $0x90] sm:$0xf] %vm2350, %v2130
      %2388 = vst.msk [vmem:[%s175 + $0x94] sm:$0xf] %vm2350, %v2131
      %2389 = vst.msk [vmem:[%s175 + $0x98] sm:$0xf] %vm2350, %v2132
      %2390 = vst.msk [vmem:[%s175 + $0x9c] sm:$0xf] %vm2350, %v2133
      %2391 = vst.msk [vmem:[%s175 + $0xa0] sm:$0xf] %vm2350, %v2134
      %2392 = vst.msk [vmem:[%s175 + $0xa4] sm:$0xf] %vm2350, %v2135
      %2393 = vst.msk [vmem:[%s175 + $0xa8] sm:$0xf] %vm2350, %v2136
      %2394 = vst.msk [vmem:[%s175 + $0xac] sm:$0xf] %vm2350, %v2137
      %2395 = vst.msk [vmem:[%s175 + $0xb0] sm:$0xf] %vm2350, %v2138
      %2396 = vst.msk [vmem:[%s175 + $0xb4] sm:$0xf] %vm2350, %v2139
      %2397 = vst.msk [vmem:[%s175 + $0xb8] sm:$0xf] %vm2350, %v2140
      %2398 = vst.msk [vmem:[%s175 + $0xbc] sm:$0xf] %vm2350, %v2141
      %2399 = vst.msk [vmem:[%s175 + $0xc0] sm:$0xf] %vm2350, %v2142
      %2400 = vst.msk [vmem:[%s175 + $0xc4] sm:$0xf] %vm2350, %v2143
      %2401 = vst.msk [vmem:[%s175 + $0xc8] sm:$0xf] %vm2350, %v2144
      %2402 = vst.msk [vmem:[%s175 + $0xcc] sm:$0xf] %vm2350, %v2145
      %2403 = vst.msk [vmem:[%s175 + $0xd0] sm:$0xf] %vm2350, %v2146
      %2404 = vst.msk [vmem:[%s175 + $0xd4] sm:$0xf] %vm2350, %v2147
      %2405 = vst.msk [vmem:[%s175 + $0xd8] sm:$0xf] %vm2350, %v2148
      %2406 = vst.msk [vmem:[%s175 + $0xdc] sm:$0xf] %vm2350, %v2149
      %2407 = vst.msk [vmem:[%s175 + $0xe0] sm:$0xf] %vm2350, %v2150
      %2408 = vst.msk [vmem:[%s175 + $0xe4] sm:$0xf] %vm2350, %v2151
      %2409 = vst.msk [vmem:[%s175 + $0xe8] sm:$0xf] %vm2350, %v2152
      %2410 = vst.msk [vmem:[%s175 + $0xec] sm:$0xf] %vm2350, %v2153
      %2411 = vst.msk [vmem:[%s175 + $0xf0] sm:$0xf] %vm2350, %v2154
      %2412 = vst.msk [vmem:[%s175 + $0xf4] sm:$0xf] %vm2350, %v2155
      %2413 = vst.msk [vmem:[%s175 + $0xf8] sm:$0xf] %vm2350, %v2156
      %2414 = vst.msk [vmem:[%s175 + $0xfc] sm:$0xf] %vm2350, %v2157
      %2415 = vst.msk [vmem:[%s175 + $0x100] sm:$0xf] %vm2350, %v2158
      %2416 = vst.msk [vmem:[%s175 + $0x104] sm:$0xf] %vm2350, %v2159
      %2417 = vst.msk [vmem:[%s175 + $0x108] sm:$0xf] %vm2350, %v2160
      %2418 = vst.msk [vmem:[%s175 + $0x10c] sm:$0xf] %vm2350, %v2161
      %2419 = vst.msk [vmem:[%s175 + $0x110] sm:$0xf] %vm2350, %v2162
      %2420 = vst.msk [vmem:[%s175 + $0x114] sm:$0xf] %vm2350, %v2163
      %2421 = vst.msk [vmem:[%s175 + $0x118] sm:$0xf] %vm2350, %v2164
      %2422 = vst.msk [vmem:[%s175 + $0x11c] sm:$0xf] %vm2350, %v2165
      %2423 = vst.msk [vmem:[%s175 + $0x120] sm:$0xf] %vm2350, %v2166
      %2424 = vst.msk [vmem:[%s175 + $0x124] sm:$0xf] %vm2350, %v2167
      %2425 = vst.msk [vmem:[%s175 + $0x128] sm:$0xf] %vm2350, %v2168
      %2426 = vst.msk [vmem:[%s175 + $0x12c] sm:$0xf] %vm2350, %v2169
      %2427 = vst.msk [vmem:[%s175 + $0x130] sm:$0xf] %vm2350, %v2170
      %2428 = vst.msk [vmem:[%s175 + $0x134] sm:$0xf] %vm2350, %v2171
      %2429 = vst.msk [vmem:[%s175 + $0x138] sm:$0xf] %vm2350, %v2172
      %2430 = vst.msk [vmem:[%s175 + $0x13c] sm:$0xf] %vm2350, %v2173
      %2431 = vst.msk [vmem:[%s175 + $0x140] sm:$0xf] %vm2350, %v2174
      %2432 = vst.msk [vmem:[%s175 + $0x144] sm:$0xf] %vm2350, %v2175
      %2433 = vst.msk [vmem:[%s175 + $0x148] sm:$0xf] %vm2350, %v2176
      %2434 = vst.msk [vmem:[%s175 + $0x14c] sm:$0xf] %vm2350, %v2177
      %2435 = vst.msk [vmem:[%s175 + $0x150] sm:$0xf] %vm2350, %v2178
      %2436 = vst.msk [vmem:[%s175 + $0x154] sm:$0xf] %vm2350, %v2179
      %2437 = vst.msk [vmem:[%s175 + $0x158] sm:$0xf] %vm2350, %v2180
      %2438 = vst.msk [vmem:[%s175 + $0x15c] sm:$0xf] %vm2350, %v2181
      %2439 = vst.msk [vmem:[%s175 + $0x160] sm:$0xf] %vm2350, %v2182
      %2440 = vst.msk [vmem:[%s175 + $0x164] sm:$0xf] %vm2350, %v2183
      %2441 = vst.msk [vmem:[%s175 + $0x168] sm:$0xf] %vm2350, %v2184
      %2442 = vst.msk [vmem:[%s175 + $0x16c] sm:$0xf] %vm2350, %v2185
      %2443 = vst.msk [vmem:[%s175 + $0x170] sm:$0xf] %vm2350, %v2186
      %2444 = vst.msk [vmem:[%s175 + $0x174] sm:$0xf] %vm2350, %v2187
      %2445 = vst.msk [vmem:[%s175 + $0x178] sm:$0xf] %vm2350, %v2188
      %2446 = vst.msk [vmem:[%s175 + $0x17c] sm:$0xf] %vm2350, %v2189
      %2447 = vst.msk [vmem:[%s175 + $0x180] sm:$0xf] %vm2350, %v2190
      %2448 = vst.msk [vmem:[%s175 + $0x184] sm:$0xf] %vm2350, %v2191
      %2449 = vst.msk [vmem:[%s175 + $0x188] sm:$0xf] %vm2350, %v2192
      %2450 = vst.msk [vmem:[%s175 + $0x18c] sm:$0xf] %vm2350, %v2193
      %2451 = vst.msk [vmem:[%s175 + $0x190] sm:$0xf] %vm2350, %v2194
      %2452 = vst.msk [vmem:[%s175 + $0x194] sm:$0xf] %vm2350, %v2195
      %2453 = vst.msk [vmem:[%s175 + $0x198] sm:$0xf] %vm2350, %v2196
      %2454 = vst.msk [vmem:[%s175 + $0x19c] sm:$0xf] %vm2350, %v2197
      %2455 = vst.msk [vmem:[%s175 + $0x1a0] sm:$0xf] %vm2350, %v2198
      %2456 = vst.msk [vmem:[%s175 + $0x1a4] sm:$0xf] %vm2350, %v2199
      %2457 = vst.msk [vmem:[%s175 + $0x1a8] sm:$0xf] %vm2350, %v2200
      %2458 = vst.msk [vmem:[%s175 + $0x1ac] sm:$0xf] %vm2350, %v2201
      %2459 = vst.msk [vmem:[%s175 + $0x1b0] sm:$0xf] %vm2350, %v2202
      %2460 = vst.msk [vmem:[%s175 + $0x1b4] sm:$0xf] %vm2350, %v2203
      %2461 = vst.msk [vmem:[%s175 + $0x1b8] sm:$0xf] %vm2350, %v2204
      %2462 = vst.msk [vmem:[%s175 + $0x1bc] sm:$0xf] %vm2350, %v2205
      %2463 = vst.msk [vmem:[%s175 + $0x1c0] sm:$0xf] %vm2350, %v2206
      %2464 = vst.msk [vmem:[%s175 + $0x1c4] sm:$0xf] %vm2350, %v2207
      %2465 = vst.msk [vmem:[%s175 + $0x1c8] sm:$0xf] %vm2350, %v2208
      %2466 = vst.msk [vmem:[%s175 + $0x1cc] sm:$0xf] %vm2350, %v2209
      %2467 = vst.msk [vmem:[%s175 + $0x1d0] sm:$0xf] %vm2350, %v2210
      %2468 = vst.msk [vmem:[%s175 + $0x1d4] sm:$0xf] %vm2350, %v2211
      %2469 = vst.msk [vmem:[%s175 + $0x1d8] sm:$0xf] %vm2350, %v2212
      %2470 = vst.msk [vmem:[%s175 + $0x1dc] sm:$0xf] %vm2350, %v2213
      %2471 = vst.msk [vmem:[%s175 + $0x1e0] sm:$0xf] %vm2350, %v2214
      %2472 = vst.msk [vmem:[%s175 + $0x1e4] sm:$0xf] %vm2350, %v2215
      %2473 = vst.msk [vmem:[%s175 + $0x1e8] sm:$0xf] %vm2350, %v2216
      %2474 = vst.msk [vmem:[%s175 + $0x1ec] sm:$0xf] %vm2350, %v2217
      %2475 = vst.msk [vmem:[%s175 + $0x1f0] sm:$0xf] %vm2350, %v2218
      %2476 = vst.msk [vmem:[%s175 + $0x1f4] sm:$0xf] %vm2350, %v2219
      %2477 = vst.msk [vmem:[%s175 + $0x1f8] sm:$0xf] %vm2350, %v2220
      %2478 = vst.msk [vmem:[%s175 + $0x1fc] sm:$0xf] %vm2350, %v2221
      %s2479 = smul.u32 128, %s14
      %p2480 = scmp.lt.s32.totalorder %s2479, 255
      %s2481 = scalar_select %p2480, %s2479, 255
      %s2482 = smul.addr %s2481, 4
      %s2483 = scalar_lea.vmem %s3, %s2482
      // Predicated region
      $region33: #{ncgm_forward.8} parent=31 // pred_check
        %p2484 = pneg %p100
      $region34: #{ncgm_forward.8} parent=31 // pred_check_branch
        %2486 = sbr.rel (%p2484) target = $region36
      $region35: #{ncgm_forward.8} parent=31 // pred_region
        %s2487 = smul.u32 128, %s14
      $region36: #{ncgm_forward.8} parent=31 // pred_fallthru
        _
    $region32: #{ncgm_forward.8} parent=5 // pred_fallthru
      _
    %p2488 = scmp.le.s32.totalorder 2, %s9
    // Predicated region
    $region37: #{ncgm_forward.8} parent=5 // pred_check
      %p2489 = pneg %p2488
    $region38: #{ncgm_forward.8} parent=5 // pred_check_branch
      %2491 = sbr.rel (%p2489) target = $region40
    $region39: #{ncgm_forward.8} parent=5 // pred_region
      %s2492 = ssub.s32 %s9, 2
      // Predicated region
      $region41: #{ncgm_forward.8} parent=39 // pred_check
        %p2493 = pneg %p106
      $region42: #{ncgm_forward.8} parent=39 // pred_check_branch
        %2495 = sbr.rel (%p2493) target = $region44
      $region43: #{ncgm_forward.8} parent=39 // pred_region
        %s2496 = smul.u32 128, %s15
        %p2497 = scmp.lt.s32.totalorder %s2496, 255
        %s2498 = scalar_select %p2497, %s2496, 255
        %s2499 = smul.addr %s2498, 4
        %s2500 = scalar_lea.vmem %s3, %s2499
      $region44: #{ncgm_forward.8} parent=39 // pred_fallthru
        _
    $region40: #{ncgm_forward.8} parent=5 // pred_fallthru
      _
  $region6: #{ncgm_forward.8} parent=0 // loop_footer
    %s13 = sadd.s32 1, %s9
  $region7: #{ncgm_forward.8} parent=0 // loop_footer_branch
    %8 = sbr.rel target = $region3
  $region8: #{ncgm_forward.8} parent=0 // loop_exit
    _

// kernel: ncgm_forward.9
$region0: #{ncgm_forward.9}
  #allocation0 [shape = 'u32[]', space=smem, size = 0x4, offset = 0x4, fixed_abs, tag = 'smem constant byte address 0x4 - core index']
  #allocation1 [shape = 'u32[144,128]{1,0:T(1,128)}', space=vmem, size = 0x12000, scoped, tag = 'internal scratch']
  %s0 = inlined_call_operand.vmem [shape: bf16[2,18,18,64], index: 0, kind: input, shape index: {}]
  %s1 = inlined_call_operand.vmem [shape: bf16[9,64,64], index: 1, kind: input, shape index: {}]
  %s2 = inlined_call_operand.vmem [shape: f32[1,64], index: 2, kind: input, shape index: {}]
  %s3 = inlined_call_operand.vmem [shape: bf16[2,256,64], index: 3, kind: output, shape index: {}]
  %s4 = sld [smem:[#allocation0]]
  $region45: #{ncgm_forward.9} parent=0
    _
  %s6 = ssub.s32 1, %s4
  %s7 = scalar_select 0, %s6, %s4
  loop: start=0, step=1, limit=4
  $region2: #{ncgm_forward.9} parent=0 // loop_pre_header
    _
  $region3: #{ncgm_forward.9} parent=0 // loop_header
    %s9 = sphi 0, %s13
    %p10 = scmp.ge.s32.totalorder %s9, 4
    %s19 = sphi 0, %s21
    %s22 = sphi 0, %s19
    %s23 = sphi 0, %s22
    %s39 = sphi 0, %s23
    %s43 = sphi 0, %s43
    %s45 = sphi 0, %s43
    %s46 = sphi 0, %s45
    %s60 = sphi 0, %s46
    %s64 = sphi 0, %s64
    %s66 = sphi 0, %s64
    %s67 = sphi 0, %s66
    %s81 = sphi 0, %s67
    %s87 = sphi 0, %s89
    %s90 = sphi 0, %s87
    %s91 = sphi 0, %s90
    %s107 = sphi 0, %s91
  $region4: #{ncgm_forward.9} parent=0 // loop_header_branch
    %12 = sbr.rel (%p10) target = $region8
  $region5: #{ncgm_forward.9} parent=0 // loop_body
    %s14 = ssub.s32 %s9, 1
    %s15 = ssub.s32 %s9, 2
    %s16 = sadd.s32 %s9, 1
    %s17 = ssub.s32 %s9, %s16
    %p18 = scmp.eq.s32.totalorder %s17, 0
    %s20 = sadd.s32 %s19, 1
    %s21 = scalar_select %p18, %s19, %s20
    %p24 = pneg %p18
    %p25 = scmp.eq.s32.totalorder %s9, 1
    %p26 = por %p24, %p25
    %p27 = scmp.ne.s32.totalorder %s19, %s22
    %p28 = scmp.eq.s32.totalorder %s9, 0
    %p29 = por %p27, %p28
    %p30 = scmp.ne.s32.totalorder %s19, %s22
    %p31 = scmp.eq.s32.totalorder %s14, 1
    %p32 = por %p30, %p31
    %p33 = scmp.ne.s32.totalorder %s22, %s23
    %p34 = scmp.eq.s32.totalorder %s14, 0
    %p35 = por %p33, %p34
    %p36 = scmp.ne.s32.totalorder %s22, %s23
    %p37 = scmp.eq.s32.totalorder %s15, 1
    %p38 = por %p36, %p37
    %p40 = scmp.ne.s32.totalorder %s23, %s39
    %p41 = scmp.eq.s32.totalorder %s15, 0
    %p42 = por %p40, %p41
    %s44 = sadd.s32 %s43, 1
    %p47 = scmp.eq.s32.totalorder %s9, 1
    %p48 = scmp.ne.s32.totalorder %s43, %s45
    %p49 = scmp.eq.s32.totalorder %s9, 0
    %p50 = por %p48, %p49
    %p51 = scmp.ne.s32.totalorder %s43, %s45
    %p52 = scmp.eq.s32.totalorder %s14, 1
    %p53 = por %p51, %p52
    %p54 = scmp.ne.s32.totalorder %s45, %s46
    %p55 = scmp.eq.s32.totalorder %s14, 0
    %p56 = por %p54, %p55
    %p57 = scmp.ne.s32.totalorder %s45, %s46
    %p58 = scmp.eq.s32.totalorder %s15, 1
    %p59 = por %p57, %p58
    %p61 = scmp.ne.s32.totalorder %s46, %s60
    %p62 = scmp.eq.s32.totalorder %s15, 0
    %p63 = por %p61, %p62
    %s65 = sadd.s32 %s64, 1
    %p68 = scmp.eq.s32.totalorder %s9, 1
    %p69 = scmp.ne.s32.totalorder %s64, %s66
    %p70 = scmp.eq.s32.totalorder %s9, 0
    %p71 = por %p69, %p70
    %p72 = scmp.ne.s32.totalorder %s64, %s66
    %p73 = scmp.eq.s32.totalorder %s14, 1
    %p74 = por %p72, %p73
    %p75 = scmp.ne.s32.totalorder %s66, %s67
    %p76 = scmp.eq.s32.totalorder %s14, 0
    %p77 = por %p75, %p76
    %p78 = scmp.ne.s32.totalorder %s66, %s67
    %p79 = scmp.eq.s32.totalorder %s15, 1
    %p80 = por %p78, %p79
    %p82 = scmp.ne.s32.totalorder %s67, %s81
    %p83 = scmp.eq.s32.totalorder %s15, 0
    %p84 = por %p82, %p83
    %s85 = ssub.s32 %s9, %s16
    %p86 = scmp.eq.s32.totalorder %s85, 0
    %s88 = sadd.s32 %s87, 1
    %s89 = scalar_select %p86, %s87, %s88
    %p92 = pneg %p86
    %p93 = scmp.eq.s32.totalorder %s9, 1
    %p94 = por %p92, %p93
    %p95 = scmp.ne.s32.totalorder %s87, %s90
    %p96 = scmp.eq.s32.totalorder %s9, 0
    %p97 = por %p95, %p96
    %p98 = scmp.ne.s32.totalorder %s87, %s90
    %p99 = scmp.eq.s32.totalorder %s14, 1
    %p100 = por %p98, %p99
    %p101 = scmp.ne.s32.totalorder %s90, %s91
    %p102 = scmp.eq.s32.totalorder %s14, 0
    %p103 = por %p101, %p102
    %p104 = scmp.ne.s32.totalorder %s90, %s91
    %p105 = scmp.eq.s32.totalorder %s15, 1
    %p106 = por %p104, %p105
    %p108 = scmp.ne.s32.totalorder %s91, %s107
    %p109 = scmp.eq.s32.totalorder %s15, 0
    %p110 = por %p108, %p109
    %p111 = scmp.le.s32.totalorder 1, %s9
    %p112 = scmp.lt.s32.totalorder %s9, 3
    %p113 = pnand %p111, %p112
    %p114 = pneg %p113
    // Predicated region
    $region9: #{ncgm_forward.9} parent=5 // pred_check
      _
    $region10: #{ncgm_forward.9} parent=5 // pred_check_branch
      %116 = sbr.rel (%p113) target = $region12
    $region11: #{ncgm_forward.9} parent=5 // pred_region
      %s117 = ssub.s32 %s9, 1
      // Predicated region
      $region13: #{ncgm_forward.9} parent=11 // pred_check
        %p118 = pneg %p56
      $region14: #{ncgm_forward.9} parent=11 // pred_check_branch
        %120 = sbr.rel (%p118) target = $region16
      $region15: #{ncgm_forward.9} parent=11 // pred_region
        _
      $region16: #{ncgm_forward.9} parent=11 // pred_fallthru
        _
      // Predicated region
      $region17: #{ncgm_forward.9} parent=11 // pred_check
        %p121 = pneg %p77
      $region18: #{ncgm_forward.9} parent=11 // pred_check_branch
        %123 = sbr.rel (%p121) target = $region20
      $region19: #{ncgm_forward.9} parent=11 // pred_region
        _
      $region20: #{ncgm_forward.9} parent=11 // pred_fallthru
        _
    $region12: #{ncgm_forward.9} parent=5 // pred_fallthru
      _
    %p124 = scmp.lt.s32.totalorder %s9, 2
    // Predicated region
    $region21: #{ncgm_forward.9} parent=5 // pred_check
      %p125 = pneg %p124
    $region22: #{ncgm_forward.9} parent=5 // pred_check_branch
      %127 = sbr.rel (%p125) target = $region24
    $region23: #{ncgm_forward.9} parent=5 // pred_region
      // Predicated region
      $region25: #{ncgm_forward.9} parent=23 // pred_check
        %p128 = pneg %p29
      $region26: #{ncgm_forward.9} parent=23 // pred_check_branch
        %130 = sbr.rel (%p128) target = $region28
      $region27: #{ncgm_forward.9} parent=23 // pred_region
        %p131 = scmp.lt.s32.totalorder %s9, 1
        %s132 = scalar_select %p131, %s9, 1
        %s133 = smul.addr %s132, 54
        %s134 = smul.addr %s133, 4
        %s135 = scalar_lea.vmem %s0, %s134
      $region28: #{ncgm_forward.9} parent=23 // pred_fallthru
        _
    $region24: #{ncgm_forward.9} parent=5 // pred_fallthru
      _
    %p136 = scmp.le.s32.totalorder 1, %s9
    %p137 = scmp.lt.s32.totalorder %s9, 3
    %p138 = pnand %p136, %p137
    %p139 = pneg %p138
    // Predicated region
    $region29: #{ncgm_forward.9} parent=5 // pred_check
      _
    $region30: #{ncgm_forward.9} parent=5 // pred_check_branch
      %141 = sbr.rel (%p138) target = $region32
    $region31: #{ncgm_forward.9} parent=5 // pred_region
      %s142 = ssub.s32 %s9, 1
      %p143 = scmp.lt.s32.totalorder %s14, 1
      %s144 = scalar_select %p143, %s14, 1
      %s145 = smul.addr %s144, 54
      %s146 = smul.addr %s145, 4
      %s147 = scalar_lea.vmem %s0, %s146
      %p148 = pneg %p35
      %p149 = pneg %p32
      %p150 = pneg %p56
      %p151 = pneg %p53
      %p152 = pneg %p77
      %p153 = pneg %p74
      %p154 = pneg %p103
      %p155 = pneg %p100
      %p156 = scmp.lt.s32.totalorder %s14, 1
      %s157 = scalar_select %p156, %s14, 1
      %s158 = smul.addr %s157, 32
      %s159 = smul.addr %s158, 4
      %s160 = scalar_lea.vmem %s3, %s159
      %p161 = scmp.lt.s32.totalorder %s14, 1
      %s162 = scalar_select %p161, %s14, 1
      %s163 = smul.addr %s162, 54
      %s164 = smul.addr %s163, 4
      %s165 = scalar_lea.vmem %s0, %s164
      %p166 = scmp.lt.s32.totalorder %s14, 1
      %s167 = scalar_select %p166, %s14, 1
      %s168 = smul.addr %s167, 32
      %s169 = smul.addr %s168, 4
      %s170 = scalar_lea.vmem %s3, %s169
      %v172 = vld [vmem:[%s165] sm:$0xf]
      %v173 = vld [vmem:[%s165 + $0x4] sm:$0xf]
      %v174 = vld [vmem:[%s165 + $0xc] sm:$0xf]
      %v175 = vld [vmem:[%s165 + $0x10] sm:$0xf]
      %v176 = vld [vmem:[%s165 + $0x18] sm:$0xf]
      %v177 = vld [vmem:[%s165 + $0x1c] sm:$0xf]
      %v178 = vld [vmem:[%s165 + $0x24] sm:$0xf]
      %v179 = vld [vmem:[%s165 + $0x28] sm:$0xf]
      %v180 = vld [vmem:[%s165 + $0x30] sm:$0xf]
      %v181 = vld [vmem:[%s165 + $0x34] sm:$0xf]
      %v182 = vld [vmem:[%s165 + $0x3c] sm:$0xf]
      %v183 = vld [vmem:[%s165 + $0x40] sm:$0xf]
      %v184 = vld [vmem:[%s165 + $0x48] sm:$0xf]
      %v185 = vld [vmem:[%s165 + $0x4c] sm:$0xf]
      %v186 = vld [vmem:[%s165 + $0x54] sm:$0xf]
      %v187 = vld [vmem:[%s165 + $0x58] sm:$0xf]
      %v188 = vld [vmem:[%s165 + $0x60] sm:$0xf]
      %v189 = vld [vmem:[%s165 + $0x64] sm:$0xf]
      %v190 = vld [vmem:[%s165 + $0x6c] sm:$0xf]
      %v191 = vld [vmem:[%s165 + $0x70] sm:$0xf]
      %v192 = vld [vmem:[%s165 + $0x78] sm:$0xf]
      %v193 = vld [vmem:[%s165 + $0x7c] sm:$0xf]
      %v194 = vld [vmem:[%s165 + $0x84] sm:$0xf]
      %v195 = vld [vmem:[%s165 + $0x88] sm:$0xf]
      %v196 = vld [vmem:[%s165 + $0x90] sm:$0xf]
      %v197 = vld [vmem:[%s165 + $0x94] sm:$0xf]
      %v198 = vld [vmem:[%s165 + $0x9c] sm:$0xf]
      %v199 = vld [vmem:[%s165 + $0xa0] sm:$0xf]
      %v200 = vld [vmem:[%s165 + $0xa8] sm:$0xf]
      %v201 = vld [vmem:[%s165 + $0xac] sm:$0xf]
      %v202 = vld [vmem:[%s165 + $0xb4] sm:$0xf]
      %v203 = vld [vmem:[%s165 + $0xb8] sm:$0xf]
      %v204 = vld [vmem:[%s1] sm:$0xf]
      %v205 = vld [vmem:[%s1 + $0x4] sm:$0xf]
      %v206 = vld [vmem:[%s1 + $0x8] sm:$0xf]
      %v207 = vld [vmem:[%s1 + $0xc] sm:$0xf]
      %v208 = vld [vmem:[%s1 + $0x10] sm:$0xf]
      %v209 = vld [vmem:[%s1 + $0x14] sm:$0xf]
      %v210 = vld [vmem:[%s1 + $0x18] sm:$0xf]
      %v211 = vld [vmem:[%s1 + $0x1c] sm:$0xf]
      %v212 = vld [vmem:[%s165 + $0x8] sm:$0x1]
      %v213 = vld [vmem:[%s165 + $0x14] sm:$0x1]
      %v214 = vld [vmem:[%s165 + $0x20] sm:$0x1]
      %v215 = vld [vmem:[%s165 + $0x2c] sm:$0x1]
      %v216 = vld [vmem:[%s165 + $0x38] sm:$0x1]
      %v217 = vld [vmem:[%s165 + $0x44] sm:$0x1]
      %v218 = vld [vmem:[%s165 + $0x50] sm:$0x1]
      %v219 = vld [vmem:[%s165 + $0x5c] sm:$0x1]
      %v220 = vld [vmem:[%s165 + $0x68] sm:$0x1]
      %v221 = vld [vmem:[%s165 + $0x74] sm:$0x1]
      %v222 = vld [vmem:[%s165 + $0x80] sm:$0x1]
      %v223 = vld [vmem:[%s165 + $0x8c] sm:$0x1]
      %v224 = vld [vmem:[%s165 + $0x98] sm:$0x1]
      %v225 = vld [vmem:[%s165 + $0xa4] sm:$0x1]
      %v226 = vld [vmem:[%s165 + $0xb0] sm:$0x1]
      %v227 = vld [vmem:[%s165 + $0xbc] sm:$0x1]
      %vm228 = vsmask.f32 3328
      %vm229 = vsmask.f32 7440
      %vm230 = vmor %vm228, %vm229
      %v232 = vshrl.u32 %v172, 16
      %v234 = vrot.slane %v232, 4
      %v235 = vshll.u32 %v172, 16
      %v237 = vrot.slane %v235, 5
      %v238 = vor.u32 %v234, %v237
      %v239 = vrot.slane %v238, 4
      %v241 = vshll.u32 %v173, 16
      %v243 = vrot.slane %v241, 5
      %v244 = vsel %vm230, %v239, %v243
      %v245 = vshrl.u32 %v173, 16
      %v247 = vrot.slane %v245, 4
      %v248 = vor.u32 %v247, %v243
      %v249 = vrot.slane %v248, 4
      %v251 = vshll.u32 %v212, 16
      %v253 = vrot.slane %v251, 5
      %v254 = vsel %vm230, %v249, %v253
      %v256 = vshrl.u32 %v174, 16
      %v258 = vrot.slane %v256, 4
      %v259 = vshll.u32 %v174, 16
      %v261 = vrot.slane %v259, 5
      %v262 = vor.u32 %v258, %v261
      %v263 = vrot.slane %v262, 4
      %v265 = vshll.u32 %v175, 16
      %v267 = vrot.slane %v265, 5
      %v268 = vsel %vm230, %v263, %v267
      %v269 = vshrl.u32 %v175, 16
      %v271 = vrot.slane %v269, 4
      %v272 = vor.u32 %v271, %v267
      %v273 = vrot.slane %v272, 4
      %v275 = vshll.u32 %v213, 16
      %v277 = vrot.slane %v275, 5
      %v278 = vsel %vm230, %v273, %v277
      %v280 = vshrl.u32 %v176, 16
      %v282 = vrot.slane %v280, 4
      %v283 = vshll.u32 %v176, 16
      %v285 = vrot.slane %v283, 5
      %v286 = vor.u32 %v282, %v285
      %v287 = vrot.slane %v286, 4
      %v289 = vshll.u32 %v177, 16
      %v291 = vrot.slane %v289, 5
      %v292 = vsel %vm230, %v287, %v291
      %v293 = vshrl.u32 %v177, 16
      %v295 = vrot.slane %v293, 4
      %v296 = vor.u32 %v295, %v291
      %v297 = vrot.slane %v296, 4
      %v299 = vshll.u32 %v214, 16
      %v301 = vrot.slane %v299, 5
      %v302 = vsel %vm230, %v297, %v301
      %v304 = vshrl.u32 %v178, 16
      %v306 = vrot.slane %v304, 4
      %v307 = vshll.u32 %v178, 16
      %v309 = vrot.slane %v307, 5
      %v310 = vor.u32 %v306, %v309
      %v311 = vrot.slane %v310, 4
      %v313 = vshll.u32 %v179, 16
      %v315 = vrot.slane %v313, 5
      %v316 = vsel %vm230, %v311, %v315
      %v317 = vshrl.u32 %v179, 16
      %v319 = vrot.slane %v317, 4
      %v320 = vor.u32 %v319, %v315
      %v321 = vrot.slane %v320, 4
      %v323 = vshll.u32 %v215, 16
      %v325 = vrot.slane %v323, 5
      %v326 = vsel %vm230, %v321, %v325
      %v328 = vshrl.u32 %v180, 16
      %v330 = vrot.slane %v328, 4
      %v331 = vshll.u32 %v180, 16
      %v333 = vrot.slane %v331, 5
      %v334 = vor.u32 %v330, %v333
      %v335 = vrot.slane %v334, 4
      %v337 = vshll.u32 %v181, 16
      %v339 = vrot.slane %v337, 5
      %v340 = vsel %vm230, %v335, %v339
      %v341 = vshrl.u32 %v181, 16
      %v343 = vrot.slane %v341, 4
      %v344 = vor.u32 %v343, %v339
      %v345 = vrot.slane %v344, 4
      %v347 = vshll.u32 %v216, 16
      %v349 = vrot.slane %v347, 5
      %v350 = vsel %vm230, %v345, %v349
      %v352 = vshrl.u32 %v182, 16
      %v354 = vrot.slane %v352, 4
      %v355 = vshll.u32 %v182, 16
      %v357 = vrot.slane %v355, 5
      %v358 = vor.u32 %v354, %v357
      %v359 = vrot.slane %v358, 4
      %v361 = vshll.u32 %v183, 16
      %v363 = vrot.slane %v361, 5
      %v364 = vsel %vm230, %v359, %v363
      %v365 = vshrl.u32 %v183, 16
      %v367 = vrot.slane %v365, 4
      %v368 = vor.u32 %v367, %v363
      %v369 = vrot.slane %v368, 4
      %v371 = vshll.u32 %v217, 16
      %v373 = vrot.slane %v371, 5
      %v374 = vsel %vm230, %v369, %v373
      %v376 = vshrl.u32 %v184, 16
      %v378 = vrot.slane %v376, 4
      %v379 = vshll.u32 %v184, 16
      %v381 = vrot.slane %v379, 5
      %v382 = vor.u32 %v378, %v381
      %v383 = vrot.slane %v382, 4
      %v385 = vshll.u32 %v185, 16
      %v387 = vrot.slane %v385, 5
      %v388 = vsel %vm230, %v383, %v387
      %v389 = vshrl.u32 %v185, 16
      %v391 = vrot.slane %v389, 4
      %v392 = vor.u32 %v391, %v387
      %v393 = vrot.slane %v392, 4
      %v395 = vshll.u32 %v218, 16
      %v397 = vrot.slane %v395, 5
      %v398 = vsel %vm230, %v393, %v397
      %v400 = vshrl.u32 %v186, 16
      %v402 = vrot.slane %v400, 4
      %v403 = vshll.u32 %v186, 16
      %v405 = vrot.slane %v403, 5
      %v406 = vor.u32 %v402, %v405
      %v407 = vrot.slane %v406, 4
      %v409 = vshll.u32 %v187, 16
      %v411 = vrot.slane %v409, 5
      %v412 = vsel %vm230, %v407, %v411
      %v413 = vshrl.u32 %v187, 16
      %v415 = vrot.slane %v413, 4
      %v416 = vor.u32 %v415, %v411
      %v417 = vrot.slane %v416, 4
      %v419 = vshll.u32 %v219, 16
      %v421 = vrot.slane %v419, 5
      %v422 = vsel %vm230, %v417, %v421
      %v424 = vshrl.u32 %v188, 16
      %v426 = vrot.slane %v424, 4
      %v427 = vshll.u32 %v188, 16
      %v429 = vrot.slane %v427, 5
      %v430 = vor.u32 %v426, %v429
      %v431 = vrot.slane %v430, 4
      %v433 = vshll.u32 %v189, 16
      %v435 = vrot.slane %v433, 5
      %v436 = vsel %vm230, %v431, %v435
      %v437 = vshrl.u32 %v189, 16
      %v439 = vrot.slane %v437, 4
      %v440 = vor.u32 %v439, %v435
      %v441 = vrot.slane %v440, 4
      %v443 = vshll.u32 %v220, 16
      %v445 = vrot.slane %v443, 5
      %v446 = vsel %vm230, %v441, %v445
      %v448 = vshrl.u32 %v190, 16
      %v450 = vrot.slane %v448, 4
      %v451 = vshll.u32 %v190, 16
      %v453 = vrot.slane %v451, 5
      %v454 = vor.u32 %v450, %v453
      %v455 = vrot.slane %v454, 4
      %v457 = vshll.u32 %v191, 16
      %v459 = vrot.slane %v457, 5
      %v460 = vsel %vm230, %v455, %v459
      %v461 = vshrl.u32 %v191, 16
      %v463 = vrot.slane %v461, 4
      %v464 = vor.u32 %v463, %v459
      %v465 = vrot.slane %v464, 4
      %v467 = vshll.u32 %v221, 16
      %v469 = vrot.slane %v467, 5
      %v470 = vsel %vm230, %v465, %v469
      %v472 = vshrl.u32 %v192, 16
      %v474 = vrot.slane %v472, 4
      %v475 = vshll.u32 %v192, 16
      %v477 = vrot.slane %v475, 5
      %v478 = vor.u32 %v474, %v477
      %v479 = vrot.slane %v478, 4
      %v481 = vshll.u32 %v193, 16
      %v483 = vrot.slane %v481, 5
      %v484 = vsel %vm230, %v479, %v483
      %v485 = vshrl.u32 %v193, 16
      %v487 = vrot.slane %v485, 4
      %v488 = vor.u32 %v487, %v483
      %v489 = vrot.slane %v488, 4
      %v491 = vshll.u32 %v222, 16
      %v493 = vrot.slane %v491, 5
      %v494 = vsel %vm230, %v489, %v493
      %v496 = vshrl.u32 %v194, 16
      %v498 = vrot.slane %v496, 4
      %v499 = vshll.u32 %v194, 16
      %v501 = vrot.slane %v499, 5
      %v502 = vor.u32 %v498, %v501
      %v503 = vrot.slane %v502, 4
      %v505 = vshll.u32 %v195, 16
      %v507 = vrot.slane %v505, 5
      %v508 = vsel %vm230, %v503, %v507
      %v509 = vshrl.u32 %v195, 16
      %v511 = vrot.slane %v509, 4
      %v512 = vor.u32 %v511, %v507
      %v513 = vrot.slane %v512, 4
      %v515 = vshll.u32 %v223, 16
      %v517 = vrot.slane %v515, 5
      %v518 = vsel %vm230, %v513, %v517
      %v520 = vshrl.u32 %v196, 16
      %v522 = vrot.slane %v520, 4
      %v523 = vshll.u32 %v196, 16
      %v525 = vrot.slane %v523, 5
      %v526 = vor.u32 %v522, %v525
      %v527 = vrot.slane %v526, 4
      %v529 = vshll.u32 %v197, 16
      %v531 = vrot.slane %v529, 5
      %v532 = vsel %vm230, %v527, %v531
      %v533 = vshrl.u32 %v197, 16
      %v535 = vrot.slane %v533, 4
      %v536 = vor.u32 %v535, %v531
      %v537 = vrot.slane %v536, 4
      %v539 = vshll.u32 %v224, 16
      %v541 = vrot.slane %v539, 5
      %v542 = vsel %vm230, %v537, %v541
      %v544 = vshrl.u32 %v198, 16
      %v546 = vrot.slane %v544, 4
      %v547 = vshll.u32 %v198, 16
      %v549 = vrot.slane %v547, 5
      %v550 = vor.u32 %v546, %v549
      %v551 = vrot.slane %v550, 4
      %v553 = vshll.u32 %v199, 16
      %v555 = vrot.slane %v553, 5
      %v556 = vsel %vm230, %v551, %v555
      %v557 = vshrl.u32 %v199, 16
      %v559 = vrot.slane %v557, 4
      %v560 = vor.u32 %v559, %v555
      %v561 = vrot.slane %v560, 4
      %v563 = vshll.u32 %v225, 16
      %v565 = vrot.slane %v563, 5
      %v566 = vsel %vm230, %v561, %v565
      %v568 = vshrl.u32 %v200, 16
      %v570 = vrot.slane %v568, 4
      %v571 = vshll.u32 %v200, 16
      %v573 = vrot.slane %v571, 5
      %v574 = vor.u32 %v570, %v573
      %v575 = vrot.slane %v574, 4
      %v577 = vshll.u32 %v201, 16
      %v579 = vrot.slane %v577, 5
      %v580 = vsel %vm230, %v575, %v579
      %v581 = vshrl.u32 %v201, 16
      %v583 = vrot.slane %v581, 4
      %v584 = vor.u32 %v583, %v579
      %v585 = vrot.slane %v584, 4
      %v587 = vshll.u32 %v226, 16
      %v589 = vrot.slane %v587, 5
      %v590 = vsel %vm230, %v585, %v589
      %v592 = vshrl.u32 %v202, 16
      %v594 = vrot.slane %v592, 4
      %v595 = vshll.u32 %v202, 16
      %v597 = vrot.slane %v595, 5
      %v598 = vor.u32 %v594, %v597
      %v599 = vrot.slane %v598, 4
      %v601 = vshll.u32 %v203, 16
      %v603 = vrot.slane %v601, 5
      %v604 = vsel %vm230, %v599, %v603
      %v605 = vshrl.u32 %v203, 16
      %v607 = vrot.slane %v605, 4
      %v608 = vor.u32 %v607, %v603
      %v609 = vrot.slane %v608, 4
      %v611 = vshll.u32 %v227, 16
      %v613 = vrot.slane %v611, 5
      %v614 = vsel %vm230, %v609, %v613
      %s615 = scalar_lea.vmem %s1, 32
      %v616 = vld [vmem:[%s615] sm:$0xf]
      %v617 = vld [vmem:[%s615 + $0x4] sm:$0xf]
      %v618 = vld [vmem:[%s615 + $0x8] sm:$0xf]
      %v619 = vld [vmem:[%s615 + $0xc] sm:$0xf]
      %v620 = vld [vmem:[%s615 + $0x10] sm:$0xf]
      %v621 = vld [vmem:[%s615 + $0x14] sm:$0xf]
      %v622 = vld [vmem:[%s615 + $0x18] sm:$0xf]
      %v623 = vld [vmem:[%s615 + $0x1c] sm:$0xf]
      %v624 = vunpack.c.l.b16 %v244
      %v625 = vunpack.c.l.b16 %v254
      %v626 = vunpack.c.l.b16 %v268
      %v627 = vunpack.c.l.b16 %v278
      %v628 = vunpack.c.l.b16 %v292
      %v629 = vunpack.c.l.b16 %v302
      %v630 = vunpack.c.l.b16 %v316
      %v631 = vunpack.c.l.b16 %v326
      %v632 = vunpack.c.l.b16 %v340
      %v633 = vunpack.c.l.b16 %v350
      %v634 = vunpack.c.l.b16 %v364
      %v635 = vunpack.c.l.b16 %v374
      %v636 = vunpack.c.l.b16 %v388
      %v637 = vunpack.c.l.b16 %v398
      %v638 = vunpack.c.l.b16 %v412
      %v639 = vunpack.c.l.b16 %v422
      %v640 = vunpack.c.l.b16 %v436
      %v641 = vunpack.c.l.b16 %v446
      %v642 = vunpack.c.l.b16 %v460
      %v643 = vunpack.c.l.b16 %v470
      %v644 = vunpack.c.l.b16 %v484
      %v645 = vunpack.c.l.b16 %v494
      %v646 = vunpack.c.l.b16 %v508
      %v647 = vunpack.c.l.b16 %v518
      %v648 = vunpack.c.l.b16 %v532
      %v649 = vunpack.c.l.b16 %v542
      %v650 = vunpack.c.l.b16 %v556
      %v651 = vunpack.c.l.b16 %v566
      %v652 = vunpack.c.l.b16 %v580
      %v653 = vunpack.c.l.b16 %v590
      %v654 = vunpack.c.l.b16 %v604
      %v655 = vunpack.c.l.b16 %v614
      %v656 = vpack.c.b16 %v625, %v624
      %v657 = vpack.c.b16 %v627, %v626
      %v658 = vpack.c.b16 %v629, %v628
      %v659 = vpack.c.b16 %v631, %v630
      %v660 = vpack.c.b16 %v633, %v632
      %v661 = vpack.c.b16 %v635, %v634
      %v662 = vpack.c.b16 %v637, %v636
      %v663 = vpack.c.b16 %v639, %v638
      %v664 = vpack.c.b16 %v641, %v640
      %v665 = vpack.c.b16 %v643, %v642
      %v666 = vpack.c.b16 %v645, %v644
      %v667 = vpack.c.b16 %v647, %v646
      %v668 = vpack.c.b16 %v649, %v648
      %v669 = vpack.c.b16 %v651, %v650
      %v670 = vpack.c.b16 %v653, %v652
      %v671 = vpack.c.b16 %v655, %v654
      %v680 = vunpack.c.l.b16 %v616
      %v681 = vunpack.c.l.b16 %v617
      %v682 = vunpack.c.l.b16 %v618
      %v683 = vunpack.c.l.b16 %v619
      %v684 = vunpack.c.l.b16 %v620
      %v685 = vunpack.c.l.b16 %v621
      %v686 = vunpack.c.l.b16 %v622
      %v687 = vunpack.c.l.b16 %v623
      %v688 = vpack.c.b16 %v681, %v680
      %v689 = vpack.c.b16 %v683, %v682
      %v690 = vpack.c.b16 %v685, %v684
      %v691 = vpack.c.b16 %v687, %v686
      %vm696 = vcmask 523264
      %v698 = vsel %vm696, %v656, 0
      %v701 = vsel %vm696, %v657, 0
      %v704 = vsel %vm696, %v658, 0
      %v707 = vsel %vm696, %v659, 0
      %v710 = vsel %vm696, %v660, 0
      %v713 = vsel %vm696, %v661, 0
      %v716 = vsel %vm696, %v662, 0
      %v719 = vsel %vm696, %v663, 0
      %v722 = vsel %vm696, %v664, 0
      %v725 = vsel %vm696, %v665, 0
      %v728 = vsel %vm696, %v666, 0
      %v731 = vsel %vm696, %v667, 0
      %v734 = vsel %vm696, %v668, 0
      %v737 = vsel %vm696, %v669, 0
      %v740 = vsel %vm696, %v670, 0
      %v743 = vsel %vm696, %v671, 0
      %745 = vmatprep.subr.bf16.mxu0 0
      %746 = vmatpush1.bf16.msra.mxu0 0
      %747 = vmatprep.subr.bf16.mxu0 0
      %748 = vmatpush1.bf16.msra.mxu0 0
      %749 = vmatprep.subr.bf16.mxu0 0
      %750 = vmatpush1.bf16.msra.mxu0 0
      %751 = vmatprep.subr.bf16.mxu0 0
      %752 = vmatpush1.bf16.msra.mxu0 0
      %753 = vmatprep.subr.bf16.mxu0 0
      %754 = vmatpush1.bf16.msra.mxu0 %v691
      %755 = vmatprep.subr.bf16.mxu0 0
      %756 = vmatpush1.bf16.msra.mxu0 %v690
      %757 = vmatprep.subr.bf16.mxu0 0
      %758 = vmatpush1.bf16.msra.mxu0 %v689
      %759 = vmatprep.subr.bf16.mxu0 0
      %760 = vmatpush1.bf16.msra.mxu0 %v688
      %761 = vmatprep.subr.bf16.mxu0 0
      %762 = vmatpush2.bf16.msra.mxu0 0
      %763 = vmatprep.subr.bf16.mxu0 0
      %764 = vmatpush2.bf16.msra.mxu0 0
      %765 = vmatprep.subr.bf16.mxu0 0
      %766 = vmatpush2.bf16.msra.mxu0 0
      %767 = vmatprep.subr.bf16.mxu0 0
      %768 = vmatpush2.bf16.msra.mxu0 0
      %769 = vmatprep.subr.bf16.mxu0 0
      %770 = vmatpush2.bf16.msra.mxu0 0
      %771 = vmatprep.subr.bf16.mxu0 0
      %772 = vmatpush2.bf16.msra.mxu0 0
      %773 = vmatprep.subr.bf16.mxu0 0
      %774 = vmatpush2.bf16.msra.mxu0 0
      %775 = vmatprep.subr.bf16.mxu0 0
      %776 = vmatpush2.bf16.msra.mxu0 0
      %777 = vmatprep.mubr.bf16.mxu0 0
      %778 = vmatmul.mubr.bf16.gmra.mxu0 %v698
      %v779 = vpop.f32.mrf.mxu0
      %v780 = vadd.f32 0.0, %v779
      %v781 = vpop.f32.mrf.mxu0
      %v782 = vpop.f32.mrf.mxu0
      %v783 = vadd.f32 0.0, %v782
      %v784 = vpop.f32.mrf.mxu0
      %785 = vmatprep.mubr.bf16.mxu0 0
      %786 = vmatmul.mubr.bf16.gmra.mxu0 %v701
      %v787 = vpop.f32.mrf.mxu0
      %v788 = vadd.f32 0.0, %v787
      %v789 = vpop.f32.mrf.mxu0
      %v790 = vpop.f32.mrf.mxu0
      %v791 = vadd.f32 0.0, %v790
      %v792 = vpop.f32.mrf.mxu0
      %793 = vmatprep.mubr.bf16.mxu0 0
      %794 = vmatmul.mubr.bf16.gmra.mxu0 %v704
      %v795 = vpop.f32.mrf.mxu0
      %v796 = vadd.f32 0.0, %v795
      %v797 = vpop.f32.mrf.mxu0
      %v798 = vpop.f32.mrf.mxu0
      %v799 = vadd.f32 0.0, %v798
      %v800 = vpop.f32.mrf.mxu0
      %801 = vmatprep.mubr.bf16.mxu0 0
      %802 = vmatmul.mubr.bf16.gmra.mxu0 %v707
      %v803 = vpop.f32.mrf.mxu0
      %v804 = vadd.f32 0.0, %v803
      %v805 = vpop.f32.mrf.mxu0
      %v806 = vpop.f32.mrf.mxu0
      %v807 = vadd.f32 0.0, %v806
      %v808 = vpop.f32.mrf.mxu0
      %809 = vmatprep.mubr.bf16.mxu0 0
      %810 = vmatmul.mubr.bf16.gmra.mxu0 %v710
      %v811 = vpop.f32.mrf.mxu0
      %v812 = vadd.f32 0.0, %v811
      %v813 = vpop.f32.mrf.mxu0
      %v814 = vpop.f32.mrf.mxu0
      %v815 = vadd.f32 0.0, %v814
      %v816 = vpop.f32.mrf.mxu0
      %817 = vmatprep.mubr.bf16.mxu0 0
      %818 = vmatmul.mubr.bf16.gmra.mxu0 %v713
      %v819 = vpop.f32.mrf.mxu0
      %v820 = vadd.f32 0.0, %v819
      %v821 = vpop.f32.mrf.mxu0
      %v822 = vpop.f32.mrf.mxu0
      %v823 = vadd.f32 0.0, %v822
      %v824 = vpop.f32.mrf.mxu0
      %825 = vmatprep.mubr.bf16.mxu0 0
      %826 = vmatmul.mubr.bf16.gmra.mxu0 %v716
      %v827 = vpop.f32.mrf.mxu0
      %v828 = vadd.f32 0.0, %v827
      %v829 = vpop.f32.mrf.mxu0
      %v830 = vpop.f32.mrf.mxu0
      %v831 = vadd.f32 0.0, %v830
      %v832 = vpop.f32.mrf.mxu0
      %833 = vmatprep.mubr.bf16.mxu0 0
      %834 = vmatmul.mubr.bf16.gmra.mxu0 %v719
      %v835 = vpop.f32.mrf.mxu0
      %v836 = vadd.f32 0.0, %v835
      %v837 = vpop.f32.mrf.mxu0
      %v838 = vpop.f32.mrf.mxu0
      %v839 = vadd.f32 0.0, %v838
      %v840 = vpop.f32.mrf.mxu0
      %841 = vmatprep.mubr.bf16.mxu0 0
      %842 = vmatmul.mubr.bf16.gmra.mxu0 %v722
      %v843 = vpop.f32.mrf.mxu0
      %v844 = vadd.f32 0.0, %v843
      %v845 = vpop.f32.mrf.mxu0
      %v846 = vpop.f32.mrf.mxu0
      %v847 = vadd.f32 0.0, %v846
      %v848 = vpop.f32.mrf.mxu0
      %849 = vmatprep.mubr.bf16.mxu0 0
      %850 = vmatmul.mubr.bf16.gmra.mxu0 %v725
      %v851 = vpop.f32.mrf.mxu0
      %v852 = vadd.f32 0.0, %v851
      %v853 = vpop.f32.mrf.mxu0
      %v854 = vpop.f32.mrf.mxu0
      %v855 = vadd.f32 0.0, %v854
      %v856 = vpop.f32.mrf.mxu0
      %857 = vmatprep.mubr.bf16.mxu0 0
      %858 = vmatmul.mubr.bf16.gmra.mxu0 %v728
      %v859 = vpop.f32.mrf.mxu0
      %v860 = vadd.f32 0.0, %v859
      %v861 = vpop.f32.mrf.mxu0
      %v862 = vpop.f32.mrf.mxu0
      %v863 = vadd.f32 0.0, %v862
      %v864 = vpop.f32.mrf.mxu0
      %865 = vmatprep.mubr.bf16.mxu0 0
      %866 = vmatmul.mubr.bf16.gmra.mxu0 %v731
      %v867 = vpop.f32.mrf.mxu0
      %v868 = vadd.f32 0.0, %v867
      %v869 = vpop.f32.mrf.mxu0
      %v870 = vpop.f32.mrf.mxu0
      %v871 = vadd.f32 0.0, %v870
      %v872 = vpop.f32.mrf.mxu0
      %873 = vmatprep.mubr.bf16.mxu0 0
      %874 = vmatmul.mubr.bf16.gmra.mxu0 %v734
      %v875 = vpop.f32.mrf.mxu0
      %v876 = vadd.f32 0.0, %v875
      %v877 = vpop.f32.mrf.mxu0
      %v878 = vpop.f32.mrf.mxu0
      %v879 = vadd.f32 0.0, %v878
      %v880 = vpop.f32.mrf.mxu0
      %881 = vmatprep.mubr.bf16.mxu0 0
      %882 = vmatmul.mubr.bf16.gmra.mxu0 %v737
      %v883 = vpop.f32.mrf.mxu0
      %v884 = vadd.f32 0.0, %v883
      %v885 = vpop.f32.mrf.mxu0
      %v886 = vpop.f32.mrf.mxu0
      %v887 = vadd.f32 0.0, %v886
      %v888 = vpop.f32.mrf.mxu0
      %889 = vmatprep.mubr.bf16.mxu0 0
      %890 = vmatmul.mubr.bf16.gmra.mxu0 %v740
      %v891 = vpop.f32.mrf.mxu0
      %v892 = vadd.f32 0.0, %v891
      %v893 = vpop.f32.mrf.mxu0
      %v894 = vpop.f32.mrf.mxu0
      %v895 = vadd.f32 0.0, %v894
      %v896 = vpop.f32.mrf.mxu0
      %897 = vmatprep.mubr.bf16.mxu0 0
      %898 = vmatmul.mubr.bf16.gmra.mxu0 %v743
      %v899 = vpop.f32.mrf.mxu0
      %v900 = vadd.f32 0.0, %v899
      %v901 = vpop.f32.mrf.mxu0
      %v902 = vpop.f32.mrf.mxu0
      %v903 = vadd.f32 0.0, %v902
      %v904 = vpop.f32.mrf.mxu0
      %905 = vdwg.mxu0
      %v938 = vunpack.c.l.b16 %v172
      %v939 = vunpack.c.l.b16 %v173
      %v940 = vunpack.c.l.b16 %v174
      %v941 = vunpack.c.l.b16 %v175
      %v942 = vunpack.c.l.b16 %v176
      %v943 = vunpack.c.l.b16 %v177
      %v944 = vunpack.c.l.b16 %v178
      %v945 = vunpack.c.l.b16 %v179
      %v946 = vunpack.c.l.b16 %v180
      %v947 = vunpack.c.l.b16 %v181
      %v948 = vunpack.c.l.b16 %v182
      %v949 = vunpack.c.l.b16 %v183
      %v950 = vunpack.c.l.b16 %v184
      %v951 = vunpack.c.l.b16 %v185
      %v952 = vunpack.c.l.b16 %v186
      %v953 = vunpack.c.l.b16 %v187
      %v954 = vunpack.c.l.b16 %v188
      %v955 = vunpack.c.l.b16 %v189
      %v956 = vunpack.c.l.b16 %v190
      %v957 = vunpack.c.l.b16 %v191
      %v958 = vunpack.c.l.b16 %v192
      %v959 = vunpack.c.l.b16 %v193
      %v960 = vunpack.c.l.b16 %v194
      %v961 = vunpack.c.l.b16 %v195
      %v962 = vunpack.c.l.b16 %v196
      %v963 = vunpack.c.l.b16 %v197
      %v964 = vunpack.c.l.b16 %v198
      %v965 = vunpack.c.l.b16 %v199
      %v966 = vunpack.c.l.b16 %v200
      %v967 = vunpack.c.l.b16 %v201
      %v968 = vunpack.c.l.b16 %v202
      %v969 = vunpack.c.l.b16 %v203
      %v970 = vpack.c.b16 %v939, %v938
      %v971 = vpack.c.b16 %v941, %v940
      %v972 = vpack.c.b16 %v943, %v942
      %v973 = vpack.c.b16 %v945, %v944
      %v974 = vpack.c.b16 %v947, %v946
      %v975 = vpack.c.b16 %v949, %v948
      %v976 = vpack.c.b16 %v951, %v950
      %v977 = vpack.c.b16 %v953, %v952
      %v978 = vpack.c.b16 %v955, %v954
      %v979 = vpack.c.b16 %v957, %v956
      %v980 = vpack.c.b16 %v959, %v958
      %v981 = vpack.c.b16 %v961, %v960
      %v982 = vpack.c.b16 %v963, %v962
      %v983 = vpack.c.b16 %v965, %v964
      %v984 = vpack.c.b16 %v967, %v966
      %v985 = vpack.c.b16 %v969, %v968
      %v994 = vunpack.c.l.b16 %v204
      %v995 = vunpack.c.l.b16 %v205
      %v996 = vunpack.c.l.b16 %v206
      %v997 = vunpack.c.l.b16 %v207
      %v998 = vunpack.c.l.b16 %v208
      %v999 = vunpack.c.l.b16 %v209
      %v1000 = vunpack.c.l.b16 %v210
      %v1001 = vunpack.c.l.b16 %v211
      %v1002 = vpack.c.b16 %v995, %v994
      %v1003 = vpack.c.b16 %v997, %v996
      %v1004 = vpack.c.b16 %v999, %v998
      %v1005 = vpack.c.b16 %v1001, %v1000
      %v1011 = vsel %vm696, %v970, 0
      %v1014 = vsel %vm696, %v971, 0
      %v1017 = vsel %vm696, %v972, 0
      %v1020 = vsel %vm696, %v973, 0
      %v1023 = vsel %vm696, %v974, 0
      %v1026 = vsel %vm696, %v975, 0
      %v1029 = vsel %vm696, %v976, 0
      %v1032 = vsel %vm696, %v977, 0
      %v1035 = vsel %vm696, %v978, 0
      %v1038 = vsel %vm696, %v979, 0
      %v1041 = vsel %vm696, %v980, 0
      %v1044 = vsel %vm696, %v981, 0
      %v1047 = vsel %vm696, %v982, 0
      %v1050 = vsel %vm696, %v983, 0
      %v1053 = vsel %vm696, %v984, 0
      %v1056 = vsel %vm696, %v985, 0
      %1058 = vmatprep.subr.bf16.mxu0 0
      %1059 = vmatpush1.bf16.msra.mxu0 0
      %1060 = vmatprep.subr.bf16.mxu0 0
      %1061 = vmatpush1.bf16.msra.mxu0 0
      %1062 = vmatprep.subr.bf16.mxu0 0
      %1063 = vmatpush1.bf16.msra.mxu0 0
      %1064 = vmatprep.subr.bf16.mxu0 0
      %1065 = vmatpush1.bf16.msra.mxu0 0
      %1066 = vmatprep.subr.bf16.mxu0 0
      %1067 = vmatpush1.bf16.msra.mxu0 %v1005
      %1068 = vmatprep.subr.bf16.mxu0 0
      %1069 = vmatpush1.bf16.msra.mxu0 %v1004
      %1070 = vmatprep.subr.bf16.mxu0 0
      %1071 = vmatpush1.bf16.msra.mxu0 %v1003
      %1072 = vmatprep.subr.bf16.mxu0 0
      %1073 = vmatpush1.bf16.msra.mxu0 %v1002
      %1074 = vmatprep.subr.bf16.mxu0 0
      %1075 = vmatpush2.bf16.msra.mxu0 0
      %1076 = vmatprep.subr.bf16.mxu0 0
      %1077 = vmatpush2.bf16.msra.mxu0 0
      %1078 = vmatprep.subr.bf16.mxu0 0
      %1079 = vmatpush2.bf16.msra.mxu0 0
      %1080 = vmatprep.subr.bf16.mxu0 0
      %1081 = vmatpush2.bf16.msra.mxu0 0
      %1082 = vmatprep.subr.bf16.mxu0 0
      %1083 = vmatpush2.bf16.msra.mxu0 0
      %1084 = vmatprep.subr.bf16.mxu0 0
      %1085 = vmatpush2.bf16.msra.mxu0 0
      %1086 = vmatprep.subr.bf16.mxu0 0
      %1087 = vmatpush2.bf16.msra.mxu0 0
      %1088 = vmatprep.subr.bf16.mxu0 0
      %1089 = vmatpush2.bf16.msra.mxu0 0
      %1090 = vmatprep.mubr.bf16.mxu0 0
      %1091 = vmatmul.mubr.bf16.gmra.mxu0 %v1011
      %v1092 = vpop.f32.mrf.mxu0
      %v1093 = vadd.f32 %v780, %v1092
      %v1094 = vpop.f32.mrf.mxu0
      %v1095 = vpop.f32.mrf.mxu0
      %v1096 = vadd.f32 %v783, %v1095
      %v1097 = vpop.f32.mrf.mxu0
      %1098 = vmatprep.mubr.bf16.mxu0 0
      %1099 = vmatmul.mubr.bf16.gmra.mxu0 %v1014
      %v1100 = vpop.f32.mrf.mxu0
      %v1101 = vadd.f32 %v788, %v1100
      %v1102 = vpop.f32.mrf.mxu0
      %v1103 = vpop.f32.mrf.mxu0
      %v1104 = vadd.f32 %v791, %v1103
      %v1105 = vpop.f32.mrf.mxu0
      %1106 = vmatprep.mubr.bf16.mxu0 0
      %1107 = vmatmul.mubr.bf16.gmra.mxu0 %v1017
      %v1108 = vpop.f32.mrf.mxu0
      %v1109 = vadd.f32 %v796, %v1108
      %v1110 = vpop.f32.mrf.mxu0
      %v1111 = vpop.f32.mrf.mxu0
      %v1112 = vadd.f32 %v799, %v1111
      %v1113 = vpop.f32.mrf.mxu0
      %1114 = vmatprep.mubr.bf16.mxu0 0
      %1115 = vmatmul.mubr.bf16.gmra.mxu0 %v1020
      %v1116 = vpop.f32.mrf.mxu0
      %v1117 = vadd.f32 %v804, %v1116
      %v1118 = vpop.f32.mrf.mxu0
      %v1119 = vpop.f32.mrf.mxu0
      %v1120 = vadd.f32 %v807, %v1119
      %v1121 = vpop.f32.mrf.mxu0
      %1122 = vmatprep.mubr.bf16.mxu0 0
      %1123 = vmatmul.mubr.bf16.gmra.mxu0 %v1023
      %v1124 = vpop.f32.mrf.mxu0
      %v1125 = vadd.f32 %v812, %v1124
      %v1126 = vpop.f32.mrf.mxu0
      %v1127 = vpop.f32.mrf.mxu0
      %v1128 = vadd.f32 %v815, %v1127
      %v1129 = vpop.f32.mrf.mxu0
      %1130 = vmatprep.mubr.bf16.mxu0 0
      %1131 = vmatmul.mubr.bf16.gmra.mxu0 %v1026
      %v1132 = vpop.f32.mrf.mxu0
      %v1133 = vadd.f32 %v820, %v1132
      %v1134 = vpop.f32.mrf.mxu0
      %v1135 = vpop.f32.mrf.mxu0
      %v1136 = vadd.f32 %v823, %v1135
      %v1137 = vpop.f32.mrf.mxu0
      %1138 = vmatprep.mubr.bf16.mxu0 0
      %1139 = vmatmul.mubr.bf16.gmra.mxu0 %v1029
      %v1140 = vpop.f32.mrf.mxu0
      %v1141 = vadd.f32 %v828, %v1140
      %v1142 = vpop.f32.mrf.mxu0
      %v1143 = vpop.f32.mrf.mxu0
      %v1144 = vadd.f32 %v831, %v1143
      %v1145 = vpop.f32.mrf.mxu0
      %1146 = vmatprep.mubr.bf16.mxu0 0
      %1147 = vmatmul.mubr.bf16.gmra.mxu0 %v1032
      %v1148 = vpop.f32.mrf.mxu0
      %v1149 = vadd.f32 %v836, %v1148
      %v1150 = vpop.f32.mrf.mxu0
      %v1151 = vpop.f32.mrf.mxu0
      %v1152 = vadd.f32 %v839, %v1151
      %v1153 = vpop.f32.mrf.mxu0
      %1154 = vmatprep.mubr.bf16.mxu0 0
      %1155 = vmatmul.mubr.bf16.gmra.mxu0 %v1035
      %v1156 = vpop.f32.mrf.mxu0
      %v1157 = vadd.f32 %v844, %v1156
      %v1158 = vpop.f32.mrf.mxu0
      %v1159 = vpop.f32.mrf.mxu0
      %v1160 = vadd.f32 %v847, %v1159
      %v1161 = vpop.f32.mrf.mxu0
      %1162 = vmatprep.mubr.bf16.mxu0 0
      %1163 = vmatmul.mubr.bf16.gmra.mxu0 %v1038
      %v1164 = vpop.f32.mrf.mxu0
      %v1165 = vadd.f32 %v852, %v1164
      %v1166 = vpop.f32.mrf.mxu0
      %v1167 = vpop.f32.mrf.mxu0
      %v1168 = vadd.f32 %v855, %v1167
      %v1169 = vpop.f32.mrf.mxu0
      %1170 = vmatprep.mubr.bf16.mxu0 0
      %1171 = vmatmul.mubr.bf16.gmra.mxu0 %v1041
      %v1172 = vpop.f32.mrf.mxu0
      %v1173 = vadd.f32 %v860, %v1172
      %v1174 = vpop.f32.mrf.mxu0
      %v1175 = vpop.f32.mrf.mxu0
      %v1176 = vadd.f32 %v863, %v1175
      %v1177 = vpop.f32.mrf.mxu0
      %1178 = vmatprep.mubr.bf16.mxu0 0
      %1179 = vmatmul.mubr.bf16.gmra.mxu0 %v1044
      %v1180 = vpop.f32.mrf.mxu0
      %v1181 = vadd.f32 %v868, %v1180
      %v1182 = vpop.f32.mrf.mxu0
      %v1183 = vpop.f32.mrf.mxu0
      %v1184 = vadd.f32 %v871, %v1183
      %v1185 = vpop.f32.mrf.mxu0
      %1186 = vmatprep.mubr.bf16.mxu0 0
      %1187 = vmatmul.mubr.bf16.gmra.mxu0 %v1047
      %v1188 = vpop.f32.mrf.mxu0
      %v1189 = vadd.f32 %v876, %v1188
      %v1190 = vpop.f32.mrf.mxu0
      %v1191 = vpop.f32.mrf.mxu0
      %v1192 = vadd.f32 %v879, %v1191
      %v1193 = vpop.f32.mrf.mxu0
      %1194 = vmatprep.mubr.bf16.mxu0 0
      %1195 = vmatmul.mubr.bf16.gmra.mxu0 %v1050
      %v1196 = vpop.f32.mrf.mxu0
      %v1197 = vadd.f32 %v884, %v1196
      %v1198 = vpop.f32.mrf.mxu0
      %v1199 = vpop.f32.mrf.mxu0
      %v1200 = vadd.f32 %v887, %v1199
      %v1201 = vpop.f32.mrf.mxu0
      %1202 = vmatprep.mubr.bf16.mxu0 0
      %1203 = vmatmul.mubr.bf16.gmra.mxu0 %v1053
      %v1204 = vpop.f32.mrf.mxu0
      %v1205 = vadd.f32 %v892, %v1204
      %v1206 = vpop.f32.mrf.mxu0
      %v1207 = vpop.f32.mrf.mxu0
      %v1208 = vadd.f32 %v895, %v1207
      %v1209 = vpop.f32.mrf.mxu0
      %1210 = vmatprep.mubr.bf16.mxu0 0
      %1211 = vmatmul.mubr.bf16.gmra.mxu0 %v1056
      %v1212 = vpop.f32.mrf.mxu0
      %v1213 = vadd.f32 %v900, %v1212
      %v1214 = vpop.f32.mrf.mxu0
      %v1215 = vpop.f32.mrf.mxu0
      %v1216 = vadd.f32 %v903, %v1215
      %v1217 = vpop.f32.mrf.mxu0
      %1218 = vdwg.mxu0
      %v1219 = vld [vmem:[%s165] sm:$0xe]
      %v1220 = vld [vmem:[%s165 + $0xc] sm:$0xe]
      %v1221 = vld [vmem:[%s165 + $0x18] sm:$0xe]
      %v1222 = vld [vmem:[%s165 + $0x24] sm:$0xe]
      %v1223 = vld [vmem:[%s165 + $0x30] sm:$0xe]
      %v1224 = vld [vmem:[%s165 + $0x3c] sm:$0xe]
      %v1225 = vld [vmem:[%s165 + $0x48] sm:$0xe]
      %v1226 = vld [vmem:[%s165 + $0x54] sm:$0xe]
      %v1227 = vld [vmem:[%s165 + $0x60] sm:$0xe]
      %v1228 = vld [vmem:[%s165 + $0x6c] sm:$0xe]
      %v1229 = vld [vmem:[%s165 + $0x78] sm:$0xe]
      %v1230 = vld [vmem:[%s165 + $0x84] sm:$0xe]
      %v1231 = vld [vmem:[%s165 + $0x90] sm:$0xe]
      %v1232 = vld [vmem:[%s165 + $0x9c] sm:$0xe]
      %v1233 = vld [vmem:[%s165 + $0xa8] sm:$0xe]
      %v1234 = vld [vmem:[%s165 + $0xb4] sm:$0xe]
      %vm1267 = vcmask 1042432
      %vm1268 = vcmask 1046532
      %vm1269 = vmor %vm1267, %vm1268
      %v1270 = vrot.slane %v1219, 5
      %v1271 = vrot.slane %v1270, 4
      %v1272 = vrot.slane %v173, 5
      %v1273 = vsel %vm1269, %v1271, %v1272
      %v1274 = vrot.slane %v1272, 4
      %v1275 = vrot.slane %v212, 5
      %v1276 = vsel %vm1269, %v1274, %v1275
      %v1277 = vrot.slane %v1220, 5
      %v1278 = vrot.slane %v1277, 4
      %v1279 = vrot.slane %v175, 5
      %v1280 = vsel %vm1269, %v1278, %v1279
      %v1281 = vrot.slane %v1279, 4
      %v1282 = vrot.slane %v213, 5
      %v1283 = vsel %vm1269, %v1281, %v1282
      %v1284 = vrot.slane %v1221, 5
      %v1285 = vrot.slane %v1284, 4
      %v1286 = vrot.slane %v177, 5
      %v1287 = vsel %vm1269, %v1285, %v1286
      %v1288 = vrot.slane %v1286, 4
      %v1289 = vrot.slane %v214, 5
      %v1290 = vsel %vm1269, %v1288, %v1289
      %v1291 = vrot.slane %v1222, 5
      %v1292 = vrot.slane %v1291, 4
      %v1293 = vrot.slane %v179, 5
      %v1294 = vsel %vm1269, %v1292, %v1293
      %v1295 = vrot.slane %v1293, 4
      %v1296 = vrot.slane %v215, 5
      %v1297 = vsel %vm1269, %v1295, %v1296
      %v1298 = vrot.slane %v1223, 5
      %v1299 = vrot.slane %v1298, 4
      %v1300 = vrot.slane %v181, 5
      %v1301 = vsel %vm1269, %v1299, %v1300
      %v1302 = vrot.slane %v1300, 4
      %v1303 = vrot.slane %v216, 5
      %v1304 = vsel %vm1269, %v1302, %v1303
      %v1305 = vrot.slane %v1224, 5
      %v1306 = vrot.slane %v1305, 4
      %v1307 = vrot.slane %v183, 5
      %v1308 = vsel %vm1269, %v1306, %v1307
      %v1309 = vrot.slane %v1307, 4
      %v1310 = vrot.slane %v217, 5
      %v1311 = vsel %vm1269, %v1309, %v1310
      %v1312 = vrot.slane %v1225, 5
      %v1313 = vrot.slane %v1312, 4
      %v1314 = vrot.slane %v185, 5
      %v1315 = vsel %vm1269, %v1313, %v1314
      %v1316 = vrot.slane %v1314, 4
      %v1317 = vrot.slane %v218, 5
      %v1318 = vsel %vm1269, %v1316, %v1317
      %v1319 = vrot.slane %v1226, 5
      %v1320 = vrot.slane %v1319, 4
      %v1321 = vrot.slane %v187, 5
      %v1322 = vsel %vm1269, %v1320, %v1321
      %v1323 = vrot.slane %v1321, 4
      %v1324 = vrot.slane %v219, 5
      %v1325 = vsel %vm1269, %v1323, %v1324
      %v1326 = vrot.slane %v1227, 5
      %v1327 = vrot.slane %v1326, 4
      %v1328 = vrot.slane %v189, 5
      %v1329 = vsel %vm1269, %v1327, %v1328
      %v1330 = vrot.slane %v1328, 4
      %v1331 = vrot.slane %v220, 5
      %v1332 = vsel %vm1269, %v1330, %v1331
      %v1333 = vrot.slane %v1228, 5
      %v1334 = vrot.slane %v1333, 4
      %v1335 = vrot.slane %v191, 5
      %v1336 = vsel %vm1269, %v1334, %v1335
      %v1337 = vrot.slane %v1335, 4
      %v1338 = vrot.slane %v221, 5
      %v1339 = vsel %vm1269, %v1337, %v1338
      %v1340 = vrot.slane %v1229, 5
      %v1341 = vrot.slane %v1340, 4
      %v1342 = vrot.slane %v193, 5
      %v1343 = vsel %vm1269, %v1341, %v1342
      %v1344 = vrot.slane %v1342, 4
      %v1345 = vrot.slane %v222, 5
      %v1346 = vsel %vm1269, %v1344, %v1345
      %v1347 = vrot.slane %v1230, 5
      %v1348 = vrot.slane %v1347, 4
      %v1349 = vrot.slane %v195, 5
      %v1350 = vsel %vm1269, %v1348, %v1349
      %v1351 = vrot.slane %v1349, 4
      %v1352 = vrot.slane %v223, 5
      %v1353 = vsel %vm1269, %v1351, %v1352
      %v1354 = vrot.slane %v1231, 5
      %v1355 = vrot.slane %v1354, 4
      %v1356 = vrot.slane %v197, 5
      %v1357 = vsel %vm1269, %v1355, %v1356
      %v1358 = vrot.slane %v1356, 4
      %v1359 = vrot.slane %v224, 5
      %v1360 = vsel %vm1269, %v1358, %v1359
      %v1361 = vrot.slane %v1232, 5
      %v1362 = vrot.slane %v1361, 4
      %v1363 = vrot.slane %v199, 5
      %v1364 = vsel %vm1269, %v1362, %v1363
      %v1365 = vrot.slane %v1363, 4
      %v1366 = vrot.slane %v225, 5
      %v1367 = vsel %vm1269, %v1365, %v1366
      %v1368 = vrot.slane %v1233, 5
      %v1369 = vrot.slane %v1368, 4
      %v1370 = vrot.slane %v201, 5
      %v1371 = vsel %vm1269, %v1369, %v1370
      %v1372 = vrot.slane %v1370, 4
      %v1373 = vrot.slane %v226, 5
      %v1374 = vsel %vm1269, %v1372, %v1373
      %v1375 = vrot.slane %v1234, 5
      %v1376 = vrot.slane %v1375, 4
      %v1377 = vrot.slane %v203, 5
      %v1378 = vsel %vm1269, %v1376, %v1377
      %v1379 = vrot.slane %v1377, 4
      %v1380 = vrot.slane %v227, 5
      %v1381 = vsel %vm1269, %v1379, %v1380
      %s1382 = scalar_lea.vmem %s1, 64
      %v1383 = vld [vmem:[%s1382] sm:$0xf]
      %v1384 = vld [vmem:[%s1382 + $0x4] sm:$0xf]
      %v1385 = vld [vmem:[%s1382 + $0x8] sm:$0xf]
      %v1386 = vld [vmem:[%s1382 + $0xc] sm:$0xf]
      %v1387 = vld [vmem:[%s1382 + $0x10] sm:$0xf]
      %v1388 = vld [vmem:[%s1382 + $0x14] sm:$0xf]
      %v1389 = vld [vmem:[%s1382 + $0x18] sm:$0xf]
      %v1390 = vld [vmem:[%s1382 + $0x1c] sm:$0xf]
      %v1391 = vunpack.c.l.b16 %v1273
      %v1392 = vunpack.c.l.b16 %v1276
      %v1393 = vunpack.c.l.b16 %v1280
      %v1394 = vunpack.c.l.b16 %v1283
      %v1395 = vunpack.c.l.b16 %v1287
      %v1396 = vunpack.c.l.b16 %v1290
      %v1397 = vunpack.c.l.b16 %v1294
      %v1398 = vunpack.c.l.b16 %v1297
      %v1399 = vunpack.c.l.b16 %v1301
      %v1400 = vunpack.c.l.b16 %v1304
      %v1401 = vunpack.c.l.b16 %v1308
      %v1402 = vunpack.c.l.b16 %v1311
      %v1403 = vunpack.c.l.b16 %v1315
      %v1404 = vunpack.c.l.b16 %v1318
      %v1405 = vunpack.c.l.b16 %v1322
      %v1406 = vunpack.c.l.b16 %v1325
      %v1407 = vunpack.c.l.b16 %v1329
      %v1408 = vunpack.c.l.b16 %v1332
      %v1409 = vunpack.c.l.b16 %v1336
      %v1410 = vunpack.c.l.b16 %v1339
      %v1411 = vunpack.c.l.b16 %v1343
      %v1412 = vunpack.c.l.b16 %v1346
      %v1413 = vunpack.c.l.b16 %v1350
      %v1414 = vunpack.c.l.b16 %v1353
      %v1415 = vunpack.c.l.b16 %v1357
      %v1416 = vunpack.c.l.b16 %v1360
      %v1417 = vunpack.c.l.b16 %v1364
      %v1418 = vunpack.c.l.b16 %v1367
      %v1419 = vunpack.c.l.b16 %v1371
      %v1420 = vunpack.c.l.b16 %v1374
      %v1421 = vunpack.c.l.b16 %v1378
      %v1422 = vunpack.c.l.b16 %v1381
      %v1423 = vpack.c.b16 %v1392, %v1391
      %v1424 = vpack.c.b16 %v1394, %v1393
      %v1425 = vpack.c.b16 %v1396, %v1395
      %v1426 = vpack.c.b16 %v1398, %v1397
      %v1427 = vpack.c.b16 %v1400, %v1399
      %v1428 = vpack.c.b16 %v1402, %v1401
      %v1429 = vpack.c.b16 %v1404, %v1403
      %v1430 = vpack.c.b16 %v1406, %v1405
      %v1431 = vpack.c.b16 %v1408, %v1407
      %v1432 = vpack.c.b16 %v1410, %v1409
      %v1433 = vpack.c.b16 %v1412, %v1411
      %v1434 = vpack.c.b16 %v1414, %v1413
      %v1435 = vpack.c.b16 %v1416, %v1415
      %v1436 = vpack.c.b16 %v1418, %v1417
      %v1437 = vpack.c.b16 %v1420, %v1419
      %v1438 = vpack.c.b16 %v1422, %v1421
      %v1447 = vunpack.c.l.b16 %v1383
      %v1448 = vunpack.c.l.b16 %v1384
      %v1449 = vunpack.c.l.b16 %v1385
      %v1450 = vunpack.c.l.b16 %v1386
      %v1451 = vunpack.c.l.b16 %v1387
      %v1452 = vunpack.c.l.b16 %v1388
      %v1453 = vunpack.c.l.b16 %v1389
      %v1454 = vunpack.c.l.b16 %v1390
      %v1455 = vpack.c.b16 %v1448, %v1447
      %v1456 = vpack.c.b16 %v1450, %v1449
      %v1457 = vpack.c.b16 %v1452, %v1451
      %v1458 = vpack.c.b16 %v1454, %v1453
      %v1464 = vsel %vm696, %v1423, 0
      %v1467 = vsel %vm696, %v1424, 0
      %v1470 = vsel %vm696, %v1425, 0
      %v1473 = vsel %vm696, %v1426, 0
      %v1476 = vsel %vm696, %v1427, 0
      %v1479 = vsel %vm696, %v1428, 0
      %v1482 = vsel %vm696, %v1429, 0
      %v1485 = vsel %vm696, %v1430, 0
      %v1488 = vsel %vm696, %v1431, 0
      %v1491 = vsel %vm696, %v1432, 0
      %v1494 = vsel %vm696, %v1433, 0
      %v1497 = vsel %vm696, %v1434, 0
      %v1500 = vsel %vm696, %v1435, 0
      %v1503 = vsel %vm696, %v1436, 0
      %v1506 = vsel %vm696, %v1437, 0
      %v1509 = vsel %vm696, %v1438, 0
      %1511 = vmatprep.subr.bf16.mxu0 0
      %1512 = vmatpush1.bf16.msra.mxu0 0
      %1513 = vmatprep.subr.bf16.mxu0 0
      %1514 = vmatpush1.bf16.msra.mxu0 0
      %1515 = vmatprep.subr.bf16.mxu0 0
      %1516 = vmatpush1.bf16.msra.mxu0 0
      %1517 = vmatprep.subr.bf16.mxu0 0
      %1518 = vmatpush1.bf16.msra.mxu0 0
      %1519 = vmatprep.subr.bf16.mxu0 0
      %1520 = vmatpush1.bf16.msra.mxu0 %v1458
      %1521 = vmatprep.subr.bf16.mxu0 0
      %1522 = vmatpush1.bf16.msra.mxu0 %v1457
      %1523 = vmatprep.subr.bf16.mxu0 0
      %1524 = vmatpush1.bf16.msra.mxu0 %v1456
      %1525 = vmatprep.subr.bf16.mxu0 0
      %1526 = vmatpush1.bf16.msra.mxu0 %v1455
      %1527 = vmatprep.subr.bf16.mxu0 0
      %1528 = vmatpush2.bf16.msra.mxu0 0
      %1529 = vmatprep.subr.bf16.mxu0 0
      %1530 = vmatpush2.bf16.msra.mxu0 0
      %1531 = vmatprep.subr.bf16.mxu0 0
      %1532 = vmatpush2.bf16.msra.mxu0 0
      %1533 = vmatprep.subr.bf16.mxu0 0
      %1534 = vmatpush2.bf16.msra.mxu0 0
      %1535 = vmatprep.subr.bf16.mxu0 0
      %1536 = vmatpush2.bf16.msra.mxu0 0
      %1537 = vmatprep.subr.bf16.mxu0 0
      %1538 = vmatpush2.bf16.msra.mxu0 0
      %1539 = vmatprep.subr.bf16.mxu0 0
      %1540 = vmatpush2.bf16.msra.mxu0 0
      %1541 = vmatprep.subr.bf16.mxu0 0
      %1542 = vmatpush2.bf16.msra.mxu0 0
      %1543 = vmatprep.mubr.bf16.mxu0 0
      %1544 = vmatmul.mubr.bf16.gmra.mxu0 %v1464
      %v1545 = vpop.f32.mrf.mxu0
      %v1546 = vadd.f32 0.0, %v1545
      %v1547 = vpop.f32.mrf.mxu0
      %v1548 = vpop.f32.mrf.mxu0
      %v1549 = vadd.f32 0.0, %v1548
      %v1550 = vpop.f32.mrf.mxu0
      %1551 = vmatprep.mubr.bf16.mxu0 0
      %1552 = vmatmul.mubr.bf16.gmra.mxu0 %v1467
      %v1553 = vpop.f32.mrf.mxu0
      %v1554 = vadd.f32 0.0, %v1553
      %v1555 = vpop.f32.mrf.mxu0
      %v1556 = vpop.f32.mrf.mxu0
      %v1557 = vadd.f32 0.0, %v1556
      %v1558 = vpop.f32.mrf.mxu0
      %1559 = vmatprep.mubr.bf16.mxu0 0
      %1560 = vmatmul.mubr.bf16.gmra.mxu0 %v1470
      %v1561 = vpop.f32.mrf.mxu0
      %v1562 = vadd.f32 0.0, %v1561
      %v1563 = vpop.f32.mrf.mxu0
      %v1564 = vpop.f32.mrf.mxu0
      %v1565 = vadd.f32 0.0, %v1564
      %v1566 = vpop.f32.mrf.mxu0
      %1567 = vmatprep.mubr.bf16.mxu0 0
      %1568 = vmatmul.mubr.bf16.gmra.mxu0 %v1473
      %v1569 = vpop.f32.mrf.mxu0
      %v1570 = vadd.f32 0.0, %v1569
      %v1571 = vpop.f32.mrf.mxu0
      %v1572 = vpop.f32.mrf.mxu0
      %v1573 = vadd.f32 0.0, %v1572
      %v1574 = vpop.f32.mrf.mxu0
      %1575 = vmatprep.mubr.bf16.mxu0 0
      %1576 = vmatmul.mubr.bf16.gmra.mxu0 %v1476
      %v1577 = vpop.f32.mrf.mxu0
      %v1578 = vadd.f32 0.0, %v1577
      %v1579 = vpop.f32.mrf.mxu0
      %v1580 = vpop.f32.mrf.mxu0
      %v1581 = vadd.f32 0.0, %v1580
      %v1582 = vpop.f32.mrf.mxu0
      %1583 = vmatprep.mubr.bf16.mxu0 0
      %1584 = vmatmul.mubr.bf16.gmra.mxu0 %v1479
      %v1585 = vpop.f32.mrf.mxu0
      %v1586 = vadd.f32 0.0, %v1585
      %v1587 = vpop.f32.mrf.mxu0
      %v1588 = vpop.f32.mrf.mxu0
      %v1589 = vadd.f32 0.0, %v1588
      %v1590 = vpop.f32.mrf.mxu0
      %1591 = vmatprep.mubr.bf16.mxu0 0
      %1592 = vmatmul.mubr.bf16.gmra.mxu0 %v1482
      %v1593 = vpop.f32.mrf.mxu0
      %v1594 = vadd.f32 0.0, %v1593
      %v1595 = vpop.f32.mrf.mxu0
      %v1596 = vpop.f32.mrf.mxu0
      %v1597 = vadd.f32 0.0, %v1596
      %v1598 = vpop.f32.mrf.mxu0
      %1599 = vmatprep.mubr.bf16.mxu0 0
      %1600 = vmatmul.mubr.bf16.gmra.mxu0 %v1485
      %v1601 = vpop.f32.mrf.mxu0
      %v1602 = vadd.f32 0.0, %v1601
      %v1603 = vpop.f32.mrf.mxu0
      %v1604 = vpop.f32.mrf.mxu0
      %v1605 = vadd.f32 0.0, %v1604
      %v1606 = vpop.f32.mrf.mxu0
      %1607 = vmatprep.mubr.bf16.mxu0 0
      %1608 = vmatmul.mubr.bf16.gmra.mxu0 %v1488
      %v1609 = vpop.f32.mrf.mxu0
      %v1610 = vadd.f32 0.0, %v1609
      %v1611 = vpop.f32.mrf.mxu0
      %v1612 = vpop.f32.mrf.mxu0
      %v1613 = vadd.f32 0.0, %v1612
      %v1614 = vpop.f32.mrf.mxu0
      %1615 = vmatprep.mubr.bf16.mxu0 0
      %1616 = vmatmul.mubr.bf16.gmra.mxu0 %v1491
      %v1617 = vpop.f32.mrf.mxu0
      %v1618 = vadd.f32 0.0, %v1617
      %v1619 = vpop.f32.mrf.mxu0
      %v1620 = vpop.f32.mrf.mxu0
      %v1621 = vadd.f32 0.0, %v1620
      %v1622 = vpop.f32.mrf.mxu0
      %1623 = vmatprep.mubr.bf16.mxu0 0
      %1624 = vmatmul.mubr.bf16.gmra.mxu0 %v1494
      %v1625 = vpop.f32.mrf.mxu0
      %v1626 = vadd.f32 0.0, %v1625
      %v1627 = vpop.f32.mrf.mxu0
      %v1628 = vpop.f32.mrf.mxu0
      %v1629 = vadd.f32 0.0, %v1628
      %v1630 = vpop.f32.mrf.mxu0
      %1631 = vmatprep.mubr.bf16.mxu0 0
      %1632 = vmatmul.mubr.bf16.gmra.mxu0 %v1497
      %v1633 = vpop.f32.mrf.mxu0
      %v1634 = vadd.f32 0.0, %v1633
      %v1635 = vpop.f32.mrf.mxu0
      %v1636 = vpop.f32.mrf.mxu0
      %v1637 = vadd.f32 0.0, %v1636
      %v1638 = vpop.f32.mrf.mxu0
      %1639 = vmatprep.mubr.bf16.mxu0 0
      %1640 = vmatmul.mubr.bf16.gmra.mxu0 %v1500
      %v1641 = vpop.f32.mrf.mxu0
      %v1642 = vadd.f32 0.0, %v1641
      %v1643 = vpop.f32.mrf.mxu0
      %v1644 = vpop.f32.mrf.mxu0
      %v1645 = vadd.f32 0.0, %v1644
      %v1646 = vpop.f32.mrf.mxu0
      %1647 = vmatprep.mubr.bf16.mxu0 0
      %1648 = vmatmul.mubr.bf16.gmra.mxu0 %v1503
      %v1649 = vpop.f32.mrf.mxu0
      %v1650 = vadd.f32 0.0, %v1649
      %v1651 = vpop.f32.mrf.mxu0
      %v1652 = vpop.f32.mrf.mxu0
      %v1653 = vadd.f32 0.0, %v1652
      %v1654 = vpop.f32.mrf.mxu0
      %1655 = vmatprep.mubr.bf16.mxu0 0
      %1656 = vmatmul.mubr.bf16.gmra.mxu0 %v1506
      %v1657 = vpop.f32.mrf.mxu0
      %v1658 = vadd.f32 0.0, %v1657
      %v1659 = vpop.f32.mrf.mxu0
      %v1660 = vpop.f32.mrf.mxu0
      %v1661 = vadd.f32 0.0, %v1660
      %v1662 = vpop.f32.mrf.mxu0
      %1663 = vmatprep.mubr.bf16.mxu0 0
      %1664 = vmatmul.mubr.bf16.gmra.mxu0 %v1509
      %v1665 = vpop.f32.mrf.mxu0
      %v1666 = vadd.f32 0.0, %v1665
      %v1667 = vpop.f32.mrf.mxu0
      %v1668 = vpop.f32.mrf.mxu0
      %v1669 = vadd.f32 0.0, %v1668
      %v1670 = vpop.f32.mrf.mxu0
      %1671 = vdwg.mxu0
      %v1672 = vadd.f32 %v1093, %v1546
      %v1673 = vadd.f32 %v1096, %v1549
      %v1674 = vadd.f32 %v1101, %v1554
      %v1675 = vadd.f32 %v1104, %v1557
      %v1676 = vadd.f32 %v1109, %v1562
      %v1677 = vadd.f32 %v1112, %v1565
      %v1678 = vadd.f32 %v1117, %v1570
      %v1679 = vadd.f32 %v1120, %v1573
      %v1680 = vadd.f32 %v1125, %v1578
      %v1681 = vadd.f32 %v1128, %v1581
      %v1682 = vadd.f32 %v1133, %v1586
      %v1683 = vadd.f32 %v1136, %v1589
      %v1684 = vadd.f32 %v1141, %v1594
      %v1685 = vadd.f32 %v1144, %v1597
      %v1686 = vadd.f32 %v1149, %v1602
      %v1687 = vadd.f32 %v1152, %v1605
      %v1688 = vadd.f32 %v1157, %v1610
      %v1689 = vadd.f32 %v1160, %v1613
      %v1690 = vadd.f32 %v1165, %v1618
      %v1691 = vadd.f32 %v1168, %v1621
      %v1692 = vadd.f32 %v1173, %v1626
      %v1693 = vadd.f32 %v1176, %v1629
      %v1694 = vadd.f32 %v1181, %v1634
      %v1695 = vadd.f32 %v1184, %v1637
      %v1696 = vadd.f32 %v1189, %v1642
      %v1697 = vadd.f32 %v1192, %v1645
      %v1698 = vadd.f32 %v1197, %v1650
      %v1699 = vadd.f32 %v1200, %v1653
      %v1700 = vadd.f32 %v1205, %v1658
      %v1701 = vadd.f32 %v1208, %v1661
      %v1702 = vadd.f32 %v1213, %v1666
      %v1703 = vadd.f32 %v1216, %v1669
      %s1704 = scalar_lea.vmem %s165, 12
      %v1705 = vld [vmem:[%s1704] sm:$0xf]
      %v1706 = vld [vmem:[%s1704 + $0x4] sm:$0xf]
      %v1707 = vld [vmem:[%s1704 + $0xc] sm:$0xf]
      %v1708 = vld [vmem:[%s1704 + $0x10] sm:$0xf]
      %v1709 = vld [vmem:[%s1704 + $0x18] sm:$0xf]
      %v1710 = vld [vmem:[%s1704 + $0x1c] sm:$0xf]
      %v1711 = vld [vmem:[%s1704 + $0x24] sm:$0xf]
      %v1712 = vld [vmem:[%s1704 + $0x28] sm:$0xf]
      %v1713 = vld [vmem:[%s1704 + $0x30] sm:$0xf]
      %v1714 = vld [vmem:[%s1704 + $0x34] sm:$0xf]
      %v1715 = vld [vmem:[%s1704 + $0x3c] sm:$0xf]
      %v1716 = vld [vmem:[%s1704 + $0x40] sm:$0xf]
      %v1717 = vld [vmem:[%s1704 + $0x48] sm:$0xf]
      %v1718 = vld [vmem:[%s1704 + $0x4c] sm:$0xf]
      %v1719 = vld [vmem:[%s1704 + $0x54] sm:$0xf]
      %v1720 = vld [vmem:[%s1704 + $0x58] sm:$0xf]
      %v1721 = vld [vmem:[%s1704 + $0x60] sm:$0xf]
      %v1722 = vld [vmem:[%s1704 + $0x64] sm:$0xf]
      %v1723 = vld [vmem:[%s1704 + $0x6c] sm:$0xf]
      %v1724 = vld [vmem:[%s1704 + $0x70] sm:$0xf]
      %v1725 = vld [vmem:[%s1704 + $0x78] sm:$0xf]
      %v1726 = vld [vmem:[%s1704 + $0x7c] sm:$0xf]
      %v1727 = vld [vmem:[%s1704 + $0x84] sm:$0xf]
      %v1728 = vld [vmem:[%s1704 + $0x88] sm:$0xf]
      %v1729 = vld [vmem:[%s1704 + $0x90] sm:$0xf]
      %v1730 = vld [vmem:[%s1704 + $0x94] sm:$0xf]
      %v1731 = vld [vmem:[%s1704 + $0x9c] sm:$0xf]
      %v1732 = vld [vmem:[%s1704 + $0xa0] sm:$0xf]
      %v1733 = vld [vmem:[%s1704 + $0xa8] sm:$0xf]
      %v1734 = vld [vmem:[%s1704 + $0xac] sm:$0xf]
      %v1735 = vld [vmem:[%s1704 + $0xb4] sm:$0xf]
      %v1736 = vld [vmem:[%s1704 + $0xb8] sm:$0xf]
      %s1737 = scalar_lea.vmem %s1, 96
      %v1738 = vld [vmem:[%s1737] sm:$0xf]
      %v1739 = vld [vmem:[%s1737 + $0x4] sm:$0xf]
      %v1740 = vld [vmem:[%s1737 + $0x8] sm:$0xf]
      %v1741 = vld [vmem:[%s1737 + $0xc] sm:$0xf]
      %v1742 = vld [vmem:[%s1737 + $0x10] sm:$0xf]
      %v1743 = vld [vmem:[%s1737 + $0x14] sm:$0xf]
      %v1744 = vld [vmem:[%s1737 + $0x18] sm:$0xf]
      %v1745 = vld [vmem:[%s1737 + $0x1c] sm:$0xf]
      %v1778 = vunpack.c.l.b16 %v1705
      %v1779 = vunpack.c.l.b16 %v1706
      %v1780 = vunpack.c.l.b16 %v1707
      %v1781 = vunpack.c.l.b16 %v1708
      %v1782 = vunpack.c.l.b16 %v1709
      %v1783 = vunpack.c.l.b16 %v1710
      %v1784 = vunpack.c.l.b16 %v1711
      %v1785 = vunpack.c.l.b16 %v1712
      %v1786 = vunpack.c.l.b16 %v1713
      %v1787 = vunpack.c.l.b16 %v1714
      %v1788 = vunpack.c.l.b16 %v1715
      %v1789 = vunpack.c.l.b16 %v1716
      %v1790 = vunpack.c.l.b16 %v1717
      %v1791 = vunpack.c.l.b16 %v1718
      %v1792 = vunpack.c.l.b16 %v1719
      %v1793 = vunpack.c.l.b16 %v1720
      %v1794 = vunpack.c.l.b16 %v1721
      %v1795 = vunpack.c.l.b16 %v1722
      %v1796 = vunpack.c.l.b16 %v1723
      %v1797 = vunpack.c.l.b16 %v1724
      %v1798 = vunpack.c.l.b16 %v1725
      %v1799 = vunpack.c.l.b16 %v1726
      %v1800 = vunpack.c.l.b16 %v1727
      %v1801 = vunpack.c.l.b16 %v1728
      %v1802 = vunpack.c.l.b16 %v1729
      %v1803 = vunpack.c.l.b16 %v1730
      %v1804 = vunpack.c.l.b16 %v1731
      %v1805 = vunpack.c.l.b16 %v1732
      %v1806 = vunpack.c.l.b16 %v1733
      %v1807 = vunpack.c.l.b16 %v1734
      %v1808 = vunpack.c.l.b16 %v1735
      %v1809 = vunpack.c.l.b16 %v1736
      %v1810 = vpack.c.b16 %v1779, %v1778
      %v1811 = vpack.c.b16 %v1781, %v1780
      %v1812 = vpack.c.b16 %v1783, %v1782
      %v1813 = vpack.c.b16 %v1785, %v1784
      %v1814 = vpack.c.b16 %v1787, %v1786
      %v1815 = vpack.c.b16 %v1789, %v1788
      %v1816 = vpack.c.b16 %v1791, %v1790
      %v1817 = vpack.c.b16 %v1793, %v1792
      %v1818 = vpack.c.b16 %v1795, %v1794
      %v1819 = vpack.c.b16 %v1797, %v1796
      %v1820 = vpack.c.b16 %v1799, %v1798
      %v1821 = vpack.c.b16 %v1801, %v1800
      %v1822 = vpack.c.b16 %v1803, %v1802
      %v1823 = vpack.c.b16 %v1805, %v1804
      %v1824 = vpack.c.b16 %v1807, %v1806
      %v1825 = vpack.c.b16 %v1809, %v1808
      %v1834 = vunpack.c.l.b16 %v1738
      %v1835 = vunpack.c.l.b16 %v1739
      %v1836 = vunpack.c.l.b16 %v1740
      %v1837 = vunpack.c.l.b16 %v1741
      %v1838 = vunpack.c.l.b16 %v1742
      %v1839 = vunpack.c.l.b16 %v1743
      %v1840 = vunpack.c.l.b16 %v1744
      %v1841 = vunpack.c.l.b16 %v1745
      %v1842 = vpack.c.b16 %v1835, %v1834
      %v1843 = vpack.c.b16 %v1837, %v1836
      %v1844 = vpack.c.b16 %v1839, %v1838
      %v1845 = vpack.c.b16 %v1841, %v1840
      %v1851 = vsel %vm696, %v1810, 0
      %v1854 = vsel %vm696, %v1811, 0
      %v1857 = vsel %vm696, %v1812, 0
      %v1860 = vsel %vm696, %v1813, 0
      %v1863 = vsel %vm696, %v1814, 0
      %v1866 = vsel %vm696, %v1815, 0
      %v1869 = vsel %vm696, %v1816, 0
      %v1872 = vsel %vm696, %v1817, 0
      %v1875 = vsel %vm696, %v1818, 0
      %v1878 = vsel %vm696, %v1819, 0
      %v1881 = vsel %vm696, %v1820, 0
      %v1884 = vsel %vm696, %v1821, 0
      %v1887 = vsel %vm696, %v1822, 0
      %v1890 = vsel %vm696, %v1823, 0
      %v1893 = vsel %vm696, %v1824, 0
      %v1896 = vsel %vm696, %v1825, 0
      %1898 = vmatprep.subr.bf16.mxu0 0
      %1899 = vmatpush1.bf16.msra.mxu0 0
      %1900 = vmatprep.subr.bf16.mxu0 0
      %1901 = vmatpush1.bf16.msra.mxu0 0
      %1902 = vmatprep.subr.bf16.mxu0 0
      %1903 = vmatpush1.bf16.msra.mxu0 0
      %1904 = vmatprep.subr.bf16.mxu0 0
      %1905 = vmatpush1.bf16.msra.mxu0 0
      %1906 = vmatprep.subr.bf16.mxu0 0
      %1907 = vmatpush1.bf16.msra.mxu0 %v1845
      %1908 = vmatprep.subr.bf16.mxu0 0
      %1909 = vmatpush1.bf16.msra.mxu0 %v1844
      %1910 = vmatprep.subr.bf16.mxu0 0
      %1911 = vmatpush1.bf16.msra.mxu0 %v1843
      %1912 = vmatprep.subr.bf16.mxu0 0
      %1913 = vmatpush1.bf16.msra.mxu0 %v1842
      %1914 = vmatprep.subr.bf16.mxu0 0
      %1915 = vmatpush2.bf16.msra.mxu0 0
      %1916 = vmatprep.subr.bf16.mxu0 0
      %1917 = vmatpush2.bf16.msra.mxu0 0
      %1918 = vmatprep.subr.bf16.mxu0 0
      %1919 = vmatpush2.bf16.msra.mxu0 0
      %1920 = vmatprep.subr.bf16.mxu0 0
      %1921 = vmatpush2.bf16.msra.mxu0 0
      %1922 = vmatprep.subr.bf16.mxu0 0
      %1923 = vmatpush2.bf16.msra.mxu0 0
      %1924 = vmatprep.subr.bf16.mxu0 0
      %1925 = vmatpush2.bf16.msra.mxu0 0
      %1926 = vmatprep.subr.bf16.mxu0 0
      %1927 = vmatpush2.bf16.msra.mxu0 0
      %1928 = vmatprep.subr.bf16.mxu0 0
      %1929 = vmatpush2.bf16.msra.mxu0 0
      %1930 = vmatprep.mubr.bf16.mxu0 0
      %1931 = vmatmul.mubr.bf16.gmra.mxu0 %v1851
      %v1932 = vpop.f32.mrf.mxu0
      %v1933 = vadd.f32 0.0, %v1932
      %v1934 = vpop.f32.mrf.mxu0
      %v1935 = vpop.f32.mrf.mxu0
      %v1936 = vadd.f32 0.0, %v1935
      %v1937 = vpop.f32.mrf.mxu0
      %1938 = vmatprep.mubr.bf16.mxu0 0
      %1939 = vmatmul.mubr.bf16.gmra.mxu0 %v1854
      %v1940 = vpop.f32.mrf.mxu0
      %v1941 = vadd.f32 0.0, %v1940
      %v1942 = vpop.f32.mrf.mxu0
      %v1943 = vpop.f32.mrf.mxu0
      %v1944 = vadd.f32 0.0, %v1943
      %v1945 = vpop.f32.mrf.mxu0
      %1946 = vmatprep.mubr.bf16.mxu0 0
      %1947 = vmatmul.mubr.bf16.gmra.mxu0 %v1857
      %v1948 = vpop.f32.mrf.mxu0
      %v1949 = vadd.f32 0.0, %v1948
      %v1950 = vpop.f32.mrf.mxu0
      %v1951 = vpop.f32.mrf.mxu0
      %v1952 = vadd.f32 0.0, %v1951
      %v1953 = vpop.f32.mrf.mxu0
      %1954 = vmatprep.mubr.bf16.mxu0 0
      %1955 = vmatmul.mubr.bf16.gmra.mxu0 %v1860
      %v1956 = vpop.f32.mrf.mxu0
      %v1957 = vadd.f32 0.0, %v1956
      %v1958 = vpop.f32.mrf.mxu0
      %v1959 = vpop.f32.mrf.mxu0
      %v1960 = vadd.f32 0.0, %v1959
      %v1961 = vpop.f32.mrf.mxu0
      %1962 = vmatprep.mubr.bf16.mxu0 0
      %1963 = vmatmul.mubr.bf16.gmra.mxu0 %v1863
      %v1964 = vpop.f32.mrf.mxu0
      %v1965 = vadd.f32 0.0, %v1964
      %v1966 = vpop.f32.mrf.mxu0
      %v1967 = vpop.f32.mrf.mxu0
      %v1968 = vadd.f32 0.0, %v1967
      %v1969 = vpop.f32.mrf.mxu0
      %1970 = vmatprep.mubr.bf16.mxu0 0
      %1971 = vmatmul.mubr.bf16.gmra.mxu0 %v1866
      %v1972 = vpop.f32.mrf.mxu0
      %v1973 = vadd.f32 0.0, %v1972
      %v1974 = vpop.f32.mrf.mxu0
      %v1975 = vpop.f32.mrf.mxu0
      %v1976 = vadd.f32 0.0, %v1975
      %v1977 = vpop.f32.mrf.mxu0
      %1978 = vmatprep.mubr.bf16.mxu0 0
      %1979 = vmatmul.mubr.bf16.gmra.mxu0 %v1869
      %v1980 = vpop.f32.mrf.mxu0
      %v1981 = vadd.f32 0.0, %v1980
      %v1982 = vpop.f32.mrf.mxu0
      %v1983 = vpop.f32.mrf.mxu0
      %v1984 = vadd.f32 0.0, %v1983
      %v1985 = vpop.f32.mrf.mxu0
      %1986 = vmatprep.mubr.bf16.mxu0 0
      %1987 = vmatmul.mubr.bf16.gmra.mxu0 %v1872
      %v1988 = vpop.f32.mrf.mxu0
      %v1989 = vadd.f32 0.0, %v1988
      %v1990 = vpop.f32.mrf.mxu0
      %v1991 = vpop.f32.mrf.mxu0
      %v1992 = vadd.f32 0.0, %v1991
      %v1993 = vpop.f32.mrf.mxu0
      %1994 = vmatprep.mubr.bf16.mxu0 0
      %1995 = vmatmul.mubr.bf16.gmra.mxu0 %v1875
      %v1996 = vpop.f32.mrf.mxu0
      %v1997 = vadd.f32 0.0, %v1996
      %v1998 = vpop.f32.mrf.mxu0
      %v1999 = vpop.f32.mrf.mxu0
      %v2000 = vadd.f32 0.0, %v1999
      %v2001 = vpop.f32.mrf.mxu0
      %2002 = vmatprep.mubr.bf16.mxu0 0
      %2003 = vmatmul.mubr.bf16.gmra.mxu0 %v1878
      %v2004 = vpop.f32.mrf.mxu0
      %v2005 = vadd.f32 0.0, %v2004
      %v2006 = vpop.f32.mrf.mxu0
      %v2007 = vpop.f32.mrf.mxu0
      %v2008 = vadd.f32 0.0, %v2007
      %v2009 = vpop.f32.mrf.mxu0
      %2010 = vmatprep.mubr.bf16.mxu0 0
      %2011 = vmatmul.mubr.bf16.gmra.mxu0 %v1881
      %v2012 = vpop.f32.mrf.mxu0
      %v2013 = vadd.f32 0.0, %v2012
      %v2014 = vpop.f32.mrf.mxu0
      %v2015 = vpop.f32.mrf.mxu0
      %v2016 = vadd.f32 0.0, %v2015
      %v2017 = vpop.f32.mrf.mxu0
      %2018 = vmatprep.mubr.bf16.mxu0 0
      %2019 = vmatmul.mubr.bf16.gmra.mxu0 %v1884
      %v2020 = vpop.f32.mrf.mxu0
      %v2021 = vadd.f32 0.0, %v2020
      %v2022 = vpop.f32.mrf.mxu0
      %v2023 = vpop.f32.mrf.mxu0
      %v2024 = vadd.f32 0.0, %v2023
      %v2025 = vpop.f32.mrf.mxu0
      %2026 = vmatprep.mubr.bf16.mxu0 0
      %2027 = vmatmul.mubr.bf16.gmra.mxu0 %v1887
      %v2028 = vpop.f32.mrf.mxu0
      %v2029 = vadd.f32 0.0, %v2028
      %v2030 = vpop.f32.mrf.mxu0
      %v2031 = vpop.f32.mrf.mxu0
      %v2032 = vadd.f32 0.0, %v2031
      %v2033 = vpop.f32.mrf.mxu0
      %2034 = vmatprep.mubr.bf16.mxu0 0
      %2035 = vmatmul.mubr.bf16.gmra.mxu0 %v1890
      %v2036 = vpop.f32.mrf.mxu0
      %v2037 = vadd.f32 0.0, %v2036
      %v2038 = vpop.f32.mrf.mxu0
      %v2039 = vpop.f32.mrf.mxu0
      %v2040 = vadd.f32 0.0, %v2039
      %v2041 = vpop.f32.mrf.mxu0
      %2042 = vmatprep.mubr.bf16.mxu0 0
      %2043 = vmatmul.mubr.bf16.gmra.mxu0 %v1893
      %v2044 = vpop.f32.mrf.mxu0
      %v2045 = vadd.f32 0.0, %v2044
      %v2046 = vpop.f32.mrf.mxu0
      %v2047 = vpop.f32.mrf.mxu0
      %v2048 = vadd.f32 0.0, %v2047
      %v2049 = vpop.f32.mrf.mxu0
      %2050 = vmatprep.mubr.bf16.mxu0 0
      %2051 = vmatmul.mubr.bf16.gmra.mxu0 %v1896
      %v2052 = vpop.f32.mrf.mxu0
      %v2053 = vadd.f32 0.0, %v2052
      %v2054 = vpop.f32.mrf.mxu0
      %v2055 = vpop.f32.mrf.mxu0
      %v2056 = vadd.f32 0.0, %v2055
      %v2057 = vpop.f32.mrf.mxu0
      %2058 = vdwg.mxu0
      %v2059 = vadd.f32 %v1672, %v1933
      %v2060 = vadd.f32 %v1673, %v1936
      %v2061 = vadd.f32 %v1674, %v1941
      %v2062 = vadd.f32 %v1675, %v1944
      %v2063 = vadd.f32 %v1676, %v1949
      %v2064 = vadd.f32 %v1677, %v1952
      %v2065 = vadd.f32 %v1678, %v1957
      %v2066 = vadd.f32 %v1679, %v1960
      %v2067 = vadd.f32 %v1680, %v1965
      %v2068 = vadd.f32 %v1681, %v1968
      %v2069 = vadd.f32 %v1682, %v1973
      %v2070 = vadd.f32 %v1683, %v1976
      %v2071 = vadd.f32 %v1684, %v1981
      %v2072 = vadd.f32 %v1685, %v1984
      %v2073 = vadd.f32 %v1686, %v1989
      %v2074 = vadd.f32 %v1687, %v1992
      %v2075 = vadd.f32 %v1688, %v1997
      %v2076 = vadd.f32 %v1689, %v2000
      %v2077 = vadd.f32 %v1690, %v2005
      %v2078 = vadd.f32 %v1691, %v2008
      %v2079 = vadd.f32 %v1692, %v2013
      %v2080 = vadd.f32 %v1693, %v2016
      %v2081 = vadd.f32 %v1694, %v2021
      %v2082 = vadd.f32 %v1695, %v2024
      %v2083 = vadd.f32 %v1696, %v2029
      %v2084 = vadd.f32 %v1697, %v2032
      %v2085 = vadd.f32 %v1698, %v2037
      %v2086 = vadd.f32 %v1699, %v2040
      %v2087 = vadd.f32 %v1700, %v2045
      %v2088 = vadd.f32 %v1701, %v2048
      %v2089 = vadd.f32 %v1702, %v2053
      %v2090 = vadd.f32 %v1703, %v2056
      %v2091 = vld [vmem:[%s1704] sm:$0xf]
      %v2092 = vld [vmem:[%s1704 + $0x4] sm:$0xf]
      %v2093 = vld [vmem:[%s1704 + $0x8] sm:$0x1]
      %v2094 = vld [vmem:[%s1704 + $0xc] sm:$0xf]
      %v2095 = vld [vmem:[%s1704 + $0x10] sm:$0xf]
      %v2096 = vld [vmem:[%s1704 + $0x14] sm:$0x1]
      %v2097 = vld [vmem:[%s1704 + $0x18] sm:$0xf]
      %v2098 = vld [vmem:[%s1704 + $0x1c] sm:$0xf]
      %v2099 = vld [vmem:[%s1704 + $0x20] sm:$0x1]
      %v2100 = vld [vmem:[%s1704 + $0x24] sm:$0xf]
      %v2101 = vld [vmem:[%s1704 + $0x28] sm:$0xf]
      %v2102 = vld [vmem:[%s1704 + $0x2c] sm:$0x1]
      %v2103 = vld [vmem:[%s1704 + $0x30] sm:$0xf]
      %v2104 = vld [vmem:[%s1704 + $0x34] sm:$0xf]
      %v2105 = vld [vmem:[%s1704 + $0x38] sm:$0x1]
      %v2106 = vld [vmem:[%s1704 + $0x3c] sm:$0xf]
      %v2107 = vld [vmem:[%s1704 + $0x40] sm:$0xf]
      %v2108 = vld [vmem:[%s1704 + $0x44] sm:$0x1]
      %v2109 = vld [vmem:[%s1704 + $0x48] sm:$0xf]
      %v2110 = vld [vmem:[%s1704 + $0x4c] sm:$0xf]
      %v2111 = vld [vmem:[%s1704 + $0x50] sm:$0x1]
      %v2112 = vld [vmem:[%s1704 + $0x54] sm:$0xf]
      %v2113 = vld [vmem:[%s1704 + $0x58] sm:$0xf]
      %v2114 = vld [vmem:[%s1704 + $0x5c] sm:$0x1]
      %v2115 = vld [vmem:[%s1704 + $0x60] sm:$0xf]
      %v2116 = vld [vmem:[%s1704 + $0x64] sm:$0xf]
      %v2117 = vld [vmem:[%s1704 + $0x68] sm:$0x1]
      %v2118 = vld [vmem:[%s1704 + $0x6c] sm:$0xf]
      %v2119 = vld [vmem:[%s1704 + $0x70] sm:$0xf]
      %v2120 = vld [vmem:[%s1704 + $0x74] sm:$0x1]
      %v2121 = vld [vmem:[%s1704 + $0x78] sm:$0xf]
      %v2122 = vld [vmem:[%s1704 + $0x7c] sm:$0xf]
      %v2123 = vld [vmem:[%s1704 + $0x80] sm:$0x1]
      %v2124 = vld [vmem:[%s1704 + $0x84] sm:$0xf]
      %v2125 = vld [vmem:[%s1704 + $0x88] sm:$0xf]
      %v2126 = vld [vmem:[%s1704 + $0x8c] sm:$0x1]
      %v2127 = vld [vmem:[%s1704 + $0x90] sm:$0xf]
      %v2128 = vld [vmem:[%s1704 + $0x94] sm:$0xf]
      %v2129 = vld [vmem:[%s1704 + $0x98] sm:$0x1]
      %v2130 = vld [vmem:[%s1704 + $0x9c] sm:$0xf]
      %v2131 = vld [vmem:[%s1704 + $0xa0] sm:$0xf]
      %v2132 = vld [vmem:[%s1704 + $0xa4] sm:$0x1]
      %v2133 = vld [vmem:[%s1704 + $0xa8] sm:$0xf]
      %v2134 = vld [vmem:[%s1704 + $0xac] sm:$0xf]
      %v2135 = vld [vmem:[%s1704 + $0xb0] sm:$0x1]
      %v2136 = vld [vmem:[%s1704 + $0xb4] sm:$0xf]
      %v2137 = vld [vmem:[%s1704 + $0xb8] sm:$0xf]
      %v2138 = vld [vmem:[%s1704 + $0xbc] sm:$0x1]
      %v2140 = vshrl.u32 %v2091, 16
      %v2142 = vrot.slane %v2140, 4
      %v2143 = vshll.u32 %v2091, 16
      %v2145 = vrot.slane %v2143, 5
      %v2146 = vor.u32 %v2142, %v2145
      %v2147 = vrot.slane %v2146, 4
      %v2149 = vshll.u32 %v2092, 16
      %v2151 = vrot.slane %v2149, 5
      %v2152 = vsel %vm230, %v2147, %v2151
      %v2153 = vshrl.u32 %v2092, 16
      %v2155 = vrot.slane %v2153, 4
      %v2156 = vor.u32 %v2155, %v2151
      %v2157 = vrot.slane %v2156, 4
      %v2159 = vshll.u32 %v2093, 16
      %v2161 = vrot.slane %v2159, 5
      %v2162 = vsel %vm230, %v2157, %v2161
      %v2164 = vshrl.u32 %v2094, 16
      %v2166 = vrot.slane %v2164, 4
      %v2167 = vshll.u32 %v2094, 16
      %v2169 = vrot.slane %v2167, 5
      %v2170 = vor.u32 %v2166, %v2169
      %v2171 = vrot.slane %v2170, 4
      %v2173 = vshll.u32 %v2095, 16
      %v2175 = vrot.slane %v2173, 5
      %v2176 = vsel %vm230, %v2171, %v2175
      %v2177 = vshrl.u32 %v2095, 16
      %v2179 = vrot.slane %v2177, 4
      %v2180 = vor.u32 %v2179, %v2175
      %v2181 = vrot.slane %v2180, 4
      %v2183 = vshll.u32 %v2096, 16
      %v2185 = vrot.slane %v2183, 5
      %v2186 = vsel %vm230, %v2181, %v2185
      %v2188 = vshrl.u32 %v2097, 16
      %v2190 = vrot.slane %v2188, 4
      %v2191 = vshll.u32 %v2097, 16
      %v2193 = vrot.slane %v2191, 5
      %v2194 = vor.u32 %v2190, %v2193
      %v2195 = vrot.slane %v2194, 4
      %v2197 = vshll.u32 %v2098, 16
      %v2199 = vrot.slane %v2197, 5
      %v2200 = vsel %vm230, %v2195, %v2199
      %v2201 = vshrl.u32 %v2098, 16
      %v2203 = vrot.slane %v2201, 4
      %v2204 = vor.u32 %v2203, %v2199
      %v2205 = vrot.slane %v2204, 4
      %v2207 = vshll.u32 %v2099, 16
      %v2209 = vrot.slane %v2207, 5
      %v2210 = vsel %vm230, %v2205, %v2209
      %v2212 = vshrl.u32 %v2100, 16
      %v2214 = vrot.slane %v2212, 4
      %v2215 = vshll.u32 %v2100, 16
      %v2217 = vrot.slane %v2215, 5
      %v2218 = vor.u32 %v2214, %v2217
      %v2219 = vrot.slane %v2218, 4
      %v2221 = vshll.u32 %v2101, 16
      %v2223 = vrot.slane %v2221, 5
      %v2224 = vsel %vm230, %v2219, %v2223
      %v2225 = vshrl.u32 %v2101, 16
      %v2227 = vrot.slane %v2225, 4
      %v2228 = vor.u32 %v2227, %v2223
      %v2229 = vrot.slane %v2228, 4
      %v2231 = vshll.u32 %v2102, 16
      %v2233 = vrot.slane %v2231, 5
      %v2234 = vsel %vm230, %v2229, %v2233
      %v2236 = vshrl.u32 %v2103, 16
      %v2238 = vrot.slane %v2236, 4
      %v2239 = vshll.u32 %v2103, 16
      %v2241 = vrot.slane %v2239, 5
      %v2242 = vor.u32 %v2238, %v2241
      %v2243 = vrot.slane %v2242, 4
      %v2245 = vshll.u32 %v2104, 16
      %v2247 = vrot.slane %v2245, 5
      %v2248 = vsel %vm230, %v2243, %v2247
      %v2249 = vshrl.u32 %v2104, 16
      %v2251 = vrot.slane %v2249, 4
      %v2252 = vor.u32 %v2251, %v2247
      %v2253 = vrot.slane %v2252, 4
      %v2255 = vshll.u32 %v2105, 16
      %v2257 = vrot.slane %v2255, 5
      %v2258 = vsel %vm230, %v2253, %v2257
      %v2260 = vshrl.u32 %v2106, 16
      %v2262 = vrot.slane %v2260, 4
      %v2263 = vshll.u32 %v2106, 16
      %v2265 = vrot.slane %v2263, 5
      %v2266 = vor.u32 %v2262, %v2265
      %v2267 = vrot.slane %v2266, 4
      %v2269 = vshll.u32 %v2107, 16
      %v2271 = vrot.slane %v2269, 5
      %v2272 = vsel %vm230, %v2267, %v2271
      %v2273 = vshrl.u32 %v2107, 16
      %v2275 = vrot.slane %v2273, 4
      %v2276 = vor.u32 %v2275, %v2271
      %v2277 = vrot.slane %v2276, 4
      %v2279 = vshll.u32 %v2108, 16
      %v2281 = vrot.slane %v2279, 5
      %v2282 = vsel %vm230, %v2277, %v2281
      %v2284 = vshrl.u32 %v2109, 16
      %v2286 = vrot.slane %v2284, 4
      %v2287 = vshll.u32 %v2109, 16
      %v2289 = vrot.slane %v2287, 5
      %v2290 = vor.u32 %v2286, %v2289
      %v2291 = vrot.slane %v2290, 4
      %v2293 = vshll.u32 %v2110, 16
      %v2295 = vrot.slane %v2293, 5
      %v2296 = vsel %vm230, %v2291, %v2295
      %v2297 = vshrl.u32 %v2110, 16
      %v2299 = vrot.slane %v2297, 4
      %v2300 = vor.u32 %v2299, %v2295
      %v2301 = vrot.slane %v2300, 4
      %v2303 = vshll.u32 %v2111, 16
      %v2305 = vrot.slane %v2303, 5
      %v2306 = vsel %vm230, %v2301, %v2305
      %v2308 = vshrl.u32 %v2112, 16
      %v2310 = vrot.slane %v2308, 4
      %v2311 = vshll.u32 %v2112, 16
      %v2313 = vrot.slane %v2311, 5
      %v2314 = vor.u32 %v2310, %v2313
      %v2315 = vrot.slane %v2314, 4
      %v2317 = vshll.u32 %v2113, 16
      %v2319 = vrot.slane %v2317, 5
      %v2320 = vsel %vm230, %v2315, %v2319
      %v2321 = vshrl.u32 %v2113, 16
      %v2323 = vrot.slane %v2321, 4
      %v2324 = vor.u32 %v2323, %v2319
      %v2325 = vrot.slane %v2324, 4
      %v2327 = vshll.u32 %v2114, 16
      %v2329 = vrot.slane %v2327, 5
      %v2330 = vsel %vm230, %v2325, %v2329
      %v2332 = vshrl.u32 %v2115, 16
      %v2334 = vrot.slane %v2332, 4
      %v2335 = vshll.u32 %v2115, 16
      %v2337 = vrot.slane %v2335, 5
      %v2338 = vor.u32 %v2334, %v2337
      %v2339 = vrot.slane %v2338, 4
      %v2341 = vshll.u32 %v2116, 16
      %v2343 = vrot.slane %v2341, 5
      %v2344 = vsel %vm230, %v2339, %v2343
      %v2345 = vshrl.u32 %v2116, 16
      %v2347 = vrot.slane %v2345, 4
      %v2348 = vor.u32 %v2347, %v2343
      %v2349 = vrot.slane %v2348, 4
      %v2351 = vshll.u32 %v2117, 16
      %v2353 = vrot.slane %v2351, 5
      %v2354 = vsel %vm230, %v2349, %v2353
      %v2356 = vshrl.u32 %v2118, 16
      %v2358 = vrot.slane %v2356, 4
      %v2359 = vshll.u32 %v2118, 16
      %v2361 = vrot.slane %v2359, 5
      %v2362 = vor.u32 %v2358, %v2361
      %v2363 = vrot.slane %v2362, 4
      %v2365 = vshll.u32 %v2119, 16
      %v2367 = vrot.slane %v2365, 5
      %v2368 = vsel %vm230, %v2363, %v2367
      %v2369 = vshrl.u32 %v2119, 16
      %v2371 = vrot.slane %v2369, 4
      %v2372 = vor.u32 %v2371, %v2367
      %v2373 = vrot.slane %v2372, 4
      %v2375 = vshll.u32 %v2120, 16
      %v2377 = vrot.slane %v2375, 5
      %v2378 = vsel %vm230, %v2373, %v2377
      %v2380 = vshrl.u32 %v2121, 16
      %v2382 = vrot.slane %v2380, 4
      %v2383 = vshll.u32 %v2121, 16
      %v2385 = vrot.slane %v2383, 5
      %v2386 = vor.u32 %v2382, %v2385
      %v2387 = vrot.slane %v2386, 4
      %v2389 = vshll.u32 %v2122, 16
      %v2391 = vrot.slane %v2389, 5
      %v2392 = vsel %vm230, %v2387, %v2391
      %v2393 = vshrl.u32 %v2122, 16
      %v2395 = vrot.slane %v2393, 4
      %v2396 = vor.u32 %v2395, %v2391
      %v2397 = vrot.slane %v2396, 4
      %v2399 = vshll.u32 %v2123, 16
      %v2401 = vrot.slane %v2399, 5
      %v2402 = vsel %vm230, %v2397, %v2401
      %v2404 = vshrl.u32 %v2124, 16
      %v2406 = vrot.slane %v2404, 4
      %v2407 = vshll.u32 %v2124, 16
      %v2409 = vrot.slane %v2407, 5
      %v2410 = vor.u32 %v2406, %v2409
      %v2411 = vrot.slane %v2410, 4
      %v2413 = vshll.u32 %v2125, 16
      %v2415 = vrot.slane %v2413, 5
      %v2416 = vsel %vm230, %v2411, %v2415
      %v2417 = vshrl.u32 %v2125, 16
      %v2419 = vrot.slane %v2417, 4
      %v2420 = vor.u32 %v2419, %v2415
      %v2421 = vrot.slane %v2420, 4
      %v2423 = vshll.u32 %v2126, 16
      %v2425 = vrot.slane %v2423, 5
      %v2426 = vsel %vm230, %v2421, %v2425
      %v2428 = vshrl.u32 %v2127, 16
      %v2430 = vrot.slane %v2428, 4
      %v2431 = vshll.u32 %v2127, 16
      %v2433 = vrot.slane %v2431, 5
      %v2434 = vor.u32 %v2430, %v2433
      %v2435 = vrot.slane %v2434, 4
      %v2437 = vshll.u32 %v2128, 16
      %v2439 = vrot.slane %v2437, 5
      %v2440 = vsel %vm230, %v2435, %v2439
      %v2441 = vshrl.u32 %v2128, 16
      %v2443 = vrot.slane %v2441, 4
      %v2444 = vor.u32 %v2443, %v2439
      %v2445 = vrot.slane %v2444, 4
      %v2447 = vshll.u32 %v2129, 16
      %v2449 = vrot.slane %v2447, 5
      %v2450 = vsel %vm230, %v2445, %v2449
      %v2452 = vshrl.u32 %v2130, 16
      %v2454 = vrot.slane %v2452, 4
      %v2455 = vshll.u32 %v2130, 16
      %v2457 = vrot.slane %v2455, 5
      %v2458 = vor.u32 %v2454, %v2457
      %v2459 = vrot.slane %v2458, 4
      %v2461 = vshll.u32 %v2131, 16
      %v2463 = vrot.slane %v2461, 5
      %v2464 = vsel %vm230, %v2459, %v2463
      %v2465 = vshrl.u32 %v2131, 16
      %v2467 = vrot.slane %v2465, 4
      %v2468 = vor.u32 %v2467, %v2463
      %v2469 = vrot.slane %v2468, 4
      %v2471 = vshll.u32 %v2132, 16
      %v2473 = vrot.slane %v2471, 5
      %v2474 = vsel %vm230, %v2469, %v2473
      %v2476 = vshrl.u32 %v2133, 16
      %v2478 = vrot.slane %v2476, 4
      %v2479 = vshll.u32 %v2133, 16
      %v2481 = vrot.slane %v2479, 5
      %v2482 = vor.u32 %v2478, %v2481
      %v2483 = vrot.slane %v2482, 4
      %v2485 = vshll.u32 %v2134, 16
      %v2487 = vrot.slane %v2485, 5
      %v2488 = vsel %vm230, %v2483, %v2487
      %v2489 = vshrl.u32 %v2134, 16
      %v2491 = vrot.slane %v2489, 4
      %v2492 = vor.u32 %v2491, %v2487
      %v2493 = vrot.slane %v2492, 4
      %v2495 = vshll.u32 %v2135, 16
      %v2497 = vrot.slane %v2495, 5
      %v2498 = vsel %vm230, %v2493, %v2497
      %v2500 = vshrl.u32 %v2136, 16
      %v2502 = vrot.slane %v2500, 4
      %v2503 = vshll.u32 %v2136, 16
      %v2505 = vrot.slane %v2503, 5
      %v2506 = vor.u32 %v2502, %v2505
      %v2507 = vrot.slane %v2506, 4
      %v2509 = vshll.u32 %v2137, 16
      %v2511 = vrot.slane %v2509, 5
      %v2512 = vsel %vm230, %v2507, %v2511
      %v2513 = vshrl.u32 %v2137, 16
      %v2515 = vrot.slane %v2513, 4
      %v2516 = vor.u32 %v2515, %v2511
      %v2517 = vrot.slane %v2516, 4
      %v2519 = vshll.u32 %v2138, 16
      %v2521 = vrot.slane %v2519, 5
      %v2522 = vsel %vm230, %v2517, %v2521
      %s2523 = scalar_lea.vmem %s1, 128
      %v2524 = vld [vmem:[%s2523] sm:$0xf]
      %v2525 = vld [vmem:[%s2523 + $0x4] sm:$0xf]
      %v2526 = vld [vmem:[%s2523 + $0x8] sm:$0xf]
      %v2527 = vld [vmem:[%s2523 + $0xc] sm:$0xf]
      %v2528 = vld [vmem:[%s2523 + $0x10] sm:$0xf]
      %v2529 = vld [vmem:[%s2523 + $0x14] sm:$0xf]
      %v2530 = vld [vmem:[%s2523 + $0x18] sm:$0xf]
      %v2531 = vld [vmem:[%s2523 + $0x1c] sm:$0xf]
      %v2532 = vunpack.c.l.b16 %v2152
      %v2533 = vunpack.c.l.b16 %v2162
      %v2534 = vunpack.c.l.b16 %v2176
      %v2535 = vunpack.c.l.b16 %v2186
      %v2536 = vunpack.c.l.b16 %v2200
      %v2537 = vunpack.c.l.b16 %v2210
      %v2538 = vunpack.c.l.b16 %v2224
      %v2539 = vunpack.c.l.b16 %v2234
      %v2540 = vunpack.c.l.b16 %v2248
      %v2541 = vunpack.c.l.b16 %v2258
      %v2542 = vunpack.c.l.b16 %v2272
      %v2543 = vunpack.c.l.b16 %v2282
      %v2544 = vunpack.c.l.b16 %v2296
      %v2545 = vunpack.c.l.b16 %v2306
      %v2546 = vunpack.c.l.b16 %v2320
      %v2547 = vunpack.c.l.b16 %v2330
      %v2548 = vunpack.c.l.b16 %v2344
      %v2549 = vunpack.c.l.b16 %v2354
      %v2550 = vunpack.c.l.b16 %v2368
      %v2551 = vunpack.c.l.b16 %v2378
      %v2552 = vunpack.c.l.b16 %v2392
      %v2553 = vunpack.c.l.b16 %v2402
      %v2554 = vunpack.c.l.b16 %v2416
      %v2555 = vunpack.c.l.b16 %v2426
      %v2556 = vunpack.c.l.b16 %v2440
      %v2557 = vunpack.c.l.b16 %v2450
      %v2558 = vunpack.c.l.b16 %v2464
      %v2559 = vunpack.c.l.b16 %v2474
      %v2560 = vunpack.c.l.b16 %v2488
      %v2561 = vunpack.c.l.b16 %v2498
      %v2562 = vunpack.c.l.b16 %v2512
      %v2563 = vunpack.c.l.b16 %v2522
      %v2564 = vpack.c.b16 %v2533, %v2532
      %v2565 = vpack.c.b16 %v2535, %v2534
      %v2566 = vpack.c.b16 %v2537, %v2536
      %v2567 = vpack.c.b16 %v2539, %v2538
      %v2568 = vpack.c.b16 %v2541, %v2540
      %v2569 = vpack.c.b16 %v2543, %v2542
      %v2570 = vpack.c.b16 %v2545, %v2544
      %v2571 = vpack.c.b16 %v2547, %v2546
      %v2572 = vpack.c.b16 %v2549, %v2548
      %v2573 = vpack.c.b16 %v2551, %v2550
      %v2574 = vpack.c.b16 %v2553, %v2552
      %v2575 = vpack.c.b16 %v2555, %v2554
      %v2576 = vpack.c.b16 %v2557, %v2556
      %v2577 = vpack.c.b16 %v2559, %v2558
      %v2578 = vpack.c.b16 %v2561, %v2560
      %v2579 = vpack.c.b16 %v2563, %v2562
      %v2588 = vunpack.c.l.b16 %v2524
      %v2589 = vunpack.c.l.b16 %v2525
      %v2590 = vunpack.c.l.b16 %v2526
      %v2591 = vunpack.c.l.b16 %v2527
      %v2592 = vunpack.c.l.b16 %v2528
      %v2593 = vunpack.c.l.b16 %v2529
      %v2594 = vunpack.c.l.b16 %v2530
      %v2595 = vunpack.c.l.b16 %v2531
      %v2596 = vpack.c.b16 %v2589, %v2588
      %v2597 = vpack.c.b16 %v2591, %v2590
      %v2598 = vpack.c.b16 %v2593, %v2592
      %v2599 = vpack.c.b16 %v2595, %v2594
      %v2605 = vsel %vm696, %v2564, 0
      %v2608 = vsel %vm696, %v2565, 0
      %v2611 = vsel %vm696, %v2566, 0
      %v2614 = vsel %vm696, %v2567, 0
      %v2617 = vsel %vm696, %v2568, 0
      %v2620 = vsel %vm696, %v2569, 0
      %v2623 = vsel %vm696, %v2570, 0
      %v2626 = vsel %vm696, %v2571, 0
      %v2629 = vsel %vm696, %v2572, 0
      %v2632 = vsel %vm696, %v2573, 0
      %v2635 = vsel %vm696, %v2574, 0
      %v2638 = vsel %vm696, %v2575, 0
      %v2641 = vsel %vm696, %v2576, 0
      %v2644 = vsel %vm696, %v2577, 0
      %v2647 = vsel %vm696, %v2578, 0
      %v2650 = vsel %vm696, %v2579, 0
      %2652 = vmatprep.subr.bf16.mxu0 0
      %2653 = vmatpush1.bf16.msra.mxu0 0
      %2654 = vmatprep.subr.bf16.mxu0 0
      %2655 = vmatpush1.bf16.msra.mxu0 0
      %2656 = vmatprep.subr.bf16.mxu0 0
      %2657 = vmatpush1.bf16.msra.mxu0 0
      %2658 = vmatprep.subr.bf16.mxu0 0
      %2659 = vmatpush1.bf16.msra.mxu0 0
      %2660 = vmatprep.subr.bf16.mxu0 0
      %2661 = vmatpush1.bf16.msra.mxu0 %v2599
      %2662 = vmatprep.subr.bf16.mxu0 0
      %2663 = vmatpush1.bf16.msra.mxu0 %v2598
      %2664 = vmatprep.subr.bf16.mxu0 0
      %2665 = vmatpush1.bf16.msra.mxu0 %v2597
      %2666 = vmatprep.subr.bf16.mxu0 0
      %2667 = vmatpush1.bf16.msra.mxu0 %v2596
      %2668 = vmatprep.subr.bf16.mxu0 0
      %2669 = vmatpush2.bf16.msra.mxu0 0
      %2670 = vmatprep.subr.bf16.mxu0 0
      %2671 = vmatpush2.bf16.msra.mxu0 0
      %2672 = vmatprep.subr.bf16.mxu0 0
      %2673 = vmatpush2.bf16.msra.mxu0 0
      %2674 = vmatprep.subr.bf16.mxu0 0
      %2675 = vmatpush2.bf16.msra.mxu0 0
      %2676 = vmatprep.subr.bf16.mxu0 0
      %2677 = vmatpush2.bf16.msra.mxu0 0
      %2678 = vmatprep.subr.bf16.mxu0 0
      %2679 = vmatpush2.bf16.msra.mxu0 0
      %2680 = vmatprep.subr.bf16.mxu0 0
      %2681 = vmatpush2.bf16.msra.mxu0 0
      %2682 = vmatprep.subr.bf16.mxu0 0
      %2683 = vmatpush2.bf16.msra.mxu0 0
      %2684 = vmatprep.mubr.bf16.mxu0 0
      %2685 = vmatmul.mubr.bf16.gmra.mxu0 %v2605
      %v2686 = vpop.f32.mrf.mxu0
      %v2687 = vadd.f32 0.0, %v2686
      %v2688 = vpop.f32.mrf.mxu0
      %v2689 = vpop.f32.mrf.mxu0
      %v2690 = vadd.f32 0.0, %v2689
      %v2691 = vpop.f32.mrf.mxu0
      %2692 = vmatprep.mubr.bf16.mxu0 0
      %2693 = vmatmul.mubr.bf16.gmra.mxu0 %v2608
      %v2694 = vpop.f32.mrf.mxu0
      %v2695 = vadd.f32 0.0, %v2694
      %v2696 = vpop.f32.mrf.mxu0
      %v2697 = vpop.f32.mrf.mxu0
      %v2698 = vadd.f32 0.0, %v2697
      %v2699 = vpop.f32.mrf.mxu0
      %2700 = vmatprep.mubr.bf16.mxu0 0
      %2701 = vmatmul.mubr.bf16.gmra.mxu0 %v2611
      %v2702 = vpop.f32.mrf.mxu0
      %v2703 = vadd.f32 0.0, %v2702
      %v2704 = vpop.f32.mrf.mxu0
      %v2705 = vpop.f32.mrf.mxu0
      %v2706 = vadd.f32 0.0, %v2705
      %v2707 = vpop.f32.mrf.mxu0
      %2708 = vmatprep.mubr.bf16.mxu0 0
      %2709 = vmatmul.mubr.bf16.gmra.mxu0 %v2614
      %v2710 = vpop.f32.mrf.mxu0
      %v2711 = vadd.f32 0.0, %v2710
      %v2712 = vpop.f32.mrf.mxu0
      %v2713 = vpop.f32.mrf.mxu0
      %v2714 = vadd.f32 0.0, %v2713
      %v2715 = vpop.f32.mrf.mxu0
      %2716 = vmatprep.mubr.bf16.mxu0 0
      %2717 = vmatmul.mubr.bf16.gmra.mxu0 %v2617
      %v2718 = vpop.f32.mrf.mxu0
      %v2719 = vadd.f32 0.0, %v2718
      %v2720 = vpop.f32.mrf.mxu0
      %v2721 = vpop.f32.mrf.mxu0
      %v2722 = vadd.f32 0.0, %v2721
      %v2723 = vpop.f32.mrf.mxu0
      %2724 = vmatprep.mubr.bf16.mxu0 0
      %2725 = vmatmul.mubr.bf16.gmra.mxu0 %v2620
      %v2726 = vpop.f32.mrf.mxu0
      %v2727 = vadd.f32 0.0, %v2726
      %v2728 = vpop.f32.mrf.mxu0
      %v2729 = vpop.f32.mrf.mxu0
      %v2730 = vadd.f32 0.0, %v2729
      %v2731 = vpop.f32.mrf.mxu0
      %2732 = vmatprep.mubr.bf16.mxu0 0
      %2733 = vmatmul.mubr.bf16.gmra.mxu0 %v2623
      %v2734 = vpop.f32.mrf.mxu0
      %v2735 = vadd.f32 0.0, %v2734
      %v2736 = vpop.f32.mrf.mxu0
      %v2737 = vpop.f32.mrf.mxu0
      %v2738 = vadd.f32 0.0, %v2737
      %v2739 = vpop.f32.mrf.mxu0
      %2740 = vmatprep.mubr.bf16.mxu0 0
      %2741 = vmatmul.mubr.bf16.gmra.mxu0 %v2626
      %v2742 = vpop.f32.mrf.mxu0
      %v2743 = vadd.f32 0.0, %v2742
      %v2744 = vpop.f32.mrf.mxu0
      %v2745 = vpop.f32.mrf.mxu0
      %v2746 = vadd.f32 0.0, %v2745
      %v2747 = vpop.f32.mrf.mxu0
      %2748 = vmatprep.mubr.bf16.mxu0 0
      %2749 = vmatmul.mubr.bf16.gmra.mxu0 %v2629
      %v2750 = vpop.f32.mrf.mxu0
      %v2751 = vadd.f32 0.0, %v2750
      %v2752 = vpop.f32.mrf.mxu0
      %v2753 = vpop.f32.mrf.mxu0
      %v2754 = vadd.f32 0.0, %v2753
      %v2755 = vpop.f32.mrf.mxu0
      %2756 = vmatprep.mubr.bf16.mxu0 0
      %2757 = vmatmul.mubr.bf16.gmra.mxu0 %v2632
      %v2758 = vpop.f32.mrf.mxu0
      %v2759 = vadd.f32 0.0, %v2758
      %v2760 = vpop.f32.mrf.mxu0
      %v2761 = vpop.f32.mrf.mxu0
      %v2762 = vadd.f32 0.0, %v2761
      %v2763 = vpop.f32.mrf.mxu0
      %2764 = vmatprep.mubr.bf16.mxu0 0
      %2765 = vmatmul.mubr.bf16.gmra.mxu0 %v2635
      %v2766 = vpop.f32.mrf.mxu0
      %v2767 = vadd.f32 0.0, %v2766
      %v2768 = vpop.f32.mrf.mxu0
      %v2769 = vpop.f32.mrf.mxu0
      %v2770 = vadd.f32 0.0, %v2769
      %v2771 = vpop.f32.mrf.mxu0
      %2772 = vmatprep.mubr.bf16.mxu0 0
      %2773 = vmatmul.mubr.bf16.gmra.mxu0 %v2638
      %v2774 = vpop.f32.mrf.mxu0
      %v2775 = vadd.f32 0.0, %v2774
      %v2776 = vpop.f32.mrf.mxu0
      %v2777 = vpop.f32.mrf.mxu0
      %v2778 = vadd.f32 0.0, %v2777
      %v2779 = vpop.f32.mrf.mxu0
      %2780 = vmatprep.mubr.bf16.mxu0 0
      %2781 = vmatmul.mubr.bf16.gmra.mxu0 %v2641
      %v2782 = vpop.f32.mrf.mxu0
      %v2783 = vadd.f32 0.0, %v2782
      %v2784 = vpop.f32.mrf.mxu0
      %v2785 = vpop.f32.mrf.mxu0
      %v2786 = vadd.f32 0.0, %v2785
      %v2787 = vpop.f32.mrf.mxu0
      %2788 = vmatprep.mubr.bf16.mxu0 0
      %2789 = vmatmul.mubr.bf16.gmra.mxu0 %v2644
      %v2790 = vpop.f32.mrf.mxu0
      %v2791 = vadd.f32 0.0, %v2790
      %v2792 = vpop.f32.mrf.mxu0
      %v2793 = vpop.f32.mrf.mxu0
      %v2794 = vadd.f32 0.0, %v2793
      %v2795 = vpop.f32.mrf.mxu0
      %2796 = vmatprep.mubr.bf16.mxu0 0
      %2797 = vmatmul.mubr.bf16.gmra.mxu0 %v2647
      %v2798 = vpop.f32.mrf.mxu0
      %v2799 = vadd.f32 0.0, %v2798
      %v2800 = vpop.f32.mrf.mxu0
      %v2801 = vpop.f32.mrf.mxu0
      %v2802 = vadd.f32 0.0, %v2801
      %v2803 = vpop.f32.mrf.mxu0
      %2804 = vmatprep.mubr.bf16.mxu0 0
      %2805 = vmatmul.mubr.bf16.gmra.mxu0 %v2650
      %v2806 = vpop.f32.mrf.mxu0
      %v2807 = vadd.f32 0.0, %v2806
      %v2808 = vpop.f32.mrf.mxu0
      %v2809 = vpop.f32.mrf.mxu0
      %v2810 = vadd.f32 0.0, %v2809
      %v2811 = vpop.f32.mrf.mxu0
      %2812 = vdwg.mxu0
      %v2813 = vadd.f32 %v2059, %v2687
      %v2814 = vadd.f32 %v2060, %v2690
      %v2815 = vadd.f32 %v2061, %v2695
      %v2816 = vadd.f32 %v2062, %v2698
      %v2817 = vadd.f32 %v2063, %v2703
      %v2818 = vadd.f32 %v2064, %v2706
      %v2819 = vadd.f32 %v2065, %v2711
      %v2820 = vadd.f32 %v2066, %v2714
      %v2821 = vadd.f32 %v2067, %v2719
      %v2822 = vadd.f32 %v2068, %v2722
      %v2823 = vadd.f32 %v2069, %v2727
      %v2824 = vadd.f32 %v2070, %v2730
      %v2825 = vadd.f32 %v2071, %v2735
      %v2826 = vadd.f32 %v2072, %v2738
      %v2827 = vadd.f32 %v2073, %v2743
      %v2828 = vadd.f32 %v2074, %v2746
      %v2829 = vadd.f32 %v2075, %v2751
      %v2830 = vadd.f32 %v2076, %v2754
      %v2831 = vadd.f32 %v2077, %v2759
      %v2832 = vadd.f32 %v2078, %v2762
      %v2833 = vadd.f32 %v2079, %v2767
      %v2834 = vadd.f32 %v2080, %v2770
      %v2835 = vadd.f32 %v2081, %v2775
      %v2836 = vadd.f32 %v2082, %v2778
      %v2837 = vadd.f32 %v2083, %v2783
      %v2838 = vadd.f32 %v2084, %v2786
      %v2839 = vadd.f32 %v2085, %v2791
      %v2840 = vadd.f32 %v2086, %v2794
      %v2841 = vadd.f32 %v2087, %v2799
      %v2842 = vadd.f32 %v2088, %v2802
      %v2843 = vadd.f32 %v2089, %v2807
      %v2844 = vadd.f32 %v2090, %v2810
      %v2845 = vld [vmem:[%s1704] sm:$0xe]
      %v2846 = vld [vmem:[%s1704 + $0xc] sm:$0xe]
      %v2847 = vld [vmem:[%s1704 + $0x18] sm:$0xe]
      %v2848 = vld [vmem:[%s1704 + $0x24] sm:$0xe]
      %v2849 = vld [vmem:[%s1704 + $0x30] sm:$0xe]
      %v2850 = vld [vmem:[%s1704 + $0x3c] sm:$0xe]
      %v2851 = vld [vmem:[%s1704 + $0x48] sm:$0xe]
      %v2852 = vld [vmem:[%s1704 + $0x54] sm:$0xe]
      %v2853 = vld [vmem:[%s1704 + $0x60] sm:$0xe]
      %v2854 = vld [vmem:[%s1704 + $0x6c] sm:$0xe]
      %v2855 = vld [vmem:[%s1704 + $0x78] sm:$0xe]
      %v2856 = vld [vmem:[%s1704 + $0x84] sm:$0xe]
      %v2857 = vld [vmem:[%s1704 + $0x90] sm:$0xe]
      %v2858 = vld [vmem:[%s1704 + $0x9c] sm:$0xe]
      %v2859 = vld [vmem:[%s1704 + $0xa8] sm:$0xe]
      %v2860 = vld [vmem:[%s1704 + $0xb4] sm:$0xe]
      %v2909 = vrot.slane %v2845, 5
      %v2910 = vrot.slane %v2909, 4
      %v2911 = vrot.slane %v2092, 5
      %v2912 = vsel %vm1269, %v2910, %v2911
      %v2913 = vrot.slane %v2911, 4
      %v2914 = vrot.slane %v2093, 5
      %v2915 = vsel %vm1269, %v2913, %v2914
      %v2916 = vrot.slane %v2846, 5
      %v2917 = vrot.slane %v2916, 4
      %v2918 = vrot.slane %v2095, 5
      %v2919 = vsel %vm1269, %v2917, %v2918
      %v2920 = vrot.slane %v2918, 4
      %v2921 = vrot.slane %v2096, 5
      %v2922 = vsel %vm1269, %v2920, %v2921
      %v2923 = vrot.slane %v2847, 5
      %v2924 = vrot.slane %v2923, 4
      %v2925 = vrot.slane %v2098, 5
      %v2926 = vsel %vm1269, %v2924, %v2925
      %v2927 = vrot.slane %v2925, 4
      %v2928 = vrot.slane %v2099, 5
      %v2929 = vsel %vm1269, %v2927, %v2928
      %v2930 = vrot.slane %v2848, 5
      %v2931 = vrot.slane %v2930, 4
      %v2932 = vrot.slane %v2101, 5
      %v2933 = vsel %vm1269, %v2931, %v2932
      %v2934 = vrot.slane %v2932, 4
      %v2935 = vrot.slane %v2102, 5
      %v2936 = vsel %vm1269, %v2934, %v2935
      %v2937 = vrot.slane %v2849, 5
      %v2938 = vrot.slane %v2937, 4
      %v2939 = vrot.slane %v2104, 5
      %v2940 = vsel %vm1269, %v2938, %v2939
      %v2941 = vrot.slane %v2939, 4
      %v2942 = vrot.slane %v2105, 5
      %v2943 = vsel %vm1269, %v2941, %v2942
      %v2944 = vrot.slane %v2850, 5
      %v2945 = vrot.slane %v2944, 4
      %v2946 = vrot.slane %v2107, 5
      %v2947 = vsel %vm1269, %v2945, %v2946
      %v2948 = vrot.slane %v2946, 4
      %v2949 = vrot.slane %v2108, 5
      %v2950 = vsel %vm1269, %v2948, %v2949
      %v2951 = vrot.slane %v2851, 5
      %v2952 = vrot.slane %v2951, 4
      %v2953 = vrot.slane %v2110, 5
      %v2954 = vsel %vm1269, %v2952, %v2953
      %v2955 = vrot.slane %v2953, 4
      %v2956 = vrot.slane %v2111, 5
      %v2957 = vsel %vm1269, %v2955, %v2956
      %v2958 = vrot.slane %v2852, 5
      %v2959 = vrot.slane %v2958, 4
      %v2960 = vrot.slane %v2113, 5
      %v2961 = vsel %vm1269, %v2959, %v2960
      %v2962 = vrot.slane %v2960, 4
      %v2963 = vrot.slane %v2114, 5
      %v2964 = vsel %vm1269, %v2962, %v2963
      %v2965 = vrot.slane %v2853, 5
      %v2966 = vrot.slane %v2965, 4
      %v2967 = vrot.slane %v2116, 5
      %v2968 = vsel %vm1269, %v2966, %v2967
      %v2969 = vrot.slane %v2967, 4
      %v2970 = vrot.slane %v2117, 5
      %v2971 = vsel %vm1269, %v2969, %v2970
      %v2972 = vrot.slane %v2854, 5
      %v2973 = vrot.slane %v2972, 4
      %v2974 = vrot.slane %v2119, 5
      %v2975 = vsel %vm1269, %v2973, %v2974
      %v2976 = vrot.slane %v2974, 4
      %v2977 = vrot.slane %v2120, 5
      %v2978 = vsel %vm1269, %v2976, %v2977
      %v2979 = vrot.slane %v2855, 5
      %v2980 = vrot.slane %v2979, 4
      %v2981 = vrot.slane %v2122, 5
      %v2982 = vsel %vm1269, %v2980, %v2981
      %v2983 = vrot.slane %v2981, 4
      %v2984 = vrot.slane %v2123, 5
      %v2985 = vsel %vm1269, %v2983, %v2984
      %v2986 = vrot.slane %v2856, 5
      %v2987 = vrot.slane %v2986, 4
      %v2988 = vrot.slane %v2125, 5
      %v2989 = vsel %vm1269, %v2987, %v2988
      %v2990 = vrot.slane %v2988, 4
      %v2991 = vrot.slane %v2126, 5
      %v2992 = vsel %vm1269, %v2990, %v2991
      %v2993 = vrot.slane %v2857, 5
      %v2994 = vrot.slane %v2993, 4
      %v2995 = vrot.slane %v2128, 5
      %v2996 = vsel %vm1269, %v2994, %v2995
      %v2997 = vrot.slane %v2995, 4
      %v2998 = vrot.slane %v2129, 5
      %v2999 = vsel %vm1269, %v2997, %v2998
      %v3000 = vrot.slane %v2858, 5
      %v3001 = vrot.slane %v3000, 4
      %v3002 = vrot.slane %v2131, 5
      %v3003 = vsel %vm1269, %v3001, %v3002
      %v3004 = vrot.slane %v3002, 4
      %v3005 = vrot.slane %v2132, 5
      %v3006 = vsel %vm1269, %v3004, %v3005
      %v3007 = vrot.slane %v2859, 5
      %v3008 = vrot.slane %v3007, 4
      %v3009 = vrot.slane %v2134, 5
      %v3010 = vsel %vm1269, %v3008, %v3009
      %v3011 = vrot.slane %v3009, 4
      %v3012 = vrot.slane %v2135, 5
      %v3013 = vsel %vm1269, %v3011, %v3012
      %v3014 = vrot.slane %v2860, 5
      %v3015 = vrot.slane %v3014, 4
      %v3016 = vrot.slane %v2137, 5
      %v3017 = vsel %vm1269, %v3015, %v3016
      %v3018 = vrot.slane %v3016, 4
      %v3019 = vrot.slane %v2138, 5
      %v3020 = vsel %vm1269, %v3018, %v3019
      %s3021 = scalar_lea.vmem %s1, 160
      %v3022 = vld [vmem:[%s3021] sm:$0xf]
      %v3023 = vld [vmem:[%s3021 + $0x4] sm:$0xf]
      %v3024 = vld [vmem:[%s3021 + $0x8] sm:$0xf]
      %v3025 = vld [vmem:[%s3021 + $0xc] sm:$0xf]
      %v3026 = vld [vmem:[%s3021 + $0x10] sm:$0xf]
      %v3027 = vld [vmem:[%s3021 + $0x14] sm:$0xf]
      %v3028 = vld [vmem:[%s3021 + $0x18] sm:$0xf]
      %v3029 = vld [vmem:[%s3021 + $0x1c] sm:$0xf]
      %v3030 = vunpack.c.l.b16 %v2912
      %v3031 = vunpack.c.l.b16 %v2915
      %v3032 = vunpack.c.l.b16 %v2919
      %v3033 = vunpack.c.l.b16 %v2922
      %v3034 = vunpack.c.l.b16 %v2926
      %v3035 = vunpack.c.l.b16 %v2929
      %v3036 = vunpack.c.l.b16 %v2933
      %v3037 = vunpack.c.l.b16 %v2936
      %v3038 = vunpack.c.l.b16 %v2940
      %v3039 = vunpack.c.l.b16 %v2943
      %v3040 = vunpack.c.l.b16 %v2947
      %v3041 = vunpack.c.l.b16 %v2950
      %v3042 = vunpack.c.l.b16 %v2954
      %v3043 = vunpack.c.l.b16 %v2957
      %v3044 = vunpack.c.l.b16 %v2961
      %v3045 = vunpack.c.l.b16 %v2964
      %v3046 = vunpack.c.l.b16 %v2968
      %v3047 = vunpack.c.l.b16 %v2971
      %v3048 = vunpack.c.l.b16 %v2975
      %v3049 = vunpack.c.l.b16 %v2978
      %v3050 = vunpack.c.l.b16 %v2982
      %v3051 = vunpack.c.l.b16 %v2985
      %v3052 = vunpack.c.l.b16 %v2989
      %v3053 = vunpack.c.l.b16 %v2992
      %v3054 = vunpack.c.l.b16 %v2996
      %v3055 = vunpack.c.l.b16 %v2999
      %v3056 = vunpack.c.l.b16 %v3003
      %v3057 = vunpack.c.l.b16 %v3006
      %v3058 = vunpack.c.l.b16 %v3010
      %v3059 = vunpack.c.l.b16 %v3013
      %v3060 = vunpack.c.l.b16 %v3017
      %v3061 = vunpack.c.l.b16 %v3020
      %v3062 = vpack.c.b16 %v3031, %v3030
      %v3063 = vpack.c.b16 %v3033, %v3032
      %v3064 = vpack.c.b16 %v3035, %v3034
      %v3065 = vpack.c.b16 %v3037, %v3036
      %v3066 = vpack.c.b16 %v3039, %v3038
      %v3067 = vpack.c.b16 %v3041, %v3040
      %v3068 = vpack.c.b16 %v3043, %v3042
      %v3069 = vpack.c.b16 %v3045, %v3044
      %v3070 = vpack.c.b16 %v3047, %v3046
      %v3071 = vpack.c.b16 %v3049, %v3048
      %v3072 = vpack.c.b16 %v3051, %v3050
      %v3073 = vpack.c.b16 %v3053, %v3052
      %v3074 = vpack.c.b16 %v3055, %v3054
      %v3075 = vpack.c.b16 %v3057, %v3056
      %v3076 = vpack.c.b16 %v3059, %v3058
      %v3077 = vpack.c.b16 %v3061, %v3060
      %v3086 = vunpack.c.l.b16 %v3022
      %v3087 = vunpack.c.l.b16 %v3023
      %v3088 = vunpack.c.l.b16 %v3024
      %v3089 = vunpack.c.l.b16 %v3025
      %v3090 = vunpack.c.l.b16 %v3026
      %v3091 = vunpack.c.l.b16 %v3027
      %v3092 = vunpack.c.l.b16 %v3028
      %v3093 = vunpack.c.l.b16 %v3029
      %v3094 = vpack.c.b16 %v3087, %v3086
      %v3095 = vpack.c.b16 %v3089, %v3088
      %v3096 = vpack.c.b16 %v3091, %v3090
      %v3097 = vpack.c.b16 %v3093, %v3092
      %v3103 = vsel %vm696, %v3062, 0
      %v3106 = vsel %vm696, %v3063, 0
      %v3109 = vsel %vm696, %v3064, 0
      %v3112 = vsel %vm696, %v3065, 0
      %v3115 = vsel %vm696, %v3066, 0
      %v3118 = vsel %vm696, %v3067, 0
      %v3121 = vsel %vm696, %v3068, 0
      %v3124 = vsel %vm696, %v3069, 0
      %v3127 = vsel %vm696, %v3070, 0
      %v3130 = vsel %vm696, %v3071, 0
      %v3133 = vsel %vm696, %v3072, 0
      %v3136 = vsel %vm696, %v3073, 0
      %v3139 = vsel %vm696, %v3074, 0
      %v3142 = vsel %vm696, %v3075, 0
      %v3145 = vsel %vm696, %v3076, 0
      %v3148 = vsel %vm696, %v3077, 0
      %3150 = vmatprep.subr.bf16.mxu0 0
      %3151 = vmatpush1.bf16.msra.mxu0 0
      %3152 = vmatprep.subr.bf16.mxu0 0
      %3153 = vmatpush1.bf16.msra.mxu0 0
      %3154 = vmatprep.subr.bf16.mxu0 0
      %3155 = vmatpush1.bf16.msra.mxu0 0
      %3156 = vmatprep.subr.bf16.mxu0 0
      %3157 = vmatpush1.bf16.msra.mxu0 0
      %3158 = vmatprep.subr.bf16.mxu0 0
      %3159 = vmatpush1.bf16.msra.mxu0 %v3097
      %3160 = vmatprep.subr.bf16.mxu0 0
      %3161 = vmatpush1.bf16.msra.mxu0 %v3096
      %3162 = vmatprep.subr.bf16.mxu0 0
      %3163 = vmatpush1.bf16.msra.mxu0 %v3095
      %3164 = vmatprep.subr.bf16.mxu0 0
      %3165 = vmatpush1.bf16.msra.mxu0 %v3094
      %3166 = vmatprep.subr.bf16.mxu0 0
      %3167 = vmatpush2.bf16.msra.mxu0 0
      %3168 = vmatprep.subr.bf16.mxu0 0
      %3169 = vmatpush2.bf16.msra.mxu0 0
      %3170 = vmatprep.subr.bf16.mxu0 0
      %3171 = vmatpush2.bf16.msra.mxu0 0
      %3172 = vmatprep.subr.bf16.mxu0 0
      %3173 = vmatpush2.bf16.msra.mxu0 0
      %3174 = vmatprep.subr.bf16.mxu0 0
      %3175 = vmatpush2.bf16.msra.mxu0 0
      %3176 = vmatprep.subr.bf16.mxu0 0
      %3177 = vmatpush2.bf16.msra.mxu0 0
      %3178 = vmatprep.subr.bf16.mxu0 0
      %3179 = vmatpush2.bf16.msra.mxu0 0
      %3180 = vmatprep.subr.bf16.mxu0 0
      %3181 = vmatpush2.bf16.msra.mxu0 0
      %3182 = vmatprep.mubr.bf16.mxu0 0
      %3183 = vmatmul.mubr.bf16.gmra.mxu0 %v3103
      %v3184 = vpop.f32.mrf.mxu0
      %v3185 = vadd.f32 0.0, %v3184
      %v3186 = vpop.f32.mrf.mxu0
      %v3187 = vpop.f32.mrf.mxu0
      %v3188 = vadd.f32 0.0, %v3187
      %v3189 = vpop.f32.mrf.mxu0
      %3190 = vmatprep.mubr.bf16.mxu0 0
      %3191 = vmatmul.mubr.bf16.gmra.mxu0 %v3106
      %v3192 = vpop.f32.mrf.mxu0
      %v3193 = vadd.f32 0.0, %v3192
      %v3194 = vpop.f32.mrf.mxu0
      %v3195 = vpop.f32.mrf.mxu0
      %v3196 = vadd.f32 0.0, %v3195
      %v3197 = vpop.f32.mrf.mxu0
      %3198 = vmatprep.mubr.bf16.mxu0 0
      %3199 = vmatmul.mubr.bf16.gmra.mxu0 %v3109
      %v3200 = vpop.f32.mrf.mxu0
      %v3201 = vadd.f32 0.0, %v3200
      %v3202 = vpop.f32.mrf.mxu0
      %v3203 = vpop.f32.mrf.mxu0
      %v3204 = vadd.f32 0.0, %v3203
      %v3205 = vpop.f32.mrf.mxu0
      %3206 = vmatprep.mubr.bf16.mxu0 0
      %3207 = vmatmul.mubr.bf16.gmra.mxu0 %v3112
      %v3208 = vpop.f32.mrf.mxu0
      %v3209 = vadd.f32 0.0, %v3208
      %v3210 = vpop.f32.mrf.mxu0
      %v3211 = vpop.f32.mrf.mxu0
      %v3212 = vadd.f32 0.0, %v3211
      %v3213 = vpop.f32.mrf.mxu0
      %3214 = vmatprep.mubr.bf16.mxu0 0
      %3215 = vmatmul.mubr.bf16.gmra.mxu0 %v3115
      %v3216 = vpop.f32.mrf.mxu0
      %v3217 = vadd.f32 0.0, %v3216
      %v3218 = vpop.f32.mrf.mxu0
      %v3219 = vpop.f32.mrf.mxu0
      %v3220 = vadd.f32 0.0, %v3219
      %v3221 = vpop.f32.mrf.mxu0
      %3222 = vmatprep.mubr.bf16.mxu0 0
      %3223 = vmatmul.mubr.bf16.gmra.mxu0 %v3118
      %v3224 = vpop.f32.mrf.mxu0
      %v3225 = vadd.f32 0.0, %v3224
      %v3226 = vpop.f32.mrf.mxu0
      %v3227 = vpop.f32.mrf.mxu0
      %v3228 = vadd.f32 0.0, %v3227
      %v3229 = vpop.f32.mrf.mxu0
      %3230 = vmatprep.mubr.bf16.mxu0 0
      %3231 = vmatmul.mubr.bf16.gmra.mxu0 %v3121
      %v3232 = vpop.f32.mrf.mxu0
      %v3233 = vadd.f32 0.0, %v3232
      %v3234 = vpop.f32.mrf.mxu0
      %v3235 = vpop.f32.mrf.mxu0
      %v3236 = vadd.f32 0.0, %v3235
      %v3237 = vpop.f32.mrf.mxu0
      %3238 = vmatprep.mubr.bf16.mxu0 0
      %3239 = vmatmul.mubr.bf16.gmra.mxu0 %v3124
      %v3240 = vpop.f32.mrf.mxu0
      %v3241 = vadd.f32 0.0, %v3240
      %v3242 = vpop.f32.mrf.mxu0
      %v3243 = vpop.f32.mrf.mxu0
      %v3244 = vadd.f32 0.0, %v3243
      %v3245 = vpop.f32.mrf.mxu0
      %3246 = vmatprep.mubr.bf16.mxu0 0
      %3247 = vmatmul.mubr.bf16.gmra.mxu0 %v3127
      %v3248 = vpop.f32.mrf.mxu0
      %v3249 = vadd.f32 0.0, %v3248
      %v3250 = vpop.f32.mrf.mxu0
      %v3251 = vpop.f32.mrf.mxu0
      %v3252 = vadd.f32 0.0, %v3251
      %v3253 = vpop.f32.mrf.mxu0
      %3254 = vmatprep.mubr.bf16.mxu0 0
      %3255 = vmatmul.mubr.bf16.gmra.mxu0 %v3130
      %v3256 = vpop.f32.mrf.mxu0
      %v3257 = vadd.f32 0.0, %v3256
      %v3258 = vpop.f32.mrf.mxu0
      %v3259 = vpop.f32.mrf.mxu0
      %v3260 = vadd.f32 0.0, %v3259
      %v3261 = vpop.f32.mrf.mxu0
      %3262 = vmatprep.mubr.bf16.mxu0 0
      %3263 = vmatmul.mubr.bf16.gmra.mxu0 %v3133
      %v3264 = vpop.f32.mrf.mxu0
      %v3265 = vadd.f32 0.0, %v3264
      %v3266 = vpop.f32.mrf.mxu0
      %v3267 = vpop.f32.mrf.mxu0
      %v3268 = vadd.f32 0.0, %v3267
      %v3269 = vpop.f32.mrf.mxu0
      %3270 = vmatprep.mubr.bf16.mxu0 0
      %3271 = vmatmul.mubr.bf16.gmra.mxu0 %v3136
      %v3272 = vpop.f32.mrf.mxu0
      %v3273 = vadd.f32 0.0, %v3272
      %v3274 = vpop.f32.mrf.mxu0
      %v3275 = vpop.f32.mrf.mxu0
      %v3276 = vadd.f32 0.0, %v3275
      %v3277 = vpop.f32.mrf.mxu0
      %3278 = vmatprep.mubr.bf16.mxu0 0
      %3279 = vmatmul.mubr.bf16.gmra.mxu0 %v3139
      %v3280 = vpop.f32.mrf.mxu0
      %v3281 = vadd.f32 0.0, %v3280
      %v3282 = vpop.f32.mrf.mxu0
      %v3283 = vpop.f32.mrf.mxu0
      %v3284 = vadd.f32 0.0, %v3283
      %v3285 = vpop.f32.mrf.mxu0
      %3286 = vmatprep.mubr.bf16.mxu0 0
      %3287 = vmatmul.mubr.bf16.gmra.mxu0 %v3142
      %v3288 = vpop.f32.mrf.mxu0
      %v3289 = vadd.f32 0.0, %v3288
      %v3290 = vpop.f32.mrf.mxu0
      %v3291 = vpop.f32.mrf.mxu0
      %v3292 = vadd.f32 0.0, %v3291
      %v3293 = vpop.f32.mrf.mxu0
      %3294 = vmatprep.mubr.bf16.mxu0 0
      %3295 = vmatmul.mubr.bf16.gmra.mxu0 %v3145
      %v3296 = vpop.f32.mrf.mxu0
      %v3297 = vadd.f32 0.0, %v3296
      %v3298 = vpop.f32.mrf.mxu0
      %v3299 = vpop.f32.mrf.mxu0
      %v3300 = vadd.f32 0.0, %v3299
      %v3301 = vpop.f32.mrf.mxu0
      %3302 = vmatprep.mubr.bf16.mxu0 0
      %3303 = vmatmul.mubr.bf16.gmra.mxu0 %v3148
      %v3304 = vpop.f32.mrf.mxu0
      %v3305 = vadd.f32 0.0, %v3304
      %v3306 = vpop.f32.mrf.mxu0
      %v3307 = vpop.f32.mrf.mxu0
      %v3308 = vadd.f32 0.0, %v3307
      %v3309 = vpop.f32.mrf.mxu0
      %3310 = vdwg.mxu0
      %v3311 = vadd.f32 %v2813, %v3185
      %v3312 = vadd.f32 %v2814, %v3188
      %v3313 = vadd.f32 %v2815, %v3193
      %v3314 = vadd.f32 %v2816, %v3196
      %v3315 = vadd.f32 %v2817, %v3201
      %v3316 = vadd.f32 %v2818, %v3204
      %v3317 = vadd.f32 %v2819, %v3209
      %v3318 = vadd.f32 %v2820, %v3212
      %v3319 = vadd.f32 %v2821, %v3217
      %v3320 = vadd.f32 %v2822, %v3220
      %v3321 = vadd.f32 %v2823, %v3225
      %v3322 = vadd.f32 %v2824, %v3228
      %v3323 = vadd.f32 %v2825, %v3233
      %v3324 = vadd.f32 %v2826, %v3236
      %v3325 = vadd.f32 %v2827, %v3241
      %v3326 = vadd.f32 %v2828, %v3244
      %v3327 = vadd.f32 %v2829, %v3249
      %v3328 = vadd.f32 %v2830, %v3252
      %v3329 = vadd.f32 %v2831, %v3257
      %v3330 = vadd.f32 %v2832, %v3260
      %v3331 = vadd.f32 %v2833, %v3265
      %v3332 = vadd.f32 %v2834, %v3268
      %v3333 = vadd.f32 %v2835, %v3273
      %v3334 = vadd.f32 %v2836, %v3276
      %v3335 = vadd.f32 %v2837, %v3281
      %v3336 = vadd.f32 %v2838, %v3284
      %v3337 = vadd.f32 %v2839, %v3289
      %v3338 = vadd.f32 %v2840, %v3292
      %v3339 = vadd.f32 %v2841, %v3297
      %v3340 = vadd.f32 %v2842, %v3300
      %v3341 = vadd.f32 %v2843, %v3305
      %v3342 = vadd.f32 %v2844, %v3308
      %s3343 = scalar_lea.vmem %s165, 24
      %v3344 = vld [vmem:[%s3343] sm:$0xf]
      %v3345 = vld [vmem:[%s3343 + $0x4] sm:$0xf]
      %v3346 = vld [vmem:[%s3343 + $0xc] sm:$0xf]
      %v3347 = vld [vmem:[%s3343 + $0x10] sm:$0xf]
      %v3348 = vld [vmem:[%s3343 + $0x18] sm:$0xf]
      %v3349 = vld [vmem:[%s3343 + $0x1c] sm:$0xf]
      %v3350 = vld [vmem:[%s3343 + $0x24] sm:$0xf]
      %v3351 = vld [vmem:[%s3343 + $0x28] sm:$0xf]
      %v3352 = vld [vmem:[%s3343 + $0x30] sm:$0xf]
      %v3353 = vld [vmem:[%s3343 + $0x34] sm:$0xf]
      %v3354 = vld [vmem:[%s3343 + $0x3c] sm:$0xf]
      %v3355 = vld [vmem:[%s3343 + $0x40] sm:$0xf]
      %v3356 = vld [vmem:[%s3343 + $0x48] sm:$0xf]
      %v3357 = vld [vmem:[%s3343 + $0x4c] sm:$0xf]
      %v3358 = vld [vmem:[%s3343 + $0x54] sm:$0xf]
      %v3359 = vld [vmem:[%s3343 + $0x58] sm:$0xf]
      %v3360 = vld [vmem:[%s3343 + $0x60] sm:$0xf]
      %v3361 = vld [vmem:[%s3343 + $0x64] sm:$0xf]
      %v3362 = vld [vmem:[%s3343 + $0x6c] sm:$0xf]
      %v3363 = vld [vmem:[%s3343 + $0x70] sm:$0xf]
      %v3364 = vld [vmem:[%s3343 + $0x78] sm:$0xf]
      %v3365 = vld [vmem:[%s3343 + $0x7c] sm:$0xf]
      %v3366 = vld [vmem:[%s3343 + $0x84] sm:$0xf]
      %v3367 = vld [vmem:[%s3343 + $0x88] sm:$0xf]
      %v3368 = vld [vmem:[%s3343 + $0x90] sm:$0xf]
      %v3369 = vld [vmem:[%s3343 + $0x94] sm:$0xf]
      %v3370 = vld [vmem:[%s3343 + $0x9c] sm:$0xf]
      %v3371 = vld [vmem:[%s3343 + $0xa0] sm:$0xf]
      %v3372 = vld [vmem:[%s3343 + $0xa8] sm:$0xf]
      %v3373 = vld [vmem:[%s3343 + $0xac] sm:$0xf]
      %v3374 = vld [vmem:[%s3343 + $0xb4] sm:$0xf]
      %v3375 = vld [vmem:[%s3343 + $0xb8] sm:$0xf]
      %s3376 = scalar_lea.vmem %s1, 192
      %v3377 = vld [vmem:[%s3376] sm:$0xf]
      %v3378 = vld [vmem:[%s3376 + $0x4] sm:$0xf]
      %v3379 = vld [vmem:[%s3376 + $0x8] sm:$0xf]
      %v3380 = vld [vmem:[%s3376 + $0xc] sm:$0xf]
      %v3381 = vld [vmem:[%s3376 + $0x10] sm:$0xf]
      %v3382 = vld [vmem:[%s3376 + $0x14] sm:$0xf]
      %v3383 = vld [vmem:[%s3376 + $0x18] sm:$0xf]
      %v3384 = vld [vmem:[%s3376 + $0x1c] sm:$0xf]
      %v3417 = vunpack.c.l.b16 %v3344
      %v3418 = vunpack.c.l.b16 %v3345
      %v3419 = vunpack.c.l.b16 %v3346
      %v3420 = vunpack.c.l.b16 %v3347
      %v3421 = vunpack.c.l.b16 %v3348
      %v3422 = vunpack.c.l.b16 %v3349
      %v3423 = vunpack.c.l.b16 %v3350
      %v3424 = vunpack.c.l.b16 %v3351
      %v3425 = vunpack.c.l.b16 %v3352
      %v3426 = vunpack.c.l.b16 %v3353
      %v3427 = vunpack.c.l.b16 %v3354
      %v3428 = vunpack.c.l.b16 %v3355
      %v3429 = vunpack.c.l.b16 %v3356
      %v3430 = vunpack.c.l.b16 %v3357
      %v3431 = vunpack.c.l.b16 %v3358
      %v3432 = vunpack.c.l.b16 %v3359
      %v3433 = vunpack.c.l.b16 %v3360
      %v3434 = vunpack.c.l.b16 %v3361
      %v3435 = vunpack.c.l.b16 %v3362
      %v3436 = vunpack.c.l.b16 %v3363
      %v3437 = vunpack.c.l.b16 %v3364
      %v3438 = vunpack.c.l.b16 %v3365
      %v3439 = vunpack.c.l.b16 %v3366
      %v3440 = vunpack.c.l.b16 %v3367
      %v3441 = vunpack.c.l.b16 %v3368
      %v3442 = vunpack.c.l.b16 %v3369
      %v3443 = vunpack.c.l.b16 %v3370
      %v3444 = vunpack.c.l.b16 %v3371
      %v3445 = vunpack.c.l.b16 %v3372
      %v3446 = vunpack.c.l.b16 %v3373
      %v3447 = vunpack.c.l.b16 %v3374
      %v3448 = vunpack.c.l.b16 %v3375
      %v3449 = vpack.c.b16 %v3418, %v3417
      %v3450 = vpack.c.b16 %v3420, %v3419
      %v3451 = vpack.c.b16 %v3422, %v3421
      %v3452 = vpack.c.b16 %v3424, %v3423
      %v3453 = vpack.c.b16 %v3426, %v3425
      %v3454 = vpack.c.b16 %v3428, %v3427
      %v3455 = vpack.c.b16 %v3430, %v3429
      %v3456 = vpack.c.b16 %v3432, %v3431
      %v3457 = vpack.c.b16 %v3434, %v3433
      %v3458 = vpack.c.b16 %v3436, %v3435
      %v3459 = vpack.c.b16 %v3438, %v3437
      %v3460 = vpack.c.b16 %v3440, %v3439
      %v3461 = vpack.c.b16 %v3442, %v3441
      %v3462 = vpack.c.b16 %v3444, %v3443
      %v3463 = vpack.c.b16 %v3446, %v3445
      %v3464 = vpack.c.b16 %v3448, %v3447
      %v3473 = vunpack.c.l.b16 %v3377
      %v3474 = vunpack.c.l.b16 %v3378
      %v3475 = vunpack.c.l.b16 %v3379
      %v3476 = vunpack.c.l.b16 %v3380
      %v3477 = vunpack.c.l.b16 %v3381
      %v3478 = vunpack.c.l.b16 %v3382
      %v3479 = vunpack.c.l.b16 %v3383
      %v3480 = vunpack.c.l.b16 %v3384
      %v3481 = vpack.c.b16 %v3474, %v3473
      %v3482 = vpack.c.b16 %v3476, %v3475
      %v3483 = vpack.c.b16 %v3478, %v3477
      %v3484 = vpack.c.b16 %v3480, %v3479
      %v3490 = vsel %vm696, %v3449, 0
      %v3493 = vsel %vm696, %v3450, 0
      %v3496 = vsel %vm696, %v3451, 0
      %v3499 = vsel %vm696, %v3452, 0
      %v3502 = vsel %vm696, %v3453, 0
      %v3505 = vsel %vm696, %v3454, 0
      %v3508 = vsel %vm696, %v3455, 0
      %v3511 = vsel %vm696, %v3456, 0
      %v3514 = vsel %vm696, %v3457, 0
      %v3517 = vsel %vm696, %v3458, 0
      %v3520 = vsel %vm696, %v3459, 0
      %v3523 = vsel %vm696, %v3460, 0
      %v3526 = vsel %vm696, %v3461, 0
      %v3529 = vsel %vm696, %v3462, 0
      %v3532 = vsel %vm696, %v3463, 0
      %v3535 = vsel %vm696, %v3464, 0
      %3537 = vmatprep.subr.bf16.mxu0 0
      %3538 = vmatpush1.bf16.msra.mxu0 0
      %3539 = vmatprep.subr.bf16.mxu0 0
      %3540 = vmatpush1.bf16.msra.mxu0 0
      %3541 = vmatprep.subr.bf16.mxu0 0
      %3542 = vmatpush1.bf16.msra.mxu0 0
      %3543 = vmatprep.subr.bf16.mxu0 0
      %3544 = vmatpush1.bf16.msra.mxu0 0
      %3545 = vmatprep.subr.bf16.mxu0 0
      %3546 = vmatpush1.bf16.msra.mxu0 %v3484
      %3547 = vmatprep.subr.bf16.mxu0 0
      %3548 = vmatpush1.bf16.msra.mxu0 %v3483
      %3549 = vmatprep.subr.bf16.mxu0 0
      %3550 = vmatpush1.bf16.msra.mxu0 %v3482
      %3551 = vmatprep.subr.bf16.mxu0 0
      %3552 = vmatpush1.bf16.msra.mxu0 %v3481
      %3553 = vmatprep.subr.bf16.mxu0 0
      %3554 = vmatpush2.bf16.msra.mxu0 0
      %3555 = vmatprep.subr.bf16.mxu0 0
      %3556 = vmatpush2.bf16.msra.mxu0 0
      %3557 = vmatprep.subr.bf16.mxu0 0
      %3558 = vmatpush2.bf16.msra.mxu0 0
      %3559 = vmatprep.subr.bf16.mxu0 0
      %3560 = vmatpush2.bf16.msra.mxu0 0
      %3561 = vmatprep.subr.bf16.mxu0 0
      %3562 = vmatpush2.bf16.msra.mxu0 0
      %3563 = vmatprep.subr.bf16.mxu0 0
      %3564 = vmatpush2.bf16.msra.mxu0 0
      %3565 = vmatprep.subr.bf16.mxu0 0
      %3566 = vmatpush2.bf16.msra.mxu0 0
      %3567 = vmatprep.subr.bf16.mxu0 0
      %3568 = vmatpush2.bf16.msra.mxu0 0
      %3569 = vmatprep.mubr.bf16.mxu0 0
      %3570 = vmatmul.mubr.bf16.gmra.mxu0 %v3490
      %v3571 = vpop.f32.mrf.mxu0
      %v3572 = vadd.f32 0.0, %v3571
      %v3573 = vpop.f32.mrf.mxu0
      %v3574 = vpop.f32.mrf.mxu0
      %v3575 = vadd.f32 0.0, %v3574
      %v3576 = vpop.f32.mrf.mxu0
      %3577 = vmatprep.mubr.bf16.mxu0 0
      %3578 = vmatmul.mubr.bf16.gmra.mxu0 %v3493
      %v3579 = vpop.f32.mrf.mxu0
      %v3580 = vadd.f32 0.0, %v3579
      %v3581 = vpop.f32.mrf.mxu0
      %v3582 = vpop.f32.mrf.mxu0
      %v3583 = vadd.f32 0.0, %v3582
      %v3584 = vpop.f32.mrf.mxu0
      %3585 = vmatprep.mubr.bf16.mxu0 0
      %3586 = vmatmul.mubr.bf16.gmra.mxu0 %v3496
      %v3587 = vpop.f32.mrf.mxu0
      %v3588 = vadd.f32 0.0, %v3587
      %v3589 = vpop.f32.mrf.mxu0
      %v3590 = vpop.f32.mrf.mxu0
      %v3591 = vadd.f32 0.0, %v3590
      %v3592 = vpop.f32.mrf.mxu0
      %3593 = vmatprep.mubr.bf16.mxu0 0
      %3594 = vmatmul.mubr.bf16.gmra.mxu0 %v3499
      %v3595 = vpop.f32.mrf.mxu0
      %v3596 = vadd.f32 0.0, %v3595
      %v3597 = vpop.f32.mrf.mxu0
      %v3598 = vpop.f32.mrf.mxu0
      %v3599 = vadd.f32 0.0, %v3598
      %v3600 = vpop.f32.mrf.mxu0
      %3601 = vmatprep.mubr.bf16.mxu0 0
      %3602 = vmatmul.mubr.bf16.gmra.mxu0 %v3502
      %v3603 = vpop.f32.mrf.mxu0
      %v3604 = vadd.f32 0.0, %v3603
      %v3605 = vpop.f32.mrf.mxu0
      %v3606 = vpop.f32.mrf.mxu0
      %v3607 = vadd.f32 0.0, %v3606
      %v3608 = vpop.f32.mrf.mxu0
      %3609 = vmatprep.mubr.bf16.mxu0 0
      %3610 = vmatmul.mubr.bf16.gmra.mxu0 %v3505
      %v3611 = vpop.f32.mrf.mxu0
      %v3612 = vadd.f32 0.0, %v3611
      %v3613 = vpop.f32.mrf.mxu0
      %v3614 = vpop.f32.mrf.mxu0
      %v3615 = vadd.f32 0.0, %v3614
      %v3616 = vpop.f32.mrf.mxu0
      %3617 = vmatprep.mubr.bf16.mxu0 0
      %3618 = vmatmul.mubr.bf16.gmra.mxu0 %v3508
      %v3619 = vpop.f32.mrf.mxu0
      %v3620 = vadd.f32 0.0, %v3619
      %v3621 = vpop.f32.mrf.mxu0
      %v3622 = vpop.f32.mrf.mxu0
      %v3623 = vadd.f32 0.0, %v3622
      %v3624 = vpop.f32.mrf.mxu0
      %3625 = vmatprep.mubr.bf16.mxu0 0
      %3626 = vmatmul.mubr.bf16.gmra.mxu0 %v3511
      %v3627 = vpop.f32.mrf.mxu0
      %v3628 = vadd.f32 0.0, %v3627
      %v3629 = vpop.f32.mrf.mxu0
      %v3630 = vpop.f32.mrf.mxu0
      %v3631 = vadd.f32 0.0, %v3630
      %v3632 = vpop.f32.mrf.mxu0
      %3633 = vmatprep.mubr.bf16.mxu0 0
      %3634 = vmatmul.mubr.bf16.gmra.mxu0 %v3514
      %v3635 = vpop.f32.mrf.mxu0
      %v3636 = vadd.f32 0.0, %v3635
      %v3637 = vpop.f32.mrf.mxu0
      %v3638 = vpop.f32.mrf.mxu0
      %v3639 = vadd.f32 0.0, %v3638
      %v3640 = vpop.f32.mrf.mxu0
      %3641 = vmatprep.mubr.bf16.mxu0 0
      %3642 = vmatmul.mubr.bf16.gmra.mxu0 %v3517
      %v3643 = vpop.f32.mrf.mxu0
      %v3644 = vadd.f32 0.0, %v3643
      %v3645 = vpop.f32.mrf.mxu0
      %v3646 = vpop.f32.mrf.mxu0
      %v3647 = vadd.f32 0.0, %v3646
      %v3648 = vpop.f32.mrf.mxu0
      %3649 = vmatprep.mubr.bf16.mxu0 0
      %3650 = vmatmul.mubr.bf16.gmra.mxu0 %v3520
      %v3651 = vpop.f32.mrf.mxu0
      %v3652 = vadd.f32 0.0, %v3651
      %v3653 = vpop.f32.mrf.mxu0
      %v3654 = vpop.f32.mrf.mxu0
      %v3655 = vadd.f32 0.0, %v3654
      %v3656 = vpop.f32.mrf.mxu0
      %3657 = vmatprep.mubr.bf16.mxu0 0
      %3658 = vmatmul.mubr.bf16.gmra.mxu0 %v3523
      %v3659 = vpop.f32.mrf.mxu0
      %v3660 = vadd.f32 0.0, %v3659
      %v3661 = vpop.f32.mrf.mxu0
      %v3662 = vpop.f32.mrf.mxu0
      %v3663 = vadd.f32 0.0, %v3662
      %v3664 = vpop.f32.mrf.mxu0
      %3665 = vmatprep.mubr.bf16.mxu0 0
      %3666 = vmatmul.mubr.bf16.gmra.mxu0 %v3526
      %v3667 = vpop.f32.mrf.mxu0
      %v3668 = vadd.f32 0.0, %v3667
      %v3669 = vpop.f32.mrf.mxu0
      %v3670 = vpop.f32.mrf.mxu0
      %v3671 = vadd.f32 0.0, %v3670
      %v3672 = vpop.f32.mrf.mxu0
      %3673 = vmatprep.mubr.bf16.mxu0 0
      %3674 = vmatmul.mubr.bf16.gmra.mxu0 %v3529
      %v3675 = vpop.f32.mrf.mxu0
      %v3676 = vadd.f32 0.0, %v3675
      %v3677 = vpop.f32.mrf.mxu0
      %v3678 = vpop.f32.mrf.mxu0
      %v3679 = vadd.f32 0.0, %v3678
      %v3680 = vpop.f32.mrf.mxu0
      %3681 = vmatprep.mubr.bf16.mxu0 0
      %3682 = vmatmul.mubr.bf16.gmra.mxu0 %v3532
      %v3683 = vpop.f32.mrf.mxu0
      %v3684 = vadd.f32 0.0, %v3683
      %v3685 = vpop.f32.mrf.mxu0
      %v3686 = vpop.f32.mrf.mxu0
      %v3687 = vadd.f32 0.0, %v3686
      %v3688 = vpop.f32.mrf.mxu0
      %3689 = vmatprep.mubr.bf16.mxu0 0
      %3690 = vmatmul.mubr.bf16.gmra.mxu0 %v3535
      %v3691 = vpop.f32.mrf.mxu0
      %v3692 = vadd.f32 0.0, %v3691
      %v3693 = vpop.f32.mrf.mxu0
      %v3694 = vpop.f32.mrf.mxu0
      %v3695 = vadd.f32 0.0, %v3694
      %v3696 = vpop.f32.mrf.mxu0
      %3697 = vdwg.mxu0
      %v3698 = vadd.f32 %v3311, %v3572
      %v3699 = vadd.f32 %v3312, %v3575
      %v3700 = vadd.f32 %v3313, %v3580
      %v3701 = vadd.f32 %v3314, %v3583
      %v3702 = vadd.f32 %v3315, %v3588
      %v3703 = vadd.f32 %v3316, %v3591
      %v3704 = vadd.f32 %v3317, %v3596
      %v3705 = vadd.f32 %v3318, %v3599
      %v3706 = vadd.f32 %v3319, %v3604
      %v3707 = vadd.f32 %v3320, %v3607
      %v3708 = vadd.f32 %v3321, %v3612
      %v3709 = vadd.f32 %v3322, %v3615
      %v3710 = vadd.f32 %v3323, %v3620
      %v3711 = vadd.f32 %v3324, %v3623
      %v3712 = vadd.f32 %v3325, %v3628
      %v3713 = vadd.f32 %v3326, %v3631
      %v3714 = vadd.f32 %v3327, %v3636
      %v3715 = vadd.f32 %v3328, %v3639
      %v3716 = vadd.f32 %v3329, %v3644
      %v3717 = vadd.f32 %v3330, %v3647
      %v3718 = vadd.f32 %v3331, %v3652
      %v3719 = vadd.f32 %v3332, %v3655
      %v3720 = vadd.f32 %v3333, %v3660
      %v3721 = vadd.f32 %v3334, %v3663
      %v3722 = vadd.f32 %v3335, %v3668
      %v3723 = vadd.f32 %v3336, %v3671
      %v3724 = vadd.f32 %v3337, %v3676
      %v3725 = vadd.f32 %v3338, %v3679
      %v3726 = vadd.f32 %v3339, %v3684
      %v3727 = vadd.f32 %v3340, %v3687
      %v3728 = vadd.f32 %v3341, %v3692
      %v3729 = vadd.f32 %v3342, %v3695
      %v3730 = vld [vmem:[%s3343] sm:$0xf]
      %v3731 = vld [vmem:[%s3343 + $0x4] sm:$0xf]
      %v3732 = vld [vmem:[%s3343 + $0x8] sm:$0x1]
      %v3733 = vld [vmem:[%s3343 + $0xc] sm:$0xf]
      %v3734 = vld [vmem:[%s3343 + $0x10] sm:$0xf]
      %v3735 = vld [vmem:[%s3343 + $0x14] sm:$0x1]
      %v3736 = vld [vmem:[%s3343 + $0x18] sm:$0xf]
      %v3737 = vld [vmem:[%s3343 + $0x1c] sm:$0xf]
      %v3738 = vld [vmem:[%s3343 + $0x20] sm:$0x1]
      %v3739 = vld [vmem:[%s3343 + $0x24] sm:$0xf]
      %v3740 = vld [vmem:[%s3343 + $0x28] sm:$0xf]
      %v3741 = vld [vmem:[%s3343 + $0x2c] sm:$0x1]
      %v3742 = vld [vmem:[%s3343 + $0x30] sm:$0xf]
      %v3743 = vld [vmem:[%s3343 + $0x34] sm:$0xf]
      %v3744 = vld [vmem:[%s3343 + $0x38] sm:$0x1]
      %v3745 = vld [vmem:[%s3343 + $0x3c] sm:$0xf]
      %v3746 = vld [vmem:[%s3343 + $0x40] sm:$0xf]
      %v3747 = vld [vmem:[%s3343 + $0x44] sm:$0x1]
      %v3748 = vld [vmem:[%s3343 + $0x48] sm:$0xf]
      %v3749 = vld [vmem:[%s3343 + $0x4c] sm:$0xf]
      %v3750 = vld [vmem:[%s3343 + $0x50] sm:$0x1]
      %v3751 = vld [vmem:[%s3343 + $0x54] sm:$0xf]
      %v3752 = vld [vmem:[%s3343 + $0x58] sm:$0xf]
      %v3753 = vld [vmem:[%s3343 + $0x5c] sm:$0x1]
      %v3754 = vld [vmem:[%s3343 + $0x60] sm:$0xf]
      %v3755 = vld [vmem:[%s3343 + $0x64] sm:$0xf]
      %v3756 = vld [vmem:[%s3343 + $0x68] sm:$0x1]
      %v3757 = vld [vmem:[%s3343 + $0x6c] sm:$0xf]
      %v3758 = vld [vmem:[%s3343 + $0x70] sm:$0xf]
      %v3759 = vld [vmem:[%s3343 + $0x74] sm:$0x1]
      %v3760 = vld [vmem:[%s3343 + $0x78] sm:$0xf]
      %v3761 = vld [vmem:[%s3343 + $0x7c] sm:$0xf]
      %v3762 = vld [vmem:[%s3343 + $0x80] sm:$0x1]
      %v3763 = vld [vmem:[%s3343 + $0x84] sm:$0xf]
      %v3764 = vld [vmem:[%s3343 + $0x88] sm:$0xf]
      %v3765 = vld [vmem:[%s3343 + $0x8c] sm:$0x1]
      %v3766 = vld [vmem:[%s3343 + $0x90] sm:$0xf]
      %v3767 = vld [vmem:[%s3343 + $0x94] sm:$0xf]
      %v3768 = vld [vmem:[%s3343 + $0x98] sm:$0x1]
      %v3769 = vld [vmem:[%s3343 + $0x9c] sm:$0xf]
      %v3770 = vld [vmem:[%s3343 + $0xa0] sm:$0xf]
      %v3771 = vld [vmem:[%s3343 + $0xa4] sm:$0x1]
      %v3772 = vld [vmem:[%s3343 + $0xa8] sm:$0xf]
      %v3773 = vld [vmem:[%s3343 + $0xac] sm:$0xf]
      %v3774 = vld [vmem:[%s3343 + $0xb0] sm:$0x1]
      %v3775 = vld [vmem:[%s3343 + $0xb4] sm:$0xf]
      %v3776 = vld [vmem:[%s3343 + $0xb8] sm:$0xf]
      %v3777 = vld [vmem:[%s3343 + $0xbc] sm:$0x1]
      %v3779 = vshrl.u32 %v3730, 16
      %v3781 = vrot.slane %v3779, 4
      %v3782 = vshll.u32 %v3730, 16
      %v3784 = vrot.slane %v3782, 5
      %v3785 = vor.u32 %v3781, %v3784
      %v3786 = vrot.slane %v3785, 4
      %v3788 = vshll.u32 %v3731, 16
      %v3790 = vrot.slane %v3788, 5
      %v3791 = vsel %vm230, %v3786, %v3790
      %v3792 = vshrl.u32 %v3731, 16
      %v3794 = vrot.slane %v3792, 4
      %v3795 = vor.u32 %v3794, %v3790
      %v3796 = vrot.slane %v3795, 4
      %v3798 = vshll.u32 %v3732, 16
      %v3800 = vrot.slane %v3798, 5
      %v3801 = vsel %vm230, %v3796, %v3800
      %v3803 = vshrl.u32 %v3733, 16
      %v3805 = vrot.slane %v3803, 4
      %v3806 = vshll.u32 %v3733, 16
      %v3808 = vrot.slane %v3806, 5
      %v3809 = vor.u32 %v3805, %v3808
      %v3810 = vrot.slane %v3809, 4
      %v3812 = vshll.u32 %v3734, 16
      %v3814 = vrot.slane %v3812, 5
      %v3815 = vsel %vm230, %v3810, %v3814
      %v3816 = vshrl.u32 %v3734, 16
      %v3818 = vrot.slane %v3816, 4
      %v3819 = vor.u32 %v3818, %v3814
      %v3820 = vrot.slane %v3819, 4
      %v3822 = vshll.u32 %v3735, 16
      %v3824 = vrot.slane %v3822, 5
      %v3825 = vsel %vm230, %v3820, %v3824
      %v3827 = vshrl.u32 %v3736, 16
      %v3829 = vrot.slane %v3827, 4
      %v3830 = vshll.u32 %v3736, 16
      %v3832 = vrot.slane %v3830, 5
      %v3833 = vor.u32 %v3829, %v3832
      %v3834 = vrot.slane %v3833, 4
      %v3836 = vshll.u32 %v3737, 16
      %v3838 = vrot.slane %v3836, 5
      %v3839 = vsel %vm230, %v3834, %v3838
      %v3840 = vshrl.u32 %v3737, 16
      %v3842 = vrot.slane %v3840, 4
      %v3843 = vor.u32 %v3842, %v3838
      %v3844 = vrot.slane %v3843, 4
      %v3846 = vshll.u32 %v3738, 16
      %v3848 = vrot.slane %v3846, 5
      %v3849 = vsel %vm230, %v3844, %v3848
      %v3851 = vshrl.u32 %v3739, 16
      %v3853 = vrot.slane %v3851, 4
      %v3854 = vshll.u32 %v3739, 16
      %v3856 = vrot.slane %v3854, 5
      %v3857 = vor.u32 %v3853, %v3856
      %v3858 = vrot.slane %v3857, 4
      %v3860 = vshll.u32 %v3740, 16
      %v3862 = vrot.slane %v3860, 5
      %v3863 = vsel %vm230, %v3858, %v3862
      %v3864 = vshrl.u32 %v3740, 16
      %v3866 = vrot.slane %v3864, 4
      %v3867 = vor.u32 %v3866, %v3862
      %v3868 = vrot.slane %v3867, 4
      %v3870 = vshll.u32 %v3741, 16
      %v3872 = vrot.slane %v3870, 5
      %v3873 = vsel %vm230, %v3868, %v3872
      %v3875 = vshrl.u32 %v3742, 16
      %v3877 = vrot.slane %v3875, 4
      %v3878 = vshll.u32 %v3742, 16
      %v3880 = vrot.slane %v3878, 5
      %v3881 = vor.u32 %v3877, %v3880
      %v3882 = vrot.slane %v3881, 4
      %v3884 = vshll.u32 %v3743, 16
      %v3886 = vrot.slane %v3884, 5
      %v3887 = vsel %vm230, %v3882, %v3886
      %v3888 = vshrl.u32 %v3743, 16
      %v3890 = vrot.slane %v3888, 4
      %v3891 = vor.u32 %v3890, %v3886
      %v3892 = vrot.slane %v3891, 4
      %v3894 = vshll.u32 %v3744, 16
      %v3896 = vrot.slane %v3894, 5
      %v3897 = vsel %vm230, %v3892, %v3896
      %v3899 = vshrl.u32 %v3745, 16
      %v3901 = vrot.slane %v3899, 4
      %v3902 = vshll.u32 %v3745, 16
      %v3904 = vrot.slane %v3902, 5
      %v3905 = vor.u32 %v3901, %v3904
      %v3906 = vrot.slane %v3905, 4
      %v3908 = vshll.u32 %v3746, 16
      %v3910 = vrot.slane %v3908, 5
      %v3911 = vsel %vm230, %v3906, %v3910
      %v3912 = vshrl.u32 %v3746, 16
      %v3914 = vrot.slane %v3912, 4
      %v3915 = vor.u32 %v3914, %v3910
      %v3916 = vrot.slane %v3915, 4
      %v3918 = vshll.u32 %v3747, 16
      %v3920 = vrot.slane %v3918, 5
      %v3921 = vsel %vm230, %v3916, %v3920
      %v3923 = vshrl.u32 %v3748, 16
      %v3925 = vrot.slane %v3923, 4
      %v3926 = vshll.u32 %v3748, 16
      %v3928 = vrot.slane %v3926, 5
      %v3929 = vor.u32 %v3925, %v3928
      %v3930 = vrot.slane %v3929, 4
      %v3932 = vshll.u32 %v3749, 16
      %v3934 = vrot.slane %v3932, 5
      %v3935 = vsel %vm230, %v3930, %v3934
      %v3936 = vshrl.u32 %v3749, 16
      %v3938 = vrot.slane %v3936, 4
      %v3939 = vor.u32 %v3938, %v3934
      %v3940 = vrot.slane %v3939, 4
      %v3942 = vshll.u32 %v3750, 16
      %v3944 = vrot.slane %v3942, 5
      %v3945 = vsel %vm230, %v3940, %v3944
      %v3947 = vshrl.u32 %v3751, 16
      %v3949 = vrot.slane %v3947, 4
      %v3950 = vshll.u32 %v3751, 16
      %v3952 = vrot.slane %v3950, 5
      %v3953 = vor.u32 %v3949, %v3952
      %v3954 = vrot.slane %v3953, 4
      %v3956 = vshll.u32 %v3752, 16
      %v3958 = vrot.slane %v3956, 5
      %v3959 = vsel %vm230, %v3954, %v3958
      %v3960 = vshrl.u32 %v3752, 16
      %v3962 = vrot.slane %v3960, 4
      %v3963 = vor.u32 %v3962, %v3958
      %v3964 = vrot.slane %v3963, 4
      %v3966 = vshll.u32 %v3753, 16
      %v3968 = vrot.slane %v3966, 5
      %v3969 = vsel %vm230, %v3964, %v3968
      %v3971 = vshrl.u32 %v3754, 16
      %v3973 = vrot.slane %v3971, 4
      %v3974 = vshll.u32 %v3754, 16
      %v3976 = vrot.slane %v3974, 5
      %v3977 = vor.u32 %v3973, %v3976
      %v3978 = vrot.slane %v3977, 4
      %v3980 = vshll.u32 %v3755, 16
      %v3982 = vrot.slane %v3980, 5
      %v3983 = vsel %vm230, %v3978, %v3982
      %v3984 = vshrl.u32 %v3755, 16
      %v3986 = vrot.slane %v3984, 4
      %v3987 = vor.u32 %v3986, %v3982
      %v3988 = vrot.slane %v3987, 4
      %v3990 = vshll.u32 %v3756, 16
      %v3992 = vrot.slane %v3990, 5
      %v3993 = vsel %vm230, %v3988, %v3992
      %v3995 = vshrl.u32 %v3757, 16
      %v3997 = vrot.slane %v3995, 4
      %v3998 = vshll.u32 %v3757, 16
      %v4000 = vrot.slane %v3998, 5
      %v4001 = vor.u32 %v3997, %v4000
      %v4002 = vrot.slane %v4001, 4
      %v4004 = vshll.u32 %v3758, 16
      %v4006 = vrot.slane %v4004, 5
      %v4007 = vsel %vm230, %v4002, %v4006
      %v4008 = vshrl.u32 %v3758, 16
      %v4010 = vrot.slane %v4008, 4
      %v4011 = vor.u32 %v4010, %v4006
      %v4012 = vrot.slane %v4011, 4
      %v4014 = vshll.u32 %v3759, 16
      %v4016 = vrot.slane %v4014, 5
      %v4017 = vsel %vm230, %v4012, %v4016
      %v4019 = vshrl.u32 %v3760, 16
      %v4021 = vrot.slane %v4019, 4
      %v4022 = vshll.u32 %v3760, 16
      %v4024 = vrot.slane %v4022, 5
      %v4025 = vor.u32 %v4021, %v4024
      %v4026 = vrot.slane %v4025, 4
      %v4028 = vshll.u32 %v3761, 16
      %v4030 = vrot.slane %v4028, 5
      %v4031 = vsel %vm230, %v4026, %v4030
      %v4032 = vshrl.u32 %v3761, 16
      %v4034 = vrot.slane %v4032, 4
      %v4035 = vor.u32 %v4034, %v4030
      %v4036 = vrot.slane %v4035, 4
      %v4038 = vshll.u32 %v3762, 16
      %v4040 = vrot.slane %v4038, 5
      %v4041 = vsel %vm230, %v4036, %v4040
      %v4043 = vshrl.u32 %v3763, 16
      %v4045 = vrot.slane %v4043, 4
      %v4046 = vshll.u32 %v3763, 16
      %v4048 = vrot.slane %v4046, 5
      %v4049 = vor.u32 %v4045, %v4048
      %v4050 = vrot.slane %v4049, 4
      %v4052 = vshll.u32 %v3764, 16
      %v4054 = vrot.slane %v4052, 5
      %v4055 = vsel %vm230, %v4050, %v4054
      %v4056 = vshrl.u32 %v3764, 16
      %v4058 = vrot.slane %v4056, 4
      %v4059 = vor.u32 %v4058, %v4054
      %v4060 = vrot.slane %v4059, 4
      %v4062 = vshll.u32 %v3765, 16
      %v4064 = vrot.slane %v4062, 5
      %v4065 = vsel %vm230, %v4060, %v4064
      %v4067 = vshrl.u32 %v3766, 16
      %v4069 = vrot.slane %v4067, 4
      %v4070 = vshll.u32 %v3766, 16
      %v4072 = vrot.slane %v4070, 5
      %v4073 = vor.u32 %v4069, %v4072
      %v4074 = vrot.slane %v4073, 4
      %v4076 = vshll.u32 %v3767, 16
      %v4078 = vrot.slane %v4076, 5
      %v4079 = vsel %vm230, %v4074, %v4078
      %v4080 = vshrl.u32 %v3767, 16
      %v4082 = vrot.slane %v4080, 4
      %v4083 = vor.u32 %v4082, %v4078
      %v4084 = vrot.slane %v4083, 4
      %v4086 = vshll.u32 %v3768, 16
      %v4088 = vrot.slane %v4086, 5
      %v4089 = vsel %vm230, %v4084, %v4088
      %v4091 = vshrl.u32 %v3769, 16
      %v4093 = vrot.slane %v4091, 4
      %v4094 = vshll.u32 %v3769, 16
      %v4096 = vrot.slane %v4094, 5
      %v4097 = vor.u32 %v4093, %v4096
      %v4098 = vrot.slane %v4097, 4
      %v4100 = vshll.u32 %v3770, 16
      %v4102 = vrot.slane %v4100, 5
      %v4103 = vsel %vm230, %v4098, %v4102
      %v4104 = vshrl.u32 %v3770, 16
      %v4106 = vrot.slane %v4104, 4
      %v4107 = vor.u32 %v4106, %v4102
      %v4108 = vrot.slane %v4107, 4
      %v4110 = vshll.u32 %v3771, 16
      %v4112 = vrot.slane %v4110, 5
      %v4113 = vsel %vm230, %v4108, %v4112
      %v4115 = vshrl.u32 %v3772, 16
      %v4117 = vrot.slane %v4115, 4
      %v4118 = vshll.u32 %v3772, 16
      %v4120 = vrot.slane %v4118, 5
      %v4121 = vor.u32 %v4117, %v4120
      %v4122 = vrot.slane %v4121, 4
      %v4124 = vshll.u32 %v3773, 16
      %v4126 = vrot.slane %v4124, 5
      %v4127 = vsel %vm230, %v4122, %v4126
      %v4128 = vshrl.u32 %v3773, 16
      %v4130 = vrot.slane %v4128, 4
      %v4131 = vor.u32 %v4130, %v4126
      %v4132 = vrot.slane %v4131, 4
      %v4134 = vshll.u32 %v3774, 16
      %v4136 = vrot.slane %v4134, 5
      %v4137 = vsel %vm230, %v4132, %v4136
      %v4139 = vshrl.u32 %v3775, 16
      %v4141 = vrot.slane %v4139, 4
      %v4142 = vshll.u32 %v3775, 16
      %v4144 = vrot.slane %v4142, 5
      %v4145 = vor.u32 %v4141, %v4144
      %v4146 = vrot.slane %v4145, 4
      %v4148 = vshll.u32 %v3776, 16
      %v4150 = vrot.slane %v4148, 5
      %v4151 = vsel %vm230, %v4146, %v4150
      %v4152 = vshrl.u32 %v3776, 16
      %v4154 = vrot.slane %v4152, 4
      %v4155 = vor.u32 %v4154, %v4150
      %v4156 = vrot.slane %v4155, 4
      %v4158 = vshll.u32 %v3777, 16
      %v4160 = vrot.slane %v4158, 5
      %v4161 = vsel %vm230, %v4156, %v4160
      %s4162 = scalar_lea.vmem %s1, 224
      %v4163 = vld [vmem:[%s4162] sm:$0xf]
      %v4164 = vld [vmem:[%s4162 + $0x4] sm:$0xf]
      %v4165 = vld [vmem:[%s4162 + $0x8] sm:$0xf]
      %v4166 = vld [vmem:[%s4162 + $0xc] sm:$0xf]
      %v4167 = vld [vmem:[%s4162 + $0x10] sm:$0xf]
      %v4168 = vld [vmem:[%s4162 + $0x14] sm:$0xf]
      %v4169 = vld [vmem:[%s4162 + $0x18] sm:$0xf]
      %v4170 = vld [vmem:[%s4162 + $0x1c] sm:$0xf]
      %v4171 = vunpack.c.l.b16 %v3791
      %v4172 = vunpack.c.l.b16 %v3801
      %v4173 = vunpack.c.l.b16 %v3815
      %v4174 = vunpack.c.l.b16 %v3825
      %v4175 = vunpack.c.l.b16 %v3839
      %v4176 = vunpack.c.l.b16 %v3849
      %v4177 = vunpack.c.l.b16 %v3863
      %v4178 = vunpack.c.l.b16 %v3873
      %v4179 = vunpack.c.l.b16 %v3887
      %v4180 = vunpack.c.l.b16 %v3897
      %v4181 = vunpack.c.l.b16 %v3911
      %v4182 = vunpack.c.l.b16 %v3921
      %v4183 = vunpack.c.l.b16 %v3935
      %v4184 = vunpack.c.l.b16 %v3945
      %v4185 = vunpack.c.l.b16 %v3959
      %v4186 = vunpack.c.l.b16 %v3969
      %v4187 = vunpack.c.l.b16 %v3983
      %v4188 = vunpack.c.l.b16 %v3993
      %v4189 = vunpack.c.l.b16 %v4007
      %v4190 = vunpack.c.l.b16 %v4017
      %v4191 = vunpack.c.l.b16 %v4031
      %v4192 = vunpack.c.l.b16 %v4041
      %v4193 = vunpack.c.l.b16 %v4055
      %v4194 = vunpack.c.l.b16 %v4065
      %v4195 = vunpack.c.l.b16 %v4079
      %v4196 = vunpack.c.l.b16 %v4089
      %v4197 = vunpack.c.l.b16 %v4103
      %v4198 = vunpack.c.l.b16 %v4113
      %v4199 = vunpack.c.l.b16 %v4127
      %v4200 = vunpack.c.l.b16 %v4137
      %v4201 = vunpack.c.l.b16 %v4151
      %v4202 = vunpack.c.l.b16 %v4161
      %v4203 = vpack.c.b16 %v4172, %v4171
      %v4204 = vpack.c.b16 %v4174, %v4173
      %v4205 = vpack.c.b16 %v4176, %v4175
      %v4206 = vpack.c.b16 %v4178, %v4177
      %v4207 = vpack.c.b16 %v4180, %v4179
      %v4208 = vpack.c.b16 %v4182, %v4181
      %v4209 = vpack.c.b16 %v4184, %v4183
      %v4210 = vpack.c.b16 %v4186, %v4185
      %v4211 = vpack.c.b16 %v4188, %v4187
      %v4212 = vpack.c.b16 %v4190, %v4189
      %v4213 = vpack.c.b16 %v4192, %v4191
      %v4214 = vpack.c.b16 %v4194, %v4193
      %v4215 = vpack.c.b16 %v4196, %v4195
      %v4216 = vpack.c.b16 %v4198, %v4197
      %v4217 = vpack.c.b16 %v4200, %v4199
      %v4218 = vpack.c.b16 %v4202, %v4201
      %v4227 = vunpack.c.l.b16 %v4163
      %v4228 = vunpack.c.l.b16 %v4164
      %v4229 = vunpack.c.l.b16 %v4165
      %v4230 = vunpack.c.l.b16 %v4166
      %v4231 = vunpack.c.l.b16 %v4167
      %v4232 = vunpack.c.l.b16 %v4168
      %v4233 = vunpack.c.l.b16 %v4169
      %v4234 = vunpack.c.l.b16 %v4170
      %v4235 = vpack.c.b16 %v4228, %v4227
      %v4236 = vpack.c.b16 %v4230, %v4229
      %v4237 = vpack.c.b16 %v4232, %v4231
      %v4238 = vpack.c.b16 %v4234, %v4233
      %v4244 = vsel %vm696, %v4203, 0
      %v4247 = vsel %vm696, %v4204, 0
      %v4250 = vsel %vm696, %v4205, 0
      %v4253 = vsel %vm696, %v4206, 0
      %v4256 = vsel %vm696, %v4207, 0
      %v4259 = vsel %vm696, %v4208, 0
      %v4262 = vsel %vm696, %v4209, 0
      %v4265 = vsel %vm696, %v4210, 0
      %v4268 = vsel %vm696, %v4211, 0
      %v4271 = vsel %vm696, %v4212, 0
      %v4274 = vsel %vm696, %v4213, 0
      %v4277 = vsel %vm696, %v4214, 0
      %v4280 = vsel %vm696, %v4215, 0
      %v4283 = vsel %vm696, %v4216, 0
      %v4286 = vsel %vm696, %v4217, 0
      %v4289 = vsel %vm696, %v4218, 0
      %4291 = vmatprep.subr.bf16.mxu0 0
      %4292 = vmatpush1.bf16.msra.mxu0 0
      %4293 = vmatprep.subr.bf16.mxu0 0
      %4294 = vmatpush1.bf16.msra.mxu0 0
      %4295 = vmatprep.subr.bf16.mxu0 0
      %4296 = vmatpush1.bf16.msra.mxu0 0
      %4297 = vmatprep.subr.bf16.mxu0 0
      %4298 = vmatpush1.bf16.msra.mxu0 0
      %4299 = vmatprep.subr.bf16.mxu0 0
      %4300 = vmatpush1.bf16.msra.mxu0 %v4238
      %4301 = vmatprep.subr.bf16.mxu0 0
      %4302 = vmatpush1.bf16.msra.mxu0 %v4237
      %4303 = vmatprep.subr.bf16.mxu0 0
      %4304 = vmatpush1.bf16.msra.mxu0 %v4236
      %4305 = vmatprep.subr.bf16.mxu0 0
      %4306 = vmatpush1.bf16.msra.mxu0 %v4235
      %4307 = vmatprep.subr.bf16.mxu0 0
      %4308 = vmatpush2.bf16.msra.mxu0 0
      %4309 = vmatprep.subr.bf16.mxu0 0
      %4310 = vmatpush2.bf16.msra.mxu0 0
      %4311 = vmatprep.subr.bf16.mxu0 0
      %4312 = vmatpush2.bf16.msra.mxu0 0
      %4313 = vmatprep.subr.bf16.mxu0 0
      %4314 = vmatpush2.bf16.msra.mxu0 0
      %4315 = vmatprep.subr.bf16.mxu0 0
      %4316 = vmatpush2.bf16.msra.mxu0 0
      %4317 = vmatprep.subr.bf16.mxu0 0
      %4318 = vmatpush2.bf16.msra.mxu0 0
      %4319 = vmatprep.subr.bf16.mxu0 0
      %4320 = vmatpush2.bf16.msra.mxu0 0
      %4321 = vmatprep.subr.bf16.mxu0 0
      %4322 = vmatpush2.bf16.msra.mxu0 0
      %4323 = vmatprep.mubr.bf16.mxu0 0
      %4324 = vmatmul.mubr.bf16.gmra.mxu0 %v4244
      %v4325 = vpop.f32.mrf.mxu0
      %v4326 = vadd.f32 0.0, %v4325
      %v4327 = vpop.f32.mrf.mxu0
      %v4328 = vpop.f32.mrf.mxu0
      %v4329 = vadd.f32 0.0, %v4328
      %v4330 = vpop.f32.mrf.mxu0
      %4331 = vmatprep.mubr.bf16.mxu0 0
      %4332 = vmatmul.mubr.bf16.gmra.mxu0 %v4247
      %v4333 = vpop.f32.mrf.mxu0
      %v4334 = vadd.f32 0.0, %v4333
      %v4335 = vpop.f32.mrf.mxu0
      %v4336 = vpop.f32.mrf.mxu0
      %v4337 = vadd.f32 0.0, %v4336
      %v4338 = vpop.f32.mrf.mxu0
      %4339 = vmatprep.mubr.bf16.mxu0 0
      %4340 = vmatmul.mubr.bf16.gmra.mxu0 %v4250
      %v4341 = vpop.f32.mrf.mxu0
      %v4342 = vadd.f32 0.0, %v4341
      %v4343 = vpop.f32.mrf.mxu0
      %v4344 = vpop.f32.mrf.mxu0
      %v4345 = vadd.f32 0.0, %v4344
      %v4346 = vpop.f32.mrf.mxu0
      %4347 = vmatprep.mubr.bf16.mxu0 0
      %4348 = vmatmul.mubr.bf16.gmra.mxu0 %v4253
      %v4349 = vpop.f32.mrf.mxu0
      %v4350 = vadd.f32 0.0, %v4349
      %v4351 = vpop.f32.mrf.mxu0
      %v4352 = vpop.f32.mrf.mxu0
      %v4353 = vadd.f32 0.0, %v4352
      %v4354 = vpop.f32.mrf.mxu0
      %4355 = vmatprep.mubr.bf16.mxu0 0
      %4356 = vmatmul.mubr.bf16.gmra.mxu0 %v4256
      %v4357 = vpop.f32.mrf.mxu0
      %v4358 = vadd.f32 0.0, %v4357
      %v4359 = vpop.f32.mrf.mxu0
      %v4360 = vpop.f32.mrf.mxu0
      %v4361 = vadd.f32 0.0, %v4360
      %v4362 = vpop.f32.mrf.mxu0
      %4363 = vmatprep.mubr.bf16.mxu0 0
      %4364 = vmatmul.mubr.bf16.gmra.mxu0 %v4259
      %v4365 = vpop.f32.mrf.mxu0
      %v4366 = vadd.f32 0.0, %v4365
      %v4367 = vpop.f32.mrf.mxu0
      %v4368 = vpop.f32.mrf.mxu0
      %v4369 = vadd.f32 0.0, %v4368
      %v4370 = vpop.f32.mrf.mxu0
      %4371 = vmatprep.mubr.bf16.mxu0 0
      %4372 = vmatmul.mubr.bf16.gmra.mxu0 %v4262
      %v4373 = vpop.f32.mrf.mxu0
      %v4374 = vadd.f32 0.0, %v4373
      %v4375 = vpop.f32.mrf.mxu0
      %v4376 = vpop.f32.mrf.mxu0
      %v4377 = vadd.f32 0.0, %v4376
      %v4378 = vpop.f32.mrf.mxu0
      %4379 = vmatprep.mubr.bf16.mxu0 0
      %4380 = vmatmul.mubr.bf16.gmra.mxu0 %v4265
      %v4381 = vpop.f32.mrf.mxu0
      %v4382 = vadd.f32 0.0, %v4381
      %v4383 = vpop.f32.mrf.mxu0
      %v4384 = vpop.f32.mrf.mxu0
      %v4385 = vadd.f32 0.0, %v4384
      %v4386 = vpop.f32.mrf.mxu0
      %4387 = vmatprep.mubr.bf16.mxu0 0
      %4388 = vmatmul.mubr.bf16.gmra.mxu0 %v4268
      %v4389 = vpop.f32.mrf.mxu0
      %v4390 = vadd.f32 0.0, %v4389
      %v4391 = vpop.f32.mrf.mxu0
      %v4392 = vpop.f32.mrf.mxu0
      %v4393 = vadd.f32 0.0, %v4392
      %v4394 = vpop.f32.mrf.mxu0
      %4395 = vmatprep.mubr.bf16.mxu0 0
      %4396 = vmatmul.mubr.bf16.gmra.mxu0 %v4271
      %v4397 = vpop.f32.mrf.mxu0
      %v4398 = vadd.f32 0.0, %v4397
      %v4399 = vpop.f32.mrf.mxu0
      %v4400 = vpop.f32.mrf.mxu0
      %v4401 = vadd.f32 0.0, %v4400
      %v4402 = vpop.f32.mrf.mxu0
      %4403 = vmatprep.mubr.bf16.mxu0 0
      %4404 = vmatmul.mubr.bf16.gmra.mxu0 %v4274
      %v4405 = vpop.f32.mrf.mxu0
      %v4406 = vadd.f32 0.0, %v4405
      %v4407 = vpop.f32.mrf.mxu0
      %v4408 = vpop.f32.mrf.mxu0
      %v4409 = vadd.f32 0.0, %v4408
      %v4410 = vpop.f32.mrf.mxu0
      %4411 = vmatprep.mubr.bf16.mxu0 0
      %4412 = vmatmul.mubr.bf16.gmra.mxu0 %v4277
      %v4413 = vpop.f32.mrf.mxu0
      %v4414 = vadd.f32 0.0, %v4413
      %v4415 = vpop.f32.mrf.mxu0
      %v4416 = vpop.f32.mrf.mxu0
      %v4417 = vadd.f32 0.0, %v4416
      %v4418 = vpop.f32.mrf.mxu0
      %4419 = vmatprep.mubr.bf16.mxu0 0
      %4420 = vmatmul.mubr.bf16.gmra.mxu0 %v4280
      %v4421 = vpop.f32.mrf.mxu0
      %v4422 = vadd.f32 0.0, %v4421
      %v4423 = vpop.f32.mrf.mxu0
      %v4424 = vpop.f32.mrf.mxu0
      %v4425 = vadd.f32 0.0, %v4424
      %v4426 = vpop.f32.mrf.mxu0
      %4427 = vmatprep.mubr.bf16.mxu0 0
      %4428 = vmatmul.mubr.bf16.gmra.mxu0 %v4283
      %v4429 = vpop.f32.mrf.mxu0
      %v4430 = vadd.f32 0.0, %v4429
      %v4431 = vpop.f32.mrf.mxu0
      %v4432 = vpop.f32.mrf.mxu0
      %v4433 = vadd.f32 0.0, %v4432
      %v4434 = vpop.f32.mrf.mxu0
      %4435 = vmatprep.mubr.bf16.mxu0 0
      %4436 = vmatmul.mubr.bf16.gmra.mxu0 %v4286
      %v4437 = vpop.f32.mrf.mxu0
      %v4438 = vadd.f32 0.0, %v4437
      %v4439 = vpop.f32.mrf.mxu0
      %v4440 = vpop.f32.mrf.mxu0
      %v4441 = vadd.f32 0.0, %v4440
      %v4442 = vpop.f32.mrf.mxu0
      %4443 = vmatprep.mubr.bf16.mxu0 0
      %4444 = vmatmul.mubr.bf16.gmra.mxu0 %v4289
      %v4445 = vpop.f32.mrf.mxu0
      %v4446 = vadd.f32 0.0, %v4445
      %v4447 = vpop.f32.mrf.mxu0
      %v4448 = vpop.f32.mrf.mxu0
      %v4449 = vadd.f32 0.0, %v4448
      %v4450 = vpop.f32.mrf.mxu0
      %4451 = vdwg.mxu0
      %v4452 = vadd.f32 %v3698, %v4326
      %v4453 = vadd.f32 %v3699, %v4329
      %v4454 = vadd.f32 %v3700, %v4334
      %v4455 = vadd.f32 %v3701, %v4337
      %v4456 = vadd.f32 %v3702, %v4342
      %v4457 = vadd.f32 %v3703, %v4345
      %v4458 = vadd.f32 %v3704, %v4350
      %v4459 = vadd.f32 %v3705, %v4353
      %v4460 = vadd.f32 %v3706, %v4358
      %v4461 = vadd.f32 %v3707, %v4361
      %v4462 = vadd.f32 %v3708, %v4366
      %v4463 = vadd.f32 %v3709, %v4369
      %v4464 = vadd.f32 %v3710, %v4374
      %v4465 = vadd.f32 %v3711, %v4377
      %v4466 = vadd.f32 %v3712, %v4382
      %v4467 = vadd.f32 %v3713, %v4385
      %v4468 = vadd.f32 %v3714, %v4390
      %v4469 = vadd.f32 %v3715, %v4393
      %v4470 = vadd.f32 %v3716, %v4398
      %v4471 = vadd.f32 %v3717, %v4401
      %v4472 = vadd.f32 %v3718, %v4406
      %v4473 = vadd.f32 %v3719, %v4409
      %v4474 = vadd.f32 %v3720, %v4414
      %v4475 = vadd.f32 %v3721, %v4417
      %v4476 = vadd.f32 %v3722, %v4422
      %v4477 = vadd.f32 %v3723, %v4425
      %v4478 = vadd.f32 %v3724, %v4430
      %v4479 = vadd.f32 %v3725, %v4433
      %v4480 = vadd.f32 %v3726, %v4438
      %v4481 = vadd.f32 %v3727, %v4441
      %v4482 = vadd.f32 %v3728, %v4446
      %v4483 = vadd.f32 %v3729, %v4449
      %v4484 = vld [vmem:[%s3343] sm:$0xe]
      %v4485 = vld [vmem:[%s3343 + $0xc] sm:$0xe]
      %v4486 = vld [vmem:[%s3343 + $0x18] sm:$0xe]
      %v4487 = vld [vmem:[%s3343 + $0x24] sm:$0xe]
      %v4488 = vld [vmem:[%s3343 + $0x30] sm:$0xe]
      %v4489 = vld [vmem:[%s3343 + $0x3c] sm:$0xe]
      %v4490 = vld [vmem:[%s3343 + $0x48] sm:$0xe]
      %v4491 = vld [vmem:[%s3343 + $0x54] sm:$0xe]
      %v4492 = vld [vmem:[%s3343 + $0x60] sm:$0xe]
      %v4493 = vld [vmem:[%s3343 + $0x6c] sm:$0xe]
      %v4494 = vld [vmem:[%s3343 + $0x78] sm:$0xe]
      %v4495 = vld [vmem:[%s3343 + $0x84] sm:$0xe]
      %v4496 = vld [vmem:[%s3343 + $0x90] sm:$0xe]
      %v4497 = vld [vmem:[%s3343 + $0x9c] sm:$0xe]
      %v4498 = vld [vmem:[%s3343 + $0xa8] sm:$0xe]
      %v4499 = vld [vmem:[%s3343 + $0xb4] sm:$0xe]
      %v4548 = vrot.slane %v4484, 5
      %v4549 = vrot.slane %v4548, 4
      %v4550 = vrot.slane %v3731, 5
      %v4551 = vsel %vm1269, %v4549, %v4550
      %v4552 = vrot.slane %v4550, 4
      %v4553 = vrot.slane %v3732, 5
      %v4554 = vsel %vm1269, %v4552, %v4553
      %v4555 = vrot.slane %v4485, 5
      %v4556 = vrot.slane %v4555, 4
      %v4557 = vrot.slane %v3734, 5
      %v4558 = vsel %vm1269, %v4556, %v4557
      %v4559 = vrot.slane %v4557, 4
      %v4560 = vrot.slane %v3735, 5
      %v4561 = vsel %vm1269, %v4559, %v4560
      %v4562 = vrot.slane %v4486, 5
      %v4563 = vrot.slane %v4562, 4
      %v4564 = vrot.slane %v3737, 5
      %v4565 = vsel %vm1269, %v4563, %v4564
      %v4566 = vrot.slane %v4564, 4
      %v4567 = vrot.slane %v3738, 5
      %v4568 = vsel %vm1269, %v4566, %v4567
      %v4569 = vrot.slane %v4487, 5
      %v4570 = vrot.slane %v4569, 4
      %v4571 = vrot.slane %v3740, 5
      %v4572 = vsel %vm1269, %v4570, %v4571
      %v4573 = vrot.slane %v4571, 4
      %v4574 = vrot.slane %v3741, 5
      %v4575 = vsel %vm1269, %v4573, %v4574
      %v4576 = vrot.slane %v4488, 5
      %v4577 = vrot.slane %v4576, 4
      %v4578 = vrot.slane %v3743, 5
      %v4579 = vsel %vm1269, %v4577, %v4578
      %v4580 = vrot.slane %v4578, 4
      %v4581 = vrot.slane %v3744, 5
      %v4582 = vsel %vm1269, %v4580, %v4581
      %v4583 = vrot.slane %v4489, 5
      %v4584 = vrot.slane %v4583, 4
      %v4585 = vrot.slane %v3746, 5
      %v4586 = vsel %vm1269, %v4584, %v4585
      %v4587 = vrot.slane %v4585, 4
      %v4588 = vrot.slane %v3747, 5
      %v4589 = vsel %vm1269, %v4587, %v4588
      %v4590 = vrot.slane %v4490, 5
      %v4591 = vrot.slane %v4590, 4
      %v4592 = vrot.slane %v3749, 5
      %v4593 = vsel %vm1269, %v4591, %v4592
      %v4594 = vrot.slane %v4592, 4
      %v4595 = vrot.slane %v3750, 5
      %v4596 = vsel %vm1269, %v4594, %v4595
      %v4597 = vrot.slane %v4491, 5
      %v4598 = vrot.slane %v4597, 4
      %v4599 = vrot.slane %v3752, 5
      %v4600 = vsel %vm1269, %v4598, %v4599
      %v4601 = vrot.slane %v4599, 4
      %v4602 = vrot.slane %v3753, 5
      %v4603 = vsel %vm1269, %v4601, %v4602
      %v4604 = vrot.slane %v4492, 5
      %v4605 = vrot.slane %v4604, 4
      %v4606 = vrot.slane %v3755, 5
      %v4607 = vsel %vm1269, %v4605, %v4606
      %v4608 = vrot.slane %v4606, 4
      %v4609 = vrot.slane %v3756, 5
      %v4610 = vsel %vm1269, %v4608, %v4609
      %v4611 = vrot.slane %v4493, 5
      %v4612 = vrot.slane %v4611, 4
      %v4613 = vrot.slane %v3758, 5
      %v4614 = vsel %vm1269, %v4612, %v4613
      %v4615 = vrot.slane %v4613, 4
      %v4616 = vrot.slane %v3759, 5
      %v4617 = vsel %vm1269, %v4615, %v4616
      %v4618 = vrot.slane %v4494, 5
      %v4619 = vrot.slane %v4618, 4
      %v4620 = vrot.slane %v3761, 5
      %v4621 = vsel %vm1269, %v4619, %v4620
      %v4622 = vrot.slane %v4620, 4
      %v4623 = vrot.slane %v3762, 5
      %v4624 = vsel %vm1269, %v4622, %v4623
      %v4625 = vrot.slane %v4495, 5
      %v4626 = vrot.slane %v4625, 4
      %v4627 = vrot.slane %v3764, 5
      %v4628 = vsel %vm1269, %v4626, %v4627
      %v4629 = vrot.slane %v4627, 4
      %v4630 = vrot.slane %v3765, 5
      %v4631 = vsel %vm1269, %v4629, %v4630
      %v4632 = vrot.slane %v4496, 5
      %v4633 = vrot.slane %v4632, 4
      %v4634 = vrot.slane %v3767, 5
      %v4635 = vsel %vm1269, %v4633, %v4634
      %v4636 = vrot.slane %v4634, 4
      %v4637 = vrot.slane %v3768, 5
      %v4638 = vsel %vm1269, %v4636, %v4637
      %v4639 = vrot.slane %v4497, 5
      %v4640 = vrot.slane %v4639, 4
      %v4641 = vrot.slane %v3770, 5
      %v4642 = vsel %vm1269, %v4640, %v4641
      %v4643 = vrot.slane %v4641, 4
      %v4644 = vrot.slane %v3771, 5
      %v4645 = vsel %vm1269, %v4643, %v4644
      %v4646 = vrot.slane %v4498, 5
      %v4647 = vrot.slane %v4646, 4
      %v4648 = vrot.slane %v3773, 5
      %v4649 = vsel %vm1269, %v4647, %v4648
      %v4650 = vrot.slane %v4648, 4
      %v4651 = vrot.slane %v3774, 5
      %v4652 = vsel %vm1269, %v4650, %v4651
      %v4653 = vrot.slane %v4499, 5
      %v4654 = vrot.slane %v4653, 4
      %v4655 = vrot.slane %v3776, 5
      %v4656 = vsel %vm1269, %v4654, %v4655
      %v4657 = vrot.slane %v4655, 4
      %v4658 = vrot.slane %v3777, 5
      %v4659 = vsel %vm1269, %v4657, %v4658
      %s4660 = scalar_lea.vmem %s1, 256
      %v4661 = vld [vmem:[%s4660] sm:$0xf]
      %v4662 = vld [vmem:[%s4660 + $0x4] sm:$0xf]
      %v4663 = vld [vmem:[%s4660 + $0x8] sm:$0xf]
      %v4664 = vld [vmem:[%s4660 + $0xc] sm:$0xf]
      %v4665 = vld [vmem:[%s4660 + $0x10] sm:$0xf]
      %v4666 = vld [vmem:[%s4660 + $0x14] sm:$0xf]
      %v4667 = vld [vmem:[%s4660 + $0x18] sm:$0xf]
      %v4668 = vld [vmem:[%s4660 + $0x1c] sm:$0xf]
      %v4669 = vunpack.c.l.b16 %v4551
      %v4670 = vunpack.c.l.b16 %v4554
      %v4671 = vunpack.c.l.b16 %v4558
      %v4672 = vunpack.c.l.b16 %v4561
      %v4673 = vunpack.c.l.b16 %v4565
      %v4674 = vunpack.c.l.b16 %v4568
      %v4675 = vunpack.c.l.b16 %v4572
      %v4676 = vunpack.c.l.b16 %v4575
      %v4677 = vunpack.c.l.b16 %v4579
      %v4678 = vunpack.c.l.b16 %v4582
      %v4679 = vunpack.c.l.b16 %v4586
      %v4680 = vunpack.c.l.b16 %v4589
      %v4681 = vunpack.c.l.b16 %v4593
      %v4682 = vunpack.c.l.b16 %v4596
      %v4683 = vunpack.c.l.b16 %v4600
      %v4684 = vunpack.c.l.b16 %v4603
      %v4685 = vunpack.c.l.b16 %v4607
      %v4686 = vunpack.c.l.b16 %v4610
      %v4687 = vunpack.c.l.b16 %v4614
      %v4688 = vunpack.c.l.b16 %v4617
      %v4689 = vunpack.c.l.b16 %v4621
      %v4690 = vunpack.c.l.b16 %v4624
      %v4691 = vunpack.c.l.b16 %v4628
      %v4692 = vunpack.c.l.b16 %v4631
      %v4693 = vunpack.c.l.b16 %v4635
      %v4694 = vunpack.c.l.b16 %v4638
      %v4695 = vunpack.c.l.b16 %v4642
      %v4696 = vunpack.c.l.b16 %v4645
      %v4697 = vunpack.c.l.b16 %v4649
      %v4698 = vunpack.c.l.b16 %v4652
      %v4699 = vunpack.c.l.b16 %v4656
      %v4700 = vunpack.c.l.b16 %v4659
      %v4701 = vpack.c.b16 %v4670, %v4669
      %v4702 = vpack.c.b16 %v4672, %v4671
      %v4703 = vpack.c.b16 %v4674, %v4673
      %v4704 = vpack.c.b16 %v4676, %v4675
      %v4705 = vpack.c.b16 %v4678, %v4677
      %v4706 = vpack.c.b16 %v4680, %v4679
      %v4707 = vpack.c.b16 %v4682, %v4681
      %v4708 = vpack.c.b16 %v4684, %v4683
      %v4709 = vpack.c.b16 %v4686, %v4685
      %v4710 = vpack.c.b16 %v4688, %v4687
      %v4711 = vpack.c.b16 %v4690, %v4689
      %v4712 = vpack.c.b16 %v4692, %v4691
      %v4713 = vpack.c.b16 %v4694, %v4693
      %v4714 = vpack.c.b16 %v4696, %v4695
      %v4715 = vpack.c.b16 %v4698, %v4697
      %v4716 = vpack.c.b16 %v4700, %v4699
      %v4725 = vunpack.c.l.b16 %v4661
      %v4726 = vunpack.c.l.b16 %v4662
      %v4727 = vunpack.c.l.b16 %v4663
      %v4728 = vunpack.c.l.b16 %v4664
      %v4729 = vunpack.c.l.b16 %v4665
      %v4730 = vunpack.c.l.b16 %v4666
      %v4731 = vunpack.c.l.b16 %v4667
      %v4732 = vunpack.c.l.b16 %v4668
      %v4733 = vpack.c.b16 %v4726, %v4725
      %v4734 = vpack.c.b16 %v4728, %v4727
      %v4735 = vpack.c.b16 %v4730, %v4729
      %v4736 = vpack.c.b16 %v4732, %v4731
      %v4742 = vsel %vm696, %v4701, 0
      %v4745 = vsel %vm696, %v4702, 0
      %v4748 = vsel %vm696, %v4703, 0
      %v4751 = vsel %vm696, %v4704, 0
      %v4754 = vsel %vm696, %v4705, 0
      %v4757 = vsel %vm696, %v4706, 0
      %v4760 = vsel %vm696, %v4707, 0
      %v4763 = vsel %vm696, %v4708, 0
      %v4766 = vsel %vm696, %v4709, 0
      %v4769 = vsel %vm696, %v4710, 0
      %v4772 = vsel %vm696, %v4711, 0
      %v4775 = vsel %vm696, %v4712, 0
      %v4778 = vsel %vm696, %v4713, 0
      %v4781 = vsel %vm696, %v4714, 0
      %v4784 = vsel %vm696, %v4715, 0
      %v4787 = vsel %vm696, %v4716, 0
      %4789 = vmatprep.subr.bf16.mxu0 0
      %4790 = vmatpush1.bf16.msra.mxu0 0
      %4791 = vmatprep.subr.bf16.mxu0 0
      %4792 = vmatpush1.bf16.msra.mxu0 0
      %4793 = vmatprep.subr.bf16.mxu0 0
      %4794 = vmatpush1.bf16.msra.mxu0 0
      %4795 = vmatprep.subr.bf16.mxu0 0
      %4796 = vmatpush1.bf16.msra.mxu0 0
      %4797 = vmatprep.subr.bf16.mxu0 0
      %4798 = vmatpush1.bf16.msra.mxu0 %v4736
      %4799 = vmatprep.subr.bf16.mxu0 0
      %4800 = vmatpush1.bf16.msra.mxu0 %v4735
      %4801 = vmatprep.subr.bf16.mxu0 0
      %4802 = vmatpush1.bf16.msra.mxu0 %v4734
      %4803 = vmatprep.subr.bf16.mxu0 0
      %4804 = vmatpush1.bf16.msra.mxu0 %v4733
      %4805 = vmatprep.subr.bf16.mxu0 0
      %4806 = vmatpush2.bf16.msra.mxu0 0
      %4807 = vmatprep.subr.bf16.mxu0 0
      %4808 = vmatpush2.bf16.msra.mxu0 0
      %4809 = vmatprep.subr.bf16.mxu0 0
      %4810 = vmatpush2.bf16.msra.mxu0 0
      %4811 = vmatprep.subr.bf16.mxu0 0
      %4812 = vmatpush2.bf16.msra.mxu0 0
      %4813 = vmatprep.subr.bf16.mxu0 0
      %4814 = vmatpush2.bf16.msra.mxu0 0
      %4815 = vmatprep.subr.bf16.mxu0 0
      %4816 = vmatpush2.bf16.msra.mxu0 0
      %4817 = vmatprep.subr.bf16.mxu0 0
      %4818 = vmatpush2.bf16.msra.mxu0 0
      %4819 = vmatprep.subr.bf16.mxu0 0
      %4820 = vmatpush2.bf16.msra.mxu0 0
      %4821 = vmatprep.mubr.bf16.mxu0 0
      %4822 = vmatmul.mubr.bf16.gmra.mxu0 %v4742
      %v4823 = vpop.f32.mrf.mxu0
      %v4824 = vadd.f32 0.0, %v4823
      %v4825 = vpop.f32.mrf.mxu0
      %v4826 = vpop.f32.mrf.mxu0
      %v4827 = vadd.f32 0.0, %v4826
      %v4828 = vpop.f32.mrf.mxu0
      %4829 = vmatprep.mubr.bf16.mxu0 0
      %4830 = vmatmul.mubr.bf16.gmra.mxu0 %v4745
      %v4831 = vpop.f32.mrf.mxu0
      %v4832 = vadd.f32 0.0, %v4831
      %v4833 = vpop.f32.mrf.mxu0
      %v4834 = vpop.f32.mrf.mxu0
      %v4835 = vadd.f32 0.0, %v4834
      %v4836 = vpop.f32.mrf.mxu0
      %4837 = vmatprep.mubr.bf16.mxu0 0
      %4838 = vmatmul.mubr.bf16.gmra.mxu0 %v4748
      %v4839 = vpop.f32.mrf.mxu0
      %v4840 = vadd.f32 0.0, %v4839
      %v4841 = vpop.f32.mrf.mxu0
      %v4842 = vpop.f32.mrf.mxu0
      %v4843 = vadd.f32 0.0, %v4842
      %v4844 = vpop.f32.mrf.mxu0
      %4845 = vmatprep.mubr.bf16.mxu0 0
      %4846 = vmatmul.mubr.bf16.gmra.mxu0 %v4751
      %v4847 = vpop.f32.mrf.mxu0
      %v4848 = vadd.f32 0.0, %v4847
      %v4849 = vpop.f32.mrf.mxu0
      %v4850 = vpop.f32.mrf.mxu0
      %v4851 = vadd.f32 0.0, %v4850
      %v4852 = vpop.f32.mrf.mxu0
      %4853 = vmatprep.mubr.bf16.mxu0 0
      %4854 = vmatmul.mubr.bf16.gmra.mxu0 %v4754
      %v4855 = vpop.f32.mrf.mxu0
      %v4856 = vadd.f32 0.0, %v4855
      %v4857 = vpop.f32.mrf.mxu0
      %v4858 = vpop.f32.mrf.mxu0
      %v4859 = vadd.f32 0.0, %v4858
      %v4860 = vpop.f32.mrf.mxu0
      %4861 = vmatprep.mubr.bf16.mxu0 0
      %4862 = vmatmul.mubr.bf16.gmra.mxu0 %v4757
      %v4863 = vpop.f32.mrf.mxu0
      %v4864 = vadd.f32 0.0, %v4863
      %v4865 = vpop.f32.mrf.mxu0
      %v4866 = vpop.f32.mrf.mxu0
      %v4867 = vadd.f32 0.0, %v4866
      %v4868 = vpop.f32.mrf.mxu0
      %4869 = vmatprep.mubr.bf16.mxu0 0
      %4870 = vmatmul.mubr.bf16.gmra.mxu0 %v4760
      %v4871 = vpop.f32.mrf.mxu0
      %v4872 = vadd.f32 0.0, %v4871
      %v4873 = vpop.f32.mrf.mxu0
      %v4874 = vpop.f32.mrf.mxu0
      %v4875 = vadd.f32 0.0, %v4874
      %v4876 = vpop.f32.mrf.mxu0
      %4877 = vmatprep.mubr.bf16.mxu0 0
      %4878 = vmatmul.mubr.bf16.gmra.mxu0 %v4763
      %v4879 = vpop.f32.mrf.mxu0
      %v4880 = vadd.f32 0.0, %v4879
      %v4881 = vpop.f32.mrf.mxu0
      %v4882 = vpop.f32.mrf.mxu0
      %v4883 = vadd.f32 0.0, %v4882
      %v4884 = vpop.f32.mrf.mxu0
      %4885 = vmatprep.mubr.bf16.mxu0 0
      %4886 = vmatmul.mubr.bf16.gmra.mxu0 %v4766
      %v4887 = vpop.f32.mrf.mxu0
      %v4888 = vadd.f32 0.0, %v4887
      %v4889 = vpop.f32.mrf.mxu0
      %v4890 = vpop.f32.mrf.mxu0
      %v4891 = vadd.f32 0.0, %v4890
      %v4892 = vpop.f32.mrf.mxu0
      %4893 = vmatprep.mubr.bf16.mxu0 0
      %4894 = vmatmul.mubr.bf16.gmra.mxu0 %v4769
      %v4895 = vpop.f32.mrf.mxu0
      %v4896 = vadd.f32 0.0, %v4895
      %v4897 = vpop.f32.mrf.mxu0
      %v4898 = vpop.f32.mrf.mxu0
      %v4899 = vadd.f32 0.0, %v4898
      %v4900 = vpop.f32.mrf.mxu0
      %4901 = vmatprep.mubr.bf16.mxu0 0
      %4902 = vmatmul.mubr.bf16.gmra.mxu0 %v4772
      %v4903 = vpop.f32.mrf.mxu0
      %v4904 = vadd.f32 0.0, %v4903
      %v4905 = vpop.f32.mrf.mxu0
      %v4906 = vpop.f32.mrf.mxu0
      %v4907 = vadd.f32 0.0, %v4906
      %v4908 = vpop.f32.mrf.mxu0
      %4909 = vmatprep.mubr.bf16.mxu0 0
      %4910 = vmatmul.mubr.bf16.gmra.mxu0 %v4775
      %v4911 = vpop.f32.mrf.mxu0
      %v4912 = vadd.f32 0.0, %v4911
      %v4913 = vpop.f32.mrf.mxu0
      %v4914 = vpop.f32.mrf.mxu0
      %v4915 = vadd.f32 0.0, %v4914
      %v4916 = vpop.f32.mrf.mxu0
      %4917 = vmatprep.mubr.bf16.mxu0 0
      %4918 = vmatmul.mubr.bf16.gmra.mxu0 %v4778
      %v4919 = vpop.f32.mrf.mxu0
      %v4920 = vadd.f32 0.0, %v4919
      %v4921 = vpop.f32.mrf.mxu0
      %v4922 = vpop.f32.mrf.mxu0
      %v4923 = vadd.f32 0.0, %v4922
      %v4924 = vpop.f32.mrf.mxu0
      %4925 = vmatprep.mubr.bf16.mxu0 0
      %4926 = vmatmul.mubr.bf16.gmra.mxu0 %v4781
      %v4927 = vpop.f32.mrf.mxu0
      %v4928 = vadd.f32 0.0, %v4927
      %v4929 = vpop.f32.mrf.mxu0
      %v4930 = vpop.f32.mrf.mxu0
      %v4931 = vadd.f32 0.0, %v4930
      %v4932 = vpop.f32.mrf.mxu0
      %4933 = vmatprep.mubr.bf16.mxu0 0
      %4934 = vmatmul.mubr.bf16.gmra.mxu0 %v4784
      %v4935 = vpop.f32.mrf.mxu0
      %v4936 = vadd.f32 0.0, %v4935
      %v4937 = vpop.f32.mrf.mxu0
      %v4938 = vpop.f32.mrf.mxu0
      %v4939 = vadd.f32 0.0, %v4938
      %v4940 = vpop.f32.mrf.mxu0
      %4941 = vmatprep.mubr.bf16.mxu0 0
      %4942 = vmatmul.mubr.bf16.gmra.mxu0 %v4787
      %v4943 = vpop.f32.mrf.mxu0
      %v4944 = vadd.f32 0.0, %v4943
      %v4945 = vpop.f32.mrf.mxu0
      %v4946 = vpop.f32.mrf.mxu0
      %v4947 = vadd.f32 0.0, %v4946
      %v4948 = vpop.f32.mrf.mxu0
      %4949 = vdwg.mxu0
      %v4950 = vadd.f32 %v4452, %v4824
      %v4951 = vadd.f32 %v4453, %v4827
      %v4952 = vadd.f32 %v4454, %v4832
      %v4953 = vadd.f32 %v4455, %v4835
      %v4954 = vadd.f32 %v4456, %v4840
      %v4955 = vadd.f32 %v4457, %v4843
      %v4956 = vadd.f32 %v4458, %v4848
      %v4957 = vadd.f32 %v4459, %v4851
      %v4958 = vadd.f32 %v4460, %v4856
      %v4959 = vadd.f32 %v4461, %v4859
      %v4960 = vadd.f32 %v4462, %v4864
      %v4961 = vadd.f32 %v4463, %v4867
      %v4962 = vadd.f32 %v4464, %v4872
      %v4963 = vadd.f32 %v4465, %v4875
      %v4964 = vadd.f32 %v4466, %v4880
      %v4965 = vadd.f32 %v4467, %v4883
      %v4966 = vadd.f32 %v4468, %v4888
      %v4967 = vadd.f32 %v4469, %v4891
      %v4968 = vadd.f32 %v4470, %v4896
      %v4969 = vadd.f32 %v4471, %v4899
      %v4970 = vadd.f32 %v4472, %v4904
      %v4971 = vadd.f32 %v4473, %v4907
      %v4972 = vadd.f32 %v4474, %v4912
      %v4973 = vadd.f32 %v4475, %v4915
      %v4974 = vadd.f32 %v4476, %v4920
      %v4975 = vadd.f32 %v4477, %v4923
      %v4976 = vadd.f32 %v4478, %v4928
      %v4977 = vadd.f32 %v4479, %v4931
      %v4978 = vadd.f32 %v4480, %v4936
      %v4979 = vadd.f32 %v4481, %v4939
      %v4980 = vadd.f32 %v4482, %v4944
      %v4981 = vadd.f32 %v4483, %v4947
      %v4982 = vld [vmem:[%s2] sm:$0x1]
      %v4984 = vlaneseq
      %v4985 = vshrl.u32 %v4984, 7
      %v4986 = vsub.s32 0, %v4985
      %v4987 = vrot.slane %v4982, %v4986
      %v4989 = vadd.f32 %v4950, %v4987
      %v4990 = vadd.f32 %v4951, %v4987
      %v4991 = vadd.f32 %v4952, %v4987
      %v4992 = vadd.f32 %v4953, %v4987
      %v4993 = vadd.f32 %v4954, %v4987
      %v4994 = vadd.f32 %v4955, %v4987
      %v4995 = vadd.f32 %v4956, %v4987
      %v4996 = vadd.f32 %v4957, %v4987
      %v4997 = vadd.f32 %v4958, %v4987
      %v4998 = vadd.f32 %v4959, %v4987
      %v4999 = vadd.f32 %v4960, %v4987
      %v5000 = vadd.f32 %v4961, %v4987
      %v5001 = vadd.f32 %v4962, %v4987
      %v5002 = vadd.f32 %v4963, %v4987
      %v5003 = vadd.f32 %v4964, %v4987
      %v5004 = vadd.f32 %v4965, %v4987
      %v5005 = vadd.f32 %v4966, %v4987
      %v5006 = vadd.f32 %v4967, %v4987
      %v5007 = vadd.f32 %v4968, %v4987
      %v5008 = vadd.f32 %v4969, %v4987
      %v5009 = vadd.f32 %v4970, %v4987
      %v5010 = vadd.f32 %v4971, %v4987
      %v5011 = vadd.f32 %v4972, %v4987
      %v5012 = vadd.f32 %v4973, %v4987
      %v5013 = vadd.f32 %v4974, %v4987
      %v5014 = vadd.f32 %v4975, %v4987
      %v5015 = vadd.f32 %v4976, %v4987
      %v5016 = vadd.f32 %v4977, %v4987
      %v5017 = vadd.f32 %v4978, %v4987
      %v5018 = vadd.f32 %v4979, %v4987
      %v5019 = vadd.f32 %v4980, %v4987
      %v5020 = vadd.f32 %v4981, %v4987
      %v5021 = vmax.f32 %v4989, 0.0
      %v5022 = vmax.f32 %v4990, 0.0
      %v5023 = vmax.f32 %v4991, 0.0
      %v5024 = vmax.f32 %v4992, 0.0
      %v5025 = vmax.f32 %v4993, 0.0
      %v5026 = vmax.f32 %v4994, 0.0
      %v5027 = vmax.f32 %v4995, 0.0
      %v5028 = vmax.f32 %v4996, 0.0
      %v5029 = vmax.f32 %v4997, 0.0
      %v5030 = vmax.f32 %v4998, 0.0
      %v5031 = vmax.f32 %v4999, 0.0
      %v5032 = vmax.f32 %v5000, 0.0
      %v5033 = vmax.f32 %v5001, 0.0
      %v5034 = vmax.f32 %v5002, 0.0
      %v5035 = vmax.f32 %v5003, 0.0
      %v5036 = vmax.f32 %v5004, 0.0
      %v5037 = vmax.f32 %v5005, 0.0
      %v5038 = vmax.f32 %v5006, 0.0
      %v5039 = vmax.f32 %v5007, 0.0
      %v5040 = vmax.f32 %v5008, 0.0
      %v5041 = vmax.f32 %v5009, 0.0
      %v5042 = vmax.f32 %v5010, 0.0
      %v5043 = vmax.f32 %v5011, 0.0
      %v5044 = vmax.f32 %v5012, 0.0
      %v5045 = vmax.f32 %v5013, 0.0
      %v5046 = vmax.f32 %v5014, 0.0
      %v5047 = vmax.f32 %v5015, 0.0
      %v5048 = vmax.f32 %v5016, 0.0
      %v5049 = vmax.f32 %v5017, 0.0
      %v5050 = vmax.f32 %v5018, 0.0
      %v5051 = vmax.f32 %v5019, 0.0
      %v5052 = vmax.f32 %v5020, 0.0
      %v5053 = vpack.c.bf16 %v5022, %v5021
      %v5054 = vpack.c.bf16 %v5024, %v5023
      %v5055 = vpack.c.bf16 %v5026, %v5025
      %v5056 = vpack.c.bf16 %v5028, %v5027
      %v5057 = vpack.c.bf16 %v5030, %v5029
      %v5058 = vpack.c.bf16 %v5032, %v5031
      %v5059 = vpack.c.bf16 %v5034, %v5033
      %v5060 = vpack.c.bf16 %v5036, %v5035
      %v5061 = vpack.c.bf16 %v5038, %v5037
      %v5062 = vpack.c.bf16 %v5040, %v5039
      %v5063 = vpack.c.bf16 %v5042, %v5041
      %v5064 = vpack.c.bf16 %v5044, %v5043
      %v5065 = vpack.c.bf16 %v5046, %v5045
      %v5066 = vpack.c.bf16 %v5048, %v5047
      %v5067 = vpack.c.bf16 %v5050, %v5049
      %v5068 = vpack.c.bf16 %v5052, %v5051
      %v5085 = vunpack.c.l.b16 %v5053
      %v5086 = vunpack.c.h.b16 %v5053
      %v5087 = vunpack.c.l.b16 %v5054
      %v5088 = vunpack.c.h.b16 %v5054
      %v5089 = vunpack.c.l.b16 %v5055
      %v5090 = vunpack.c.h.b16 %v5055
      %v5091 = vunpack.c.l.b16 %v5056
      %v5092 = vunpack.c.h.b16 %v5056
      %v5093 = vunpack.c.l.b16 %v5057
      %v5094 = vunpack.c.h.b16 %v5057
      %v5095 = vunpack.c.l.b16 %v5058
      %v5096 = vunpack.c.h.b16 %v5058
      %v5097 = vunpack.c.l.b16 %v5059
      %v5098 = vunpack.c.h.b16 %v5059
      %v5099 = vunpack.c.l.b16 %v5060
      %v5100 = vunpack.c.h.b16 %v5060
      %v5101 = vunpack.c.l.b16 %v5061
      %v5102 = vunpack.c.h.b16 %v5061
      %v5103 = vunpack.c.l.b16 %v5062
      %v5104 = vunpack.c.h.b16 %v5062
      %v5105 = vunpack.c.l.b16 %v5063
      %v5106 = vunpack.c.h.b16 %v5063
      %v5107 = vunpack.c.l.b16 %v5064
      %v5108 = vunpack.c.h.b16 %v5064
      %v5109 = vunpack.c.l.b16 %v5065
      %v5110 = vunpack.c.h.b16 %v5065
      %v5111 = vunpack.c.l.b16 %v5066
      %v5112 = vunpack.c.h.b16 %v5066
      %v5113 = vunpack.c.l.b16 %v5067
      %v5114 = vunpack.c.h.b16 %v5067
      %v5115 = vunpack.c.l.b16 %v5068
      %v5116 = vunpack.c.h.b16 %v5068
      %v5117 = vpack.c.b16 %v5085, %v5085
      %v5118 = vpack.c.b16 %v5086, %v5086
      %v5119 = vpack.c.b16 %v5087, %v5087
      %v5120 = vpack.c.b16 %v5088, %v5088
      %v5121 = vpack.c.b16 %v5089, %v5089
      %v5122 = vpack.c.b16 %v5090, %v5090
      %v5123 = vpack.c.b16 %v5091, %v5091
      %v5124 = vpack.c.b16 %v5092, %v5092
      %v5125 = vpack.c.b16 %v5093, %v5093
      %v5126 = vpack.c.b16 %v5094, %v5094
      %v5127 = vpack.c.b16 %v5095, %v5095
      %v5128 = vpack.c.b16 %v5096, %v5096
      %v5129 = vpack.c.b16 %v5097, %v5097
      %v5130 = vpack.c.b16 %v5098, %v5098
      %v5131 = vpack.c.b16 %v5099, %v5099
      %v5132 = vpack.c.b16 %v5100, %v5100
      %v5133 = vpack.c.b16 %v5101, %v5101
      %v5134 = vpack.c.b16 %v5102, %v5102
      %v5135 = vpack.c.b16 %v5103, %v5103
      %v5136 = vpack.c.b16 %v5104, %v5104
      %v5137 = vpack.c.b16 %v5105, %v5105
      %v5138 = vpack.c.b16 %v5106, %v5106
      %v5139 = vpack.c.b16 %v5107, %v5107
      %v5140 = vpack.c.b16 %v5108, %v5108
      %v5141 = vpack.c.b16 %v5109, %v5109
      %v5142 = vpack.c.b16 %v5110, %v5110
      %v5143 = vpack.c.b16 %v5111, %v5111
      %v5144 = vpack.c.b16 %v5112, %v5112
      %v5145 = vpack.c.b16 %v5113, %v5113
      %v5146 = vpack.c.b16 %v5114, %v5114
      %v5147 = vpack.c.b16 %v5115, %v5115
      %v5148 = vpack.c.b16 %v5116, %v5116
      %vm5181 = vcmask 519168
      %5182 = vst.msk [vmem:[%s170] sm:$0xf] %vm5181, %v5117
      %5183 = vst.msk [vmem:[%s170 + $0x4] sm:$0xf] %vm5181, %v5118
      %5184 = vst.msk [vmem:[%s170 + $0x8] sm:$0xf] %vm5181, %v5119
      %5185 = vst.msk [vmem:[%s170 + $0xc] sm:$0xf] %vm5181, %v5120
      %5186 = vst.msk [vmem:[%s170 + $0x10] sm:$0xf] %vm5181, %v5121
      %5187 = vst.msk [vmem:[%s170 + $0x14] sm:$0xf] %vm5181, %v5122
      %5188 = vst.msk [vmem:[%s170 + $0x18] sm:$0xf] %vm5181, %v5123
      %5189 = vst.msk [vmem:[%s170 + $0x1c] sm:$0xf] %vm5181, %v5124
      %5190 = vst.msk [vmem:[%s170 + $0x20] sm:$0xf] %vm5181, %v5125
      %5191 = vst.msk [vmem:[%s170 + $0x24] sm:$0xf] %vm5181, %v5126
      %5192 = vst.msk [vmem:[%s170 + $0x28] sm:$0xf] %vm5181, %v5127
      %5193 = vst.msk [vmem:[%s170 + $0x2c] sm:$0xf] %vm5181, %v5128
      %5194 = vst.msk [vmem:[%s170 + $0x30] sm:$0xf] %vm5181, %v5129
      %5195 = vst.msk [vmem:[%s170 + $0x34] sm:$0xf] %vm5181, %v5130
      %5196 = vst.msk [vmem:[%s170 + $0x38] sm:$0xf] %vm5181, %v5131
      %5197 = vst.msk [vmem:[%s170 + $0x3c] sm:$0xf] %vm5181, %v5132
      %5198 = vst.msk [vmem:[%s170 + $0x40] sm:$0xf] %vm5181, %v5133
      %5199 = vst.msk [vmem:[%s170 + $0x44] sm:$0xf] %vm5181, %v5134
      %5200 = vst.msk [vmem:[%s170 + $0x48] sm:$0xf] %vm5181, %v5135
      %5201 = vst.msk [vmem:[%s170 + $0x4c] sm:$0xf] %vm5181, %v5136
      %5202 = vst.msk [vmem:[%s170 + $0x50] sm:$0xf] %vm5181, %v5137
      %5203 = vst.msk [vmem:[%s170 + $0x54] sm:$0xf] %vm5181, %v5138
      %5204 = vst.msk [vmem:[%s170 + $0x58] sm:$0xf] %vm5181, %v5139
      %5205 = vst.msk [vmem:[%s170 + $0x5c] sm:$0xf] %vm5181, %v5140
      %5206 = vst.msk [vmem:[%s170 + $0x60] sm:$0xf] %vm5181, %v5141
      %5207 = vst.msk [vmem:[%s170 + $0x64] sm:$0xf] %vm5181, %v5142
      %5208 = vst.msk [vmem:[%s170 + $0x68] sm:$0xf] %vm5181, %v5143
      %5209 = vst.msk [vmem:[%s170 + $0x6c] sm:$0xf] %vm5181, %v5144
      %5210 = vst.msk [vmem:[%s170 + $0x70] sm:$0xf] %vm5181, %v5145
      %5211 = vst.msk [vmem:[%s170 + $0x74] sm:$0xf] %vm5181, %v5146
      %5212 = vst.msk [vmem:[%s170 + $0x78] sm:$0xf] %vm5181, %v5147
      %5213 = vst.msk [vmem:[%s170 + $0x7c] sm:$0xf] %vm5181, %v5148
      %p5214 = scmp.lt.s32.totalorder %s14, 1
      %s5215 = scalar_select %p5214, %s14, 1
      %s5216 = smul.addr %s5215, 32
      %s5217 = smul.addr %s5216, 4
      %s5218 = scalar_lea.vmem %s3, %s5217
      // Predicated region
      $region33: #{ncgm_forward.9} parent=31 // pred_check
        %p5219 = pneg %p100
      $region34: #{ncgm_forward.9} parent=31 // pred_check_branch
        %5221 = sbr.rel (%p5219) target = $region36
      $region35: #{ncgm_forward.9} parent=31 // pred_region
        _
      $region36: #{ncgm_forward.9} parent=31 // pred_fallthru
        _
    $region32: #{ncgm_forward.9} parent=5 // pred_fallthru
      _
    %p5222 = scmp.le.s32.totalorder 2, %s9
    // Predicated region
    $region37: #{ncgm_forward.9} parent=5 // pred_check
      %p5223 = pneg %p5222
    $region38: #{ncgm_forward.9} parent=5 // pred_check_branch
      %5225 = sbr.rel (%p5223) target = $region40
    $region39: #{ncgm_forward.9} parent=5 // pred_region
      %s5226 = ssub.s32 %s9, 2
      // Predicated region
      $region41: #{ncgm_forward.9} parent=39 // pred_check
        %p5227 = pneg %p106
      $region42: #{ncgm_forward.9} parent=39 // pred_check_branch
        %5229 = sbr.rel (%p5227) target = $region44
      $region43: #{ncgm_forward.9} parent=39 // pred_region
        %p5230 = scmp.lt.s32.totalorder %s15, 1
        %s5231 = scalar_select %p5230, %s15, 1
        %s5232 = smul.addr %s5231, 32
        %s5233 = smul.addr %s5232, 4
        %s5234 = scalar_lea.vmem %s3, %s5233
      $region44: #{ncgm_forward.9} parent=39 // pred_fallthru
        _
    $region40: #{ncgm_forward.9} parent=5 // pred_fallthru
      _
  $region6: #{ncgm_forward.9} parent=0 // loop_footer
    %s13 = sadd.s32 1, %s9
  $region7: #{ncgm_forward.9} parent=0 // loop_footer_branch
    %8 = sbr.rel target = $region3
  $region8: #{ncgm_forward.9} parent=0 // loop_exit
    _

// kernel: ncgm_forward.10
$region0: #{ncgm_forward.10}
  #allocation0 [shape = 'u32[]', space=smem, size = 0x4, offset = 0x4, fixed_abs, tag = 'smem constant byte address 0x4 - core index']
  #allocation1 [shape = 'u32[144,128]{1,0:T(1,128)}', space=vmem, size = 0x12000, scoped, tag = 'internal scratch']
  %s0 = inlined_call_operand.vmem [shape: bf16[2,18,18,64], index: 0, kind: input, shape index: {}]
  %s1 = inlined_call_operand.vmem [shape: bf16[9,64,64], index: 1, kind: input, shape index: {}]
  %s2 = inlined_call_operand.vmem [shape: f32[1,64], index: 2, kind: input, shape index: {}]
  %s3 = inlined_call_operand.vmem [shape: bf16[2,256,64], index: 3, kind: input, shape index: {}]
  %s4 = inlined_call_operand.vmem [shape: bf16[2,256,64], index: 4, kind: output, shape index: {}]
  %s5 = sld [smem:[#allocation0]]
  $region49: #{ncgm_forward.10} parent=0
    _
  %s7 = ssub.s32 1, %s5
  %s8 = scalar_select 0, %s7, %s5
  loop: start=0, step=1, limit=4
  $region2: #{ncgm_forward.10} parent=0 // loop_pre_header
    _
  $region3: #{ncgm_forward.10} parent=0 // loop_header
    %s10 = sphi 0, %s14
    %p11 = scmp.ge.s32.totalorder %s10, 4
    %s20 = sphi 0, %s22
    %s23 = sphi 0, %s20
    %s24 = sphi 0, %s23
    %s40 = sphi 0, %s24
    %s44 = sphi 0, %s44
    %s46 = sphi 0, %s44
    %s47 = sphi 0, %s46
    %s61 = sphi 0, %s47
    %s65 = sphi 0, %s65
    %s67 = sphi 0, %s65
    %s68 = sphi 0, %s67
    %s82 = sphi 0, %s68
    %s88 = sphi 0, %s90
    %s91 = sphi 0, %s88
    %s92 = sphi 0, %s91
    %s108 = sphi 0, %s92
    %s114 = sphi 0, %s116
    %s117 = sphi 0, %s114
    %s118 = sphi 0, %s117
    %s134 = sphi 0, %s118
  $region4: #{ncgm_forward.10} parent=0 // loop_header_branch
    %13 = sbr.rel (%p11) target = $region8
  $region5: #{ncgm_forward.10} parent=0 // loop_body
    %s15 = ssub.s32 %s10, 1
    %s16 = ssub.s32 %s10, 2
    %s17 = sadd.s32 %s10, 1
    %s18 = ssub.s32 %s10, %s17
    %p19 = scmp.eq.s32.totalorder %s18, 0
    %s21 = sadd.s32 %s20, 1
    %s22 = scalar_select %p19, %s20, %s21
    %p25 = pneg %p19
    %p26 = scmp.eq.s32.totalorder %s10, 1
    %p27 = por %p25, %p26
    %p28 = scmp.ne.s32.totalorder %s20, %s23
    %p29 = scmp.eq.s32.totalorder %s10, 0
    %p30 = por %p28, %p29
    %p31 = scmp.ne.s32.totalorder %s20, %s23
    %p32 = scmp.eq.s32.totalorder %s15, 1
    %p33 = por %p31, %p32
    %p34 = scmp.ne.s32.totalorder %s23, %s24
    %p35 = scmp.eq.s32.totalorder %s15, 0
    %p36 = por %p34, %p35
    %p37 = scmp.ne.s32.totalorder %s23, %s24
    %p38 = scmp.eq.s32.totalorder %s16, 1
    %p39 = por %p37, %p38
    %p41 = scmp.ne.s32.totalorder %s24, %s40
    %p42 = scmp.eq.s32.totalorder %s16, 0
    %p43 = por %p41, %p42
    %s45 = sadd.s32 %s44, 1
    %p48 = scmp.eq.s32.totalorder %s10, 1
    %p49 = scmp.ne.s32.totalorder %s44, %s46
    %p50 = scmp.eq.s32.totalorder %s10, 0
    %p51 = por %p49, %p50
    %p52 = scmp.ne.s32.totalorder %s44, %s46
    %p53 = scmp.eq.s32.totalorder %s15, 1
    %p54 = por %p52, %p53
    %p55 = scmp.ne.s32.totalorder %s46, %s47
    %p56 = scmp.eq.s32.totalorder %s15, 0
    %p57 = por %p55, %p56
    %p58 = scmp.ne.s32.totalorder %s46, %s47
    %p59 = scmp.eq.s32.totalorder %s16, 1
    %p60 = por %p58, %p59
    %p62 = scmp.ne.s32.totalorder %s47, %s61
    %p63 = scmp.eq.s32.totalorder %s16, 0
    %p64 = por %p62, %p63
    %s66 = sadd.s32 %s65, 1
    %p69 = scmp.eq.s32.totalorder %s10, 1
    %p70 = scmp.ne.s32.totalorder %s65, %s67
    %p71 = scmp.eq.s32.totalorder %s10, 0
    %p72 = por %p70, %p71
    %p73 = scmp.ne.s32.totalorder %s65, %s67
    %p74 = scmp.eq.s32.totalorder %s15, 1
    %p75 = por %p73, %p74
    %p76 = scmp.ne.s32.totalorder %s67, %s68
    %p77 = scmp.eq.s32.totalorder %s15, 0
    %p78 = por %p76, %p77
    %p79 = scmp.ne.s32.totalorder %s67, %s68
    %p80 = scmp.eq.s32.totalorder %s16, 1
    %p81 = por %p79, %p80
    %p83 = scmp.ne.s32.totalorder %s68, %s82
    %p84 = scmp.eq.s32.totalorder %s16, 0
    %p85 = por %p83, %p84
    %s86 = ssub.s32 %s10, %s17
    %p87 = scmp.eq.s32.totalorder %s86, 0
    %s89 = sadd.s32 %s88, 1
    %s90 = scalar_select %p87, %s88, %s89
    %p93 = pneg %p87
    %p94 = scmp.eq.s32.totalorder %s10, 1
    %p95 = por %p93, %p94
    %p96 = scmp.ne.s32.totalorder %s88, %s91
    %p97 = scmp.eq.s32.totalorder %s10, 0
    %p98 = por %p96, %p97
    %p99 = scmp.ne.s32.totalorder %s88, %s91
    %p100 = scmp.eq.s32.totalorder %s15, 1
    %p101 = por %p99, %p100
    %p102 = scmp.ne.s32.totalorder %s91, %s92
    %p103 = scmp.eq.s32.totalorder %s15, 0
    %p104 = por %p102, %p103
    %p105 = scmp.ne.s32.totalorder %s91, %s92
    %p106 = scmp.eq.s32.totalorder %s16, 1
    %p107 = por %p105, %p106
    %p109 = scmp.ne.s32.totalorder %s92, %s108
    %p110 = scmp.eq.s32.totalorder %s16, 0
    %p111 = por %p109, %p110
    %s112 = ssub.s32 %s10, %s17
    %p113 = scmp.eq.s32.totalorder %s112, 0
    %s115 = sadd.s32 %s114, 1
    %s116 = scalar_select %p113, %s114, %s115
    %p119 = pneg %p113
    %p120 = scmp.eq.s32.totalorder %s10, 1
    %p121 = por %p119, %p120
    %p122 = scmp.ne.s32.totalorder %s114, %s117
    %p123 = scmp.eq.s32.totalorder %s10, 0
    %p124 = por %p122, %p123
    %p125 = scmp.ne.s32.totalorder %s114, %s117
    %p126 = scmp.eq.s32.totalorder %s15, 1
    %p127 = por %p125, %p126
    %p128 = scmp.ne.s32.totalorder %s117, %s118
    %p129 = scmp.eq.s32.totalorder %s15, 0
    %p130 = por %p128, %p129
    %p131 = scmp.ne.s32.totalorder %s117, %s118
    %p132 = scmp.eq.s32.totalorder %s16, 1
    %p133 = por %p131, %p132
    %p135 = scmp.ne.s32.totalorder %s118, %s134
    %p136 = scmp.eq.s32.totalorder %s16, 0
    %p137 = por %p135, %p136
    %p138 = scmp.le.s32.totalorder 1, %s10
    %p139 = scmp.lt.s32.totalorder %s10, 3
    %p140 = pnand %p138, %p139
    %p141 = pneg %p140
    // Predicated region
    $region9: #{ncgm_forward.10} parent=5 // pred_check
      _
    $region10: #{ncgm_forward.10} parent=5 // pred_check_branch
      %143 = sbr.rel (%p140) target = $region12
    $region11: #{ncgm_forward.10} parent=5 // pred_region
      %s144 = ssub.s32 %s10, 1
      // Predicated region
      $region13: #{ncgm_forward.10} parent=11 // pred_check
        %p145 = pneg %p57
      $region14: #{ncgm_forward.10} parent=11 // pred_check_branch
        %147 = sbr.rel (%p145) target = $region16
      $region15: #{ncgm_forward.10} parent=11 // pred_region
        _
      $region16: #{ncgm_forward.10} parent=11 // pred_fallthru
        _
      // Predicated region
      $region17: #{ncgm_forward.10} parent=11 // pred_check
        %p148 = pneg %p78
      $region18: #{ncgm_forward.10} parent=11 // pred_check_branch
        %150 = sbr.rel (%p148) target = $region20
      $region19: #{ncgm_forward.10} parent=11 // pred_region
        _
      $region20: #{ncgm_forward.10} parent=11 // pred_fallthru
        _
    $region12: #{ncgm_forward.10} parent=5 // pred_fallthru
      _
    %p151 = scmp.lt.s32.totalorder %s10, 2
    // Predicated region
    $region21: #{ncgm_forward.10} parent=5 // pred_check
      %p152 = pneg %p151
    $region22: #{ncgm_forward.10} parent=5 // pred_check_branch
      %154 = sbr.rel (%p152) target = $region24
    $region23: #{ncgm_forward.10} parent=5 // pred_region
      // Predicated region
      $region25: #{ncgm_forward.10} parent=23 // pred_check
        %p155 = pneg %p30
      $region26: #{ncgm_forward.10} parent=23 // pred_check_branch
        %157 = sbr.rel (%p155) target = $region28
      $region27: #{ncgm_forward.10} parent=23 // pred_region
        %p158 = scmp.lt.s32.totalorder %s10, 1
        %s159 = scalar_select %p158, %s10, 1
        %s160 = smul.addr %s159, 54
        %s161 = smul.addr %s160, 4
        %s162 = scalar_lea.vmem %s0, %s161
      $region28: #{ncgm_forward.10} parent=23 // pred_fallthru
        _
      // Predicated region
      $region29: #{ncgm_forward.10} parent=23 // pred_check
        %p163 = pneg %p98
      $region30: #{ncgm_forward.10} parent=23 // pred_check_branch
        %165 = sbr.rel (%p163) target = $region32
      $region31: #{ncgm_forward.10} parent=23 // pred_region
        %p166 = scmp.lt.s32.totalorder %s10, 1
        %s167 = scalar_select %p166, %s10, 1
        %s168 = smul.addr %s167, 32
        %s169 = smul.addr %s168, 4
        %s170 = scalar_lea.vmem %s3, %s169
      $region32: #{ncgm_forward.10} parent=23 // pred_fallthru
        _
    $region24: #{ncgm_forward.10} parent=5 // pred_fallthru
      _
    %p171 = scmp.le.s32.totalorder 1, %s10
    %p172 = scmp.lt.s32.totalorder %s10, 3
    %p173 = pnand %p171, %p172
    %p174 = pneg %p173
    // Predicated region
    $region33: #{ncgm_forward.10} parent=5 // pred_check
      _
    $region34: #{ncgm_forward.10} parent=5 // pred_check_branch
      %176 = sbr.rel (%p173) target = $region36
    $region35: #{ncgm_forward.10} parent=5 // pred_region
      %s177 = ssub.s32 %s10, 1
      %p178 = scmp.lt.s32.totalorder %s15, 1
      %s179 = scalar_select %p178, %s15, 1
      %s180 = smul.addr %s179, 54
      %s181 = smul.addr %s180, 4
      %s182 = scalar_lea.vmem %s0, %s181
      %p183 = pneg %p36
      %p184 = pneg %p33
      %p185 = pneg %p57
      %p186 = pneg %p54
      %p187 = pneg %p78
      %p188 = pneg %p75
      %p189 = scmp.lt.s32.totalorder %s15, 1
      %s190 = scalar_select %p189, %s15, 1
      %s191 = smul.addr %s190, 32
      %s192 = smul.addr %s191, 4
      %s193 = scalar_lea.vmem %s3, %s192
      %p194 = pneg %p104
      %p195 = pneg %p101
      %p196 = pneg %p130
      %p197 = pneg %p127
      %p198 = scmp.lt.s32.totalorder %s15, 1
      %s199 = scalar_select %p198, %s15, 1
      %s200 = smul.addr %s199, 32
      %s201 = smul.addr %s200, 4
      %s202 = scalar_lea.vmem %s4, %s201
      %p203 = scmp.lt.s32.totalorder %s15, 1
      %s204 = scalar_select %p203, %s15, 1
      %s205 = smul.addr %s204, 54
      %s206 = smul.addr %s205, 4
      %s207 = scalar_lea.vmem %s0, %s206
      %p208 = scmp.lt.s32.totalorder %s15, 1
      %s209 = scalar_select %p208, %s15, 1
      %s210 = smul.addr %s209, 32
      %s211 = smul.addr %s210, 4
      %s212 = scalar_lea.vmem %s3, %s211
      %p213 = scmp.lt.s32.totalorder %s15, 1
      %s214 = scalar_select %p213, %s15, 1
      %s215 = smul.addr %s214, 32
      %s216 = smul.addr %s215, 4
      %s217 = scalar_lea.vmem %s4, %s216
      %v219 = vld [vmem:[%s207] sm:$0xf]
      %v220 = vld [vmem:[%s207 + $0x4] sm:$0xf]
      %v221 = vld [vmem:[%s207 + $0xc] sm:$0xf]
      %v222 = vld [vmem:[%s207 + $0x10] sm:$0xf]
      %v223 = vld [vmem:[%s207 + $0x18] sm:$0xf]
      %v224 = vld [vmem:[%s207 + $0x1c] sm:$0xf]
      %v225 = vld [vmem:[%s207 + $0x24] sm:$0xf]
      %v226 = vld [vmem:[%s207 + $0x28] sm:$0xf]
      %v227 = vld [vmem:[%s207 + $0x30] sm:$0xf]
      %v228 = vld [vmem:[%s207 + $0x34] sm:$0xf]
      %v229 = vld [vmem:[%s207 + $0x3c] sm:$0xf]
      %v230 = vld [vmem:[%s207 + $0x40] sm:$0xf]
      %v231 = vld [vmem:[%s207 + $0x48] sm:$0xf]
      %v232 = vld [vmem:[%s207 + $0x4c] sm:$0xf]
      %v233 = vld [vmem:[%s207 + $0x54] sm:$0xf]
      %v234 = vld [vmem:[%s207 + $0x58] sm:$0xf]
      %v235 = vld [vmem:[%s207 + $0x60] sm:$0xf]
      %v236 = vld [vmem:[%s207 + $0x64] sm:$0xf]
      %v237 = vld [vmem:[%s207 + $0x6c] sm:$0xf]
      %v238 = vld [vmem:[%s207 + $0x70] sm:$0xf]
      %v239 = vld [vmem:[%s207 + $0x78] sm:$0xf]
      %v240 = vld [vmem:[%s207 + $0x7c] sm:$0xf]
      %v241 = vld [vmem:[%s207 + $0x84] sm:$0xf]
      %v242 = vld [vmem:[%s207 + $0x88] sm:$0xf]
      %v243 = vld [vmem:[%s207 + $0x90] sm:$0xf]
      %v244 = vld [vmem:[%s207 + $0x94] sm:$0xf]
      %v245 = vld [vmem:[%s207 + $0x9c] sm:$0xf]
      %v246 = vld [vmem:[%s207 + $0xa0] sm:$0xf]
      %v247 = vld [vmem:[%s207 + $0xa8] sm:$0xf]
      %v248 = vld [vmem:[%s207 + $0xac] sm:$0xf]
      %v249 = vld [vmem:[%s207 + $0xb4] sm:$0xf]
      %v250 = vld [vmem:[%s207 + $0xb8] sm:$0xf]
      %v251 = vld [vmem:[%s1] sm:$0xf]
      %v252 = vld [vmem:[%s1 + $0x4] sm:$0xf]
      %v253 = vld [vmem:[%s1 + $0x8] sm:$0xf]
      %v254 = vld [vmem:[%s1 + $0xc] sm:$0xf]
      %v255 = vld [vmem:[%s1 + $0x10] sm:$0xf]
      %v256 = vld [vmem:[%s1 + $0x14] sm:$0xf]
      %v257 = vld [vmem:[%s1 + $0x18] sm:$0xf]
      %v258 = vld [vmem:[%s1 + $0x1c] sm:$0xf]
      %v259 = vld [vmem:[%s207 + $0x8] sm:$0x1]
      %v260 = vld [vmem:[%s207 + $0x14] sm:$0x1]
      %v261 = vld [vmem:[%s207 + $0x20] sm:$0x1]
      %v262 = vld [vmem:[%s207 + $0x2c] sm:$0x1]
      %v263 = vld [vmem:[%s207 + $0x38] sm:$0x1]
      %v264 = vld [vmem:[%s207 + $0x44] sm:$0x1]
      %v265 = vld [vmem:[%s207 + $0x50] sm:$0x1]
      %v266 = vld [vmem:[%s207 + $0x5c] sm:$0x1]
      %v267 = vld [vmem:[%s207 + $0x68] sm:$0x1]
      %v268 = vld [vmem:[%s207 + $0x74] sm:$0x1]
      %v269 = vld [vmem:[%s207 + $0x80] sm:$0x1]
      %v270 = vld [vmem:[%s207 + $0x8c] sm:$0x1]
      %v271 = vld [vmem:[%s207 + $0x98] sm:$0x1]
      %v272 = vld [vmem:[%s207 + $0xa4] sm:$0x1]
      %v273 = vld [vmem:[%s207 + $0xb0] sm:$0x1]
      %v274 = vld [vmem:[%s207 + $0xbc] sm:$0x1]
      %vm275 = vsmask.f32 3328
      %vm276 = vsmask.f32 7440
      %vm277 = vmor %vm275, %vm276
      %v279 = vshrl.u32 %v219, 16
      %v281 = vrot.slane %v279, 4
      %v282 = vshll.u32 %v219, 16
      %v284 = vrot.slane %v282, 5
      %v285 = vor.u32 %v281, %v284
      %v286 = vrot.slane %v285, 4
      %v288 = vshll.u32 %v220, 16
      %v290 = vrot.slane %v288, 5
      %v291 = vsel %vm277, %v286, %v290
      %v292 = vshrl.u32 %v220, 16
      %v294 = vrot.slane %v292, 4
      %v295 = vor.u32 %v294, %v290
      %v296 = vrot.slane %v295, 4
      %v298 = vshll.u32 %v259, 16
      %v300 = vrot.slane %v298, 5
      %v301 = vsel %vm277, %v296, %v300
      %v303 = vshrl.u32 %v221, 16
      %v305 = vrot.slane %v303, 4
      %v306 = vshll.u32 %v221, 16
      %v308 = vrot.slane %v306, 5
      %v309 = vor.u32 %v305, %v308
      %v310 = vrot.slane %v309, 4
      %v312 = vshll.u32 %v222, 16
      %v314 = vrot.slane %v312, 5
      %v315 = vsel %vm277, %v310, %v314
      %v316 = vshrl.u32 %v222, 16
      %v318 = vrot.slane %v316, 4
      %v319 = vor.u32 %v318, %v314
      %v320 = vrot.slane %v319, 4
      %v322 = vshll.u32 %v260, 16
      %v324 = vrot.slane %v322, 5
      %v325 = vsel %vm277, %v320, %v324
      %v327 = vshrl.u32 %v223, 16
      %v329 = vrot.slane %v327, 4
      %v330 = vshll.u32 %v223, 16
      %v332 = vrot.slane %v330, 5
      %v333 = vor.u32 %v329, %v332
      %v334 = vrot.slane %v333, 4
      %v336 = vshll.u32 %v224, 16
      %v338 = vrot.slane %v336, 5
      %v339 = vsel %vm277, %v334, %v338
      %v340 = vshrl.u32 %v224, 16
      %v342 = vrot.slane %v340, 4
      %v343 = vor.u32 %v342, %v338
      %v344 = vrot.slane %v343, 4
      %v346 = vshll.u32 %v261, 16
      %v348 = vrot.slane %v346, 5
      %v349 = vsel %vm277, %v344, %v348
      %v351 = vshrl.u32 %v225, 16
      %v353 = vrot.slane %v351, 4
      %v354 = vshll.u32 %v225, 16
      %v356 = vrot.slane %v354, 5
      %v357 = vor.u32 %v353, %v356
      %v358 = vrot.slane %v357, 4
      %v360 = vshll.u32 %v226, 16
      %v362 = vrot.slane %v360, 5
      %v363 = vsel %vm277, %v358, %v362
      %v364 = vshrl.u32 %v226, 16
      %v366 = vrot.slane %v364, 4
      %v367 = vor.u32 %v366, %v362
      %v368 = vrot.slane %v367, 4
      %v370 = vshll.u32 %v262, 16
      %v372 = vrot.slane %v370, 5
      %v373 = vsel %vm277, %v368, %v372
      %v375 = vshrl.u32 %v227, 16
      %v377 = vrot.slane %v375, 4
      %v378 = vshll.u32 %v227, 16
      %v380 = vrot.slane %v378, 5
      %v381 = vor.u32 %v377, %v380
      %v382 = vrot.slane %v381, 4
      %v384 = vshll.u32 %v228, 16
      %v386 = vrot.slane %v384, 5
      %v387 = vsel %vm277, %v382, %v386
      %v388 = vshrl.u32 %v228, 16
      %v390 = vrot.slane %v388, 4
      %v391 = vor.u32 %v390, %v386
      %v392 = vrot.slane %v391, 4
      %v394 = vshll.u32 %v263, 16
      %v396 = vrot.slane %v394, 5
      %v397 = vsel %vm277, %v392, %v396
      %v399 = vshrl.u32 %v229, 16
      %v401 = vrot.slane %v399, 4
      %v402 = vshll.u32 %v229, 16
      %v404 = vrot.slane %v402, 5
      %v405 = vor.u32 %v401, %v404
      %v406 = vrot.slane %v405, 4
      %v408 = vshll.u32 %v230, 16
      %v410 = vrot.slane %v408, 5
      %v411 = vsel %vm277, %v406, %v410
      %v412 = vshrl.u32 %v230, 16
      %v414 = vrot.slane %v412, 4
      %v415 = vor.u32 %v414, %v410
      %v416 = vrot.slane %v415, 4
      %v418 = vshll.u32 %v264, 16
      %v420 = vrot.slane %v418, 5
      %v421 = vsel %vm277, %v416, %v420
      %v423 = vshrl.u32 %v231, 16
      %v425 = vrot.slane %v423, 4
      %v426 = vshll.u32 %v231, 16
      %v428 = vrot.slane %v426, 5
      %v429 = vor.u32 %v425, %v428
      %v430 = vrot.slane %v429, 4
      %v432 = vshll.u32 %v232, 16
      %v434 = vrot.slane %v432, 5
      %v435 = vsel %vm277, %v430, %v434
      %v436 = vshrl.u32 %v232, 16
      %v438 = vrot.slane %v436, 4
      %v439 = vor.u32 %v438, %v434
      %v440 = vrot.slane %v439, 4
      %v442 = vshll.u32 %v265, 16
      %v444 = vrot.slane %v442, 5
      %v445 = vsel %vm277, %v440, %v444
      %v447 = vshrl.u32 %v233, 16
      %v449 = vrot.slane %v447, 4
      %v450 = vshll.u32 %v233, 16
      %v452 = vrot.slane %v450, 5
      %v453 = vor.u32 %v449, %v452
      %v454 = vrot.slane %v453, 4
      %v456 = vshll.u32 %v234, 16
      %v458 = vrot.slane %v456, 5
      %v459 = vsel %vm277, %v454, %v458
      %v460 = vshrl.u32 %v234, 16
      %v462 = vrot.slane %v460, 4
      %v463 = vor.u32 %v462, %v458
      %v464 = vrot.slane %v463, 4
      %v466 = vshll.u32 %v266, 16
      %v468 = vrot.slane %v466, 5
      %v469 = vsel %vm277, %v464, %v468
      %v471 = vshrl.u32 %v235, 16
      %v473 = vrot.slane %v471, 4
      %v474 = vshll.u32 %v235, 16
      %v476 = vrot.slane %v474, 5
      %v477 = vor.u32 %v473, %v476
      %v478 = vrot.slane %v477, 4
      %v480 = vshll.u32 %v236, 16
      %v482 = vrot.slane %v480, 5
      %v483 = vsel %vm277, %v478, %v482
      %v484 = vshrl.u32 %v236, 16
      %v486 = vrot.slane %v484, 4
      %v487 = vor.u32 %v486, %v482
      %v488 = vrot.slane %v487, 4
      %v490 = vshll.u32 %v267, 16
      %v492 = vrot.slane %v490, 5
      %v493 = vsel %vm277, %v488, %v492
      %v495 = vshrl.u32 %v237, 16
      %v497 = vrot.slane %v495, 4
      %v498 = vshll.u32 %v237, 16
      %v500 = vrot.slane %v498, 5
      %v501 = vor.u32 %v497, %v500
      %v502 = vrot.slane %v501, 4
      %v504 = vshll.u32 %v238, 16
      %v506 = vrot.slane %v504, 5
      %v507 = vsel %vm277, %v502, %v506
      %v508 = vshrl.u32 %v238, 16
      %v510 = vrot.slane %v508, 4
      %v511 = vor.u32 %v510, %v506
      %v512 = vrot.slane %v511, 4
      %v514 = vshll.u32 %v268, 16
      %v516 = vrot.slane %v514, 5
      %v517 = vsel %vm277, %v512, %v516
      %v519 = vshrl.u32 %v239, 16
      %v521 = vrot.slane %v519, 4
      %v522 = vshll.u32 %v239, 16
      %v524 = vrot.slane %v522, 5
      %v525 = vor.u32 %v521, %v524
      %v526 = vrot.slane %v525, 4
      %v528 = vshll.u32 %v240, 16
      %v530 = vrot.slane %v528, 5
      %v531 = vsel %vm277, %v526, %v530
      %v532 = vshrl.u32 %v240, 16
      %v534 = vrot.slane %v532, 4
      %v535 = vor.u32 %v534, %v530
      %v536 = vrot.slane %v535, 4
      %v538 = vshll.u32 %v269, 16
      %v540 = vrot.slane %v538, 5
      %v541 = vsel %vm277, %v536, %v540
      %v543 = vshrl.u32 %v241, 16
      %v545 = vrot.slane %v543, 4
      %v546 = vshll.u32 %v241, 16
      %v548 = vrot.slane %v546, 5
      %v549 = vor.u32 %v545, %v548
      %v550 = vrot.slane %v549, 4
      %v552 = vshll.u32 %v242, 16
      %v554 = vrot.slane %v552, 5
      %v555 = vsel %vm277, %v550, %v554
      %v556 = vshrl.u32 %v242, 16
      %v558 = vrot.slane %v556, 4
      %v559 = vor.u32 %v558, %v554
      %v560 = vrot.slane %v559, 4
      %v562 = vshll.u32 %v270, 16
      %v564 = vrot.slane %v562, 5
      %v565 = vsel %vm277, %v560, %v564
      %v567 = vshrl.u32 %v243, 16
      %v569 = vrot.slane %v567, 4
      %v570 = vshll.u32 %v243, 16
      %v572 = vrot.slane %v570, 5
      %v573 = vor.u32 %v569, %v572
      %v574 = vrot.slane %v573, 4
      %v576 = vshll.u32 %v244, 16
      %v578 = vrot.slane %v576, 5
      %v579 = vsel %vm277, %v574, %v578
      %v580 = vshrl.u32 %v244, 16
      %v582 = vrot.slane %v580, 4
      %v583 = vor.u32 %v582, %v578
      %v584 = vrot.slane %v583, 4
      %v586 = vshll.u32 %v271, 16
      %v588 = vrot.slane %v586, 5
      %v589 = vsel %vm277, %v584, %v588
      %v591 = vshrl.u32 %v245, 16
      %v593 = vrot.slane %v591, 4
      %v594 = vshll.u32 %v245, 16
      %v596 = vrot.slane %v594, 5
      %v597 = vor.u32 %v593, %v596
      %v598 = vrot.slane %v597, 4
      %v600 = vshll.u32 %v246, 16
      %v602 = vrot.slane %v600, 5
      %v603 = vsel %vm277, %v598, %v602
      %v604 = vshrl.u32 %v246, 16
      %v606 = vrot.slane %v604, 4
      %v607 = vor.u32 %v606, %v602
      %v608 = vrot.slane %v607, 4
      %v610 = vshll.u32 %v272, 16
      %v612 = vrot.slane %v610, 5
      %v613 = vsel %vm277, %v608, %v612
      %v615 = vshrl.u32 %v247, 16
      %v617 = vrot.slane %v615, 4
      %v618 = vshll.u32 %v247, 16
      %v620 = vrot.slane %v618, 5
      %v621 = vor.u32 %v617, %v620
      %v622 = vrot.slane %v621, 4
      %v624 = vshll.u32 %v248, 16
      %v626 = vrot.slane %v624, 5
      %v627 = vsel %vm277, %v622, %v626
      %v628 = vshrl.u32 %v248, 16
      %v630 = vrot.slane %v628, 4
      %v631 = vor.u32 %v630, %v626
      %v632 = vrot.slane %v631, 4
      %v634 = vshll.u32 %v273, 16
      %v636 = vrot.slane %v634, 5
      %v637 = vsel %vm277, %v632, %v636
      %v639 = vshrl.u32 %v249, 16
      %v641 = vrot.slane %v639, 4
      %v642 = vshll.u32 %v249, 16
      %v644 = vrot.slane %v642, 5
      %v645 = vor.u32 %v641, %v644
      %v646 = vrot.slane %v645, 4
      %v648 = vshll.u32 %v250, 16
      %v650 = vrot.slane %v648, 5
      %v651 = vsel %vm277, %v646, %v650
      %v652 = vshrl.u32 %v250, 16
      %v654 = vrot.slane %v652, 4
      %v655 = vor.u32 %v654, %v650
      %v656 = vrot.slane %v655, 4
      %v658 = vshll.u32 %v274, 16
      %v660 = vrot.slane %v658, 5
      %v661 = vsel %vm277, %v656, %v660
      %s662 = scalar_lea.vmem %s1, 32
      %v663 = vld [vmem:[%s662] sm:$0xf]
      %v664 = vld [vmem:[%s662 + $0x4] sm:$0xf]
      %v665 = vld [vmem:[%s662 + $0x8] sm:$0xf]
      %v666 = vld [vmem:[%s662 + $0xc] sm:$0xf]
      %v667 = vld [vmem:[%s662 + $0x10] sm:$0xf]
      %v668 = vld [vmem:[%s662 + $0x14] sm:$0xf]
      %v669 = vld [vmem:[%s662 + $0x18] sm:$0xf]
      %v670 = vld [vmem:[%s662 + $0x1c] sm:$0xf]
      %v671 = vunpack.c.l.b16 %v291
      %v672 = vunpack.c.l.b16 %v301
      %v673 = vunpack.c.l.b16 %v315
      %v674 = vunpack.c.l.b16 %v325
      %v675 = vunpack.c.l.b16 %v339
      %v676 = vunpack.c.l.b16 %v349
      %v677 = vunpack.c.l.b16 %v363
      %v678 = vunpack.c.l.b16 %v373
      %v679 = vunpack.c.l.b16 %v387
      %v680 = vunpack.c.l.b16 %v397
      %v681 = vunpack.c.l.b16 %v411
      %v682 = vunpack.c.l.b16 %v421
      %v683 = vunpack.c.l.b16 %v435
      %v684 = vunpack.c.l.b16 %v445
      %v685 = vunpack.c.l.b16 %v459
      %v686 = vunpack.c.l.b16 %v469
      %v687 = vunpack.c.l.b16 %v483
      %v688 = vunpack.c.l.b16 %v493
      %v689 = vunpack.c.l.b16 %v507
      %v690 = vunpack.c.l.b16 %v517
      %v691 = vunpack.c.l.b16 %v531
      %v692 = vunpack.c.l.b16 %v541
      %v693 = vunpack.c.l.b16 %v555
      %v694 = vunpack.c.l.b16 %v565
      %v695 = vunpack.c.l.b16 %v579
      %v696 = vunpack.c.l.b16 %v589
      %v697 = vunpack.c.l.b16 %v603
      %v698 = vunpack.c.l.b16 %v613
      %v699 = vunpack.c.l.b16 %v627
      %v700 = vunpack.c.l.b16 %v637
      %v701 = vunpack.c.l.b16 %v651
      %v702 = vunpack.c.l.b16 %v661
      %v703 = vpack.c.b16 %v672, %v671
      %v704 = vpack.c.b16 %v674, %v673
      %v705 = vpack.c.b16 %v676, %v675
      %v706 = vpack.c.b16 %v678, %v677
      %v707 = vpack.c.b16 %v680, %v679
      %v708 = vpack.c.b16 %v682, %v681
      %v709 = vpack.c.b16 %v684, %v683
      %v710 = vpack.c.b16 %v686, %v685
      %v711 = vpack.c.b16 %v688, %v687
      %v712 = vpack.c.b16 %v690, %v689
      %v713 = vpack.c.b16 %v692, %v691
      %v714 = vpack.c.b16 %v694, %v693
      %v715 = vpack.c.b16 %v696, %v695
      %v716 = vpack.c.b16 %v698, %v697
      %v717 = vpack.c.b16 %v700, %v699
      %v718 = vpack.c.b16 %v702, %v701
      %v727 = vunpack.c.l.b16 %v663
      %v728 = vunpack.c.l.b16 %v664
      %v729 = vunpack.c.l.b16 %v665
      %v730 = vunpack.c.l.b16 %v666
      %v731 = vunpack.c.l.b16 %v667
      %v732 = vunpack.c.l.b16 %v668
      %v733 = vunpack.c.l.b16 %v669
      %v734 = vunpack.c.l.b16 %v670
      %v735 = vpack.c.b16 %v728, %v727
      %v736 = vpack.c.b16 %v730, %v729
      %v737 = vpack.c.b16 %v732, %v731
      %v738 = vpack.c.b16 %v734, %v733
      %vm743 = vcmask 523264
      %v745 = vsel %vm743, %v703, 0
      %v748 = vsel %vm743, %v704, 0
      %v751 = vsel %vm743, %v705, 0
      %v754 = vsel %vm743, %v706, 0
      %v757 = vsel %vm743, %v707, 0
      %v760 = vsel %vm743, %v708, 0
      %v763 = vsel %vm743, %v709, 0
      %v766 = vsel %vm743, %v710, 0
      %v769 = vsel %vm743, %v711, 0
      %v772 = vsel %vm743, %v712, 0
      %v775 = vsel %vm743, %v713, 0
      %v778 = vsel %vm743, %v714, 0
      %v781 = vsel %vm743, %v715, 0
      %v784 = vsel %vm743, %v716, 0
      %v787 = vsel %vm743, %v717, 0
      %v790 = vsel %vm743, %v718, 0
      %792 = vmatprep.subr.bf16.mxu0 0
      %793 = vmatpush1.bf16.msra.mxu0 0
      %794 = vmatprep.subr.bf16.mxu0 0
      %795 = vmatpush1.bf16.msra.mxu0 0
      %796 = vmatprep.subr.bf16.mxu0 0
      %797 = vmatpush1.bf16.msra.mxu0 0
      %798 = vmatprep.subr.bf16.mxu0 0
      %799 = vmatpush1.bf16.msra.mxu0 0
      %800 = vmatprep.subr.bf16.mxu0 0
      %801 = vmatpush1.bf16.msra.mxu0 %v738
      %802 = vmatprep.subr.bf16.mxu0 0
      %803 = vmatpush1.bf16.msra.mxu0 %v737
      %804 = vmatprep.subr.bf16.mxu0 0
      %805 = vmatpush1.bf16.msra.mxu0 %v736
      %806 = vmatprep.subr.bf16.mxu0 0
      %807 = vmatpush1.bf16.msra.mxu0 %v735
      %808 = vmatprep.subr.bf16.mxu0 0
      %809 = vmatpush2.bf16.msra.mxu0 0
      %810 = vmatprep.subr.bf16.mxu0 0
      %811 = vmatpush2.bf16.msra.mxu0 0
      %812 = vmatprep.subr.bf16.mxu0 0
      %813 = vmatpush2.bf16.msra.mxu0 0
      %814 = vmatprep.subr.bf16.mxu0 0
      %815 = vmatpush2.bf16.msra.mxu0 0
      %816 = vmatprep.subr.bf16.mxu0 0
      %817 = vmatpush2.bf16.msra.mxu0 0
      %818 = vmatprep.subr.bf16.mxu0 0
      %819 = vmatpush2.bf16.msra.mxu0 0
      %820 = vmatprep.subr.bf16.mxu0 0
      %821 = vmatpush2.bf16.msra.mxu0 0
      %822 = vmatprep.subr.bf16.mxu0 0
      %823 = vmatpush2.bf16.msra.mxu0 0
      %824 = vmatprep.mubr.bf16.mxu0 0
      %825 = vmatmul.mubr.bf16.gmra.mxu0 %v745
      %v826 = vpop.f32.mrf.mxu0
      %v827 = vadd.f32 0.0, %v826
      %v828 = vpop.f32.mrf.mxu0
      %v829 = vpop.f32.mrf.mxu0
      %v830 = vadd.f32 0.0, %v829
      %v831 = vpop.f32.mrf.mxu0
      %832 = vmatprep.mubr.bf16.mxu0 0
      %833 = vmatmul.mubr.bf16.gmra.mxu0 %v748
      %v834 = vpop.f32.mrf.mxu0
      %v835 = vadd.f32 0.0, %v834
      %v836 = vpop.f32.mrf.mxu0
      %v837 = vpop.f32.mrf.mxu0
      %v838 = vadd.f32 0.0, %v837
      %v839 = vpop.f32.mrf.mxu0
      %840 = vmatprep.mubr.bf16.mxu0 0
      %841 = vmatmul.mubr.bf16.gmra.mxu0 %v751
      %v842 = vpop.f32.mrf.mxu0
      %v843 = vadd.f32 0.0, %v842
      %v844 = vpop.f32.mrf.mxu0
      %v845 = vpop.f32.mrf.mxu0
      %v846 = vadd.f32 0.0, %v845
      %v847 = vpop.f32.mrf.mxu0
      %848 = vmatprep.mubr.bf16.mxu0 0
      %849 = vmatmul.mubr.bf16.gmra.mxu0 %v754
      %v850 = vpop.f32.mrf.mxu0
      %v851 = vadd.f32 0.0, %v850
      %v852 = vpop.f32.mrf.mxu0
      %v853 = vpop.f32.mrf.mxu0
      %v854 = vadd.f32 0.0, %v853
      %v855 = vpop.f32.mrf.mxu0
      %856 = vmatprep.mubr.bf16.mxu0 0
      %857 = vmatmul.mubr.bf16.gmra.mxu0 %v757
      %v858 = vpop.f32.mrf.mxu0
      %v859 = vadd.f32 0.0, %v858
      %v860 = vpop.f32.mrf.mxu0
      %v861 = vpop.f32.mrf.mxu0
      %v862 = vadd.f32 0.0, %v861
      %v863 = vpop.f32.mrf.mxu0
      %864 = vmatprep.mubr.bf16.mxu0 0
      %865 = vmatmul.mubr.bf16.gmra.mxu0 %v760
      %v866 = vpop.f32.mrf.mxu0
      %v867 = vadd.f32 0.0, %v866
      %v868 = vpop.f32.mrf.mxu0
      %v869 = vpop.f32.mrf.mxu0
      %v870 = vadd.f32 0.0, %v869
      %v871 = vpop.f32.mrf.mxu0
      %872 = vmatprep.mubr.bf16.mxu0 0
      %873 = vmatmul.mubr.bf16.gmra.mxu0 %v763
      %v874 = vpop.f32.mrf.mxu0
      %v875 = vadd.f32 0.0, %v874
      %v876 = vpop.f32.mrf.mxu0
      %v877 = vpop.f32.mrf.mxu0
      %v878 = vadd.f32 0.0, %v877
      %v879 = vpop.f32.mrf.mxu0
      %880 = vmatprep.mubr.bf16.mxu0 0
      %881 = vmatmul.mubr.bf16.gmra.mxu0 %v766
      %v882 = vpop.f32.mrf.mxu0
      %v883 = vadd.f32 0.0, %v882
      %v884 = vpop.f32.mrf.mxu0
      %v885 = vpop.f32.mrf.mxu0
      %v886 = vadd.f32 0.0, %v885
      %v887 = vpop.f32.mrf.mxu0
      %888 = vmatprep.mubr.bf16.mxu0 0
      %889 = vmatmul.mubr.bf16.gmra.mxu0 %v769
      %v890 = vpop.f32.mrf.mxu0
      %v891 = vadd.f32 0.0, %v890
      %v892 = vpop.f32.mrf.mxu0
      %v893 = vpop.f32.mrf.mxu0
      %v894 = vadd.f32 0.0, %v893
      %v895 = vpop.f32.mrf.mxu0
      %896 = vmatprep.mubr.bf16.mxu0 0
      %897 = vmatmul.mubr.bf16.gmra.mxu0 %v772
      %v898 = vpop.f32.mrf.mxu0
      %v899 = vadd.f32 0.0, %v898
      %v900 = vpop.f32.mrf.mxu0
      %v901 = vpop.f32.mrf.mxu0
      %v902 = vadd.f32 0.0, %v901
      %v903 = vpop.f32.mrf.mxu0
      %904 = vmatprep.mubr.bf16.mxu0 0
      %905 = vmatmul.mubr.bf16.gmra.mxu0 %v775
      %v906 = vpop.f32.mrf.mxu0
      %v907 = vadd.f32 0.0, %v906
      %v908 = vpop.f32.mrf.mxu0
      %v909 = vpop.f32.mrf.mxu0
      %v910 = vadd.f32 0.0, %v909
      %v911 = vpop.f32.mrf.mxu0
      %912 = vmatprep.mubr.bf16.mxu0 0
      %913 = vmatmul.mubr.bf16.gmra.mxu0 %v778
      %v914 = vpop.f32.mrf.mxu0
      %v915 = vadd.f32 0.0, %v914
      %v916 = vpop.f32.mrf.mxu0
      %v917 = vpop.f32.mrf.mxu0
      %v918 = vadd.f32 0.0, %v917
      %v919 = vpop.f32.mrf.mxu0
      %920 = vmatprep.mubr.bf16.mxu0 0
      %921 = vmatmul.mubr.bf16.gmra.mxu0 %v781
      %v922 = vpop.f32.mrf.mxu0
      %v923 = vadd.f32 0.0, %v922
      %v924 = vpop.f32.mrf.mxu0
      %v925 = vpop.f32.mrf.mxu0
      %v926 = vadd.f32 0.0, %v925
      %v927 = vpop.f32.mrf.mxu0
      %928 = vmatprep.mubr.bf16.mxu0 0
      %929 = vmatmul.mubr.bf16.gmra.mxu0 %v784
      %v930 = vpop.f32.mrf.mxu0
      %v931 = vadd.f32 0.0, %v930
      %v932 = vpop.f32.mrf.mxu0
      %v933 = vpop.f32.mrf.mxu0
      %v934 = vadd.f32 0.0, %v933
      %v935 = vpop.f32.mrf.mxu0
      %936 = vmatprep.mubr.bf16.mxu0 0
      %937 = vmatmul.mubr.bf16.gmra.mxu0 %v787
      %v938 = vpop.f32.mrf.mxu0
      %v939 = vadd.f32 0.0, %v938
      %v940 = vpop.f32.mrf.mxu0
      %v941 = vpop.f32.mrf.mxu0
      %v942 = vadd.f32 0.0, %v941
      %v943 = vpop.f32.mrf.mxu0
      %944 = vmatprep.mubr.bf16.mxu0 0
      %945 = vmatmul.mubr.bf16.gmra.mxu0 %v790
      %v946 = vpop.f32.mrf.mxu0
      %v947 = vadd.f32 0.0, %v946
      %v948 = vpop.f32.mrf.mxu0
      %v949 = vpop.f32.mrf.mxu0
      %v950 = vadd.f32 0.0, %v949
      %v951 = vpop.f32.mrf.mxu0
      %952 = vdwg.mxu0
      %v985 = vunpack.c.l.b16 %v219
      %v986 = vunpack.c.l.b16 %v220
      %v987 = vunpack.c.l.b16 %v221
      %v988 = vunpack.c.l.b16 %v222
      %v989 = vunpack.c.l.b16 %v223
      %v990 = vunpack.c.l.b16 %v224
      %v991 = vunpack.c.l.b16 %v225
      %v992 = vunpack.c.l.b16 %v226
      %v993 = vunpack.c.l.b16 %v227
      %v994 = vunpack.c.l.b16 %v228
      %v995 = vunpack.c.l.b16 %v229
      %v996 = vunpack.c.l.b16 %v230
      %v997 = vunpack.c.l.b16 %v231
      %v998 = vunpack.c.l.b16 %v232
      %v999 = vunpack.c.l.b16 %v233
      %v1000 = vunpack.c.l.b16 %v234
      %v1001 = vunpack.c.l.b16 %v235
      %v1002 = vunpack.c.l.b16 %v236
      %v1003 = vunpack.c.l.b16 %v237
      %v1004 = vunpack.c.l.b16 %v238
      %v1005 = vunpack.c.l.b16 %v239
      %v1006 = vunpack.c.l.b16 %v240
      %v1007 = vunpack.c.l.b16 %v241
      %v1008 = vunpack.c.l.b16 %v242
      %v1009 = vunpack.c.l.b16 %v243
      %v1010 = vunpack.c.l.b16 %v244
      %v1011 = vunpack.c.l.b16 %v245
      %v1012 = vunpack.c.l.b16 %v246
      %v1013 = vunpack.c.l.b16 %v247
      %v1014 = vunpack.c.l.b16 %v248
      %v1015 = vunpack.c.l.b16 %v249
      %v1016 = vunpack.c.l.b16 %v250
      %v1017 = vpack.c.b16 %v986, %v985
      %v1018 = vpack.c.b16 %v988, %v987
      %v1019 = vpack.c.b16 %v990, %v989
      %v1020 = vpack.c.b16 %v992, %v991
      %v1021 = vpack.c.b16 %v994, %v993
      %v1022 = vpack.c.b16 %v996, %v995
      %v1023 = vpack.c.b16 %v998, %v997
      %v1024 = vpack.c.b16 %v1000, %v999
      %v1025 = vpack.c.b16 %v1002, %v1001
      %v1026 = vpack.c.b16 %v1004, %v1003
      %v1027 = vpack.c.b16 %v1006, %v1005
      %v1028 = vpack.c.b16 %v1008, %v1007
      %v1029 = vpack.c.b16 %v1010, %v1009
      %v1030 = vpack.c.b16 %v1012, %v1011
      %v1031 = vpack.c.b16 %v1014, %v1013
      %v1032 = vpack.c.b16 %v1016, %v1015
      %v1041 = vunpack.c.l.b16 %v251
      %v1042 = vunpack.c.l.b16 %v252
      %v1043 = vunpack.c.l.b16 %v253
      %v1044 = vunpack.c.l.b16 %v254
      %v1045 = vunpack.c.l.b16 %v255
      %v1046 = vunpack.c.l.b16 %v256
      %v1047 = vunpack.c.l.b16 %v257
      %v1048 = vunpack.c.l.b16 %v258
      %v1049 = vpack.c.b16 %v1042, %v1041
      %v1050 = vpack.c.b16 %v1044, %v1043
      %v1051 = vpack.c.b16 %v1046, %v1045
      %v1052 = vpack.c.b16 %v1048, %v1047
      %v1058 = vsel %vm743, %v1017, 0
      %v1061 = vsel %vm743, %v1018, 0
      %v1064 = vsel %vm743, %v1019, 0
      %v1067 = vsel %vm743, %v1020, 0
      %v1070 = vsel %vm743, %v1021, 0
      %v1073 = vsel %vm743, %v1022, 0
      %v1076 = vsel %vm743, %v1023, 0
      %v1079 = vsel %vm743, %v1024, 0
      %v1082 = vsel %vm743, %v1025, 0
      %v1085 = vsel %vm743, %v1026, 0
      %v1088 = vsel %vm743, %v1027, 0
      %v1091 = vsel %vm743, %v1028, 0
      %v1094 = vsel %vm743, %v1029, 0
      %v1097 = vsel %vm743, %v1030, 0
      %v1100 = vsel %vm743, %v1031, 0
      %v1103 = vsel %vm743, %v1032, 0
      %1105 = vmatprep.subr.bf16.mxu0 0
      %1106 = vmatpush1.bf16.msra.mxu0 0
      %1107 = vmatprep.subr.bf16.mxu0 0
      %1108 = vmatpush1.bf16.msra.mxu0 0
      %1109 = vmatprep.subr.bf16.mxu0 0
      %1110 = vmatpush1.bf16.msra.mxu0 0
      %1111 = vmatprep.subr.bf16.mxu0 0
      %1112 = vmatpush1.bf16.msra.mxu0 0
      %1113 = vmatprep.subr.bf16.mxu0 0
      %1114 = vmatpush1.bf16.msra.mxu0 %v1052
      %1115 = vmatprep.subr.bf16.mxu0 0
      %1116 = vmatpush1.bf16.msra.mxu0 %v1051
      %1117 = vmatprep.subr.bf16.mxu0 0
      %1118 = vmatpush1.bf16.msra.mxu0 %v1050
      %1119 = vmatprep.subr.bf16.mxu0 0
      %1120 = vmatpush1.bf16.msra.mxu0 %v1049
      %1121 = vmatprep.subr.bf16.mxu0 0
      %1122 = vmatpush2.bf16.msra.mxu0 0
      %1123 = vmatprep.subr.bf16.mxu0 0
      %1124 = vmatpush2.bf16.msra.mxu0 0
      %1125 = vmatprep.subr.bf16.mxu0 0
      %1126 = vmatpush2.bf16.msra.mxu0 0
      %1127 = vmatprep.subr.bf16.mxu0 0
      %1128 = vmatpush2.bf16.msra.mxu0 0
      %1129 = vmatprep.subr.bf16.mxu0 0
      %1130 = vmatpush2.bf16.msra.mxu0 0
      %1131 = vmatprep.subr.bf16.mxu0 0
      %1132 = vmatpush2.bf16.msra.mxu0 0
      %1133 = vmatprep.subr.bf16.mxu0 0
      %1134 = vmatpush2.bf16.msra.mxu0 0
      %1135 = vmatprep.subr.bf16.mxu0 0
      %1136 = vmatpush2.bf16.msra.mxu0 0
      %1137 = vmatprep.mubr.bf16.mxu0 0
      %1138 = vmatmul.mubr.bf16.gmra.mxu0 %v1058
      %v1139 = vpop.f32.mrf.mxu0
      %v1140 = vadd.f32 %v827, %v1139
      %v1141 = vpop.f32.mrf.mxu0
      %v1142 = vpop.f32.mrf.mxu0
      %v1143 = vadd.f32 %v830, %v1142
      %v1144 = vpop.f32.mrf.mxu0
      %1145 = vmatprep.mubr.bf16.mxu0 0
      %1146 = vmatmul.mubr.bf16.gmra.mxu0 %v1061
      %v1147 = vpop.f32.mrf.mxu0
      %v1148 = vadd.f32 %v835, %v1147
      %v1149 = vpop.f32.mrf.mxu0
      %v1150 = vpop.f32.mrf.mxu0
      %v1151 = vadd.f32 %v838, %v1150
      %v1152 = vpop.f32.mrf.mxu0
      %1153 = vmatprep.mubr.bf16.mxu0 0
      %1154 = vmatmul.mubr.bf16.gmra.mxu0 %v1064
      %v1155 = vpop.f32.mrf.mxu0
      %v1156 = vadd.f32 %v843, %v1155
      %v1157 = vpop.f32.mrf.mxu0
      %v1158 = vpop.f32.mrf.mxu0
      %v1159 = vadd.f32 %v846, %v1158
      %v1160 = vpop.f32.mrf.mxu0
      %1161 = vmatprep.mubr.bf16.mxu0 0
      %1162 = vmatmul.mubr.bf16.gmra.mxu0 %v1067
      %v1163 = vpop.f32.mrf.mxu0
      %v1164 = vadd.f32 %v851, %v1163
      %v1165 = vpop.f32.mrf.mxu0
      %v1166 = vpop.f32.mrf.mxu0
      %v1167 = vadd.f32 %v854, %v1166
      %v1168 = vpop.f32.mrf.mxu0
      %1169 = vmatprep.mubr.bf16.mxu0 0
      %1170 = vmatmul.mubr.bf16.gmra.mxu0 %v1070
      %v1171 = vpop.f32.mrf.mxu0
      %v1172 = vadd.f32 %v859, %v1171
      %v1173 = vpop.f32.mrf.mxu0
      %v1174 = vpop.f32.mrf.mxu0
      %v1175 = vadd.f32 %v862, %v1174
      %v1176 = vpop.f32.mrf.mxu0
      %1177 = vmatprep.mubr.bf16.mxu0 0
      %1178 = vmatmul.mubr.bf16.gmra.mxu0 %v1073
      %v1179 = vpop.f32.mrf.mxu0
      %v1180 = vadd.f32 %v867, %v1179
      %v1181 = vpop.f32.mrf.mxu0
      %v1182 = vpop.f32.mrf.mxu0
      %v1183 = vadd.f32 %v870, %v1182
      %v1184 = vpop.f32.mrf.mxu0
      %1185 = vmatprep.mubr.bf16.mxu0 0
      %1186 = vmatmul.mubr.bf16.gmra.mxu0 %v1076
      %v1187 = vpop.f32.mrf.mxu0
      %v1188 = vadd.f32 %v875, %v1187
      %v1189 = vpop.f32.mrf.mxu0
      %v1190 = vpop.f32.mrf.mxu0
      %v1191 = vadd.f32 %v878, %v1190
      %v1192 = vpop.f32.mrf.mxu0
      %1193 = vmatprep.mubr.bf16.mxu0 0
      %1194 = vmatmul.mubr.bf16.gmra.mxu0 %v1079
      %v1195 = vpop.f32.mrf.mxu0
      %v1196 = vadd.f32 %v883, %v1195
      %v1197 = vpop.f32.mrf.mxu0
      %v1198 = vpop.f32.mrf.mxu0
      %v1199 = vadd.f32 %v886, %v1198
      %v1200 = vpop.f32.mrf.mxu0
      %1201 = vmatprep.mubr.bf16.mxu0 0
      %1202 = vmatmul.mubr.bf16.gmra.mxu0 %v1082
      %v1203 = vpop.f32.mrf.mxu0
      %v1204 = vadd.f32 %v891, %v1203
      %v1205 = vpop.f32.mrf.mxu0
      %v1206 = vpop.f32.mrf.mxu0
      %v1207 = vadd.f32 %v894, %v1206
      %v1208 = vpop.f32.mrf.mxu0
      %1209 = vmatprep.mubr.bf16.mxu0 0
      %1210 = vmatmul.mubr.bf16.gmra.mxu0 %v1085
      %v1211 = vpop.f32.mrf.mxu0
      %v1212 = vadd.f32 %v899, %v1211
      %v1213 = vpop.f32.mrf.mxu0
      %v1214 = vpop.f32.mrf.mxu0
      %v1215 = vadd.f32 %v902, %v1214
      %v1216 = vpop.f32.mrf.mxu0
      %1217 = vmatprep.mubr.bf16.mxu0 0
      %1218 = vmatmul.mubr.bf16.gmra.mxu0 %v1088
      %v1219 = vpop.f32.mrf.mxu0
      %v1220 = vadd.f32 %v907, %v1219
      %v1221 = vpop.f32.mrf.mxu0
      %v1222 = vpop.f32.mrf.mxu0
      %v1223 = vadd.f32 %v910, %v1222
      %v1224 = vpop.f32.mrf.mxu0
      %1225 = vmatprep.mubr.bf16.mxu0 0
      %1226 = vmatmul.mubr.bf16.gmra.mxu0 %v1091
      %v1227 = vpop.f32.mrf.mxu0
      %v1228 = vadd.f32 %v915, %v1227
      %v1229 = vpop.f32.mrf.mxu0
      %v1230 = vpop.f32.mrf.mxu0
      %v1231 = vadd.f32 %v918, %v1230
      %v1232 = vpop.f32.mrf.mxu0
      %1233 = vmatprep.mubr.bf16.mxu0 0
      %1234 = vmatmul.mubr.bf16.gmra.mxu0 %v1094
      %v1235 = vpop.f32.mrf.mxu0
      %v1236 = vadd.f32 %v923, %v1235
      %v1237 = vpop.f32.mrf.mxu0
      %v1238 = vpop.f32.mrf.mxu0
      %v1239 = vadd.f32 %v926, %v1238
      %v1240 = vpop.f32.mrf.mxu0
      %1241 = vmatprep.mubr.bf16.mxu0 0
      %1242 = vmatmul.mubr.bf16.gmra.mxu0 %v1097
      %v1243 = vpop.f32.mrf.mxu0
      %v1244 = vadd.f32 %v931, %v1243
      %v1245 = vpop.f32.mrf.mxu0
      %v1246 = vpop.f32.mrf.mxu0
      %v1247 = vadd.f32 %v934, %v1246
      %v1248 = vpop.f32.mrf.mxu0
      %1249 = vmatprep.mubr.bf16.mxu0 0
      %1250 = vmatmul.mubr.bf16.gmra.mxu0 %v1100
      %v1251 = vpop.f32.mrf.mxu0
      %v1252 = vadd.f32 %v939, %v1251
      %v1253 = vpop.f32.mrf.mxu0
      %v1254 = vpop.f32.mrf.mxu0
      %v1255 = vadd.f32 %v942, %v1254
      %v1256 = vpop.f32.mrf.mxu0
      %1257 = vmatprep.mubr.bf16.mxu0 0
      %1258 = vmatmul.mubr.bf16.gmra.mxu0 %v1103
      %v1259 = vpop.f32.mrf.mxu0
      %v1260 = vadd.f32 %v947, %v1259
      %v1261 = vpop.f32.mrf.mxu0
      %v1262 = vpop.f32.mrf.mxu0
      %v1263 = vadd.f32 %v950, %v1262
      %v1264 = vpop.f32.mrf.mxu0
      %1265 = vdwg.mxu0
      %v1266 = vld [vmem:[%s207] sm:$0xe]
      %v1267 = vld [vmem:[%s207 + $0xc] sm:$0xe]
      %v1268 = vld [vmem:[%s207 + $0x18] sm:$0xe]
      %v1269 = vld [vmem:[%s207 + $0x24] sm:$0xe]
      %v1270 = vld [vmem:[%s207 + $0x30] sm:$0xe]
      %v1271 = vld [vmem:[%s207 + $0x3c] sm:$0xe]
      %v1272 = vld [vmem:[%s207 + $0x48] sm:$0xe]
      %v1273 = vld [vmem:[%s207 + $0x54] sm:$0xe]
      %v1274 = vld [vmem:[%s207 + $0x60] sm:$0xe]
      %v1275 = vld [vmem:[%s207 + $0x6c] sm:$0xe]
      %v1276 = vld [vmem:[%s207 + $0x78] sm:$0xe]
      %v1277 = vld [vmem:[%s207 + $0x84] sm:$0xe]
      %v1278 = vld [vmem:[%s207 + $0x90] sm:$0xe]
      %v1279 = vld [vmem:[%s207 + $0x9c] sm:$0xe]
      %v1280 = vld [vmem:[%s207 + $0xa8] sm:$0xe]
      %v1281 = vld [vmem:[%s207 + $0xb4] sm:$0xe]
      %vm1314 = vcmask 1042432
      %vm1315 = vcmask 1046532
      %vm1316 = vmor %vm1314, %vm1315
      %v1317 = vrot.slane %v1266, 5
      %v1318 = vrot.slane %v1317, 4
      %v1319 = vrot.slane %v220, 5
      %v1320 = vsel %vm1316, %v1318, %v1319
      %v1321 = vrot.slane %v1319, 4
      %v1322 = vrot.slane %v259, 5
      %v1323 = vsel %vm1316, %v1321, %v1322
      %v1324 = vrot.slane %v1267, 5
      %v1325 = vrot.slane %v1324, 4
      %v1326 = vrot.slane %v222, 5
      %v1327 = vsel %vm1316, %v1325, %v1326
      %v1328 = vrot.slane %v1326, 4
      %v1329 = vrot.slane %v260, 5
      %v1330 = vsel %vm1316, %v1328, %v1329
      %v1331 = vrot.slane %v1268, 5
      %v1332 = vrot.slane %v1331, 4
      %v1333 = vrot.slane %v224, 5
      %v1334 = vsel %vm1316, %v1332, %v1333
      %v1335 = vrot.slane %v1333, 4
      %v1336 = vrot.slane %v261, 5
      %v1337 = vsel %vm1316, %v1335, %v1336
      %v1338 = vrot.slane %v1269, 5
      %v1339 = vrot.slane %v1338, 4
      %v1340 = vrot.slane %v226, 5
      %v1341 = vsel %vm1316, %v1339, %v1340
      %v1342 = vrot.slane %v1340, 4
      %v1343 = vrot.slane %v262, 5
      %v1344 = vsel %vm1316, %v1342, %v1343
      %v1345 = vrot.slane %v1270, 5
      %v1346 = vrot.slane %v1345, 4
      %v1347 = vrot.slane %v228, 5
      %v1348 = vsel %vm1316, %v1346, %v1347
      %v1349 = vrot.slane %v1347, 4
      %v1350 = vrot.slane %v263, 5
      %v1351 = vsel %vm1316, %v1349, %v1350
      %v1352 = vrot.slane %v1271, 5
      %v1353 = vrot.slane %v1352, 4
      %v1354 = vrot.slane %v230, 5
      %v1355 = vsel %vm1316, %v1353, %v1354
      %v1356 = vrot.slane %v1354, 4
      %v1357 = vrot.slane %v264, 5
      %v1358 = vsel %vm1316, %v1356, %v1357
      %v1359 = vrot.slane %v1272, 5
      %v1360 = vrot.slane %v1359, 4
      %v1361 = vrot.slane %v232, 5
      %v1362 = vsel %vm1316, %v1360, %v1361
      %v1363 = vrot.slane %v1361, 4
      %v1364 = vrot.slane %v265, 5
      %v1365 = vsel %vm1316, %v1363, %v1364
      %v1366 = vrot.slane %v1273, 5
      %v1367 = vrot.slane %v1366, 4
      %v1368 = vrot.slane %v234, 5
      %v1369 = vsel %vm1316, %v1367, %v1368
      %v1370 = vrot.slane %v1368, 4
      %v1371 = vrot.slane %v266, 5
      %v1372 = vsel %vm1316, %v1370, %v1371
      %v1373 = vrot.slane %v1274, 5
      %v1374 = vrot.slane %v1373, 4
      %v1375 = vrot.slane %v236, 5
      %v1376 = vsel %vm1316, %v1374, %v1375
      %v1377 = vrot.slane %v1375, 4
      %v1378 = vrot.slane %v267, 5
      %v1379 = vsel %vm1316, %v1377, %v1378
      %v1380 = vrot.slane %v1275, 5
      %v1381 = vrot.slane %v1380, 4
      %v1382 = vrot.slane %v238, 5
      %v1383 = vsel %vm1316, %v1381, %v1382
      %v1384 = vrot.slane %v1382, 4
      %v1385 = vrot.slane %v268, 5
      %v1386 = vsel %vm1316, %v1384, %v1385
      %v1387 = vrot.slane %v1276, 5
      %v1388 = vrot.slane %v1387, 4
      %v1389 = vrot.slane %v240, 5
      %v1390 = vsel %vm1316, %v1388, %v1389
      %v1391 = vrot.slane %v1389, 4
      %v1392 = vrot.slane %v269, 5
      %v1393 = vsel %vm1316, %v1391, %v1392
      %v1394 = vrot.slane %v1277, 5
      %v1395 = vrot.slane %v1394, 4
      %v1396 = vrot.slane %v242, 5
      %v1397 = vsel %vm1316, %v1395, %v1396
      %v1398 = vrot.slane %v1396, 4
      %v1399 = vrot.slane %v270, 5
      %v1400 = vsel %vm1316, %v1398, %v1399
      %v1401 = vrot.slane %v1278, 5
      %v1402 = vrot.slane %v1401, 4
      %v1403 = vrot.slane %v244, 5
      %v1404 = vsel %vm1316, %v1402, %v1403
      %v1405 = vrot.slane %v1403, 4
      %v1406 = vrot.slane %v271, 5
      %v1407 = vsel %vm1316, %v1405, %v1406
      %v1408 = vrot.slane %v1279, 5
      %v1409 = vrot.slane %v1408, 4
      %v1410 = vrot.slane %v246, 5
      %v1411 = vsel %vm1316, %v1409, %v1410
      %v1412 = vrot.slane %v1410, 4
      %v1413 = vrot.slane %v272, 5
      %v1414 = vsel %vm1316, %v1412, %v1413
      %v1415 = vrot.slane %v1280, 5
      %v1416 = vrot.slane %v1415, 4
      %v1417 = vrot.slane %v248, 5
      %v1418 = vsel %vm1316, %v1416, %v1417
      %v1419 = vrot.slane %v1417, 4
      %v1420 = vrot.slane %v273, 5
      %v1421 = vsel %vm1316, %v1419, %v1420
      %v1422 = vrot.slane %v1281, 5
      %v1423 = vrot.slane %v1422, 4
      %v1424 = vrot.slane %v250, 5
      %v1425 = vsel %vm1316, %v1423, %v1424
      %v1426 = vrot.slane %v1424, 4
      %v1427 = vrot.slane %v274, 5
      %v1428 = vsel %vm1316, %v1426, %v1427
      %s1429 = scalar_lea.vmem %s1, 64
      %v1430 = vld [vmem:[%s1429] sm:$0xf]
      %v1431 = vld [vmem:[%s1429 + $0x4] sm:$0xf]
      %v1432 = vld [vmem:[%s1429 + $0x8] sm:$0xf]
      %v1433 = vld [vmem:[%s1429 + $0xc] sm:$0xf]
      %v1434 = vld [vmem:[%s1429 + $0x10] sm:$0xf]
      %v1435 = vld [vmem:[%s1429 + $0x14] sm:$0xf]
      %v1436 = vld [vmem:[%s1429 + $0x18] sm:$0xf]
      %v1437 = vld [vmem:[%s1429 + $0x1c] sm:$0xf]
      %v1438 = vunpack.c.l.b16 %v1320
      %v1439 = vunpack.c.l.b16 %v1323
      %v1440 = vunpack.c.l.b16 %v1327
      %v1441 = vunpack.c.l.b16 %v1330
      %v1442 = vunpack.c.l.b16 %v1334
      %v1443 = vunpack.c.l.b16 %v1337
      %v1444 = vunpack.c.l.b16 %v1341
      %v1445 = vunpack.c.l.b16 %v1344
      %v1446 = vunpack.c.l.b16 %v1348
      %v1447 = vunpack.c.l.b16 %v1351
      %v1448 = vunpack.c.l.b16 %v1355
      %v1449 = vunpack.c.l.b16 %v1358
      %v1450 = vunpack.c.l.b16 %v1362
      %v1451 = vunpack.c.l.b16 %v1365
      %v1452 = vunpack.c.l.b16 %v1369
      %v1453 = vunpack.c.l.b16 %v1372
      %v1454 = vunpack.c.l.b16 %v1376
      %v1455 = vunpack.c.l.b16 %v1379
      %v1456 = vunpack.c.l.b16 %v1383
      %v1457 = vunpack.c.l.b16 %v1386
      %v1458 = vunpack.c.l.b16 %v1390
      %v1459 = vunpack.c.l.b16 %v1393
      %v1460 = vunpack.c.l.b16 %v1397
      %v1461 = vunpack.c.l.b16 %v1400
      %v1462 = vunpack.c.l.b16 %v1404
      %v1463 = vunpack.c.l.b16 %v1407
      %v1464 = vunpack.c.l.b16 %v1411
      %v1465 = vunpack.c.l.b16 %v1414
      %v1466 = vunpack.c.l.b16 %v1418
      %v1467 = vunpack.c.l.b16 %v1421
      %v1468 = vunpack.c.l.b16 %v1425
      %v1469 = vunpack.c.l.b16 %v1428
      %v1470 = vpack.c.b16 %v1439, %v1438
      %v1471 = vpack.c.b16 %v1441, %v1440
      %v1472 = vpack.c.b16 %v1443, %v1442
      %v1473 = vpack.c.b16 %v1445, %v1444
      %v1474 = vpack.c.b16 %v1447, %v1446
      %v1475 = vpack.c.b16 %v1449, %v1448
      %v1476 = vpack.c.b16 %v1451, %v1450
      %v1477 = vpack.c.b16 %v1453, %v1452
      %v1478 = vpack.c.b16 %v1455, %v1454
      %v1479 = vpack.c.b16 %v1457, %v1456
      %v1480 = vpack.c.b16 %v1459, %v1458
      %v1481 = vpack.c.b16 %v1461, %v1460
      %v1482 = vpack.c.b16 %v1463, %v1462
      %v1483 = vpack.c.b16 %v1465, %v1464
      %v1484 = vpack.c.b16 %v1467, %v1466
      %v1485 = vpack.c.b16 %v1469, %v1468
      %v1494 = vunpack.c.l.b16 %v1430
      %v1495 = vunpack.c.l.b16 %v1431
      %v1496 = vunpack.c.l.b16 %v1432
      %v1497 = vunpack.c.l.b16 %v1433
      %v1498 = vunpack.c.l.b16 %v1434
      %v1499 = vunpack.c.l.b16 %v1435
      %v1500 = vunpack.c.l.b16 %v1436
      %v1501 = vunpack.c.l.b16 %v1437
      %v1502 = vpack.c.b16 %v1495, %v1494
      %v1503 = vpack.c.b16 %v1497, %v1496
      %v1504 = vpack.c.b16 %v1499, %v1498
      %v1505 = vpack.c.b16 %v1501, %v1500
      %v1511 = vsel %vm743, %v1470, 0
      %v1514 = vsel %vm743, %v1471, 0
      %v1517 = vsel %vm743, %v1472, 0
      %v1520 = vsel %vm743, %v1473, 0
      %v1523 = vsel %vm743, %v1474, 0
      %v1526 = vsel %vm743, %v1475, 0
      %v1529 = vsel %vm743, %v1476, 0
      %v1532 = vsel %vm743, %v1477, 0
      %v1535 = vsel %vm743, %v1478, 0
      %v1538 = vsel %vm743, %v1479, 0
      %v1541 = vsel %vm743, %v1480, 0
      %v1544 = vsel %vm743, %v1481, 0
      %v1547 = vsel %vm743, %v1482, 0
      %v1550 = vsel %vm743, %v1483, 0
      %v1553 = vsel %vm743, %v1484, 0
      %v1556 = vsel %vm743, %v1485, 0
      %1558 = vmatprep.subr.bf16.mxu0 0
      %1559 = vmatpush1.bf16.msra.mxu0 0
      %1560 = vmatprep.subr.bf16.mxu0 0
      %1561 = vmatpush1.bf16.msra.mxu0 0
      %1562 = vmatprep.subr.bf16.mxu0 0
      %1563 = vmatpush1.bf16.msra.mxu0 0
      %1564 = vmatprep.subr.bf16.mxu0 0
      %1565 = vmatpush1.bf16.msra.mxu0 0
      %1566 = vmatprep.subr.bf16.mxu0 0
      %1567 = vmatpush1.bf16.msra.mxu0 %v1505
      %1568 = vmatprep.subr.bf16.mxu0 0
      %1569 = vmatpush1.bf16.msra.mxu0 %v1504
      %1570 = vmatprep.subr.bf16.mxu0 0
      %1571 = vmatpush1.bf16.msra.mxu0 %v1503
      %1572 = vmatprep.subr.bf16.mxu0 0
      %1573 = vmatpush1.bf16.msra.mxu0 %v1502
      %1574 = vmatprep.subr.bf16.mxu0 0
      %1575 = vmatpush2.bf16.msra.mxu0 0
      %1576 = vmatprep.subr.bf16.mxu0 0
      %1577 = vmatpush2.bf16.msra.mxu0 0
      %1578 = vmatprep.subr.bf16.mxu0 0
      %1579 = vmatpush2.bf16.msra.mxu0 0
      %1580 = vmatprep.subr.bf16.mxu0 0
      %1581 = vmatpush2.bf16.msra.mxu0 0
      %1582 = vmatprep.subr.bf16.mxu0 0
      %1583 = vmatpush2.bf16.msra.mxu0 0
      %1584 = vmatprep.subr.bf16.mxu0 0
      %1585 = vmatpush2.bf16.msra.mxu0 0
      %1586 = vmatprep.subr.bf16.mxu0 0
      %1587 = vmatpush2.bf16.msra.mxu0 0
      %1588 = vmatprep.subr.bf16.mxu0 0
      %1589 = vmatpush2.bf16.msra.mxu0 0
      %1590 = vmatprep.mubr.bf16.mxu0 0
      %1591 = vmatmul.mubr.bf16.gmra.mxu0 %v1511
      %v1592 = vpop.f32.mrf.mxu0
      %v1593 = vadd.f32 0.0, %v1592
      %v1594 = vpop.f32.mrf.mxu0
      %v1595 = vpop.f32.mrf.mxu0
      %v1596 = vadd.f32 0.0, %v1595
      %v1597 = vpop.f32.mrf.mxu0
      %1598 = vmatprep.mubr.bf16.mxu0 0
      %1599 = vmatmul.mubr.bf16.gmra.mxu0 %v1514
      %v1600 = vpop.f32.mrf.mxu0
      %v1601 = vadd.f32 0.0, %v1600
      %v1602 = vpop.f32.mrf.mxu0
      %v1603 = vpop.f32.mrf.mxu0
      %v1604 = vadd.f32 0.0, %v1603
      %v1605 = vpop.f32.mrf.mxu0
      %1606 = vmatprep.mubr.bf16.mxu0 0
      %1607 = vmatmul.mubr.bf16.gmra.mxu0 %v1517
      %v1608 = vpop.f32.mrf.mxu0
      %v1609 = vadd.f32 0.0, %v1608
      %v1610 = vpop.f32.mrf.mxu0
      %v1611 = vpop.f32.mrf.mxu0
      %v1612 = vadd.f32 0.0, %v1611
      %v1613 = vpop.f32.mrf.mxu0
      %1614 = vmatprep.mubr.bf16.mxu0 0
      %1615 = vmatmul.mubr.bf16.gmra.mxu0 %v1520
      %v1616 = vpop.f32.mrf.mxu0
      %v1617 = vadd.f32 0.0, %v1616
      %v1618 = vpop.f32.mrf.mxu0
      %v1619 = vpop.f32.mrf.mxu0
      %v1620 = vadd.f32 0.0, %v1619
      %v1621 = vpop.f32.mrf.mxu0
      %1622 = vmatprep.mubr.bf16.mxu0 0
      %1623 = vmatmul.mubr.bf16.gmra.mxu0 %v1523
      %v1624 = vpop.f32.mrf.mxu0
      %v1625 = vadd.f32 0.0, %v1624
      %v1626 = vpop.f32.mrf.mxu0
      %v1627 = vpop.f32.mrf.mxu0
      %v1628 = vadd.f32 0.0, %v1627
      %v1629 = vpop.f32.mrf.mxu0
      %1630 = vmatprep.mubr.bf16.mxu0 0
      %1631 = vmatmul.mubr.bf16.gmra.mxu0 %v1526
      %v1632 = vpop.f32.mrf.mxu0
      %v1633 = vadd.f32 0.0, %v1632
      %v1634 = vpop.f32.mrf.mxu0
      %v1635 = vpop.f32.mrf.mxu0
      %v1636 = vadd.f32 0.0, %v1635
      %v1637 = vpop.f32.mrf.mxu0
      %1638 = vmatprep.mubr.bf16.mxu0 0
      %1639 = vmatmul.mubr.bf16.gmra.mxu0 %v1529
      %v1640 = vpop.f32.mrf.mxu0
      %v1641 = vadd.f32 0.0, %v1640
      %v1642 = vpop.f32.mrf.mxu0
      %v1643 = vpop.f32.mrf.mxu0
      %v1644 = vadd.f32 0.0, %v1643
      %v1645 = vpop.f32.mrf.mxu0
      %1646 = vmatprep.mubr.bf16.mxu0 0
      %1647 = vmatmul.mubr.bf16.gmra.mxu0 %v1532
      %v1648 = vpop.f32.mrf.mxu0
      %v1649 = vadd.f32 0.0, %v1648
      %v1650 = vpop.f32.mrf.mxu0
      %v1651 = vpop.f32.mrf.mxu0
      %v1652 = vadd.f32 0.0, %v1651
      %v1653 = vpop.f32.mrf.mxu0
      %1654 = vmatprep.mubr.bf16.mxu0 0
      %1655 = vmatmul.mubr.bf16.gmra.mxu0 %v1535
      %v1656 = vpop.f32.mrf.mxu0
      %v1657 = vadd.f32 0.0, %v1656
      %v1658 = vpop.f32.mrf.mxu0
      %v1659 = vpop.f32.mrf.mxu0
      %v1660 = vadd.f32 0.0, %v1659
      %v1661 = vpop.f32.mrf.mxu0
      %1662 = vmatprep.mubr.bf16.mxu0 0
      %1663 = vmatmul.mubr.bf16.gmra.mxu0 %v1538
      %v1664 = vpop.f32.mrf.mxu0
      %v1665 = vadd.f32 0.0, %v1664
      %v1666 = vpop.f32.mrf.mxu0
      %v1667 = vpop.f32.mrf.mxu0
      %v1668 = vadd.f32 0.0, %v1667
      %v1669 = vpop.f32.mrf.mxu0
      %1670 = vmatprep.mubr.bf16.mxu0 0
      %1671 = vmatmul.mubr.bf16.gmra.mxu0 %v1541
      %v1672 = vpop.f32.mrf.mxu0
      %v1673 = vadd.f32 0.0, %v1672
      %v1674 = vpop.f32.mrf.mxu0
      %v1675 = vpop.f32.mrf.mxu0
      %v1676 = vadd.f32 0.0, %v1675
      %v1677 = vpop.f32.mrf.mxu0
      %1678 = vmatprep.mubr.bf16.mxu0 0
      %1679 = vmatmul.mubr.bf16.gmra.mxu0 %v1544
      %v1680 = vpop.f32.mrf.mxu0
      %v1681 = vadd.f32 0.0, %v1680
      %v1682 = vpop.f32.mrf.mxu0
      %v1683 = vpop.f32.mrf.mxu0
      %v1684 = vadd.f32 0.0, %v1683
      %v1685 = vpop.f32.mrf.mxu0
      %1686 = vmatprep.mubr.bf16.mxu0 0
      %1687 = vmatmul.mubr.bf16.gmra.mxu0 %v1547
      %v1688 = vpop.f32.mrf.mxu0
      %v1689 = vadd.f32 0.0, %v1688
      %v1690 = vpop.f32.mrf.mxu0
      %v1691 = vpop.f32.mrf.mxu0
      %v1692 = vadd.f32 0.0, %v1691
      %v1693 = vpop.f32.mrf.mxu0
      %1694 = vmatprep.mubr.bf16.mxu0 0
      %1695 = vmatmul.mubr.bf16.gmra.mxu0 %v1550
      %v1696 = vpop.f32.mrf.mxu0
      %v1697 = vadd.f32 0.0, %v1696
      %v1698 = vpop.f32.mrf.mxu0
      %v1699 = vpop.f32.mrf.mxu0
      %v1700 = vadd.f32 0.0, %v1699
      %v1701 = vpop.f32.mrf.mxu0
      %1702 = vmatprep.mubr.bf16.mxu0 0
      %1703 = vmatmul.mubr.bf16.gmra.mxu0 %v1553
      %v1704 = vpop.f32.mrf.mxu0
      %v1705 = vadd.f32 0.0, %v1704
      %v1706 = vpop.f32.mrf.mxu0
      %v1707 = vpop.f32.mrf.mxu0
      %v1708 = vadd.f32 0.0, %v1707
      %v1709 = vpop.f32.mrf.mxu0
      %1710 = vmatprep.mubr.bf16.mxu0 0
      %1711 = vmatmul.mubr.bf16.gmra.mxu0 %v1556
      %v1712 = vpop.f32.mrf.mxu0
      %v1713 = vadd.f32 0.0, %v1712
      %v1714 = vpop.f32.mrf.mxu0
      %v1715 = vpop.f32.mrf.mxu0
      %v1716 = vadd.f32 0.0, %v1715
      %v1717 = vpop.f32.mrf.mxu0
      %1718 = vdwg.mxu0
      %v1719 = vadd.f32 %v1140, %v1593
      %v1720 = vadd.f32 %v1143, %v1596
      %v1721 = vadd.f32 %v1148, %v1601
      %v1722 = vadd.f32 %v1151, %v1604
      %v1723 = vadd.f32 %v1156, %v1609
      %v1724 = vadd.f32 %v1159, %v1612
      %v1725 = vadd.f32 %v1164, %v1617
      %v1726 = vadd.f32 %v1167, %v1620
      %v1727 = vadd.f32 %v1172, %v1625
      %v1728 = vadd.f32 %v1175, %v1628
      %v1729 = vadd.f32 %v1180, %v1633
      %v1730 = vadd.f32 %v1183, %v1636
      %v1731 = vadd.f32 %v1188, %v1641
      %v1732 = vadd.f32 %v1191, %v1644
      %v1733 = vadd.f32 %v1196, %v1649
      %v1734 = vadd.f32 %v1199, %v1652
      %v1735 = vadd.f32 %v1204, %v1657
      %v1736 = vadd.f32 %v1207, %v1660
      %v1737 = vadd.f32 %v1212, %v1665
      %v1738 = vadd.f32 %v1215, %v1668
      %v1739 = vadd.f32 %v1220, %v1673
      %v1740 = vadd.f32 %v1223, %v1676
      %v1741 = vadd.f32 %v1228, %v1681
      %v1742 = vadd.f32 %v1231, %v1684
      %v1743 = vadd.f32 %v1236, %v1689
      %v1744 = vadd.f32 %v1239, %v1692
      %v1745 = vadd.f32 %v1244, %v1697
      %v1746 = vadd.f32 %v1247, %v1700
      %v1747 = vadd.f32 %v1252, %v1705
      %v1748 = vadd.f32 %v1255, %v1708
      %v1749 = vadd.f32 %v1260, %v1713
      %v1750 = vadd.f32 %v1263, %v1716
      %s1751 = scalar_lea.vmem %s207, 12
      %v1752 = vld [vmem:[%s1751] sm:$0xf]
      %v1753 = vld [vmem:[%s1751 + $0x4] sm:$0xf]
      %v1754 = vld [vmem:[%s1751 + $0xc] sm:$0xf]
      %v1755 = vld [vmem:[%s1751 + $0x10] sm:$0xf]
      %v1756 = vld [vmem:[%s1751 + $0x18] sm:$0xf]
      %v1757 = vld [vmem:[%s1751 + $0x1c] sm:$0xf]
      %v1758 = vld [vmem:[%s1751 + $0x24] sm:$0xf]
      %v1759 = vld [vmem:[%s1751 + $0x28] sm:$0xf]
      %v1760 = vld [vmem:[%s1751 + $0x30] sm:$0xf]
      %v1761 = vld [vmem:[%s1751 + $0x34] sm:$0xf]
      %v1762 = vld [vmem:[%s1751 + $0x3c] sm:$0xf]
      %v1763 = vld [vmem:[%s1751 + $0x40] sm:$0xf]
      %v1764 = vld [vmem:[%s1751 + $0x48] sm:$0xf]
      %v1765 = vld [vmem:[%s1751 + $0x4c] sm:$0xf]
      %v1766 = vld [vmem:[%s1751 + $0x54] sm:$0xf]
      %v1767 = vld [vmem:[%s1751 + $0x58] sm:$0xf]
      %v1768 = vld [vmem:[%s1751 + $0x60] sm:$0xf]
      %v1769 = vld [vmem:[%s1751 + $0x64] sm:$0xf]
      %v1770 = vld [vmem:[%s1751 + $0x6c] sm:$0xf]
      %v1771 = vld [vmem:[%s1751 + $0x70] sm:$0xf]
      %v1772 = vld [vmem:[%s1751 + $0x78] sm:$0xf]
      %v1773 = vld [vmem:[%s1751 + $0x7c] sm:$0xf]
      %v1774 = vld [vmem:[%s1751 + $0x84] sm:$0xf]
      %v1775 = vld [vmem:[%s1751 + $0x88] sm:$0xf]
      %v1776 = vld [vmem:[%s1751 + $0x90] sm:$0xf]
      %v1777 = vld [vmem:[%s1751 + $0x94] sm:$0xf]
      %v1778 = vld [vmem:[%s1751 + $0x9c] sm:$0xf]
      %v1779 = vld [vmem:[%s1751 + $0xa0] sm:$0xf]
      %v1780 = vld [vmem:[%s1751 + $0xa8] sm:$0xf]
      %v1781 = vld [vmem:[%s1751 + $0xac] sm:$0xf]
      %v1782 = vld [vmem:[%s1751 + $0xb4] sm:$0xf]
      %v1783 = vld [vmem:[%s1751 + $0xb8] sm:$0xf]
      %s1784 = scalar_lea.vmem %s1, 96
      %v1785 = vld [vmem:[%s1784] sm:$0xf]
      %v1786 = vld [vmem:[%s1784 + $0x4] sm:$0xf]
      %v1787 = vld [vmem:[%s1784 + $0x8] sm:$0xf]
      %v1788 = vld [vmem:[%s1784 + $0xc] sm:$0xf]
      %v1789 = vld [vmem:[%s1784 + $0x10] sm:$0xf]
      %v1790 = vld [vmem:[%s1784 + $0x14] sm:$0xf]
      %v1791 = vld [vmem:[%s1784 + $0x18] sm:$0xf]
      %v1792 = vld [vmem:[%s1784 + $0x1c] sm:$0xf]
      %v1825 = vunpack.c.l.b16 %v1752
      %v1826 = vunpack.c.l.b16 %v1753
      %v1827 = vunpack.c.l.b16 %v1754
      %v1828 = vunpack.c.l.b16 %v1755
      %v1829 = vunpack.c.l.b16 %v1756
      %v1830 = vunpack.c.l.b16 %v1757
      %v1831 = vunpack.c.l.b16 %v1758
      %v1832 = vunpack.c.l.b16 %v1759
      %v1833 = vunpack.c.l.b16 %v1760
      %v1834 = vunpack.c.l.b16 %v1761
      %v1835 = vunpack.c.l.b16 %v1762
      %v1836 = vunpack.c.l.b16 %v1763
      %v1837 = vunpack.c.l.b16 %v1764
      %v1838 = vunpack.c.l.b16 %v1765
      %v1839 = vunpack.c.l.b16 %v1766
      %v1840 = vunpack.c.l.b16 %v1767
      %v1841 = vunpack.c.l.b16 %v1768
      %v1842 = vunpack.c.l.b16 %v1769
      %v1843 = vunpack.c.l.b16 %v1770
      %v1844 = vunpack.c.l.b16 %v1771
      %v1845 = vunpack.c.l.b16 %v1772
      %v1846 = vunpack.c.l.b16 %v1773
      %v1847 = vunpack.c.l.b16 %v1774
      %v1848 = vunpack.c.l.b16 %v1775
      %v1849 = vunpack.c.l.b16 %v1776
      %v1850 = vunpack.c.l.b16 %v1777
      %v1851 = vunpack.c.l.b16 %v1778
      %v1852 = vunpack.c.l.b16 %v1779
      %v1853 = vunpack.c.l.b16 %v1780
      %v1854 = vunpack.c.l.b16 %v1781
      %v1855 = vunpack.c.l.b16 %v1782
      %v1856 = vunpack.c.l.b16 %v1783
      %v1857 = vpack.c.b16 %v1826, %v1825
      %v1858 = vpack.c.b16 %v1828, %v1827
      %v1859 = vpack.c.b16 %v1830, %v1829
      %v1860 = vpack.c.b16 %v1832, %v1831
      %v1861 = vpack.c.b16 %v1834, %v1833
      %v1862 = vpack.c.b16 %v1836, %v1835
      %v1863 = vpack.c.b16 %v1838, %v1837
      %v1864 = vpack.c.b16 %v1840, %v1839
      %v1865 = vpack.c.b16 %v1842, %v1841
      %v1866 = vpack.c.b16 %v1844, %v1843
      %v1867 = vpack.c.b16 %v1846, %v1845
      %v1868 = vpack.c.b16 %v1848, %v1847
      %v1869 = vpack.c.b16 %v1850, %v1849
      %v1870 = vpack.c.b16 %v1852, %v1851
      %v1871 = vpack.c.b16 %v1854, %v1853
      %v1872 = vpack.c.b16 %v1856, %v1855
      %v1881 = vunpack.c.l.b16 %v1785
      %v1882 = vunpack.c.l.b16 %v1786
      %v1883 = vunpack.c.l.b16 %v1787
      %v1884 = vunpack.c.l.b16 %v1788
      %v1885 = vunpack.c.l.b16 %v1789
      %v1886 = vunpack.c.l.b16 %v1790
      %v1887 = vunpack.c.l.b16 %v1791
      %v1888 = vunpack.c.l.b16 %v1792
      %v1889 = vpack.c.b16 %v1882, %v1881
      %v1890 = vpack.c.b16 %v1884, %v1883
      %v1891 = vpack.c.b16 %v1886, %v1885
      %v1892 = vpack.c.b16 %v1888, %v1887
      %v1898 = vsel %vm743, %v1857, 0
      %v1901 = vsel %vm743, %v1858, 0
      %v1904 = vsel %vm743, %v1859, 0
      %v1907 = vsel %vm743, %v1860, 0
      %v1910 = vsel %vm743, %v1861, 0
      %v1913 = vsel %vm743, %v1862, 0
      %v1916 = vsel %vm743, %v1863, 0
      %v1919 = vsel %vm743, %v1864, 0
      %v1922 = vsel %vm743, %v1865, 0
      %v1925 = vsel %vm743, %v1866, 0
      %v1928 = vsel %vm743, %v1867, 0
      %v1931 = vsel %vm743, %v1868, 0
      %v1934 = vsel %vm743, %v1869, 0
      %v1937 = vsel %vm743, %v1870, 0
      %v1940 = vsel %vm743, %v1871, 0
      %v1943 = vsel %vm743, %v1872, 0
      %1945 = vmatprep.subr.bf16.mxu0 0
      %1946 = vmatpush1.bf16.msra.mxu0 0
      %1947 = vmatprep.subr.bf16.mxu0 0
      %1948 = vmatpush1.bf16.msra.mxu0 0
      %1949 = vmatprep.subr.bf16.mxu0 0
      %1950 = vmatpush1.bf16.msra.mxu0 0
      %1951 = vmatprep.subr.bf16.mxu0 0
      %1952 = vmatpush1.bf16.msra.mxu0 0
      %1953 = vmatprep.subr.bf16.mxu0 0
      %1954 = vmatpush1.bf16.msra.mxu0 %v1892
      %1955 = vmatprep.subr.bf16.mxu0 0
      %1956 = vmatpush1.bf16.msra.mxu0 %v1891
      %1957 = vmatprep.subr.bf16.mxu0 0
      %1958 = vmatpush1.bf16.msra.mxu0 %v1890
      %1959 = vmatprep.subr.bf16.mxu0 0
      %1960 = vmatpush1.bf16.msra.mxu0 %v1889
      %1961 = vmatprep.subr.bf16.mxu0 0
      %1962 = vmatpush2.bf16.msra.mxu0 0
      %1963 = vmatprep.subr.bf16.mxu0 0
      %1964 = vmatpush2.bf16.msra.mxu0 0
      %1965 = vmatprep.subr.bf16.mxu0 0
      %1966 = vmatpush2.bf16.msra.mxu0 0
      %1967 = vmatprep.subr.bf16.mxu0 0
      %1968 = vmatpush2.bf16.msra.mxu0 0
      %1969 = vmatprep.subr.bf16.mxu0 0
      %1970 = vmatpush2.bf16.msra.mxu0 0
      %1971 = vmatprep.subr.bf16.mxu0 0
      %1972 = vmatpush2.bf16.msra.mxu0 0
      %1973 = vmatprep.subr.bf16.mxu0 0
      %1974 = vmatpush2.bf16.msra.mxu0 0
      %1975 = vmatprep.subr.bf16.mxu0 0
      %1976 = vmatpush2.bf16.msra.mxu0 0
      %1977 = vmatprep.mubr.bf16.mxu0 0
      %1978 = vmatmul.mubr.bf16.gmra.mxu0 %v1898
      %v1979 = vpop.f32.mrf.mxu0
      %v1980 = vadd.f32 0.0, %v1979
      %v1981 = vpop.f32.mrf.mxu0
      %v1982 = vpop.f32.mrf.mxu0
      %v1983 = vadd.f32 0.0, %v1982
      %v1984 = vpop.f32.mrf.mxu0
      %1985 = vmatprep.mubr.bf16.mxu0 0
      %1986 = vmatmul.mubr.bf16.gmra.mxu0 %v1901
      %v1987 = vpop.f32.mrf.mxu0
      %v1988 = vadd.f32 0.0, %v1987
      %v1989 = vpop.f32.mrf.mxu0
      %v1990 = vpop.f32.mrf.mxu0
      %v1991 = vadd.f32 0.0, %v1990
      %v1992 = vpop.f32.mrf.mxu0
      %1993 = vmatprep.mubr.bf16.mxu0 0
      %1994 = vmatmul.mubr.bf16.gmra.mxu0 %v1904
      %v1995 = vpop.f32.mrf.mxu0
      %v1996 = vadd.f32 0.0, %v1995
      %v1997 = vpop.f32.mrf.mxu0
      %v1998 = vpop.f32.mrf.mxu0
      %v1999 = vadd.f32 0.0, %v1998
      %v2000 = vpop.f32.mrf.mxu0
      %2001 = vmatprep.mubr.bf16.mxu0 0
      %2002 = vmatmul.mubr.bf16.gmra.mxu0 %v1907
      %v2003 = vpop.f32.mrf.mxu0
      %v2004 = vadd.f32 0.0, %v2003
      %v2005 = vpop.f32.mrf.mxu0
      %v2006 = vpop.f32.mrf.mxu0
      %v2007 = vadd.f32 0.0, %v2006
      %v2008 = vpop.f32.mrf.mxu0
      %2009 = vmatprep.mubr.bf16.mxu0 0
      %2010 = vmatmul.mubr.bf16.gmra.mxu0 %v1910
      %v2011 = vpop.f32.mrf.mxu0
      %v2012 = vadd.f32 0.0, %v2011
      %v2013 = vpop.f32.mrf.mxu0
      %v2014 = vpop.f32.mrf.mxu0
      %v2015 = vadd.f32 0.0, %v2014
      %v2016 = vpop.f32.mrf.mxu0
      %2017 = vmatprep.mubr.bf16.mxu0 0
      %2018 = vmatmul.mubr.bf16.gmra.mxu0 %v1913
      %v2019 = vpop.f32.mrf.mxu0
      %v2020 = vadd.f32 0.0, %v2019
      %v2021 = vpop.f32.mrf.mxu0
      %v2022 = vpop.f32.mrf.mxu0
      %v2023 = vadd.f32 0.0, %v2022
      %v2024 = vpop.f32.mrf.mxu0
      %2025 = vmatprep.mubr.bf16.mxu0 0
      %2026 = vmatmul.mubr.bf16.gmra.mxu0 %v1916
      %v2027 = vpop.f32.mrf.mxu0
      %v2028 = vadd.f32 0.0, %v2027
      %v2029 = vpop.f32.mrf.mxu0
      %v2030 = vpop.f32.mrf.mxu0
      %v2031 = vadd.f32 0.0, %v2030
      %v2032 = vpop.f32.mrf.mxu0
      %2033 = vmatprep.mubr.bf16.mxu0 0
      %2034 = vmatmul.mubr.bf16.gmra.mxu0 %v1919
      %v2035 = vpop.f32.mrf.mxu0
      %v2036 = vadd.f32 0.0, %v2035
      %v2037 = vpop.f32.mrf.mxu0
      %v2038 = vpop.f32.mrf.mxu0
      %v2039 = vadd.f32 0.0, %v2038
      %v2040 = vpop.f32.mrf.mxu0
      %2041 = vmatprep.mubr.bf16.mxu0 0
      %2042 = vmatmul.mubr.bf16.gmra.mxu0 %v1922
      %v2043 = vpop.f32.mrf.mxu0
      %v2044 = vadd.f32 0.0, %v2043
      %v2045 = vpop.f32.mrf.mxu0
      %v2046 = vpop.f32.mrf.mxu0
      %v2047 = vadd.f32 0.0, %v2046
      %v2048 = vpop.f32.mrf.mxu0
      %2049 = vmatprep.mubr.bf16.mxu0 0
      %2050 = vmatmul.mubr.bf16.gmra.mxu0 %v1925
      %v2051 = vpop.f32.mrf.mxu0
      %v2052 = vadd.f32 0.0, %v2051
      %v2053 = vpop.f32.mrf.mxu0
      %v2054 = vpop.f32.mrf.mxu0
      %v2055 = vadd.f32 0.0, %v2054
      %v2056 = vpop.f32.mrf.mxu0
      %2057 = vmatprep.mubr.bf16.mxu0 0
      %2058 = vmatmul.mubr.bf16.gmra.mxu0 %v1928
      %v2059 = vpop.f32.mrf.mxu0
      %v2060 = vadd.f32 0.0, %v2059
      %v2061 = vpop.f32.mrf.mxu0
      %v2062 = vpop.f32.mrf.mxu0
      %v2063 = vadd.f32 0.0, %v2062
      %v2064 = vpop.f32.mrf.mxu0
      %2065 = vmatprep.mubr.bf16.mxu0 0
      %2066 = vmatmul.mubr.bf16.gmra.mxu0 %v1931
      %v2067 = vpop.f32.mrf.mxu0
      %v2068 = vadd.f32 0.0, %v2067
      %v2069 = vpop.f32.mrf.mxu0
      %v2070 = vpop.f32.mrf.mxu0
      %v2071 = vadd.f32 0.0, %v2070
      %v2072 = vpop.f32.mrf.mxu0
      %2073 = vmatprep.mubr.bf16.mxu0 0
      %2074 = vmatmul.mubr.bf16.gmra.mxu0 %v1934
      %v2075 = vpop.f32.mrf.mxu0
      %v2076 = vadd.f32 0.0, %v2075
      %v2077 = vpop.f32.mrf.mxu0
      %v2078 = vpop.f32.mrf.mxu0
      %v2079 = vadd.f32 0.0, %v2078
      %v2080 = vpop.f32.mrf.mxu0
      %2081 = vmatprep.mubr.bf16.mxu0 0
      %2082 = vmatmul.mubr.bf16.gmra.mxu0 %v1937
      %v2083 = vpop.f32.mrf.mxu0
      %v2084 = vadd.f32 0.0, %v2083
      %v2085 = vpop.f32.mrf.mxu0
      %v2086 = vpop.f32.mrf.mxu0
      %v2087 = vadd.f32 0.0, %v2086
      %v2088 = vpop.f32.mrf.mxu0
      %2089 = vmatprep.mubr.bf16.mxu0 0
      %2090 = vmatmul.mubr.bf16.gmra.mxu0 %v1940
      %v2091 = vpop.f32.mrf.mxu0
      %v2092 = vadd.f32 0.0, %v2091
      %v2093 = vpop.f32.mrf.mxu0
      %v2094 = vpop.f32.mrf.mxu0
      %v2095 = vadd.f32 0.0, %v2094
      %v2096 = vpop.f32.mrf.mxu0
      %2097 = vmatprep.mubr.bf16.mxu0 0
      %2098 = vmatmul.mubr.bf16.gmra.mxu0 %v1943
      %v2099 = vpop.f32.mrf.mxu0
      %v2100 = vadd.f32 0.0, %v2099
      %v2101 = vpop.f32.mrf.mxu0
      %v2102 = vpop.f32.mrf.mxu0
      %v2103 = vadd.f32 0.0, %v2102
      %v2104 = vpop.f32.mrf.mxu0
      %2105 = vdwg.mxu0
      %v2106 = vadd.f32 %v1719, %v1980
      %v2107 = vadd.f32 %v1720, %v1983
      %v2108 = vadd.f32 %v1721, %v1988
      %v2109 = vadd.f32 %v1722, %v1991
      %v2110 = vadd.f32 %v1723, %v1996
      %v2111 = vadd.f32 %v1724, %v1999
      %v2112 = vadd.f32 %v1725, %v2004
      %v2113 = vadd.f32 %v1726, %v2007
      %v2114 = vadd.f32 %v1727, %v2012
      %v2115 = vadd.f32 %v1728, %v2015
      %v2116 = vadd.f32 %v1729, %v2020
      %v2117 = vadd.f32 %v1730, %v2023
      %v2118 = vadd.f32 %v1731, %v2028
      %v2119 = vadd.f32 %v1732, %v2031
      %v2120 = vadd.f32 %v1733, %v2036
      %v2121 = vadd.f32 %v1734, %v2039
      %v2122 = vadd.f32 %v1735, %v2044
      %v2123 = vadd.f32 %v1736, %v2047
      %v2124 = vadd.f32 %v1737, %v2052
      %v2125 = vadd.f32 %v1738, %v2055
      %v2126 = vadd.f32 %v1739, %v2060
      %v2127 = vadd.f32 %v1740, %v2063
      %v2128 = vadd.f32 %v1741, %v2068
      %v2129 = vadd.f32 %v1742, %v2071
      %v2130 = vadd.f32 %v1743, %v2076
      %v2131 = vadd.f32 %v1744, %v2079
      %v2132 = vadd.f32 %v1745, %v2084
      %v2133 = vadd.f32 %v1746, %v2087
      %v2134 = vadd.f32 %v1747, %v2092
      %v2135 = vadd.f32 %v1748, %v2095
      %v2136 = vadd.f32 %v1749, %v2100
      %v2137 = vadd.f32 %v1750, %v2103
      %v2138 = vld [vmem:[%s1751] sm:$0xf]
      %v2139 = vld [vmem:[%s1751 + $0x4] sm:$0xf]
      %v2140 = vld [vmem:[%s1751 + $0x8] sm:$0x1]
      %v2141 = vld [vmem:[%s1751 + $0xc] sm:$0xf]
      %v2142 = vld [vmem:[%s1751 + $0x10] sm:$0xf]
      %v2143 = vld [vmem:[%s1751 + $0x14] sm:$0x1]
      %v2144 = vld [vmem:[%s1751 + $0x18] sm:$0xf]
      %v2145 = vld [vmem:[%s1751 + $0x1c] sm:$0xf]
      %v2146 = vld [vmem:[%s1751 + $0x20] sm:$0x1]
      %v2147 = vld [vmem:[%s1751 + $0x24] sm:$0xf]
      %v2148 = vld [vmem:[%s1751 + $0x28] sm:$0xf]
      %v2149 = vld [vmem:[%s1751 + $0x2c] sm:$0x1]
      %v2150 = vld [vmem:[%s1751 + $0x30] sm:$0xf]
      %v2151 = vld [vmem:[%s1751 + $0x34] sm:$0xf]
      %v2152 = vld [vmem:[%s1751 + $0x38] sm:$0x1]
      %v2153 = vld [vmem:[%s1751 + $0x3c] sm:$0xf]
      %v2154 = vld [vmem:[%s1751 + $0x40] sm:$0xf]
      %v2155 = vld [vmem:[%s1751 + $0x44] sm:$0x1]
      %v2156 = vld [vmem:[%s1751 + $0x48] sm:$0xf]
      %v2157 = vld [vmem:[%s1751 + $0x4c] sm:$0xf]
      %v2158 = vld [vmem:[%s1751 + $0x50] sm:$0x1]
      %v2159 = vld [vmem:[%s1751 + $0x54] sm:$0xf]
      %v2160 = vld [vmem:[%s1751 + $0x58] sm:$0xf]
      %v2161 = vld [vmem:[%s1751 + $0x5c] sm:$0x1]
      %v2162 = vld [vmem:[%s1751 + $0x60] sm:$0xf]
      %v2163 = vld [vmem:[%s1751 + $0x64] sm:$0xf]
      %v2164 = vld [vmem:[%s1751 + $0x68] sm:$0x1]
      %v2165 = vld [vmem:[%s1751 + $0x6c] sm:$0xf]
      %v2166 = vld [vmem:[%s1751 + $0x70] sm:$0xf]
      %v2167 = vld [vmem:[%s1751 + $0x74] sm:$0x1]
      %v2168 = vld [vmem:[%s1751 + $0x78] sm:$0xf]
      %v2169 = vld [vmem:[%s1751 + $0x7c] sm:$0xf]
      %v2170 = vld [vmem:[%s1751 + $0x80] sm:$0x1]
      %v2171 = vld [vmem:[%s1751 + $0x84] sm:$0xf]
      %v2172 = vld [vmem:[%s1751 + $0x88] sm:$0xf]
      %v2173 = vld [vmem:[%s1751 + $0x8c] sm:$0x1]
      %v2174 = vld [vmem:[%s1751 + $0x90] sm:$0xf]
      %v2175 = vld [vmem:[%s1751 + $0x94] sm:$0xf]
      %v2176 = vld [vmem:[%s1751 + $0x98] sm:$0x1]
      %v2177 = vld [vmem:[%s1751 + $0x9c] sm:$0xf]
      %v2178 = vld [vmem:[%s1751 + $0xa0] sm:$0xf]
      %v2179 = vld [vmem:[%s1751 + $0xa4] sm:$0x1]
      %v2180 = vld [vmem:[%s1751 + $0xa8] sm:$0xf]
      %v2181 = vld [vmem:[%s1751 + $0xac] sm:$0xf]
      %v2182 = vld [vmem:[%s1751 + $0xb0] sm:$0x1]
      %v2183 = vld [vmem:[%s1751 + $0xb4] sm:$0xf]
      %v2184 = vld [vmem:[%s1751 + $0xb8] sm:$0xf]
      %v2185 = vld [vmem:[%s1751 + $0xbc] sm:$0x1]
      %v2187 = vshrl.u32 %v2138, 16
      %v2189 = vrot.slane %v2187, 4
      %v2190 = vshll.u32 %v2138, 16
      %v2192 = vrot.slane %v2190, 5
      %v2193 = vor.u32 %v2189, %v2192
      %v2194 = vrot.slane %v2193, 4
      %v2196 = vshll.u32 %v2139, 16
      %v2198 = vrot.slane %v2196, 5
      %v2199 = vsel %vm277, %v2194, %v2198
      %v2200 = vshrl.u32 %v2139, 16
      %v2202 = vrot.slane %v2200, 4
      %v2203 = vor.u32 %v2202, %v2198
      %v2204 = vrot.slane %v2203, 4
      %v2206 = vshll.u32 %v2140, 16
      %v2208 = vrot.slane %v2206, 5
      %v2209 = vsel %vm277, %v2204, %v2208
      %v2211 = vshrl.u32 %v2141, 16
      %v2213 = vrot.slane %v2211, 4
      %v2214 = vshll.u32 %v2141, 16
      %v2216 = vrot.slane %v2214, 5
      %v2217 = vor.u32 %v2213, %v2216
      %v2218 = vrot.slane %v2217, 4
      %v2220 = vshll.u32 %v2142, 16
      %v2222 = vrot.slane %v2220, 5
      %v2223 = vsel %vm277, %v2218, %v2222
      %v2224 = vshrl.u32 %v2142, 16
      %v2226 = vrot.slane %v2224, 4
      %v2227 = vor.u32 %v2226, %v2222
      %v2228 = vrot.slane %v2227, 4
      %v2230 = vshll.u32 %v2143, 16
      %v2232 = vrot.slane %v2230, 5
      %v2233 = vsel %vm277, %v2228, %v2232
      %v2235 = vshrl.u32 %v2144, 16
      %v2237 = vrot.slane %v2235, 4
      %v2238 = vshll.u32 %v2144, 16
      %v2240 = vrot.slane %v2238, 5
      %v2241 = vor.u32 %v2237, %v2240
      %v2242 = vrot.slane %v2241, 4
      %v2244 = vshll.u32 %v2145, 16
      %v2246 = vrot.slane %v2244, 5
      %v2247 = vsel %vm277, %v2242, %v2246
      %v2248 = vshrl.u32 %v2145, 16
      %v2250 = vrot.slane %v2248, 4
      %v2251 = vor.u32 %v2250, %v2246
      %v2252 = vrot.slane %v2251, 4
      %v2254 = vshll.u32 %v2146, 16
      %v2256 = vrot.slane %v2254, 5
      %v2257 = vsel %vm277, %v2252, %v2256
      %v2259 = vshrl.u32 %v2147, 16
      %v2261 = vrot.slane %v2259, 4
      %v2262 = vshll.u32 %v2147, 16
      %v2264 = vrot.slane %v2262, 5
      %v2265 = vor.u32 %v2261, %v2264
      %v2266 = vrot.slane %v2265, 4
      %v2268 = vshll.u32 %v2148, 16
      %v2270 = vrot.slane %v2268, 5
      %v2271 = vsel %vm277, %v2266, %v2270
      %v2272 = vshrl.u32 %v2148, 16
      %v2274 = vrot.slane %v2272, 4
      %v2275 = vor.u32 %v2274, %v2270
      %v2276 = vrot.slane %v2275, 4
      %v2278 = vshll.u32 %v2149, 16
      %v2280 = vrot.slane %v2278, 5
      %v2281 = vsel %vm277, %v2276, %v2280
      %v2283 = vshrl.u32 %v2150, 16
      %v2285 = vrot.slane %v2283, 4
      %v2286 = vshll.u32 %v2150, 16
      %v2288 = vrot.slane %v2286, 5
      %v2289 = vor.u32 %v2285, %v2288
      %v2290 = vrot.slane %v2289, 4
      %v2292 = vshll.u32 %v2151, 16
      %v2294 = vrot.slane %v2292, 5
      %v2295 = vsel %vm277, %v2290, %v2294
      %v2296 = vshrl.u32 %v2151, 16
      %v2298 = vrot.slane %v2296, 4
      %v2299 = vor.u32 %v2298, %v2294
      %v2300 = vrot.slane %v2299, 4
      %v2302 = vshll.u32 %v2152, 16
      %v2304 = vrot.slane %v2302, 5
      %v2305 = vsel %vm277, %v2300, %v2304
      %v2307 = vshrl.u32 %v2153, 16
      %v2309 = vrot.slane %v2307, 4
      %v2310 = vshll.u32 %v2153, 16
      %v2312 = vrot.slane %v2310, 5
      %v2313 = vor.u32 %v2309, %v2312
      %v2314 = vrot.slane %v2313, 4
      %v2316 = vshll.u32 %v2154, 16
      %v2318 = vrot.slane %v2316, 5
      %v2319 = vsel %vm277, %v2314, %v2318
      %v2320 = vshrl.u32 %v2154, 16
      %v2322 = vrot.slane %v2320, 4
      %v2323 = vor.u32 %v2322, %v2318
      %v2324 = vrot.slane %v2323, 4
      %v2326 = vshll.u32 %v2155, 16
      %v2328 = vrot.slane %v2326, 5
      %v2329 = vsel %vm277, %v2324, %v2328
      %v2331 = vshrl.u32 %v2156, 16
      %v2333 = vrot.slane %v2331, 4
      %v2334 = vshll.u32 %v2156, 16
      %v2336 = vrot.slane %v2334, 5
      %v2337 = vor.u32 %v2333, %v2336
      %v2338 = vrot.slane %v2337, 4
      %v2340 = vshll.u32 %v2157, 16
      %v2342 = vrot.slane %v2340, 5
      %v2343 = vsel %vm277, %v2338, %v2342
      %v2344 = vshrl.u32 %v2157, 16
      %v2346 = vrot.slane %v2344, 4
      %v2347 = vor.u32 %v2346, %v2342
      %v2348 = vrot.slane %v2347, 4
      %v2350 = vshll.u32 %v2158, 16
      %v2352 = vrot.slane %v2350, 5
      %v2353 = vsel %vm277, %v2348, %v2352
      %v2355 = vshrl.u32 %v2159, 16
      %v2357 = vrot.slane %v2355, 4
      %v2358 = vshll.u32 %v2159, 16
      %v2360 = vrot.slane %v2358, 5
      %v2361 = vor.u32 %v2357, %v2360
      %v2362 = vrot.slane %v2361, 4
      %v2364 = vshll.u32 %v2160, 16
      %v2366 = vrot.slane %v2364, 5
      %v2367 = vsel %vm277, %v2362, %v2366
      %v2368 = vshrl.u32 %v2160, 16
      %v2370 = vrot.slane %v2368, 4
      %v2371 = vor.u32 %v2370, %v2366
      %v2372 = vrot.slane %v2371, 4
      %v2374 = vshll.u32 %v2161, 16
      %v2376 = vrot.slane %v2374, 5
      %v2377 = vsel %vm277, %v2372, %v2376
      %v2379 = vshrl.u32 %v2162, 16
      %v2381 = vrot.slane %v2379, 4
      %v2382 = vshll.u32 %v2162, 16
      %v2384 = vrot.slane %v2382, 5
      %v2385 = vor.u32 %v2381, %v2384
      %v2386 = vrot.slane %v2385, 4
      %v2388 = vshll.u32 %v2163, 16
      %v2390 = vrot.slane %v2388, 5
      %v2391 = vsel %vm277, %v2386, %v2390
      %v2392 = vshrl.u32 %v2163, 16
      %v2394 = vrot.slane %v2392, 4
      %v2395 = vor.u32 %v2394, %v2390
      %v2396 = vrot.slane %v2395, 4
      %v2398 = vshll.u32 %v2164, 16
      %v2400 = vrot.slane %v2398, 5
      %v2401 = vsel %vm277, %v2396, %v2400
      %v2403 = vshrl.u32 %v2165, 16
      %v2405 = vrot.slane %v2403, 4
      %v2406 = vshll.u32 %v2165, 16
      %v2408 = vrot.slane %v2406, 5
      %v2409 = vor.u32 %v2405, %v2408
      %v2410 = vrot.slane %v2409, 4
      %v2412 = vshll.u32 %v2166, 16
      %v2414 = vrot.slane %v2412, 5
      %v2415 = vsel %vm277, %v2410, %v2414
      %v2416 = vshrl.u32 %v2166, 16
      %v2418 = vrot.slane %v2416, 4
      %v2419 = vor.u32 %v2418, %v2414
      %v2420 = vrot.slane %v2419, 4
      %v2422 = vshll.u32 %v2167, 16
      %v2424 = vrot.slane %v2422, 5
      %v2425 = vsel %vm277, %v2420, %v2424
      %v2427 = vshrl.u32 %v2168, 16
      %v2429 = vrot.slane %v2427, 4
      %v2430 = vshll.u32 %v2168, 16
      %v2432 = vrot.slane %v2430, 5
      %v2433 = vor.u32 %v2429, %v2432
      %v2434 = vrot.slane %v2433, 4
      %v2436 = vshll.u32 %v2169, 16
      %v2438 = vrot.slane %v2436, 5
      %v2439 = vsel %vm277, %v2434, %v2438
      %v2440 = vshrl.u32 %v2169, 16
      %v2442 = vrot.slane %v2440, 4
      %v2443 = vor.u32 %v2442, %v2438
      %v2444 = vrot.slane %v2443, 4
      %v2446 = vshll.u32 %v2170, 16
      %v2448 = vrot.slane %v2446, 5
      %v2449 = vsel %vm277, %v2444, %v2448
      %v2451 = vshrl.u32 %v2171, 16
      %v2453 = vrot.slane %v2451, 4
      %v2454 = vshll.u32 %v2171, 16
      %v2456 = vrot.slane %v2454, 5
      %v2457 = vor.u32 %v2453, %v2456
      %v2458 = vrot.slane %v2457, 4
      %v2460 = vshll.u32 %v2172, 16
      %v2462 = vrot.slane %v2460, 5
      %v2463 = vsel %vm277, %v2458, %v2462
      %v2464 = vshrl.u32 %v2172, 16
      %v2466 = vrot.slane %v2464, 4
      %v2467 = vor.u32 %v2466, %v2462
      %v2468 = vrot.slane %v2467, 4
      %v2470 = vshll.u32 %v2173, 16
      %v2472 = vrot.slane %v2470, 5
      %v2473 = vsel %vm277, %v2468, %v2472
      %v2475 = vshrl.u32 %v2174, 16
      %v2477 = vrot.slane %v2475, 4
      %v2478 = vshll.u32 %v2174, 16
      %v2480 = vrot.slane %v2478, 5
      %v2481 = vor.u32 %v2477, %v2480
      %v2482 = vrot.slane %v2481, 4
      %v2484 = vshll.u32 %v2175, 16
      %v2486 = vrot.slane %v2484, 5
      %v2487 = vsel %vm277, %v2482, %v2486
      %v2488 = vshrl.u32 %v2175, 16
      %v2490 = vrot.slane %v2488, 4
      %v2491 = vor.u32 %v2490, %v2486
      %v2492 = vrot.slane %v2491, 4
      %v2494 = vshll.u32 %v2176, 16
      %v2496 = vrot.slane %v2494, 5
      %v2497 = vsel %vm277, %v2492, %v2496
      %v2499 = vshrl.u32 %v2177, 16
      %v2501 = vrot.slane %v2499, 4
      %v2502 = vshll.u32 %v2177, 16
      %v2504 = vrot.slane %v2502, 5
      %v2505 = vor.u32 %v2501, %v2504
      %v2506 = vrot.slane %v2505, 4
      %v2508 = vshll.u32 %v2178, 16
      %v2510 = vrot.slane %v2508, 5
      %v2511 = vsel %vm277, %v2506, %v2510
      %v2512 = vshrl.u32 %v2178, 16
      %v2514 = vrot.slane %v2512, 4
      %v2515 = vor.u32 %v2514, %v2510
      %v2516 = vrot.slane %v2515, 4
      %v2518 = vshll.u32 %v2179, 16
      %v2520 = vrot.slane %v2518, 5
      %v2521 = vsel %vm277, %v2516, %v2520
      %v2523 = vshrl.u32 %v2180, 16
      %v2525 = vrot.slane %v2523, 4
      %v2526 = vshll.u32 %v2180, 16
      %v2528 = vrot.slane %v2526, 5
      %v2529 = vor.u32 %v2525, %v2528
      %v2530 = vrot.slane %v2529, 4
      %v2532 = vshll.u32 %v2181, 16
      %v2534 = vrot.slane %v2532, 5
      %v2535 = vsel %vm277, %v2530, %v2534
      %v2536 = vshrl.u32 %v2181, 16
      %v2538 = vrot.slane %v2536, 4
      %v2539 = vor.u32 %v2538, %v2534
      %v2540 = vrot.slane %v2539, 4
      %v2542 = vshll.u32 %v2182, 16
      %v2544 = vrot.slane %v2542, 5
      %v2545 = vsel %vm277, %v2540, %v2544
      %v2547 = vshrl.u32 %v2183, 16
      %v2549 = vrot.slane %v2547, 4
      %v2550 = vshll.u32 %v2183, 16
      %v2552 = vrot.slane %v2550, 5
      %v2553 = vor.u32 %v2549, %v2552
      %v2554 = vrot.slane %v2553, 4
      %v2556 = vshll.u32 %v2184, 16
      %v2558 = vrot.slane %v2556, 5
      %v2559 = vsel %vm277, %v2554, %v2558
      %v2560 = vshrl.u32 %v2184, 16
      %v2562 = vrot.slane %v2560, 4
      %v2563 = vor.u32 %v2562, %v2558
      %v2564 = vrot.slane %v2563, 4
      %v2566 = vshll.u32 %v2185, 16
      %v2568 = vrot.slane %v2566, 5
      %v2569 = vsel %vm277, %v2564, %v2568
      %s2570 = scalar_lea.vmem %s1, 128
      %v2571 = vld [vmem:[%s2570] sm:$0xf]
      %v2572 = vld [vmem:[%s2570 + $0x4] sm:$0xf]
      %v2573 = vld [vmem:[%s2570 + $0x8] sm:$0xf]
      %v2574 = vld [vmem:[%s2570 + $0xc] sm:$0xf]
      %v2575 = vld [vmem:[%s2570 + $0x10] sm:$0xf]
      %v2576 = vld [vmem:[%s2570 + $0x14] sm:$0xf]
      %v2577 = vld [vmem:[%s2570 + $0x18] sm:$0xf]
      %v2578 = vld [vmem:[%s2570 + $0x1c] sm:$0xf]
      %v2579 = vunpack.c.l.b16 %v2199
      %v2580 = vunpack.c.l.b16 %v2209
      %v2581 = vunpack.c.l.b16 %v2223
      %v2582 = vunpack.c.l.b16 %v2233
      %v2583 = vunpack.c.l.b16 %v2247
      %v2584 = vunpack.c.l.b16 %v2257
      %v2585 = vunpack.c.l.b16 %v2271
      %v2586 = vunpack.c.l.b16 %v2281
      %v2587 = vunpack.c.l.b16 %v2295
      %v2588 = vunpack.c.l.b16 %v2305
      %v2589 = vunpack.c.l.b16 %v2319
      %v2590 = vunpack.c.l.b16 %v2329
      %v2591 = vunpack.c.l.b16 %v2343
      %v2592 = vunpack.c.l.b16 %v2353
      %v2593 = vunpack.c.l.b16 %v2367
      %v2594 = vunpack.c.l.b16 %v2377
      %v2595 = vunpack.c.l.b16 %v2391
      %v2596 = vunpack.c.l.b16 %v2401
      %v2597 = vunpack.c.l.b16 %v2415
      %v2598 = vunpack.c.l.b16 %v2425
      %v2599 = vunpack.c.l.b16 %v2439
      %v2600 = vunpack.c.l.b16 %v2449
      %v2601 = vunpack.c.l.b16 %v2463
      %v2602 = vunpack.c.l.b16 %v2473
      %v2603 = vunpack.c.l.b16 %v2487
      %v2604 = vunpack.c.l.b16 %v2497
      %v2605 = vunpack.c.l.b16 %v2511
      %v2606 = vunpack.c.l.b16 %v2521
      %v2607 = vunpack.c.l.b16 %v2535
      %v2608 = vunpack.c.l.b16 %v2545
      %v2609 = vunpack.c.l.b16 %v2559
      %v2610 = vunpack.c.l.b16 %v2569
      %v2611 = vpack.c.b16 %v2580, %v2579
      %v2612 = vpack.c.b16 %v2582, %v2581
      %v2613 = vpack.c.b16 %v2584, %v2583
      %v2614 = vpack.c.b16 %v2586, %v2585
      %v2615 = vpack.c.b16 %v2588, %v2587
      %v2616 = vpack.c.b16 %v2590, %v2589
      %v2617 = vpack.c.b16 %v2592, %v2591
      %v2618 = vpack.c.b16 %v2594, %v2593
      %v2619 = vpack.c.b16 %v2596, %v2595
      %v2620 = vpack.c.b16 %v2598, %v2597
      %v2621 = vpack.c.b16 %v2600, %v2599
      %v2622 = vpack.c.b16 %v2602, %v2601
      %v2623 = vpack.c.b16 %v2604, %v2603
      %v2624 = vpack.c.b16 %v2606, %v2605
      %v2625 = vpack.c.b16 %v2608, %v2607
      %v2626 = vpack.c.b16 %v2610, %v2609
      %v2635 = vunpack.c.l.b16 %v2571
      %v2636 = vunpack.c.l.b16 %v2572
      %v2637 = vunpack.c.l.b16 %v2573
      %v2638 = vunpack.c.l.b16 %v2574
      %v2639 = vunpack.c.l.b16 %v2575
      %v2640 = vunpack.c.l.b16 %v2576
      %v2641 = vunpack.c.l.b16 %v2577
      %v2642 = vunpack.c.l.b16 %v2578
      %v2643 = vpack.c.b16 %v2636, %v2635
      %v2644 = vpack.c.b16 %v2638, %v2637
      %v2645 = vpack.c.b16 %v2640, %v2639
      %v2646 = vpack.c.b16 %v2642, %v2641
      %v2652 = vsel %vm743, %v2611, 0
      %v2655 = vsel %vm743, %v2612, 0
      %v2658 = vsel %vm743, %v2613, 0
      %v2661 = vsel %vm743, %v2614, 0
      %v2664 = vsel %vm743, %v2615, 0
      %v2667 = vsel %vm743, %v2616, 0
      %v2670 = vsel %vm743, %v2617, 0
      %v2673 = vsel %vm743, %v2618, 0
      %v2676 = vsel %vm743, %v2619, 0
      %v2679 = vsel %vm743, %v2620, 0
      %v2682 = vsel %vm743, %v2621, 0
      %v2685 = vsel %vm743, %v2622, 0
      %v2688 = vsel %vm743, %v2623, 0
      %v2691 = vsel %vm743, %v2624, 0
      %v2694 = vsel %vm743, %v2625, 0
      %v2697 = vsel %vm743, %v2626, 0
      %2699 = vmatprep.subr.bf16.mxu0 0
      %2700 = vmatpush1.bf16.msra.mxu0 0
      %2701 = vmatprep.subr.bf16.mxu0 0
      %2702 = vmatpush1.bf16.msra.mxu0 0
      %2703 = vmatprep.subr.bf16.mxu0 0
      %2704 = vmatpush1.bf16.msra.mxu0 0
      %2705 = vmatprep.subr.bf16.mxu0 0
      %2706 = vmatpush1.bf16.msra.mxu0 0
      %2707 = vmatprep.subr.bf16.mxu0 0
      %2708 = vmatpush1.bf16.msra.mxu0 %v2646
      %2709 = vmatprep.subr.bf16.mxu0 0
      %2710 = vmatpush1.bf16.msra.mxu0 %v2645
      %2711 = vmatprep.subr.bf16.mxu0 0
      %2712 = vmatpush1.bf16.msra.mxu0 %v2644
      %2713 = vmatprep.subr.bf16.mxu0 0
      %2714 = vmatpush1.bf16.msra.mxu0 %v2643
      %2715 = vmatprep.subr.bf16.mxu0 0
      %2716 = vmatpush2.bf16.msra.mxu0 0
      %2717 = vmatprep.subr.bf16.mxu0 0
      %2718 = vmatpush2.bf16.msra.mxu0 0
      %2719 = vmatprep.subr.bf16.mxu0 0
      %2720 = vmatpush2.bf16.msra.mxu0 0
      %2721 = vmatprep.subr.bf16.mxu0 0
      %2722 = vmatpush2.bf16.msra.mxu0 0
      %2723 = vmatprep.subr.bf16.mxu0 0
      %2724 = vmatpush2.bf16.msra.mxu0 0
      %2725 = vmatprep.subr.bf16.mxu0 0
      %2726 = vmatpush2.bf16.msra.mxu0 0
      %2727 = vmatprep.subr.bf16.mxu0 0
      %2728 = vmatpush2.bf16.msra.mxu0 0
      %2729 = vmatprep.subr.bf16.mxu0 0
      %2730 = vmatpush2.bf16.msra.mxu0 0
      %2731 = vmatprep.mubr.bf16.mxu0 0
      %2732 = vmatmul.mubr.bf16.gmra.mxu0 %v2652
      %v2733 = vpop.f32.mrf.mxu0
      %v2734 = vadd.f32 0.0, %v2733
      %v2735 = vpop.f32.mrf.mxu0
      %v2736 = vpop.f32.mrf.mxu0
      %v2737 = vadd.f32 0.0, %v2736
      %v2738 = vpop.f32.mrf.mxu0
      %2739 = vmatprep.mubr.bf16.mxu0 0
      %2740 = vmatmul.mubr.bf16.gmra.mxu0 %v2655
      %v2741 = vpop.f32.mrf.mxu0
      %v2742 = vadd.f32 0.0, %v2741
      %v2743 = vpop.f32.mrf.mxu0
      %v2744 = vpop.f32.mrf.mxu0
      %v2745 = vadd.f32 0.0, %v2744
      %v2746 = vpop.f32.mrf.mxu0
      %2747 = vmatprep.mubr.bf16.mxu0 0
      %2748 = vmatmul.mubr.bf16.gmra.mxu0 %v2658
      %v2749 = vpop.f32.mrf.mxu0
      %v2750 = vadd.f32 0.0, %v2749
      %v2751 = vpop.f32.mrf.mxu0
      %v2752 = vpop.f32.mrf.mxu0
      %v2753 = vadd.f32 0.0, %v2752
      %v2754 = vpop.f32.mrf.mxu0
      %2755 = vmatprep.mubr.bf16.mxu0 0
      %2756 = vmatmul.mubr.bf16.gmra.mxu0 %v2661
      %v2757 = vpop.f32.mrf.mxu0
      %v2758 = vadd.f32 0.0, %v2757
      %v2759 = vpop.f32.mrf.mxu0
      %v2760 = vpop.f32.mrf.mxu0
      %v2761 = vadd.f32 0.0, %v2760
      %v2762 = vpop.f32.mrf.mxu0
      %2763 = vmatprep.mubr.bf16.mxu0 0
      %2764 = vmatmul.mubr.bf16.gmra.mxu0 %v2664
      %v2765 = vpop.f32.mrf.mxu0
      %v2766 = vadd.f32 0.0, %v2765
      %v2767 = vpop.f32.mrf.mxu0
      %v2768 = vpop.f32.mrf.mxu0
      %v2769 = vadd.f32 0.0, %v2768
      %v2770 = vpop.f32.mrf.mxu0
      %2771 = vmatprep.mubr.bf16.mxu0 0
      %2772 = vmatmul.mubr.bf16.gmra.mxu0 %v2667
      %v2773 = vpop.f32.mrf.mxu0
      %v2774 = vadd.f32 0.0, %v2773
      %v2775 = vpop.f32.mrf.mxu0
      %v2776 = vpop.f32.mrf.mxu0
      %v2777 = vadd.f32 0.0, %v2776
      %v2778 = vpop.f32.mrf.mxu0
      %2779 = vmatprep.mubr.bf16.mxu0 0
      %2780 = vmatmul.mubr.bf16.gmra.mxu0 %v2670
      %v2781 = vpop.f32.mrf.mxu0
      %v2782 = vadd.f32 0.0, %v2781
      %v2783 = vpop.f32.mrf.mxu0
      %v2784 = vpop.f32.mrf.mxu0
      %v2785 = vadd.f32 0.0, %v2784
      %v2786 = vpop.f32.mrf.mxu0
      %2787 = vmatprep.mubr.bf16.mxu0 0
      %2788 = vmatmul.mubr.bf16.gmra.mxu0 %v2673
      %v2789 = vpop.f32.mrf.mxu0
      %v2790 = vadd.f32 0.0, %v2789
      %v2791 = vpop.f32.mrf.mxu0
      %v2792 = vpop.f32.mrf.mxu0
      %v2793 = vadd.f32 0.0, %v2792
      %v2794 = vpop.f32.mrf.mxu0
      %2795 = vmatprep.mubr.bf16.mxu0 0
      %2796 = vmatmul.mubr.bf16.gmra.mxu0 %v2676
      %v2797 = vpop.f32.mrf.mxu0
      %v2798 = vadd.f32 0.0, %v2797
      %v2799 = vpop.f32.mrf.mxu0
      %v2800 = vpop.f32.mrf.mxu0
      %v2801 = vadd.f32 0.0, %v2800
      %v2802 = vpop.f32.mrf.mxu0
      %2803 = vmatprep.mubr.bf16.mxu0 0
      %2804 = vmatmul.mubr.bf16.gmra.mxu0 %v2679
      %v2805 = vpop.f32.mrf.mxu0
      %v2806 = vadd.f32 0.0, %v2805
      %v2807 = vpop.f32.mrf.mxu0
      %v2808 = vpop.f32.mrf.mxu0
      %v2809 = vadd.f32 0.0, %v2808
      %v2810 = vpop.f32.mrf.mxu0
      %2811 = vmatprep.mubr.bf16.mxu0 0
      %2812 = vmatmul.mubr.bf16.gmra.mxu0 %v2682
      %v2813 = vpop.f32.mrf.mxu0
      %v2814 = vadd.f32 0.0, %v2813
      %v2815 = vpop.f32.mrf.mxu0
      %v2816 = vpop.f32.mrf.mxu0
      %v2817 = vadd.f32 0.0, %v2816
      %v2818 = vpop.f32.mrf.mxu0
      %2819 = vmatprep.mubr.bf16.mxu0 0
      %2820 = vmatmul.mubr.bf16.gmra.mxu0 %v2685
      %v2821 = vpop.f32.mrf.mxu0
      %v2822 = vadd.f32 0.0, %v2821
      %v2823 = vpop.f32.mrf.mxu0
      %v2824 = vpop.f32.mrf.mxu0
      %v2825 = vadd.f32 0.0, %v2824
      %v2826 = vpop.f32.mrf.mxu0
      %2827 = vmatprep.mubr.bf16.mxu0 0
      %2828 = vmatmul.mubr.bf16.gmra.mxu0 %v2688
      %v2829 = vpop.f32.mrf.mxu0
      %v2830 = vadd.f32 0.0, %v2829
      %v2831 = vpop.f32.mrf.mxu0
      %v2832 = vpop.f32.mrf.mxu0
      %v2833 = vadd.f32 0.0, %v2832
      %v2834 = vpop.f32.mrf.mxu0
      %2835 = vmatprep.mubr.bf16.mxu0 0
      %2836 = vmatmul.mubr.bf16.gmra.mxu0 %v2691
      %v2837 = vpop.f32.mrf.mxu0
      %v2838 = vadd.f32 0.0, %v2837
      %v2839 = vpop.f32.mrf.mxu0
      %v2840 = vpop.f32.mrf.mxu0
      %v2841 = vadd.f32 0.0, %v2840
      %v2842 = vpop.f32.mrf.mxu0
      %2843 = vmatprep.mubr.bf16.mxu0 0
      %2844 = vmatmul.mubr.bf16.gmra.mxu0 %v2694
      %v2845 = vpop.f32.mrf.mxu0
      %v2846 = vadd.f32 0.0, %v2845
      %v2847 = vpop.f32.mrf.mxu0
      %v2848 = vpop.f32.mrf.mxu0
      %v2849 = vadd.f32 0.0, %v2848
      %v2850 = vpop.f32.mrf.mxu0
      %2851 = vmatprep.mubr.bf16.mxu0 0
      %2852 = vmatmul.mubr.bf16.gmra.mxu0 %v2697
      %v2853 = vpop.f32.mrf.mxu0
      %v2854 = vadd.f32 0.0, %v2853
      %v2855 = vpop.f32.mrf.mxu0
      %v2856 = vpop.f32.mrf.mxu0
      %v2857 = vadd.f32 0.0, %v2856
      %v2858 = vpop.f32.mrf.mxu0
      %2859 = vdwg.mxu0
      %v2860 = vadd.f32 %v2106, %v2734
      %v2861 = vadd.f32 %v2107, %v2737
      %v2862 = vadd.f32 %v2108, %v2742
      %v2863 = vadd.f32 %v2109, %v2745
      %v2864 = vadd.f32 %v2110, %v2750
      %v2865 = vadd.f32 %v2111, %v2753
      %v2866 = vadd.f32 %v2112, %v2758
      %v2867 = vadd.f32 %v2113, %v2761
      %v2868 = vadd.f32 %v2114, %v2766
      %v2869 = vadd.f32 %v2115, %v2769
      %v2870 = vadd.f32 %v2116, %v2774
      %v2871 = vadd.f32 %v2117, %v2777
      %v2872 = vadd.f32 %v2118, %v2782
      %v2873 = vadd.f32 %v2119, %v2785
      %v2874 = vadd.f32 %v2120, %v2790
      %v2875 = vadd.f32 %v2121, %v2793
      %v2876 = vadd.f32 %v2122, %v2798
      %v2877 = vadd.f32 %v2123, %v2801
      %v2878 = vadd.f32 %v2124, %v2806
      %v2879 = vadd.f32 %v2125, %v2809
      %v2880 = vadd.f32 %v2126, %v2814
      %v2881 = vadd.f32 %v2127, %v2817
      %v2882 = vadd.f32 %v2128, %v2822
      %v2883 = vadd.f32 %v2129, %v2825
      %v2884 = vadd.f32 %v2130, %v2830
      %v2885 = vadd.f32 %v2131, %v2833
      %v2886 = vadd.f32 %v2132, %v2838
      %v2887 = vadd.f32 %v2133, %v2841
      %v2888 = vadd.f32 %v2134, %v2846
      %v2889 = vadd.f32 %v2135, %v2849
      %v2890 = vadd.f32 %v2136, %v2854
      %v2891 = vadd.f32 %v2137, %v2857
      %v2892 = vld [vmem:[%s1751] sm:$0xe]
      %v2893 = vld [vmem:[%s1751 + $0xc] sm:$0xe]
      %v2894 = vld [vmem:[%s1751 + $0x18] sm:$0xe]
      %v2895 = vld [vmem:[%s1751 + $0x24] sm:$0xe]
      %v2896 = vld [vmem:[%s1751 + $0x30] sm:$0xe]
      %v2897 = vld [vmem:[%s1751 + $0x3c] sm:$0xe]
      %v2898 = vld [vmem:[%s1751 + $0x48] sm:$0xe]
      %v2899 = vld [vmem:[%s1751 + $0x54] sm:$0xe]
      %v2900 = vld [vmem:[%s1751 + $0x60] sm:$0xe]
      %v2901 = vld [vmem:[%s1751 + $0x6c] sm:$0xe]
      %v2902 = vld [vmem:[%s1751 + $0x78] sm:$0xe]
      %v2903 = vld [vmem:[%s1751 + $0x84] sm:$0xe]
      %v2904 = vld [vmem:[%s1751 + $0x90] sm:$0xe]
      %v2905 = vld [vmem:[%s1751 + $0x9c] sm:$0xe]
      %v2906 = vld [vmem:[%s1751 + $0xa8] sm:$0xe]
      %v2907 = vld [vmem:[%s1751 + $0xb4] sm:$0xe]
      %v2956 = vrot.slane %v2892, 5
      %v2957 = vrot.slane %v2956, 4
      %v2958 = vrot.slane %v2139, 5
      %v2959 = vsel %vm1316, %v2957, %v2958
      %v2960 = vrot.slane %v2958, 4
      %v2961 = vrot.slane %v2140, 5
      %v2962 = vsel %vm1316, %v2960, %v2961
      %v2963 = vrot.slane %v2893, 5
      %v2964 = vrot.slane %v2963, 4
      %v2965 = vrot.slane %v2142, 5
      %v2966 = vsel %vm1316, %v2964, %v2965
      %v2967 = vrot.slane %v2965, 4
      %v2968 = vrot.slane %v2143, 5
      %v2969 = vsel %vm1316, %v2967, %v2968
      %v2970 = vrot.slane %v2894, 5
      %v2971 = vrot.slane %v2970, 4
      %v2972 = vrot.slane %v2145, 5
      %v2973 = vsel %vm1316, %v2971, %v2972
      %v2974 = vrot.slane %v2972, 4
      %v2975 = vrot.slane %v2146, 5
      %v2976 = vsel %vm1316, %v2974, %v2975
      %v2977 = vrot.slane %v2895, 5
      %v2978 = vrot.slane %v2977, 4
      %v2979 = vrot.slane %v2148, 5
      %v2980 = vsel %vm1316, %v2978, %v2979
      %v2981 = vrot.slane %v2979, 4
      %v2982 = vrot.slane %v2149, 5
      %v2983 = vsel %vm1316, %v2981, %v2982
      %v2984 = vrot.slane %v2896, 5
      %v2985 = vrot.slane %v2984, 4
      %v2986 = vrot.slane %v2151, 5
      %v2987 = vsel %vm1316, %v2985, %v2986
      %v2988 = vrot.slane %v2986, 4
      %v2989 = vrot.slane %v2152, 5
      %v2990 = vsel %vm1316, %v2988, %v2989
      %v2991 = vrot.slane %v2897, 5
      %v2992 = vrot.slane %v2991, 4
      %v2993 = vrot.slane %v2154, 5
      %v2994 = vsel %vm1316, %v2992, %v2993
      %v2995 = vrot.slane %v2993, 4
      %v2996 = vrot.slane %v2155, 5
      %v2997 = vsel %vm1316, %v2995, %v2996
      %v2998 = vrot.slane %v2898, 5
      %v2999 = vrot.slane %v2998, 4
      %v3000 = vrot.slane %v2157, 5
      %v3001 = vsel %vm1316, %v2999, %v3000
      %v3002 = vrot.slane %v3000, 4
      %v3003 = vrot.slane %v2158, 5
      %v3004 = vsel %vm1316, %v3002, %v3003
      %v3005 = vrot.slane %v2899, 5
      %v3006 = vrot.slane %v3005, 4
      %v3007 = vrot.slane %v2160, 5
      %v3008 = vsel %vm1316, %v3006, %v3007
      %v3009 = vrot.slane %v3007, 4
      %v3010 = vrot.slane %v2161, 5
      %v3011 = vsel %vm1316, %v3009, %v3010
      %v3012 = vrot.slane %v2900, 5
      %v3013 = vrot.slane %v3012, 4
      %v3014 = vrot.slane %v2163, 5
      %v3015 = vsel %vm1316, %v3013, %v3014
      %v3016 = vrot.slane %v3014, 4
      %v3017 = vrot.slane %v2164, 5
      %v3018 = vsel %vm1316, %v3016, %v3017
      %v3019 = vrot.slane %v2901, 5
      %v3020 = vrot.slane %v3019, 4
      %v3021 = vrot.slane %v2166, 5
      %v3022 = vsel %vm1316, %v3020, %v3021
      %v3023 = vrot.slane %v3021, 4
      %v3024 = vrot.slane %v2167, 5
      %v3025 = vsel %vm1316, %v3023, %v3024
      %v3026 = vrot.slane %v2902, 5
      %v3027 = vrot.slane %v3026, 4
      %v3028 = vrot.slane %v2169, 5
      %v3029 = vsel %vm1316, %v3027, %v3028
      %v3030 = vrot.slane %v3028, 4
      %v3031 = vrot.slane %v2170, 5
      %v3032 = vsel %vm1316, %v3030, %v3031
      %v3033 = vrot.slane %v2903, 5
      %v3034 = vrot.slane %v3033, 4
      %v3035 = vrot.slane %v2172, 5
      %v3036 = vsel %vm1316, %v3034, %v3035
      %v3037 = vrot.slane %v3035, 4
      %v3038 = vrot.slane %v2173, 5
      %v3039 = vsel %vm1316, %v3037, %v3038
      %v3040 = vrot.slane %v2904, 5
      %v3041 = vrot.slane %v3040, 4
      %v3042 = vrot.slane %v2175, 5
      %v3043 = vsel %vm1316, %v3041, %v3042
      %v3044 = vrot.slane %v3042, 4
      %v3045 = vrot.slane %v2176, 5
      %v3046 = vsel %vm1316, %v3044, %v3045
      %v3047 = vrot.slane %v2905, 5
      %v3048 = vrot.slane %v3047, 4
      %v3049 = vrot.slane %v2178, 5
      %v3050 = vsel %vm1316, %v3048, %v3049
      %v3051 = vrot.slane %v3049, 4
      %v3052 = vrot.slane %v2179, 5
      %v3053 = vsel %vm1316, %v3051, %v3052
      %v3054 = vrot.slane %v2906, 5
      %v3055 = vrot.slane %v3054, 4
      %v3056 = vrot.slane %v2181, 5
      %v3057 = vsel %vm1316, %v3055, %v3056
      %v3058 = vrot.slane %v3056, 4
      %v3059 = vrot.slane %v2182, 5
      %v3060 = vsel %vm1316, %v3058, %v3059
      %v3061 = vrot.slane %v2907, 5
      %v3062 = vrot.slane %v3061, 4
      %v3063 = vrot.slane %v2184, 5
      %v3064 = vsel %vm1316, %v3062, %v3063
      %v3065 = vrot.slane %v3063, 4
      %v3066 = vrot.slane %v2185, 5
      %v3067 = vsel %vm1316, %v3065, %v3066
      %s3068 = scalar_lea.vmem %s1, 160
      %v3069 = vld [vmem:[%s3068] sm:$0xf]
      %v3070 = vld [vmem:[%s3068 + $0x4] sm:$0xf]
      %v3071 = vld [vmem:[%s3068 + $0x8] sm:$0xf]
      %v3072 = vld [vmem:[%s3068 + $0xc] sm:$0xf]
      %v3073 = vld [vmem:[%s3068 + $0x10] sm:$0xf]
      %v3074 = vld [vmem:[%s3068 + $0x14] sm:$0xf]
      %v3075 = vld [vmem:[%s3068 + $0x18] sm:$0xf]
      %v3076 = vld [vmem:[%s3068 + $0x1c] sm:$0xf]
      %v3077 = vunpack.c.l.b16 %v2959
      %v3078 = vunpack.c.l.b16 %v2962
      %v3079 = vunpack.c.l.b16 %v2966
      %v3080 = vunpack.c.l.b16 %v2969
      %v3081 = vunpack.c.l.b16 %v2973
      %v3082 = vunpack.c.l.b16 %v2976
      %v3083 = vunpack.c.l.b16 %v2980
      %v3084 = vunpack.c.l.b16 %v2983
      %v3085 = vunpack.c.l.b16 %v2987
      %v3086 = vunpack.c.l.b16 %v2990
      %v3087 = vunpack.c.l.b16 %v2994
      %v3088 = vunpack.c.l.b16 %v2997
      %v3089 = vunpack.c.l.b16 %v3001
      %v3090 = vunpack.c.l.b16 %v3004
      %v3091 = vunpack.c.l.b16 %v3008
      %v3092 = vunpack.c.l.b16 %v3011
      %v3093 = vunpack.c.l.b16 %v3015
      %v3094 = vunpack.c.l.b16 %v3018
      %v3095 = vunpack.c.l.b16 %v3022
      %v3096 = vunpack.c.l.b16 %v3025
      %v3097 = vunpack.c.l.b16 %v3029
      %v3098 = vunpack.c.l.b16 %v3032
      %v3099 = vunpack.c.l.b16 %v3036
      %v3100 = vunpack.c.l.b16 %v3039
      %v3101 = vunpack.c.l.b16 %v3043
      %v3102 = vunpack.c.l.b16 %v3046
      %v3103 = vunpack.c.l.b16 %v3050
      %v3104 = vunpack.c.l.b16 %v3053
      %v3105 = vunpack.c.l.b16 %v3057
      %v3106 = vunpack.c.l.b16 %v3060
      %v3107 = vunpack.c.l.b16 %v3064
      %v3108 = vunpack.c.l.b16 %v3067
      %v3109 = vpack.c.b16 %v3078, %v3077
      %v3110 = vpack.c.b16 %v3080, %v3079
      %v3111 = vpack.c.b16 %v3082, %v3081
      %v3112 = vpack.c.b16 %v3084, %v3083
      %v3113 = vpack.c.b16 %v3086, %v3085
      %v3114 = vpack.c.b16 %v3088, %v3087
      %v3115 = vpack.c.b16 %v3090, %v3089
      %v3116 = vpack.c.b16 %v3092, %v3091
      %v3117 = vpack.c.b16 %v3094, %v3093
      %v3118 = vpack.c.b16 %v3096, %v3095
      %v3119 = vpack.c.b16 %v3098, %v3097
      %v3120 = vpack.c.b16 %v3100, %v3099
      %v3121 = vpack.c.b16 %v3102, %v3101
      %v3122 = vpack.c.b16 %v3104, %v3103
      %v3123 = vpack.c.b16 %v3106, %v3105
      %v3124 = vpack.c.b16 %v3108, %v3107
      %v3133 = vunpack.c.l.b16 %v3069
      %v3134 = vunpack.c.l.b16 %v3070
      %v3135 = vunpack.c.l.b16 %v3071
      %v3136 = vunpack.c.l.b16 %v3072
      %v3137 = vunpack.c.l.b16 %v3073
      %v3138 = vunpack.c.l.b16 %v3074
      %v3139 = vunpack.c.l.b16 %v3075
      %v3140 = vunpack.c.l.b16 %v3076
      %v3141 = vpack.c.b16 %v3134, %v3133
      %v3142 = vpack.c.b16 %v3136, %v3135
      %v3143 = vpack.c.b16 %v3138, %v3137
      %v3144 = vpack.c.b16 %v3140, %v3139
      %v3150 = vsel %vm743, %v3109, 0
      %v3153 = vsel %vm743, %v3110, 0
      %v3156 = vsel %vm743, %v3111, 0
      %v3159 = vsel %vm743, %v3112, 0
      %v3162 = vsel %vm743, %v3113, 0
      %v3165 = vsel %vm743, %v3114, 0
      %v3168 = vsel %vm743, %v3115, 0
      %v3171 = vsel %vm743, %v3116, 0
      %v3174 = vsel %vm743, %v3117, 0
      %v3177 = vsel %vm743, %v3118, 0
      %v3180 = vsel %vm743, %v3119, 0
      %v3183 = vsel %vm743, %v3120, 0
      %v3186 = vsel %vm743, %v3121, 0
      %v3189 = vsel %vm743, %v3122, 0
      %v3192 = vsel %vm743, %v3123, 0
      %v3195 = vsel %vm743, %v3124, 0
      %3197 = vmatprep.subr.bf16.mxu0 0
      %3198 = vmatpush1.bf16.msra.mxu0 0
      %3199 = vmatprep.subr.bf16.mxu0 0
      %3200 = vmatpush1.bf16.msra.mxu0 0
      %3201 = vmatprep.subr.bf16.mxu0 0
      %3202 = vmatpush1.bf16.msra.mxu0 0
      %3203 = vmatprep.subr.bf16.mxu0 0
      %3204 = vmatpush1.bf16.msra.mxu0 0
      %3205 = vmatprep.subr.bf16.mxu0 0
      %3206 = vmatpush1.bf16.msra.mxu0 %v3144
      %3207 = vmatprep.subr.bf16.mxu0 0
      %3208 = vmatpush1.bf16.msra.mxu0 %v3143
      %3209 = vmatprep.subr.bf16.mxu0 0
      %3210 = vmatpush1.bf16.msra.mxu0 %v3142
      %3211 = vmatprep.subr.bf16.mxu0 0
      %3212 = vmatpush1.bf16.msra.mxu0 %v3141
      %3213 = vmatprep.subr.bf16.mxu0 0
      %3214 = vmatpush2.bf16.msra.mxu0 0
      %3215 = vmatprep.subr.bf16.mxu0 0
      %3216 = vmatpush2.bf16.msra.mxu0 0
      %3217 = vmatprep.subr.bf16.mxu0 0
      %3218 = vmatpush2.bf16.msra.mxu0 0
      %3219 = vmatprep.subr.bf16.mxu0 0
      %3220 = vmatpush2.bf16.msra.mxu0 0
      %3221 = vmatprep.subr.bf16.mxu0 0
      %3222 = vmatpush2.bf16.msra.mxu0 0
      %3223 = vmatprep.subr.bf16.mxu0 0
      %3224 = vmatpush2.bf16.msra.mxu0 0
      %3225 = vmatprep.subr.bf16.mxu0 0
      %3226 = vmatpush2.bf16.msra.mxu0 0
      %3227 = vmatprep.subr.bf16.mxu0 0
      %3228 = vmatpush2.bf16.msra.mxu0 0
      %3229 = vmatprep.mubr.bf16.mxu0 0
      %3230 = vmatmul.mubr.bf16.gmra.mxu0 %v3150
      %v3231 = vpop.f32.mrf.mxu0
      %v3232 = vadd.f32 0.0, %v3231
      %v3233 = vpop.f32.mrf.mxu0
      %v3234 = vpop.f32.mrf.mxu0
      %v3235 = vadd.f32 0.0, %v3234
      %v3236 = vpop.f32.mrf.mxu0
      %3237 = vmatprep.mubr.bf16.mxu0 0
      %3238 = vmatmul.mubr.bf16.gmra.mxu0 %v3153
      %v3239 = vpop.f32.mrf.mxu0
      %v3240 = vadd.f32 0.0, %v3239
      %v3241 = vpop.f32.mrf.mxu0
      %v3242 = vpop.f32.mrf.mxu0
      %v3243 = vadd.f32 0.0, %v3242
      %v3244 = vpop.f32.mrf.mxu0
      %3245 = vmatprep.mubr.bf16.mxu0 0
      %3246 = vmatmul.mubr.bf16.gmra.mxu0 %v3156
      %v3247 = vpop.f32.mrf.mxu0
      %v3248 = vadd.f32 0.0, %v3247
      %v3249 = vpop.f32.mrf.mxu0
      %v3250 = vpop.f32.mrf.mxu0
      %v3251 = vadd.f32 0.0, %v3250
      %v3252 = vpop.f32.mrf.mxu0
      %3253 = vmatprep.mubr.bf16.mxu0 0
      %3254 = vmatmul.mubr.bf16.gmra.mxu0 %v3159
      %v3255 = vpop.f32.mrf.mxu0
      %v3256 = vadd.f32 0.0, %v3255
      %v3257 = vpop.f32.mrf.mxu0
      %v3258 = vpop.f32.mrf.mxu0
      %v3259 = vadd.f32 0.0, %v3258
      %v3260 = vpop.f32.mrf.mxu0
      %3261 = vmatprep.mubr.bf16.mxu0 0
      %3262 = vmatmul.mubr.bf16.gmra.mxu0 %v3162
      %v3263 = vpop.f32.mrf.mxu0
      %v3264 = vadd.f32 0.0, %v3263
      %v3265 = vpop.f32.mrf.mxu0
      %v3266 = vpop.f32.mrf.mxu0
      %v3267 = vadd.f32 0.0, %v3266
      %v3268 = vpop.f32.mrf.mxu0
      %3269 = vmatprep.mubr.bf16.mxu0 0
      %3270 = vmatmul.mubr.bf16.gmra.mxu0 %v3165
      %v3271 = vpop.f32.mrf.mxu0
      %v3272 = vadd.f32 0.0, %v3271
      %v3273 = vpop.f32.mrf.mxu0
      %v3274 = vpop.f32.mrf.mxu0
      %v3275 = vadd.f32 0.0, %v3274
      %v3276 = vpop.f32.mrf.mxu0
      %3277 = vmatprep.mubr.bf16.mxu0 0
      %3278 = vmatmul.mubr.bf16.gmra.mxu0 %v3168
      %v3279 = vpop.f32.mrf.mxu0
      %v3280 = vadd.f32 0.0, %v3279
      %v3281 = vpop.f32.mrf.mxu0
      %v3282 = vpop.f32.mrf.mxu0
      %v3283 = vadd.f32 0.0, %v3282
      %v3284 = vpop.f32.mrf.mxu0
      %3285 = vmatprep.mubr.bf16.mxu0 0
      %3286 = vmatmul.mubr.bf16.gmra.mxu0 %v3171
      %v3287 = vpop.f32.mrf.mxu0
      %v3288 = vadd.f32 0.0, %v3287
      %v3289 = vpop.f32.mrf.mxu0
      %v3290 = vpop.f32.mrf.mxu0
      %v3291 = vadd.f32 0.0, %v3290
      %v3292 = vpop.f32.mrf.mxu0
      %3293 = vmatprep.mubr.bf16.mxu0 0
      %3294 = vmatmul.mubr.bf16.gmra.mxu0 %v3174
      %v3295 = vpop.f32.mrf.mxu0
      %v3296 = vadd.f32 0.0, %v3295
      %v3297 = vpop.f32.mrf.mxu0
      %v3298 = vpop.f32.mrf.mxu0
      %v3299 = vadd.f32 0.0, %v3298
      %v3300 = vpop.f32.mrf.mxu0
      %3301 = vmatprep.mubr.bf16.mxu0 0
      %3302 = vmatmul.mubr.bf16.gmra.mxu0 %v3177
      %v3303 = vpop.f32.mrf.mxu0
      %v3304 = vadd.f32 0.0, %v3303
      %v3305 = vpop.f32.mrf.mxu0
      %v3306 = vpop.f32.mrf.mxu0
      %v3307 = vadd.f32 0.0, %v3306
      %v3308 = vpop.f32.mrf.mxu0
      %3309 = vmatprep.mubr.bf16.mxu0 0
      %3310 = vmatmul.mubr.bf16.gmra.mxu0 %v3180
      %v3311 = vpop.f32.mrf.mxu0
      %v3312 = vadd.f32 0.0, %v3311
      %v3313 = vpop.f32.mrf.mxu0
      %v3314 = vpop.f32.mrf.mxu0
      %v3315 = vadd.f32 0.0, %v3314
      %v3316 = vpop.f32.mrf.mxu0
      %3317 = vmatprep.mubr.bf16.mxu0 0
      %3318 = vmatmul.mubr.bf16.gmra.mxu0 %v3183
      %v3319 = vpop.f32.mrf.mxu0
      %v3320 = vadd.f32 0.0, %v3319
      %v3321 = vpop.f32.mrf.mxu0
      %v3322 = vpop.f32.mrf.mxu0
      %v3323 = vadd.f32 0.0, %v3322
      %v3324 = vpop.f32.mrf.mxu0
      %3325 = vmatprep.mubr.bf16.mxu0 0
      %3326 = vmatmul.mubr.bf16.gmra.mxu0 %v3186
      %v3327 = vpop.f32.mrf.mxu0
      %v3328 = vadd.f32 0.0, %v3327
      %v3329 = vpop.f32.mrf.mxu0
      %v3330 = vpop.f32.mrf.mxu0
      %v3331 = vadd.f32 0.0, %v3330
      %v3332 = vpop.f32.mrf.mxu0
      %3333 = vmatprep.mubr.bf16.mxu0 0
      %3334 = vmatmul.mubr.bf16.gmra.mxu0 %v3189
      %v3335 = vpop.f32.mrf.mxu0
      %v3336 = vadd.f32 0.0, %v3335
      %v3337 = vpop.f32.mrf.mxu0
      %v3338 = vpop.f32.mrf.mxu0
      %v3339 = vadd.f32 0.0, %v3338
      %v3340 = vpop.f32.mrf.mxu0
      %3341 = vmatprep.mubr.bf16.mxu0 0
      %3342 = vmatmul.mubr.bf16.gmra.mxu0 %v3192
      %v3343 = vpop.f32.mrf.mxu0
      %v3344 = vadd.f32 0.0, %v3343
      %v3345 = vpop.f32.mrf.mxu0
      %v3346 = vpop.f32.mrf.mxu0
      %v3347 = vadd.f32 0.0, %v3346
      %v3348 = vpop.f32.mrf.mxu0
      %3349 = vmatprep.mubr.bf16.mxu0 0
      %3350 = vmatmul.mubr.bf16.gmra.mxu0 %v3195
      %v3351 = vpop.f32.mrf.mxu0
      %v3352 = vadd.f32 0.0, %v3351
      %v3353 = vpop.f32.mrf.mxu0
      %v3354 = vpop.f32.mrf.mxu0
      %v3355 = vadd.f32 0.0, %v3354
      %v3356 = vpop.f32.mrf.mxu0
      %3357 = vdwg.mxu0
      %v3358 = vadd.f32 %v2860, %v3232
      %v3359 = vadd.f32 %v2861, %v3235
      %v3360 = vadd.f32 %v2862, %v3240
      %v3361 = vadd.f32 %v2863, %v3243
      %v3362 = vadd.f32 %v2864, %v3248
      %v3363 = vadd.f32 %v2865, %v3251
      %v3364 = vadd.f32 %v2866, %v3256
      %v3365 = vadd.f32 %v2867, %v3259
      %v3366 = vadd.f32 %v2868, %v3264
      %v3367 = vadd.f32 %v2869, %v3267
      %v3368 = vadd.f32 %v2870, %v3272
      %v3369 = vadd.f32 %v2871, %v3275
      %v3370 = vadd.f32 %v2872, %v3280
      %v3371 = vadd.f32 %v2873, %v3283
      %v3372 = vadd.f32 %v2874, %v3288
      %v3373 = vadd.f32 %v2875, %v3291
      %v3374 = vadd.f32 %v2876, %v3296
      %v3375 = vadd.f32 %v2877, %v3299
      %v3376 = vadd.f32 %v2878, %v3304
      %v3377 = vadd.f32 %v2879, %v3307
      %v3378 = vadd.f32 %v2880, %v3312
      %v3379 = vadd.f32 %v2881, %v3315
      %v3380 = vadd.f32 %v2882, %v3320
      %v3381 = vadd.f32 %v2883, %v3323
      %v3382 = vadd.f32 %v2884, %v3328
      %v3383 = vadd.f32 %v2885, %v3331
      %v3384 = vadd.f32 %v2886, %v3336
      %v3385 = vadd.f32 %v2887, %v3339
      %v3386 = vadd.f32 %v2888, %v3344
      %v3387 = vadd.f32 %v2889, %v3347
      %v3388 = vadd.f32 %v2890, %v3352
      %v3389 = vadd.f32 %v2891, %v3355
      %s3390 = scalar_lea.vmem %s207, 24
      %v3391 = vld [vmem:[%s3390] sm:$0xf]
      %v3392 = vld [vmem:[%s3390 + $0x4] sm:$0xf]
      %v3393 = vld [vmem:[%s3390 + $0xc] sm:$0xf]
      %v3394 = vld [vmem:[%s3390 + $0x10] sm:$0xf]
      %v3395 = vld [vmem:[%s3390 + $0x18] sm:$0xf]
      %v3396 = vld [vmem:[%s3390 + $0x1c] sm:$0xf]
      %v3397 = vld [vmem:[%s3390 + $0x24] sm:$0xf]
      %v3398 = vld [vmem:[%s3390 + $0x28] sm:$0xf]
      %v3399 = vld [vmem:[%s3390 + $0x30] sm:$0xf]
      %v3400 = vld [vmem:[%s3390 + $0x34] sm:$0xf]
      %v3401 = vld [vmem:[%s3390 + $0x3c] sm:$0xf]
      %v3402 = vld [vmem:[%s3390 + $0x40] sm:$0xf]
      %v3403 = vld [vmem:[%s3390 + $0x48] sm:$0xf]
      %v3404 = vld [vmem:[%s3390 + $0x4c] sm:$0xf]
      %v3405 = vld [vmem:[%s3390 + $0x54] sm:$0xf]
      %v3406 = vld [vmem:[%s3390 + $0x58] sm:$0xf]
      %v3407 = vld [vmem:[%s3390 + $0x60] sm:$0xf]
      %v3408 = vld [vmem:[%s3390 + $0x64] sm:$0xf]
      %v3409 = vld [vmem:[%s3390 + $0x6c] sm:$0xf]
      %v3410 = vld [vmem:[%s3390 + $0x70] sm:$0xf]
      %v3411 = vld [vmem:[%s3390 + $0x78] sm:$0xf]
      %v3412 = vld [vmem:[%s3390 + $0x7c] sm:$0xf]
      %v3413 = vld [vmem:[%s3390 + $0x84] sm:$0xf]
      %v3414 = vld [vmem:[%s3390 + $0x88] sm:$0xf]
      %v3415 = vld [vmem:[%s3390 + $0x90] sm:$0xf]
      %v3416 = vld [vmem:[%s3390 + $0x94] sm:$0xf]
      %v3417 = vld [vmem:[%s3390 + $0x9c] sm:$0xf]
      %v3418 = vld [vmem:[%s3390 + $0xa0] sm:$0xf]
      %v3419 = vld [vmem:[%s3390 + $0xa8] sm:$0xf]
      %v3420 = vld [vmem:[%s3390 + $0xac] sm:$0xf]
      %v3421 = vld [vmem:[%s3390 + $0xb4] sm:$0xf]
      %v3422 = vld [vmem:[%s3390 + $0xb8] sm:$0xf]
      %s3423 = scalar_lea.vmem %s1, 192
      %v3424 = vld [vmem:[%s3423] sm:$0xf]
      %v3425 = vld [vmem:[%s3423 + $0x4] sm:$0xf]
      %v3426 = vld [vmem:[%s3423 + $0x8] sm:$0xf]
      %v3427 = vld [vmem:[%s3423 + $0xc] sm:$0xf]
      %v3428 = vld [vmem:[%s3423 + $0x10] sm:$0xf]
      %v3429 = vld [vmem:[%s3423 + $0x14] sm:$0xf]
      %v3430 = vld [vmem:[%s3423 + $0x18] sm:$0xf]
      %v3431 = vld [vmem:[%s3423 + $0x1c] sm:$0xf]
      %v3464 = vunpack.c.l.b16 %v3391
      %v3465 = vunpack.c.l.b16 %v3392
      %v3466 = vunpack.c.l.b16 %v3393
      %v3467 = vunpack.c.l.b16 %v3394
      %v3468 = vunpack.c.l.b16 %v3395
      %v3469 = vunpack.c.l.b16 %v3396
      %v3470 = vunpack.c.l.b16 %v3397
      %v3471 = vunpack.c.l.b16 %v3398
      %v3472 = vunpack.c.l.b16 %v3399
      %v3473 = vunpack.c.l.b16 %v3400
      %v3474 = vunpack.c.l.b16 %v3401
      %v3475 = vunpack.c.l.b16 %v3402
      %v3476 = vunpack.c.l.b16 %v3403
      %v3477 = vunpack.c.l.b16 %v3404
      %v3478 = vunpack.c.l.b16 %v3405
      %v3479 = vunpack.c.l.b16 %v3406
      %v3480 = vunpack.c.l.b16 %v3407
      %v3481 = vunpack.c.l.b16 %v3408
      %v3482 = vunpack.c.l.b16 %v3409
      %v3483 = vunpack.c.l.b16 %v3410
      %v3484 = vunpack.c.l.b16 %v3411
      %v3485 = vunpack.c.l.b16 %v3412
      %v3486 = vunpack.c.l.b16 %v3413
      %v3487 = vunpack.c.l.b16 %v3414
      %v3488 = vunpack.c.l.b16 %v3415
      %v3489 = vunpack.c.l.b16 %v3416
      %v3490 = vunpack.c.l.b16 %v3417
      %v3491 = vunpack.c.l.b16 %v3418
      %v3492 = vunpack.c.l.b16 %v3419
      %v3493 = vunpack.c.l.b16 %v3420
      %v3494 = vunpack.c.l.b16 %v3421
      %v3495 = vunpack.c.l.b16 %v3422
      %v3496 = vpack.c.b16 %v3465, %v3464
      %v3497 = vpack.c.b16 %v3467, %v3466
      %v3498 = vpack.c.b16 %v3469, %v3468
      %v3499 = vpack.c.b16 %v3471, %v3470
      %v3500 = vpack.c.b16 %v3473, %v3472
      %v3501 = vpack.c.b16 %v3475, %v3474
      %v3502 = vpack.c.b16 %v3477, %v3476
      %v3503 = vpack.c.b16 %v3479, %v3478
      %v3504 = vpack.c.b16 %v3481, %v3480
      %v3505 = vpack.c.b16 %v3483, %v3482
      %v3506 = vpack.c.b16 %v3485, %v3484
      %v3507 = vpack.c.b16 %v3487, %v3486
      %v3508 = vpack.c.b16 %v3489, %v3488
      %v3509 = vpack.c.b16 %v3491, %v3490
      %v3510 = vpack.c.b16 %v3493, %v3492
      %v3511 = vpack.c.b16 %v3495, %v3494
      %v3520 = vunpack.c.l.b16 %v3424
      %v3521 = vunpack.c.l.b16 %v3425
      %v3522 = vunpack.c.l.b16 %v3426
      %v3523 = vunpack.c.l.b16 %v3427
      %v3524 = vunpack.c.l.b16 %v3428
      %v3525 = vunpack.c.l.b16 %v3429
      %v3526 = vunpack.c.l.b16 %v3430
      %v3527 = vunpack.c.l.b16 %v3431
      %v3528 = vpack.c.b16 %v3521, %v3520
      %v3529 = vpack.c.b16 %v3523, %v3522
      %v3530 = vpack.c.b16 %v3525, %v3524
      %v3531 = vpack.c.b16 %v3527, %v3526
      %v3537 = vsel %vm743, %v3496, 0
      %v3540 = vsel %vm743, %v3497, 0
      %v3543 = vsel %vm743, %v3498, 0
      %v3546 = vsel %vm743, %v3499, 0
      %v3549 = vsel %vm743, %v3500, 0
      %v3552 = vsel %vm743, %v3501, 0
      %v3555 = vsel %vm743, %v3502, 0
      %v3558 = vsel %vm743, %v3503, 0
      %v3561 = vsel %vm743, %v3504, 0
      %v3564 = vsel %vm743, %v3505, 0
      %v3567 = vsel %vm743, %v3506, 0
      %v3570 = vsel %vm743, %v3507, 0
      %v3573 = vsel %vm743, %v3508, 0
      %v3576 = vsel %vm743, %v3509, 0
      %v3579 = vsel %vm743, %v3510, 0
      %v3582 = vsel %vm743, %v3511, 0
      %3584 = vmatprep.subr.bf16.mxu0 0
      %3585 = vmatpush1.bf16.msra.mxu0 0
      %3586 = vmatprep.subr.bf16.mxu0 0
      %3587 = vmatpush1.bf16.msra.mxu0 0
      %3588 = vmatprep.subr.bf16.mxu0 0
      %3589 = vmatpush1.bf16.msra.mxu0 0
      %3590 = vmatprep.subr.bf16.mxu0 0
      %3591 = vmatpush1.bf16.msra.mxu0 0
      %3592 = vmatprep.subr.bf16.mxu0 0
      %3593 = vmatpush1.bf16.msra.mxu0 %v3531
      %3594 = vmatprep.subr.bf16.mxu0 0
      %3595 = vmatpush1.bf16.msra.mxu0 %v3530
      %3596 = vmatprep.subr.bf16.mxu0 0
      %3597 = vmatpush1.bf16.msra.mxu0 %v3529
      %3598 = vmatprep.subr.bf16.mxu0 0
      %3599 = vmatpush1.bf16.msra.mxu0 %v3528
      %3600 = vmatprep.subr.bf16.mxu0 0
      %3601 = vmatpush2.bf16.msra.mxu0 0
      %3602 = vmatprep.subr.bf16.mxu0 0
      %3603 = vmatpush2.bf16.msra.mxu0 0
      %3604 = vmatprep.subr.bf16.mxu0 0
      %3605 = vmatpush2.bf16.msra.mxu0 0
      %3606 = vmatprep.subr.bf16.mxu0 0
      %3607 = vmatpush2.bf16.msra.mxu0 0
      %3608 = vmatprep.subr.bf16.mxu0 0
      %3609 = vmatpush2.bf16.msra.mxu0 0
      %3610 = vmatprep.subr.bf16.mxu0 0
      %3611 = vmatpush2.bf16.msra.mxu0 0
      %3612 = vmatprep.subr.bf16.mxu0 0
      %3613 = vmatpush2.bf16.msra.mxu0 0
      %3614 = vmatprep.subr.bf16.mxu0 0
      %3615 = vmatpush2.bf16.msra.mxu0 0
      %3616 = vmatprep.mubr.bf16.mxu0 0
      %3617 = vmatmul.mubr.bf16.gmra.mxu0 %v3537
      %v3618 = vpop.f32.mrf.mxu0
      %v3619 = vadd.f32 0.0, %v3618
      %v3620 = vpop.f32.mrf.mxu0
      %v3621 = vpop.f32.mrf.mxu0
      %v3622 = vadd.f32 0.0, %v3621
      %v3623 = vpop.f32.mrf.mxu0
      %3624 = vmatprep.mubr.bf16.mxu0 0
      %3625 = vmatmul.mubr.bf16.gmra.mxu0 %v3540
      %v3626 = vpop.f32.mrf.mxu0
      %v3627 = vadd.f32 0.0, %v3626
      %v3628 = vpop.f32.mrf.mxu0
      %v3629 = vpop.f32.mrf.mxu0
      %v3630 = vadd.f32 0.0, %v3629
      %v3631 = vpop.f32.mrf.mxu0
      %3632 = vmatprep.mubr.bf16.mxu0 0
      %3633 = vmatmul.mubr.bf16.gmra.mxu0 %v3543
      %v3634 = vpop.f32.mrf.mxu0
      %v3635 = vadd.f32 0.0, %v3634
      %v3636 = vpop.f32.mrf.mxu0
      %v3637 = vpop.f32.mrf.mxu0
      %v3638 = vadd.f32 0.0, %v3637
      %v3639 = vpop.f32.mrf.mxu0
      %3640 = vmatprep.mubr.bf16.mxu0 0
      %3641 = vmatmul.mubr.bf16.gmra.mxu0 %v3546
      %v3642 = vpop.f32.mrf.mxu0
      %v3643 = vadd.f32 0.0, %v3642
      %v3644 = vpop.f32.mrf.mxu0
      %v3645 = vpop.f32.mrf.mxu0
      %v3646 = vadd.f32 0.0, %v3645
      %v3647 = vpop.f32.mrf.mxu0
      %3648 = vmatprep.mubr.bf16.mxu0 0
      %3649 = vmatmul.mubr.bf16.gmra.mxu0 %v3549
      %v3650 = vpop.f32.mrf.mxu0
      %v3651 = vadd.f32 0.0, %v3650
      %v3652 = vpop.f32.mrf.mxu0
      %v3653 = vpop.f32.mrf.mxu0
      %v3654 = vadd.f32 0.0, %v3653
      %v3655 = vpop.f32.mrf.mxu0
      %3656 = vmatprep.mubr.bf16.mxu0 0
      %3657 = vmatmul.mubr.bf16.gmra.mxu0 %v3552
      %v3658 = vpop.f32.mrf.mxu0
      %v3659 = vadd.f32 0.0, %v3658
      %v3660 = vpop.f32.mrf.mxu0
      %v3661 = vpop.f32.mrf.mxu0
      %v3662 = vadd.f32 0.0, %v3661
      %v3663 = vpop.f32.mrf.mxu0
      %3664 = vmatprep.mubr.bf16.mxu0 0
      %3665 = vmatmul.mubr.bf16.gmra.mxu0 %v3555
      %v3666 = vpop.f32.mrf.mxu0
      %v3667 = vadd.f32 0.0, %v3666
      %v3668 = vpop.f32.mrf.mxu0
      %v3669 = vpop.f32.mrf.mxu0
      %v3670 = vadd.f32 0.0, %v3669
      %v3671 = vpop.f32.mrf.mxu0
      %3672 = vmatprep.mubr.bf16.mxu0 0
      %3673 = vmatmul.mubr.bf16.gmra.mxu0 %v3558
      %v3674 = vpop.f32.mrf.mxu0
      %v3675 = vadd.f32 0.0, %v3674
      %v3676 = vpop.f32.mrf.mxu0
      %v3677 = vpop.f32.mrf.mxu0
      %v3678 = vadd.f32 0.0, %v3677
      %v3679 = vpop.f32.mrf.mxu0
      %3680 = vmatprep.mubr.bf16.mxu0 0
      %3681 = vmatmul.mubr.bf16.gmra.mxu0 %v3561
      %v3682 = vpop.f32.mrf.mxu0
      %v3683 = vadd.f32 0.0, %v3682
      %v3684 = vpop.f32.mrf.mxu0
      %v3685 = vpop.f32.mrf.mxu0
      %v3686 = vadd.f32 0.0, %v3685
      %v3687 = vpop.f32.mrf.mxu0
      %3688 = vmatprep.mubr.bf16.mxu0 0
      %3689 = vmatmul.mubr.bf16.gmra.mxu0 %v3564
      %v3690 = vpop.f32.mrf.mxu0
      %v3691 = vadd.f32 0.0, %v3690
      %v3692 = vpop.f32.mrf.mxu0
      %v3693 = vpop.f32.mrf.mxu0
      %v3694 = vadd.f32 0.0, %v3693
      %v3695 = vpop.f32.mrf.mxu0
      %3696 = vmatprep.mubr.bf16.mxu0 0
      %3697 = vmatmul.mubr.bf16.gmra.mxu0 %v3567
      %v3698 = vpop.f32.mrf.mxu0
      %v3699 = vadd.f32 0.0, %v3698
      %v3700 = vpop.f32.mrf.mxu0
      %v3701 = vpop.f32.mrf.mxu0
      %v3702 = vadd.f32 0.0, %v3701
      %v3703 = vpop.f32.mrf.mxu0
      %3704 = vmatprep.mubr.bf16.mxu0 0
      %3705 = vmatmul.mubr.bf16.gmra.mxu0 %v3570
      %v3706 = vpop.f32.mrf.mxu0
      %v3707 = vadd.f32 0.0, %v3706
      %v3708 = vpop.f32.mrf.mxu0
      %v3709 = vpop.f32.mrf.mxu0
      %v3710 = vadd.f32 0.0, %v3709
      %v3711 = vpop.f32.mrf.mxu0
      %3712 = vmatprep.mubr.bf16.mxu0 0
      %3713 = vmatmul.mubr.bf16.gmra.mxu0 %v3573
      %v3714 = vpop.f32.mrf.mxu0
      %v3715 = vadd.f32 0.0, %v3714
      %v3716 = vpop.f32.mrf.mxu0
      %v3717 = vpop.f32.mrf.mxu0
      %v3718 = vadd.f32 0.0, %v3717
      %v3719 = vpop.f32.mrf.mxu0
      %3720 = vmatprep.mubr.bf16.mxu0 0
      %3721 = vmatmul.mubr.bf16.gmra.mxu0 %v3576
      %v3722 = vpop.f32.mrf.mxu0
      %v3723 = vadd.f32 0.0, %v3722
      %v3724 = vpop.f32.mrf.mxu0
      %v3725 = vpop.f32.mrf.mxu0
      %v3726 = vadd.f32 0.0, %v3725
      %v3727 = vpop.f32.mrf.mxu0
      %3728 = vmatprep.mubr.bf16.mxu0 0
      %3729 = vmatmul.mubr.bf16.gmra.mxu0 %v3579
      %v3730 = vpop.f32.mrf.mxu0
      %v3731 = vadd.f32 0.0, %v3730
      %v3732 = vpop.f32.mrf.mxu0
      %v3733 = vpop.f32.mrf.mxu0
      %v3734 = vadd.f32 0.0, %v3733
      %v3735 = vpop.f32.mrf.mxu0
      %3736 = vmatprep.mubr.bf16.mxu0 0
      %3737 = vmatmul.mubr.bf16.gmra.mxu0 %v3582
      %v3738 = vpop.f32.mrf.mxu0
      %v3739 = vadd.f32 0.0, %v3738
      %v3740 = vpop.f32.mrf.mxu0
      %v3741 = vpop.f32.mrf.mxu0
      %v3742 = vadd.f32 0.0, %v3741
      %v3743 = vpop.f32.mrf.mxu0
      %3744 = vdwg.mxu0
      %v3745 = vadd.f32 %v3358, %v3619
      %v3746 = vadd.f32 %v3359, %v3622
      %v3747 = vadd.f32 %v3360, %v3627
      %v3748 = vadd.f32 %v3361, %v3630
      %v3749 = vadd.f32 %v3362, %v3635
      %v3750 = vadd.f32 %v3363, %v3638
      %v3751 = vadd.f32 %v3364, %v3643
      %v3752 = vadd.f32 %v3365, %v3646
      %v3753 = vadd.f32 %v3366, %v3651
      %v3754 = vadd.f32 %v3367, %v3654
      %v3755 = vadd.f32 %v3368, %v3659
      %v3756 = vadd.f32 %v3369, %v3662
      %v3757 = vadd.f32 %v3370, %v3667
      %v3758 = vadd.f32 %v3371, %v3670
      %v3759 = vadd.f32 %v3372, %v3675
      %v3760 = vadd.f32 %v3373, %v3678
      %v3761 = vadd.f32 %v3374, %v3683
      %v3762 = vadd.f32 %v3375, %v3686
      %v3763 = vadd.f32 %v3376, %v3691
      %v3764 = vadd.f32 %v3377, %v3694
      %v3765 = vadd.f32 %v3378, %v3699
      %v3766 = vadd.f32 %v3379, %v3702
      %v3767 = vadd.f32 %v3380, %v3707
      %v3768 = vadd.f32 %v3381, %v3710
      %v3769 = vadd.f32 %v3382, %v3715
      %v3770 = vadd.f32 %v3383, %v3718
      %v3771 = vadd.f32 %v3384, %v3723
      %v3772 = vadd.f32 %v3385, %v3726
      %v3773 = vadd.f32 %v3386, %v3731
      %v3774 = vadd.f32 %v3387, %v3734
      %v3775 = vadd.f32 %v3388, %v3739
      %v3776 = vadd.f32 %v3389, %v3742
      %v3777 = vld [vmem:[%s3390] sm:$0xf]
      %v3778 = vld [vmem:[%s3390 + $0x4] sm:$0xf]
      %v3779 = vld [vmem:[%s3390 + $0x8] sm:$0x1]
      %v3780 = vld [vmem:[%s3390 + $0xc] sm:$0xf]
      %v3781 = vld [vmem:[%s3390 + $0x10] sm:$0xf]
      %v3782 = vld [vmem:[%s3390 + $0x14] sm:$0x1]
      %v3783 = vld [vmem:[%s3390 + $0x18] sm:$0xf]
      %v3784 = vld [vmem:[%s3390 + $0x1c] sm:$0xf]
      %v3785 = vld [vmem:[%s3390 + $0x20] sm:$0x1]
      %v3786 = vld [vmem:[%s3390 + $0x24] sm:$0xf]
      %v3787 = vld [vmem:[%s3390 + $0x28] sm:$0xf]
      %v3788 = vld [vmem:[%s3390 + $0x2c] sm:$0x1]
      %v3789 = vld [vmem:[%s3390 + $0x30] sm:$0xf]
      %v3790 = vld [vmem:[%s3390 + $0x34] sm:$0xf]
      %v3791 = vld [vmem:[%s3390 + $0x38] sm:$0x1]
      %v3792 = vld [vmem:[%s3390 + $0x3c] sm:$0xf]
      %v3793 = vld [vmem:[%s3390 + $0x40] sm:$0xf]
      %v3794 = vld [vmem:[%s3390 + $0x44] sm:$0x1]
      %v3795 = vld [vmem:[%s3390 + $0x48] sm:$0xf]
      %v3796 = vld [vmem:[%s3390 + $0x4c] sm:$0xf]
      %v3797 = vld [vmem:[%s3390 + $0x50] sm:$0x1]
      %v3798 = vld [vmem:[%s3390 + $0x54] sm:$0xf]
      %v3799 = vld [vmem:[%s3390 + $0x58] sm:$0xf]
      %v3800 = vld [vmem:[%s3390 + $0x5c] sm:$0x1]
      %v3801 = vld [vmem:[%s3390 + $0x60] sm:$0xf]
      %v3802 = vld [vmem:[%s3390 + $0x64] sm:$0xf]
      %v3803 = vld [vmem:[%s3390 + $0x68] sm:$0x1]
      %v3804 = vld [vmem:[%s3390 + $0x6c] sm:$0xf]
      %v3805 = vld [vmem:[%s3390 + $0x70] sm:$0xf]
      %v3806 = vld [vmem:[%s3390 + $0x74] sm:$0x1]
      %v3807 = vld [vmem:[%s3390 + $0x78] sm:$0xf]
      %v3808 = vld [vmem:[%s3390 + $0x7c] sm:$0xf]
      %v3809 = vld [vmem:[%s3390 + $0x80] sm:$0x1]
      %v3810 = vld [vmem:[%s3390 + $0x84] sm:$0xf]
      %v3811 = vld [vmem:[%s3390 + $0x88] sm:$0xf]
      %v3812 = vld [vmem:[%s3390 + $0x8c] sm:$0x1]
      %v3813 = vld [vmem:[%s3390 + $0x90] sm:$0xf]
      %v3814 = vld [vmem:[%s3390 + $0x94] sm:$0xf]
      %v3815 = vld [vmem:[%s3390 + $0x98] sm:$0x1]
      %v3816 = vld [vmem:[%s3390 + $0x9c] sm:$0xf]
      %v3817 = vld [vmem:[%s3390 + $0xa0] sm:$0xf]
      %v3818 = vld [vmem:[%s3390 + $0xa4] sm:$0x1]
      %v3819 = vld [vmem:[%s3390 + $0xa8] sm:$0xf]
      %v3820 = vld [vmem:[%s3390 + $0xac] sm:$0xf]
      %v3821 = vld [vmem:[%s3390 + $0xb0] sm:$0x1]
      %v3822 = vld [vmem:[%s3390 + $0xb4] sm:$0xf]
      %v3823 = vld [vmem:[%s3390 + $0xb8] sm:$0xf]
      %v3824 = vld [vmem:[%s3390 + $0xbc] sm:$0x1]
      %v3826 = vshrl.u32 %v3777, 16
      %v3828 = vrot.slane %v3826, 4
      %v3829 = vshll.u32 %v3777, 16
      %v3831 = vrot.slane %v3829, 5
      %v3832 = vor.u32 %v3828, %v3831
      %v3833 = vrot.slane %v3832, 4
      %v3835 = vshll.u32 %v3778, 16
      %v3837 = vrot.slane %v3835, 5
      %v3838 = vsel %vm277, %v3833, %v3837
      %v3839 = vshrl.u32 %v3778, 16
      %v3841 = vrot.slane %v3839, 4
      %v3842 = vor.u32 %v3841, %v3837
      %v3843 = vrot.slane %v3842, 4
      %v3845 = vshll.u32 %v3779, 16
      %v3847 = vrot.slane %v3845, 5
      %v3848 = vsel %vm277, %v3843, %v3847
      %v3850 = vshrl.u32 %v3780, 16
      %v3852 = vrot.slane %v3850, 4
      %v3853 = vshll.u32 %v3780, 16
      %v3855 = vrot.slane %v3853, 5
      %v3856 = vor.u32 %v3852, %v3855
      %v3857 = vrot.slane %v3856, 4
      %v3859 = vshll.u32 %v3781, 16
      %v3861 = vrot.slane %v3859, 5
      %v3862 = vsel %vm277, %v3857, %v3861
      %v3863 = vshrl.u32 %v3781, 16
      %v3865 = vrot.slane %v3863, 4
      %v3866 = vor.u32 %v3865, %v3861
      %v3867 = vrot.slane %v3866, 4
      %v3869 = vshll.u32 %v3782, 16
      %v3871 = vrot.slane %v3869, 5
      %v3872 = vsel %vm277, %v3867, %v3871
      %v3874 = vshrl.u32 %v3783, 16
      %v3876 = vrot.slane %v3874, 4
      %v3877 = vshll.u32 %v3783, 16
      %v3879 = vrot.slane %v3877, 5
      %v3880 = vor.u32 %v3876, %v3879
      %v3881 = vrot.slane %v3880, 4
      %v3883 = vshll.u32 %v3784, 16
      %v3885 = vrot.slane %v3883, 5
      %v3886 = vsel %vm277, %v3881, %v3885
      %v3887 = vshrl.u32 %v3784, 16
      %v3889 = vrot.slane %v3887, 4
      %v3890 = vor.u32 %v3889, %v3885
      %v3891 = vrot.slane %v3890, 4
      %v3893 = vshll.u32 %v3785, 16
      %v3895 = vrot.slane %v3893, 5
      %v3896 = vsel %vm277, %v3891, %v3895
      %v3898 = vshrl.u32 %v3786, 16
      %v3900 = vrot.slane %v3898, 4
      %v3901 = vshll.u32 %v3786, 16
      %v3903 = vrot.slane %v3901, 5
      %v3904 = vor.u32 %v3900, %v3903
      %v3905 = vrot.slane %v3904, 4
      %v3907 = vshll.u32 %v3787, 16
      %v3909 = vrot.slane %v3907, 5
      %v3910 = vsel %vm277, %v3905, %v3909
      %v3911 = vshrl.u32 %v3787, 16
      %v3913 = vrot.slane %v3911, 4
      %v3914 = vor.u32 %v3913, %v3909
      %v3915 = vrot.slane %v3914, 4
      %v3917 = vshll.u32 %v3788, 16
      %v3919 = vrot.slane %v3917, 5
      %v3920 = vsel %vm277, %v3915, %v3919
      %v3922 = vshrl.u32 %v3789, 16
      %v3924 = vrot.slane %v3922, 4
      %v3925 = vshll.u32 %v3789, 16
      %v3927 = vrot.slane %v3925, 5
      %v3928 = vor.u32 %v3924, %v3927
      %v3929 = vrot.slane %v3928, 4
      %v3931 = vshll.u32 %v3790, 16
      %v3933 = vrot.slane %v3931, 5
      %v3934 = vsel %vm277, %v3929, %v3933
      %v3935 = vshrl.u32 %v3790, 16
      %v3937 = vrot.slane %v3935, 4
      %v3938 = vor.u32 %v3937, %v3933
      %v3939 = vrot.slane %v3938, 4
      %v3941 = vshll.u32 %v3791, 16
      %v3943 = vrot.slane %v3941, 5
      %v3944 = vsel %vm277, %v3939, %v3943
      %v3946 = vshrl.u32 %v3792, 16
      %v3948 = vrot.slane %v3946, 4
      %v3949 = vshll.u32 %v3792, 16
      %v3951 = vrot.slane %v3949, 5
      %v3952 = vor.u32 %v3948, %v3951
      %v3953 = vrot.slane %v3952, 4
      %v3955 = vshll.u32 %v3793, 16
      %v3957 = vrot.slane %v3955, 5
      %v3958 = vsel %vm277, %v3953, %v3957
      %v3959 = vshrl.u32 %v3793, 16
      %v3961 = vrot.slane %v3959, 4
      %v3962 = vor.u32 %v3961, %v3957
      %v3963 = vrot.slane %v3962, 4
      %v3965 = vshll.u32 %v3794, 16
      %v3967 = vrot.slane %v3965, 5
      %v3968 = vsel %vm277, %v3963, %v3967
      %v3970 = vshrl.u32 %v3795, 16
      %v3972 = vrot.slane %v3970, 4
      %v3973 = vshll.u32 %v3795, 16
      %v3975 = vrot.slane %v3973, 5
      %v3976 = vor.u32 %v3972, %v3975
      %v3977 = vrot.slane %v3976, 4
      %v3979 = vshll.u32 %v3796, 16
      %v3981 = vrot.slane %v3979, 5
      %v3982 = vsel %vm277, %v3977, %v3981
      %v3983 = vshrl.u32 %v3796, 16
      %v3985 = vrot.slane %v3983, 4
      %v3986 = vor.u32 %v3985, %v3981
      %v3987 = vrot.slane %v3986, 4
      %v3989 = vshll.u32 %v3797, 16
      %v3991 = vrot.slane %v3989, 5
      %v3992 = vsel %vm277, %v3987, %v3991
      %v3994 = vshrl.u32 %v3798, 16
      %v3996 = vrot.slane %v3994, 4
      %v3997 = vshll.u32 %v3798, 16
      %v3999 = vrot.slane %v3997, 5
      %v4000 = vor.u32 %v3996, %v3999
      %v4001 = vrot.slane %v4000, 4
      %v4003 = vshll.u32 %v3799, 16
      %v4005 = vrot.slane %v4003, 5
      %v4006 = vsel %vm277, %v4001, %v4005
      %v4007 = vshrl.u32 %v3799, 16
      %v4009 = vrot.slane %v4007, 4
      %v4010 = vor.u32 %v4009, %v4005
      %v4011 = vrot.slane %v4010, 4
      %v4013 = vshll.u32 %v3800, 16
      %v4015 = vrot.slane %v4013, 5
      %v4016 = vsel %vm277, %v4011, %v4015
      %v4018 = vshrl.u32 %v3801, 16
      %v4020 = vrot.slane %v4018, 4
      %v4021 = vshll.u32 %v3801, 16
      %v4023 = vrot.slane %v4021, 5
      %v4024 = vor.u32 %v4020, %v4023
      %v4025 = vrot.slane %v4024, 4
      %v4027 = vshll.u32 %v3802, 16
      %v4029 = vrot.slane %v4027, 5
      %v4030 = vsel %vm277, %v4025, %v4029
      %v4031 = vshrl.u32 %v3802, 16
      %v4033 = vrot.slane %v4031, 4
      %v4034 = vor.u32 %v4033, %v4029
      %v4035 = vrot.slane %v4034, 4
      %v4037 = vshll.u32 %v3803, 16
      %v4039 = vrot.slane %v4037, 5
      %v4040 = vsel %vm277, %v4035, %v4039
      %v4042 = vshrl.u32 %v3804, 16
      %v4044 = vrot.slane %v4042, 4
      %v4045 = vshll.u32 %v3804, 16
      %v4047 = vrot.slane %v4045, 5
      %v4048 = vor.u32 %v4044, %v4047
      %v4049 = vrot.slane %v4048, 4
      %v4051 = vshll.u32 %v3805, 16
      %v4053 = vrot.slane %v4051, 5
      %v4054 = vsel %vm277, %v4049, %v4053
      %v4055 = vshrl.u32 %v3805, 16
      %v4057 = vrot.slane %v4055, 4
      %v4058 = vor.u32 %v4057, %v4053
      %v4059 = vrot.slane %v4058, 4
      %v4061 = vshll.u32 %v3806, 16
      %v4063 = vrot.slane %v4061, 5
      %v4064 = vsel %vm277, %v4059, %v4063
      %v4066 = vshrl.u32 %v3807, 16
      %v4068 = vrot.slane %v4066, 4
      %v4069 = vshll.u32 %v3807, 16
      %v4071 = vrot.slane %v4069, 5
      %v4072 = vor.u32 %v4068, %v4071
      %v4073 = vrot.slane %v4072, 4
      %v4075 = vshll.u32 %v3808, 16
      %v4077 = vrot.slane %v4075, 5
      %v4078 = vsel %vm277, %v4073, %v4077
      %v4079 = vshrl.u32 %v3808, 16
      %v4081 = vrot.slane %v4079, 4
      %v4082 = vor.u32 %v4081, %v4077
      %v4083 = vrot.slane %v4082, 4
      %v4085 = vshll.u32 %v3809, 16
      %v4087 = vrot.slane %v4085, 5
      %v4088 = vsel %vm277, %v4083, %v4087
      %v4090 = vshrl.u32 %v3810, 16
      %v4092 = vrot.slane %v4090, 4
      %v4093 = vshll.u32 %v3810, 16
      %v4095 = vrot.slane %v4093, 5
      %v4096 = vor.u32 %v4092, %v4095
      %v4097 = vrot.slane %v4096, 4
      %v4099 = vshll.u32 %v3811, 16
      %v4101 = vrot.slane %v4099, 5
      %v4102 = vsel %vm277, %v4097, %v4101
      %v4103 = vshrl.u32 %v3811, 16
      %v4105 = vrot.slane %v4103, 4
      %v4106 = vor.u32 %v4105, %v4101
      %v4107 = vrot.slane %v4106, 4
      %v4109 = vshll.u32 %v3812, 16
      %v4111 = vrot.slane %v4109, 5
      %v4112 = vsel %vm277, %v4107, %v4111
      %v4114 = vshrl.u32 %v3813, 16
      %v4116 = vrot.slane %v4114, 4
      %v4117 = vshll.u32 %v3813, 16
      %v4119 = vrot.slane %v4117, 5
      %v4120 = vor.u32 %v4116, %v4119
      %v4121 = vrot.slane %v4120, 4
      %v4123 = vshll.u32 %v3814, 16
      %v4125 = vrot.slane %v4123, 5
      %v4126 = vsel %vm277, %v4121, %v4125
      %v4127 = vshrl.u32 %v3814, 16
      %v4129 = vrot.slane %v4127, 4
      %v4130 = vor.u32 %v4129, %v4125
      %v4131 = vrot.slane %v4130, 4
      %v4133 = vshll.u32 %v3815, 16
      %v4135 = vrot.slane %v4133, 5
      %v4136 = vsel %vm277, %v4131, %v4135
      %v4138 = vshrl.u32 %v3816, 16
      %v4140 = vrot.slane %v4138, 4
      %v4141 = vshll.u32 %v3816, 16
      %v4143 = vrot.slane %v4141, 5
      %v4144 = vor.u32 %v4140, %v4143
      %v4145 = vrot.slane %v4144, 4
      %v4147 = vshll.u32 %v3817, 16
      %v4149 = vrot.slane %v4147, 5
      %v4150 = vsel %vm277, %v4145, %v4149
      %v4151 = vshrl.u32 %v3817, 16
      %v4153 = vrot.slane %v4151, 4
      %v4154 = vor.u32 %v4153, %v4149
      %v4155 = vrot.slane %v4154, 4
      %v4157 = vshll.u32 %v3818, 16
      %v4159 = vrot.slane %v4157, 5
      %v4160 = vsel %vm277, %v4155, %v4159
      %v4162 = vshrl.u32 %v3819, 16
      %v4164 = vrot.slane %v4162, 4
      %v4165 = vshll.u32 %v3819, 16
      %v4167 = vrot.slane %v4165, 5
      %v4168 = vor.u32 %v4164, %v4167
      %v4169 = vrot.slane %v4168, 4
      %v4171 = vshll.u32 %v3820, 16
      %v4173 = vrot.slane %v4171, 5
      %v4174 = vsel %vm277, %v4169, %v4173
      %v4175 = vshrl.u32 %v3820, 16
      %v4177 = vrot.slane %v4175, 4
      %v4178 = vor.u32 %v4177, %v4173
      %v4179 = vrot.slane %v4178, 4
      %v4181 = vshll.u32 %v3821, 16
      %v4183 = vrot.slane %v4181, 5
      %v4184 = vsel %vm277, %v4179, %v4183
      %v4186 = vshrl.u32 %v3822, 16
      %v4188 = vrot.slane %v4186, 4
      %v4189 = vshll.u32 %v3822, 16
      %v4191 = vrot.slane %v4189, 5
      %v4192 = vor.u32 %v4188, %v4191
      %v4193 = vrot.slane %v4192, 4
      %v4195 = vshll.u32 %v3823, 16
      %v4197 = vrot.slane %v4195, 5
      %v4198 = vsel %vm277, %v4193, %v4197
      %v4199 = vshrl.u32 %v3823, 16
      %v4201 = vrot.slane %v4199, 4
      %v4202 = vor.u32 %v4201, %v4197
      %v4203 = vrot.slane %v4202, 4
      %v4205 = vshll.u32 %v3824, 16
      %v4207 = vrot.slane %v4205, 5
      %v4208 = vsel %vm277, %v4203, %v4207
      %s4209 = scalar_lea.vmem %s1, 224
      %v4210 = vld [vmem:[%s4209] sm:$0xf]
      %v4211 = vld [vmem:[%s4209 + $0x4] sm:$0xf]
      %v4212 = vld [vmem:[%s4209 + $0x8] sm:$0xf]
      %v4213 = vld [vmem:[%s4209 + $0xc] sm:$0xf]
      %v4214 = vld [vmem:[%s4209 + $0x10] sm:$0xf]
      %v4215 = vld [vmem:[%s4209 + $0x14] sm:$0xf]
      %v4216 = vld [vmem:[%s4209 + $0x18] sm:$0xf]
      %v4217 = vld [vmem:[%s4209 + $0x1c] sm:$0xf]
      %v4218 = vunpack.c.l.b16 %v3838
      %v4219 = vunpack.c.l.b16 %v3848
      %v4220 = vunpack.c.l.b16 %v3862
      %v4221 = vunpack.c.l.b16 %v3872
      %v4222 = vunpack.c.l.b16 %v3886
      %v4223 = vunpack.c.l.b16 %v3896
      %v4224 = vunpack.c.l.b16 %v3910
      %v4225 = vunpack.c.l.b16 %v3920
      %v4226 = vunpack.c.l.b16 %v3934
      %v4227 = vunpack.c.l.b16 %v3944
      %v4228 = vunpack.c.l.b16 %v3958
      %v4229 = vunpack.c.l.b16 %v3968
      %v4230 = vunpack.c.l.b16 %v3982
      %v4231 = vunpack.c.l.b16 %v3992
      %v4232 = vunpack.c.l.b16 %v4006
      %v4233 = vunpack.c.l.b16 %v4016
      %v4234 = vunpack.c.l.b16 %v4030
      %v4235 = vunpack.c.l.b16 %v4040
      %v4236 = vunpack.c.l.b16 %v4054
      %v4237 = vunpack.c.l.b16 %v4064
      %v4238 = vunpack.c.l.b16 %v4078
      %v4239 = vunpack.c.l.b16 %v4088
      %v4240 = vunpack.c.l.b16 %v4102
      %v4241 = vunpack.c.l.b16 %v4112
      %v4242 = vunpack.c.l.b16 %v4126
      %v4243 = vunpack.c.l.b16 %v4136
      %v4244 = vunpack.c.l.b16 %v4150
      %v4245 = vunpack.c.l.b16 %v4160
      %v4246 = vunpack.c.l.b16 %v4174
      %v4247 = vunpack.c.l.b16 %v4184
      %v4248 = vunpack.c.l.b16 %v4198
      %v4249 = vunpack.c.l.b16 %v4208
      %v4250 = vpack.c.b16 %v4219, %v4218
      %v4251 = vpack.c.b16 %v4221, %v4220
      %v4252 = vpack.c.b16 %v4223, %v4222
      %v4253 = vpack.c.b16 %v4225, %v4224
      %v4254 = vpack.c.b16 %v4227, %v4226
      %v4255 = vpack.c.b16 %v4229, %v4228
      %v4256 = vpack.c.b16 %v4231, %v4230
      %v4257 = vpack.c.b16 %v4233, %v4232
      %v4258 = vpack.c.b16 %v4235, %v4234
      %v4259 = vpack.c.b16 %v4237, %v4236
      %v4260 = vpack.c.b16 %v4239, %v4238
      %v4261 = vpack.c.b16 %v4241, %v4240
      %v4262 = vpack.c.b16 %v4243, %v4242
      %v4263 = vpack.c.b16 %v4245, %v4244
      %v4264 = vpack.c.b16 %v4247, %v4246
      %v4265 = vpack.c.b16 %v4249, %v4248
      %v4274 = vunpack.c.l.b16 %v4210
      %v4275 = vunpack.c.l.b16 %v4211
      %v4276 = vunpack.c.l.b16 %v4212
      %v4277 = vunpack.c.l.b16 %v4213
      %v4278 = vunpack.c.l.b16 %v4214
      %v4279 = vunpack.c.l.b16 %v4215
      %v4280 = vunpack.c.l.b16 %v4216
      %v4281 = vunpack.c.l.b16 %v4217
      %v4282 = vpack.c.b16 %v4275, %v4274
      %v4283 = vpack.c.b16 %v4277, %v4276
      %v4284 = vpack.c.b16 %v4279, %v4278
      %v4285 = vpack.c.b16 %v4281, %v4280
      %v4291 = vsel %vm743, %v4250, 0
      %v4294 = vsel %vm743, %v4251, 0
      %v4297 = vsel %vm743, %v4252, 0
      %v4300 = vsel %vm743, %v4253, 0
      %v4303 = vsel %vm743, %v4254, 0
      %v4306 = vsel %vm743, %v4255, 0
      %v4309 = vsel %vm743, %v4256, 0
      %v4312 = vsel %vm743, %v4257, 0
      %v4315 = vsel %vm743, %v4258, 0
      %v4318 = vsel %vm743, %v4259, 0
      %v4321 = vsel %vm743, %v4260, 0
      %v4324 = vsel %vm743, %v4261, 0
      %v4327 = vsel %vm743, %v4262, 0
      %v4330 = vsel %vm743, %v4263, 0
      %v4333 = vsel %vm743, %v4264, 0
      %v4336 = vsel %vm743, %v4265, 0
      %4338 = vmatprep.subr.bf16.mxu0 0
      %4339 = vmatpush1.bf16.msra.mxu0 0
      %4340 = vmatprep.subr.bf16.mxu0 0
      %4341 = vmatpush1.bf16.msra.mxu0 0
      %4342 = vmatprep.subr.bf16.mxu0 0
      %4343 = vmatpush1.bf16.msra.mxu0 0
      %4344 = vmatprep.subr.bf16.mxu0 0
      %4345 = vmatpush1.bf16.msra.mxu0 0
      %4346 = vmatprep.subr.bf16.mxu0 0
      %4347 = vmatpush1.bf16.msra.mxu0 %v4285
      %4348 = vmatprep.subr.bf16.mxu0 0
      %4349 = vmatpush1.bf16.msra.mxu0 %v4284
      %4350 = vmatprep.subr.bf16.mxu0 0
      %4351 = vmatpush1.bf16.msra.mxu0 %v4283
      %4352 = vmatprep.subr.bf16.mxu0 0
      %4353 = vmatpush1.bf16.msra.mxu0 %v4282
      %4354 = vmatprep.subr.bf16.mxu0 0
      %4355 = vmatpush2.bf16.msra.mxu0 0
      %4356 = vmatprep.subr.bf16.mxu0 0
      %4357 = vmatpush2.bf16.msra.mxu0 0
      %4358 = vmatprep.subr.bf16.mxu0 0
      %4359 = vmatpush2.bf16.msra.mxu0 0
      %4360 = vmatprep.subr.bf16.mxu0 0
      %4361 = vmatpush2.bf16.msra.mxu0 0
      %4362 = vmatprep.subr.bf16.mxu0 0
      %4363 = vmatpush2.bf16.msra.mxu0 0
      %4364 = vmatprep.subr.bf16.mxu0 0
      %4365 = vmatpush2.bf16.msra.mxu0 0
      %4366 = vmatprep.subr.bf16.mxu0 0
      %4367 = vmatpush2.bf16.msra.mxu0 0
      %4368 = vmatprep.subr.bf16.mxu0 0
      %4369 = vmatpush2.bf16.msra.mxu0 0
      %4370 = vmatprep.mubr.bf16.mxu0 0
      %4371 = vmatmul.mubr.bf16.gmra.mxu0 %v4291
      %v4372 = vpop.f32.mrf.mxu0
      %v4373 = vadd.f32 0.0, %v4372
      %v4374 = vpop.f32.mrf.mxu0
      %v4375 = vpop.f32.mrf.mxu0
      %v4376 = vadd.f32 0.0, %v4375
      %v4377 = vpop.f32.mrf.mxu0
      %4378 = vmatprep.mubr.bf16.mxu0 0
      %4379 = vmatmul.mubr.bf16.gmra.mxu0 %v4294
      %v4380 = vpop.f32.mrf.mxu0
      %v4381 = vadd.f32 0.0, %v4380
      %v4382 = vpop.f32.mrf.mxu0
      %v4383 = vpop.f32.mrf.mxu0
      %v4384 = vadd.f32 0.0, %v4383
      %v4385 = vpop.f32.mrf.mxu0
      %4386 = vmatprep.mubr.bf16.mxu0 0
      %4387 = vmatmul.mubr.bf16.gmra.mxu0 %v4297
      %v4388 = vpop.f32.mrf.mxu0
      %v4389 = vadd.f32 0.0, %v4388
      %v4390 = vpop.f32.mrf.mxu0
      %v4391 = vpop.f32.mrf.mxu0
      %v4392 = vadd.f32 0.0, %v4391
      %v4393 = vpop.f32.mrf.mxu0
      %4394 = vmatprep.mubr.bf16.mxu0 0
      %4395 = vmatmul.mubr.bf16.gmra.mxu0 %v4300
      %v4396 = vpop.f32.mrf.mxu0
      %v4397 = vadd.f32 0.0, %v4396
      %v4398 = vpop.f32.mrf.mxu0
      %v4399 = vpop.f32.mrf.mxu0
      %v4400 = vadd.f32 0.0, %v4399
      %v4401 = vpop.f32.mrf.mxu0
      %4402 = vmatprep.mubr.bf16.mxu0 0
      %4403 = vmatmul.mubr.bf16.gmra.mxu0 %v4303
      %v4404 = vpop.f32.mrf.mxu0
      %v4405 = vadd.f32 0.0, %v4404
      %v4406 = vpop.f32.mrf.mxu0
      %v4407 = vpop.f32.mrf.mxu0
      %v4408 = vadd.f32 0.0, %v4407
      %v4409 = vpop.f32.mrf.mxu0
      %4410 = vmatprep.mubr.bf16.mxu0 0
      %4411 = vmatmul.mubr.bf16.gmra.mxu0 %v4306
      %v4412 = vpop.f32.mrf.mxu0
      %v4413 = vadd.f32 0.0, %v4412
      %v4414 = vpop.f32.mrf.mxu0
      %v4415 = vpop.f32.mrf.mxu0
      %v4416 = vadd.f32 0.0, %v4415
      %v4417 = vpop.f32.mrf.mxu0
      %4418 = vmatprep.mubr.bf16.mxu0 0
      %4419 = vmatmul.mubr.bf16.gmra.mxu0 %v4309
      %v4420 = vpop.f32.mrf.mxu0
      %v4421 = vadd.f32 0.0, %v4420
      %v4422 = vpop.f32.mrf.mxu0
      %v4423 = vpop.f32.mrf.mxu0
      %v4424 = vadd.f32 0.0, %v4423
      %v4425 = vpop.f32.mrf.mxu0
      %4426 = vmatprep.mubr.bf16.mxu0 0
      %4427 = vmatmul.mubr.bf16.gmra.mxu0 %v4312
      %v4428 = vpop.f32.mrf.mxu0
      %v4429 = vadd.f32 0.0, %v4428
      %v4430 = vpop.f32.mrf.mxu0
      %v4431 = vpop.f32.mrf.mxu0
      %v4432 = vadd.f32 0.0, %v4431
      %v4433 = vpop.f32.mrf.mxu0
      %4434 = vmatprep.mubr.bf16.mxu0 0
      %4435 = vmatmul.mubr.bf16.gmra.mxu0 %v4315
      %v4436 = vpop.f32.mrf.mxu0
      %v4437 = vadd.f32 0.0, %v4436
      %v4438 = vpop.f32.mrf.mxu0
      %v4439 = vpop.f32.mrf.mxu0
      %v4440 = vadd.f32 0.0, %v4439
      %v4441 = vpop.f32.mrf.mxu0
      %4442 = vmatprep.mubr.bf16.mxu0 0
      %4443 = vmatmul.mubr.bf16.gmra.mxu0 %v4318
      %v4444 = vpop.f32.mrf.mxu0
      %v4445 = vadd.f32 0.0, %v4444
      %v4446 = vpop.f32.mrf.mxu0
      %v4447 = vpop.f32.mrf.mxu0
      %v4448 = vadd.f32 0.0, %v4447
      %v4449 = vpop.f32.mrf.mxu0
      %4450 = vmatprep.mubr.bf16.mxu0 0
      %4451 = vmatmul.mubr.bf16.gmra.mxu0 %v4321
      %v4452 = vpop.f32.mrf.mxu0
      %v4453 = vadd.f32 0.0, %v4452
      %v4454 = vpop.f32.mrf.mxu0
      %v4455 = vpop.f32.mrf.mxu0
      %v4456 = vadd.f32 0.0, %v4455
      %v4457 = vpop.f32.mrf.mxu0
      %4458 = vmatprep.mubr.bf16.mxu0 0
      %4459 = vmatmul.mubr.bf16.gmra.mxu0 %v4324
      %v4460 = vpop.f32.mrf.mxu0
      %v4461 = vadd.f32 0.0, %v4460
      %v4462 = vpop.f32.mrf.mxu0
      %v4463 = vpop.f32.mrf.mxu0
      %v4464 = vadd.f32 0.0, %v4463
      %v4465 = vpop.f32.mrf.mxu0
      %4466 = vmatprep.mubr.bf16.mxu0 0
      %4467 = vmatmul.mubr.bf16.gmra.mxu0 %v4327
      %v4468 = vpop.f32.mrf.mxu0
      %v4469 = vadd.f32 0.0, %v4468
      %v4470 = vpop.f32.mrf.mxu0
      %v4471 = vpop.f32.mrf.mxu0
      %v4472 = vadd.f32 0.0, %v4471
      %v4473 = vpop.f32.mrf.mxu0
      %4474 = vmatprep.mubr.bf16.mxu0 0
      %4475 = vmatmul.mubr.bf16.gmra.mxu0 %v4330
      %v4476 = vpop.f32.mrf.mxu0
      %v4477 = vadd.f32 0.0, %v4476
      %v4478 = vpop.f32.mrf.mxu0
      %v4479 = vpop.f32.mrf.mxu0
      %v4480 = vadd.f32 0.0, %v4479
      %v4481 = vpop.f32.mrf.mxu0
      %4482 = vmatprep.mubr.bf16.mxu0 0
      %4483 = vmatmul.mubr.bf16.gmra.mxu0 %v4333
      %v4484 = vpop.f32.mrf.mxu0
      %v4485 = vadd.f32 0.0, %v4484
      %v4486 = vpop.f32.mrf.mxu0
      %v4487 = vpop.f32.mrf.mxu0
      %v4488 = vadd.f32 0.0, %v4487
      %v4489 = vpop.f32.mrf.mxu0
      %4490 = vmatprep.mubr.bf16.mxu0 0
      %4491 = vmatmul.mubr.bf16.gmra.mxu0 %v4336
      %v4492 = vpop.f32.mrf.mxu0
      %v4493 = vadd.f32 0.0, %v4492
      %v4494 = vpop.f32.mrf.mxu0
      %v4495 = vpop.f32.mrf.mxu0
      %v4496 = vadd.f32 0.0, %v4495
      %v4497 = vpop.f32.mrf.mxu0
      %4498 = vdwg.mxu0
      %v4499 = vadd.f32 %v3745, %v4373
      %v4500 = vadd.f32 %v3746, %v4376
      %v4501 = vadd.f32 %v3747, %v4381
      %v4502 = vadd.f32 %v3748, %v4384
      %v4503 = vadd.f32 %v3749, %v4389
      %v4504 = vadd.f32 %v3750, %v4392
      %v4505 = vadd.f32 %v3751, %v4397
      %v4506 = vadd.f32 %v3752, %v4400
      %v4507 = vadd.f32 %v3753, %v4405
      %v4508 = vadd.f32 %v3754, %v4408
      %v4509 = vadd.f32 %v3755, %v4413
      %v4510 = vadd.f32 %v3756, %v4416
      %v4511 = vadd.f32 %v3757, %v4421
      %v4512 = vadd.f32 %v3758, %v4424
      %v4513 = vadd.f32 %v3759, %v4429
      %v4514 = vadd.f32 %v3760, %v4432
      %v4515 = vadd.f32 %v3761, %v4437
      %v4516 = vadd.f32 %v3762, %v4440
      %v4517 = vadd.f32 %v3763, %v4445
      %v4518 = vadd.f32 %v3764, %v4448
      %v4519 = vadd.f32 %v3765, %v4453
      %v4520 = vadd.f32 %v3766, %v4456
      %v4521 = vadd.f32 %v3767, %v4461
      %v4522 = vadd.f32 %v3768, %v4464
      %v4523 = vadd.f32 %v3769, %v4469
      %v4524 = vadd.f32 %v3770, %v4472
      %v4525 = vadd.f32 %v3771, %v4477
      %v4526 = vadd.f32 %v3772, %v4480
      %v4527 = vadd.f32 %v3773, %v4485
      %v4528 = vadd.f32 %v3774, %v4488
      %v4529 = vadd.f32 %v3775, %v4493
      %v4530 = vadd.f32 %v3776, %v4496
      %v4531 = vld [vmem:[%s3390] sm:$0xe]
      %v4532 = vld [vmem:[%s3390 + $0xc] sm:$0xe]
      %v4533 = vld [vmem:[%s3390 + $0x18] sm:$0xe]
      %v4534 = vld [vmem:[%s3390 + $0x24] sm:$0xe]
      %v4535 = vld [vmem:[%s3390 + $0x30] sm:$0xe]
      %v4536 = vld [vmem:[%s3390 + $0x3c] sm:$0xe]
      %v4537 = vld [vmem:[%s3390 + $0x48] sm:$0xe]
      %v4538 = vld [vmem:[%s3390 + $0x54] sm:$0xe]
      %v4539 = vld [vmem:[%s3390 + $0x60] sm:$0xe]
      %v4540 = vld [vmem:[%s3390 + $0x6c] sm:$0xe]
      %v4541 = vld [vmem:[%s3390 + $0x78] sm:$0xe]
      %v4542 = vld [vmem:[%s3390 + $0x84] sm:$0xe]
      %v4543 = vld [vmem:[%s3390 + $0x90] sm:$0xe]
      %v4544 = vld [vmem:[%s3390 + $0x9c] sm:$0xe]
      %v4545 = vld [vmem:[%s3390 + $0xa8] sm:$0xe]
      %v4546 = vld [vmem:[%s3390 + $0xb4] sm:$0xe]
      %v4595 = vrot.slane %v4531, 5
      %v4596 = vrot.slane %v4595, 4
      %v4597 = vrot.slane %v3778, 5
      %v4598 = vsel %vm1316, %v4596, %v4597
      %v4599 = vrot.slane %v4597, 4
      %v4600 = vrot.slane %v3779, 5
      %v4601 = vsel %vm1316, %v4599, %v4600
      %v4602 = vrot.slane %v4532, 5
      %v4603 = vrot.slane %v4602, 4
      %v4604 = vrot.slane %v3781, 5
      %v4605 = vsel %vm1316, %v4603, %v4604
      %v4606 = vrot.slane %v4604, 4
      %v4607 = vrot.slane %v3782, 5
      %v4608 = vsel %vm1316, %v4606, %v4607
      %v4609 = vrot.slane %v4533, 5
      %v4610 = vrot.slane %v4609, 4
      %v4611 = vrot.slane %v3784, 5
      %v4612 = vsel %vm1316, %v4610, %v4611
      %v4613 = vrot.slane %v4611, 4
      %v4614 = vrot.slane %v3785, 5
      %v4615 = vsel %vm1316, %v4613, %v4614
      %v4616 = vrot.slane %v4534, 5
      %v4617 = vrot.slane %v4616, 4
      %v4618 = vrot.slane %v3787, 5
      %v4619 = vsel %vm1316, %v4617, %v4618
      %v4620 = vrot.slane %v4618, 4
      %v4621 = vrot.slane %v3788, 5
      %v4622 = vsel %vm1316, %v4620, %v4621
      %v4623 = vrot.slane %v4535, 5
      %v4624 = vrot.slane %v4623, 4
      %v4625 = vrot.slane %v3790, 5
      %v4626 = vsel %vm1316, %v4624, %v4625
      %v4627 = vrot.slane %v4625, 4
      %v4628 = vrot.slane %v3791, 5
      %v4629 = vsel %vm1316, %v4627, %v4628
      %v4630 = vrot.slane %v4536, 5
      %v4631 = vrot.slane %v4630, 4
      %v4632 = vrot.slane %v3793, 5
      %v4633 = vsel %vm1316, %v4631, %v4632
      %v4634 = vrot.slane %v4632, 4
      %v4635 = vrot.slane %v3794, 5
      %v4636 = vsel %vm1316, %v4634, %v4635
      %v4637 = vrot.slane %v4537, 5
      %v4638 = vrot.slane %v4637, 4
      %v4639 = vrot.slane %v3796, 5
      %v4640 = vsel %vm1316, %v4638, %v4639
      %v4641 = vrot.slane %v4639, 4
      %v4642 = vrot.slane %v3797, 5
      %v4643 = vsel %vm1316, %v4641, %v4642
      %v4644 = vrot.slane %v4538, 5
      %v4645 = vrot.slane %v4644, 4
      %v4646 = vrot.slane %v3799, 5
      %v4647 = vsel %vm1316, %v4645, %v4646
      %v4648 = vrot.slane %v4646, 4
      %v4649 = vrot.slane %v3800, 5
      %v4650 = vsel %vm1316, %v4648, %v4649
      %v4651 = vrot.slane %v4539, 5
      %v4652 = vrot.slane %v4651, 4
      %v4653 = vrot.slane %v3802, 5
      %v4654 = vsel %vm1316, %v4652, %v4653
      %v4655 = vrot.slane %v4653, 4
      %v4656 = vrot.slane %v3803, 5
      %v4657 = vsel %vm1316, %v4655, %v4656
      %v4658 = vrot.slane %v4540, 5
      %v4659 = vrot.slane %v4658, 4
      %v4660 = vrot.slane %v3805, 5
      %v4661 = vsel %vm1316, %v4659, %v4660
      %v4662 = vrot.slane %v4660, 4
      %v4663 = vrot.slane %v3806, 5
      %v4664 = vsel %vm1316, %v4662, %v4663
      %v4665 = vrot.slane %v4541, 5
      %v4666 = vrot.slane %v4665, 4
      %v4667 = vrot.slane %v3808, 5
      %v4668 = vsel %vm1316, %v4666, %v4667
      %v4669 = vrot.slane %v4667, 4
      %v4670 = vrot.slane %v3809, 5
      %v4671 = vsel %vm1316, %v4669, %v4670
      %v4672 = vrot.slane %v4542, 5
      %v4673 = vrot.slane %v4672, 4
      %v4674 = vrot.slane %v3811, 5
      %v4675 = vsel %vm1316, %v4673, %v4674
      %v4676 = vrot.slane %v4674, 4
      %v4677 = vrot.slane %v3812, 5
      %v4678 = vsel %vm1316, %v4676, %v4677
      %v4679 = vrot.slane %v4543, 5
      %v4680 = vrot.slane %v4679, 4
      %v4681 = vrot.slane %v3814, 5
      %v4682 = vsel %vm1316, %v4680, %v4681
      %v4683 = vrot.slane %v4681, 4
      %v4684 = vrot.slane %v3815, 5
      %v4685 = vsel %vm1316, %v4683, %v4684
      %v4686 = vrot.slane %v4544, 5
      %v4687 = vrot.slane %v4686, 4
      %v4688 = vrot.slane %v3817, 5
      %v4689 = vsel %vm1316, %v4687, %v4688
      %v4690 = vrot.slane %v4688, 4
      %v4691 = vrot.slane %v3818, 5
      %v4692 = vsel %vm1316, %v4690, %v4691
      %v4693 = vrot.slane %v4545, 5
      %v4694 = vrot.slane %v4693, 4
      %v4695 = vrot.slane %v3820, 5
      %v4696 = vsel %vm1316, %v4694, %v4695
      %v4697 = vrot.slane %v4695, 4
      %v4698 = vrot.slane %v3821, 5
      %v4699 = vsel %vm1316, %v4697, %v4698
      %v4700 = vrot.slane %v4546, 5
      %v4701 = vrot.slane %v4700, 4
      %v4702 = vrot.slane %v3823, 5
      %v4703 = vsel %vm1316, %v4701, %v4702
      %v4704 = vrot.slane %v4702, 4
      %v4705 = vrot.slane %v3824, 5
      %v4706 = vsel %vm1316, %v4704, %v4705
      %s4707 = scalar_lea.vmem %s1, 256
      %v4708 = vld [vmem:[%s4707] sm:$0xf]
      %v4709 = vld [vmem:[%s4707 + $0x4] sm:$0xf]
      %v4710 = vld [vmem:[%s4707 + $0x8] sm:$0xf]
      %v4711 = vld [vmem:[%s4707 + $0xc] sm:$0xf]
      %v4712 = vld [vmem:[%s4707 + $0x10] sm:$0xf]
      %v4713 = vld [vmem:[%s4707 + $0x14] sm:$0xf]
      %v4714 = vld [vmem:[%s4707 + $0x18] sm:$0xf]
      %v4715 = vld [vmem:[%s4707 + $0x1c] sm:$0xf]
      %v4716 = vunpack.c.l.b16 %v4598
      %v4717 = vunpack.c.l.b16 %v4601
      %v4718 = vunpack.c.l.b16 %v4605
      %v4719 = vunpack.c.l.b16 %v4608
      %v4720 = vunpack.c.l.b16 %v4612
      %v4721 = vunpack.c.l.b16 %v4615
      %v4722 = vunpack.c.l.b16 %v4619
      %v4723 = vunpack.c.l.b16 %v4622
      %v4724 = vunpack.c.l.b16 %v4626
      %v4725 = vunpack.c.l.b16 %v4629
      %v4726 = vunpack.c.l.b16 %v4633
      %v4727 = vunpack.c.l.b16 %v4636
      %v4728 = vunpack.c.l.b16 %v4640
      %v4729 = vunpack.c.l.b16 %v4643
      %v4730 = vunpack.c.l.b16 %v4647
      %v4731 = vunpack.c.l.b16 %v4650
      %v4732 = vunpack.c.l.b16 %v4654
      %v4733 = vunpack.c.l.b16 %v4657
      %v4734 = vunpack.c.l.b16 %v4661
      %v4735 = vunpack.c.l.b16 %v4664
      %v4736 = vunpack.c.l.b16 %v4668
      %v4737 = vunpack.c.l.b16 %v4671
      %v4738 = vunpack.c.l.b16 %v4675
      %v4739 = vunpack.c.l.b16 %v4678
      %v4740 = vunpack.c.l.b16 %v4682
      %v4741 = vunpack.c.l.b16 %v4685
      %v4742 = vunpack.c.l.b16 %v4689
      %v4743 = vunpack.c.l.b16 %v4692
      %v4744 = vunpack.c.l.b16 %v4696
      %v4745 = vunpack.c.l.b16 %v4699
      %v4746 = vunpack.c.l.b16 %v4703
      %v4747 = vunpack.c.l.b16 %v4706
      %v4748 = vpack.c.b16 %v4717, %v4716
      %v4749 = vpack.c.b16 %v4719, %v4718
      %v4750 = vpack.c.b16 %v4721, %v4720
      %v4751 = vpack.c.b16 %v4723, %v4722
      %v4752 = vpack.c.b16 %v4725, %v4724
      %v4753 = vpack.c.b16 %v4727, %v4726
      %v4754 = vpack.c.b16 %v4729, %v4728
      %v4755 = vpack.c.b16 %v4731, %v4730
      %v4756 = vpack.c.b16 %v4733, %v4732
      %v4757 = vpack.c.b16 %v4735, %v4734
      %v4758 = vpack.c.b16 %v4737, %v4736
      %v4759 = vpack.c.b16 %v4739, %v4738
      %v4760 = vpack.c.b16 %v4741, %v4740
      %v4761 = vpack.c.b16 %v4743, %v4742
      %v4762 = vpack.c.b16 %v4745, %v4744
      %v4763 = vpack.c.b16 %v4747, %v4746
      %v4772 = vunpack.c.l.b16 %v4708
      %v4773 = vunpack.c.l.b16 %v4709
      %v4774 = vunpack.c.l.b16 %v4710
      %v4775 = vunpack.c.l.b16 %v4711
      %v4776 = vunpack.c.l.b16 %v4712
      %v4777 = vunpack.c.l.b16 %v4713
      %v4778 = vunpack.c.l.b16 %v4714
      %v4779 = vunpack.c.l.b16 %v4715
      %v4780 = vpack.c.b16 %v4773, %v4772
      %v4781 = vpack.c.b16 %v4775, %v4774
      %v4782 = vpack.c.b16 %v4777, %v4776
      %v4783 = vpack.c.b16 %v4779, %v4778
      %v4789 = vsel %vm743, %v4748, 0
      %v4792 = vsel %vm743, %v4749, 0
      %v4795 = vsel %vm743, %v4750, 0
      %v4798 = vsel %vm743, %v4751, 0
      %v4801 = vsel %vm743, %v4752, 0
      %v4804 = vsel %vm743, %v4753, 0
      %v4807 = vsel %vm743, %v4754, 0
      %v4810 = vsel %vm743, %v4755, 0
      %v4813 = vsel %vm743, %v4756, 0
      %v4816 = vsel %vm743, %v4757, 0
      %v4819 = vsel %vm743, %v4758, 0
      %v4822 = vsel %vm743, %v4759, 0
      %v4825 = vsel %vm743, %v4760, 0
      %v4828 = vsel %vm743, %v4761, 0
      %v4831 = vsel %vm743, %v4762, 0
      %v4834 = vsel %vm743, %v4763, 0
      %4836 = vmatprep.subr.bf16.mxu0 0
      %4837 = vmatpush1.bf16.msra.mxu0 0
      %4838 = vmatprep.subr.bf16.mxu0 0
      %4839 = vmatpush1.bf16.msra.mxu0 0
      %4840 = vmatprep.subr.bf16.mxu0 0
      %4841 = vmatpush1.bf16.msra.mxu0 0
      %4842 = vmatprep.subr.bf16.mxu0 0
      %4843 = vmatpush1.bf16.msra.mxu0 0
      %4844 = vmatprep.subr.bf16.mxu0 0
      %4845 = vmatpush1.bf16.msra.mxu0 %v4783
      %4846 = vmatprep.subr.bf16.mxu0 0
      %4847 = vmatpush1.bf16.msra.mxu0 %v4782
      %4848 = vmatprep.subr.bf16.mxu0 0
      %4849 = vmatpush1.bf16.msra.mxu0 %v4781
      %4850 = vmatprep.subr.bf16.mxu0 0
      %4851 = vmatpush1.bf16.msra.mxu0 %v4780
      %4852 = vmatprep.subr.bf16.mxu0 0
      %4853 = vmatpush2.bf16.msra.mxu0 0
      %4854 = vmatprep.subr.bf16.mxu0 0
      %4855 = vmatpush2.bf16.msra.mxu0 0
      %4856 = vmatprep.subr.bf16.mxu0 0
      %4857 = vmatpush2.bf16.msra.mxu0 0
      %4858 = vmatprep.subr.bf16.mxu0 0
      %4859 = vmatpush2.bf16.msra.mxu0 0
      %4860 = vmatprep.subr.bf16.mxu0 0
      %4861 = vmatpush2.bf16.msra.mxu0 0
      %4862 = vmatprep.subr.bf16.mxu0 0
      %4863 = vmatpush2.bf16.msra.mxu0 0
      %4864 = vmatprep.subr.bf16.mxu0 0
      %4865 = vmatpush2.bf16.msra.mxu0 0
      %4866 = vmatprep.subr.bf16.mxu0 0
      %4867 = vmatpush2.bf16.msra.mxu0 0
      %4868 = vmatprep.mubr.bf16.mxu0 0
      %4869 = vmatmul.mubr.bf16.gmra.mxu0 %v4789
      %v4870 = vpop.f32.mrf.mxu0
      %v4871 = vadd.f32 0.0, %v4870
      %v4872 = vpop.f32.mrf.mxu0
      %v4873 = vpop.f32.mrf.mxu0
      %v4874 = vadd.f32 0.0, %v4873
      %v4875 = vpop.f32.mrf.mxu0
      %4876 = vmatprep.mubr.bf16.mxu0 0
      %4877 = vmatmul.mubr.bf16.gmra.mxu0 %v4792
      %v4878 = vpop.f32.mrf.mxu0
      %v4879 = vadd.f32 0.0, %v4878
      %v4880 = vpop.f32.mrf.mxu0
      %v4881 = vpop.f32.mrf.mxu0
      %v4882 = vadd.f32 0.0, %v4881
      %v4883 = vpop.f32.mrf.mxu0
      %4884 = vmatprep.mubr.bf16.mxu0 0
      %4885 = vmatmul.mubr.bf16.gmra.mxu0 %v4795
      %v4886 = vpop.f32.mrf.mxu0
      %v4887 = vadd.f32 0.0, %v4886
      %v4888 = vpop.f32.mrf.mxu0
      %v4889 = vpop.f32.mrf.mxu0
      %v4890 = vadd.f32 0.0, %v4889
      %v4891 = vpop.f32.mrf.mxu0
      %4892 = vmatprep.mubr.bf16.mxu0 0
      %4893 = vmatmul.mubr.bf16.gmra.mxu0 %v4798
      %v4894 = vpop.f32.mrf.mxu0
      %v4895 = vadd.f32 0.0, %v4894
      %v4896 = vpop.f32.mrf.mxu0
      %v4897 = vpop.f32.mrf.mxu0
      %v4898 = vadd.f32 0.0, %v4897
      %v4899 = vpop.f32.mrf.mxu0
      %4900 = vmatprep.mubr.bf16.mxu0 0
      %4901 = vmatmul.mubr.bf16.gmra.mxu0 %v4801
      %v4902 = vpop.f32.mrf.mxu0
      %v4903 = vadd.f32 0.0, %v4902
      %v4904 = vpop.f32.mrf.mxu0
      %v4905 = vpop.f32.mrf.mxu0
      %v4906 = vadd.f32 0.0, %v4905
      %v4907 = vpop.f32.mrf.mxu0
      %4908 = vmatprep.mubr.bf16.mxu0 0
      %4909 = vmatmul.mubr.bf16.gmra.mxu0 %v4804
      %v4910 = vpop.f32.mrf.mxu0
      %v4911 = vadd.f32 0.0, %v4910
      %v4912 = vpop.f32.mrf.mxu0
      %v4913 = vpop.f32.mrf.mxu0
      %v4914 = vadd.f32 0.0, %v4913
      %v4915 = vpop.f32.mrf.mxu0
      %4916 = vmatprep.mubr.bf16.mxu0 0
      %4917 = vmatmul.mubr.bf16.gmra.mxu0 %v4807
      %v4918 = vpop.f32.mrf.mxu0
      %v4919 = vadd.f32 0.0, %v4918
      %v4920 = vpop.f32.mrf.mxu0
      %v4921 = vpop.f32.mrf.mxu0
      %v4922 = vadd.f32 0.0, %v4921
      %v4923 = vpop.f32.mrf.mxu0
      %4924 = vmatprep.mubr.bf16.mxu0 0
      %4925 = vmatmul.mubr.bf16.gmra.mxu0 %v4810
      %v4926 = vpop.f32.mrf.mxu0
      %v4927 = vadd.f32 0.0, %v4926
      %v4928 = vpop.f32.mrf.mxu0
      %v4929 = vpop.f32.mrf.mxu0
      %v4930 = vadd.f32 0.0, %v4929
      %v4931 = vpop.f32.mrf.mxu0
      %4932 = vmatprep.mubr.bf16.mxu0 0
      %4933 = vmatmul.mubr.bf16.gmra.mxu0 %v4813
      %v4934 = vpop.f32.mrf.mxu0
      %v4935 = vadd.f32 0.0, %v4934
      %v4936 = vpop.f32.mrf.mxu0
      %v4937 = vpop.f32.mrf.mxu0
      %v4938 = vadd.f32 0.0, %v4937
      %v4939 = vpop.f32.mrf.mxu0
      %4940 = vmatprep.mubr.bf16.mxu0 0
      %4941 = vmatmul.mubr.bf16.gmra.mxu0 %v4816
      %v4942 = vpop.f32.mrf.mxu0
      %v4943 = vadd.f32 0.0, %v4942
      %v4944 = vpop.f32.mrf.mxu0
      %v4945 = vpop.f32.mrf.mxu0
      %v4946 = vadd.f32 0.0, %v4945
      %v4947 = vpop.f32.mrf.mxu0
      %4948 = vmatprep.mubr.bf16.mxu0 0
      %4949 = vmatmul.mubr.bf16.gmra.mxu0 %v4819
      %v4950 = vpop.f32.mrf.mxu0
      %v4951 = vadd.f32 0.0, %v4950
      %v4952 = vpop.f32.mrf.mxu0
      %v4953 = vpop.f32.mrf.mxu0
      %v4954 = vadd.f32 0.0, %v4953
      %v4955 = vpop.f32.mrf.mxu0
      %4956 = vmatprep.mubr.bf16.mxu0 0
      %4957 = vmatmul.mubr.bf16.gmra.mxu0 %v4822
      %v4958 = vpop.f32.mrf.mxu0
      %v4959 = vadd.f32 0.0, %v4958
      %v4960 = vpop.f32.mrf.mxu0
      %v4961 = vpop.f32.mrf.mxu0
      %v4962 = vadd.f32 0.0, %v4961
      %v4963 = vpop.f32.mrf.mxu0
      %4964 = vmatprep.mubr.bf16.mxu0 0
      %4965 = vmatmul.mubr.bf16.gmra.mxu0 %v4825
      %v4966 = vpop.f32.mrf.mxu0
      %v4967 = vadd.f32 0.0, %v4966
      %v4968 = vpop.f32.mrf.mxu0
      %v4969 = vpop.f32.mrf.mxu0
      %v4970 = vadd.f32 0.0, %v4969
      %v4971 = vpop.f32.mrf.mxu0
      %4972 = vmatprep.mubr.bf16.mxu0 0
      %4973 = vmatmul.mubr.bf16.gmra.mxu0 %v4828
      %v4974 = vpop.f32.mrf.mxu0
      %v4975 = vadd.f32 0.0, %v4974
      %v4976 = vpop.f32.mrf.mxu0
      %v4977 = vpop.f32.mrf.mxu0
      %v4978 = vadd.f32 0.0, %v4977
      %v4979 = vpop.f32.mrf.mxu0
      %4980 = vmatprep.mubr.bf16.mxu0 0
      %4981 = vmatmul.mubr.bf16.gmra.mxu0 %v4831
      %v4982 = vpop.f32.mrf.mxu0
      %v4983 = vadd.f32 0.0, %v4982
      %v4984 = vpop.f32.mrf.mxu0
      %v4985 = vpop.f32.mrf.mxu0
      %v4986 = vadd.f32 0.0, %v4985
      %v4987 = vpop.f32.mrf.mxu0
      %4988 = vmatprep.mubr.bf16.mxu0 0
      %4989 = vmatmul.mubr.bf16.gmra.mxu0 %v4834
      %v4990 = vpop.f32.mrf.mxu0
      %v4991 = vadd.f32 0.0, %v4990
      %v4992 = vpop.f32.mrf.mxu0
      %v4993 = vpop.f32.mrf.mxu0
      %v4994 = vadd.f32 0.0, %v4993
      %v4995 = vpop.f32.mrf.mxu0
      %4996 = vdwg.mxu0
      %v4997 = vadd.f32 %v4499, %v4871
      %v4998 = vadd.f32 %v4500, %v4874
      %v4999 = vadd.f32 %v4501, %v4879
      %v5000 = vadd.f32 %v4502, %v4882
      %v5001 = vadd.f32 %v4503, %v4887
      %v5002 = vadd.f32 %v4504, %v4890
      %v5003 = vadd.f32 %v4505, %v4895
      %v5004 = vadd.f32 %v4506, %v4898
      %v5005 = vadd.f32 %v4507, %v4903
      %v5006 = vadd.f32 %v4508, %v4906
      %v5007 = vadd.f32 %v4509, %v4911
      %v5008 = vadd.f32 %v4510, %v4914
      %v5009 = vadd.f32 %v4511, %v4919
      %v5010 = vadd.f32 %v4512, %v4922
      %v5011 = vadd.f32 %v4513, %v4927
      %v5012 = vadd.f32 %v4514, %v4930
      %v5013 = vadd.f32 %v4515, %v4935
      %v5014 = vadd.f32 %v4516, %v4938
      %v5015 = vadd.f32 %v4517, %v4943
      %v5016 = vadd.f32 %v4518, %v4946
      %v5017 = vadd.f32 %v4519, %v4951
      %v5018 = vadd.f32 %v4520, %v4954
      %v5019 = vadd.f32 %v4521, %v4959
      %v5020 = vadd.f32 %v4522, %v4962
      %v5021 = vadd.f32 %v4523, %v4967
      %v5022 = vadd.f32 %v4524, %v4970
      %v5023 = vadd.f32 %v4525, %v4975
      %v5024 = vadd.f32 %v4526, %v4978
      %v5025 = vadd.f32 %v4527, %v4983
      %v5026 = vadd.f32 %v4528, %v4986
      %v5027 = vadd.f32 %v4529, %v4991
      %v5028 = vadd.f32 %v4530, %v4994
      %v5029 = vld [vmem:[%s2] sm:$0x1]
      %v5031 = vlaneseq
      %v5032 = vshrl.u32 %v5031, 7
      %v5033 = vsub.s32 0, %v5032
      %v5034 = vrot.slane %v5029, %v5033
      %v5036 = vadd.f32 %v4997, %v5034
      %v5037 = vadd.f32 %v4998, %v5034
      %v5038 = vadd.f32 %v4999, %v5034
      %v5039 = vadd.f32 %v5000, %v5034
      %v5040 = vadd.f32 %v5001, %v5034
      %v5041 = vadd.f32 %v5002, %v5034
      %v5042 = vadd.f32 %v5003, %v5034
      %v5043 = vadd.f32 %v5004, %v5034
      %v5044 = vadd.f32 %v5005, %v5034
      %v5045 = vadd.f32 %v5006, %v5034
      %v5046 = vadd.f32 %v5007, %v5034
      %v5047 = vadd.f32 %v5008, %v5034
      %v5048 = vadd.f32 %v5009, %v5034
      %v5049 = vadd.f32 %v5010, %v5034
      %v5050 = vadd.f32 %v5011, %v5034
      %v5051 = vadd.f32 %v5012, %v5034
      %v5052 = vadd.f32 %v5013, %v5034
      %v5053 = vadd.f32 %v5014, %v5034
      %v5054 = vadd.f32 %v5015, %v5034
      %v5055 = vadd.f32 %v5016, %v5034
      %v5056 = vadd.f32 %v5017, %v5034
      %v5057 = vadd.f32 %v5018, %v5034
      %v5058 = vadd.f32 %v5019, %v5034
      %v5059 = vadd.f32 %v5020, %v5034
      %v5060 = vadd.f32 %v5021, %v5034
      %v5061 = vadd.f32 %v5022, %v5034
      %v5062 = vadd.f32 %v5023, %v5034
      %v5063 = vadd.f32 %v5024, %v5034
      %v5064 = vadd.f32 %v5025, %v5034
      %v5065 = vadd.f32 %v5026, %v5034
      %v5066 = vadd.f32 %v5027, %v5034
      %v5067 = vadd.f32 %v5028, %v5034
      %v5068 = vld [vmem:[%s212] sm:$0xf]
      %v5069 = vld [vmem:[%s212 + $0x4] sm:$0xf]
      %v5070 = vld [vmem:[%s212 + $0x8] sm:$0xf]
      %v5071 = vld [vmem:[%s212 + $0xc] sm:$0xf]
      %v5072 = vld [vmem:[%s212 + $0x10] sm:$0xf]
      %v5073 = vld [vmem:[%s212 + $0x14] sm:$0xf]
      %v5074 = vld [vmem:[%s212 + $0x18] sm:$0xf]
      %v5075 = vld [vmem:[%s212 + $0x1c] sm:$0xf]
      %v5076 = vld [vmem:[%s212 + $0x20] sm:$0xf]
      %v5077 = vld [vmem:[%s212 + $0x24] sm:$0xf]
      %v5078 = vld [vmem:[%s212 + $0x28] sm:$0xf]
      %v5079 = vld [vmem:[%s212 + $0x2c] sm:$0xf]
      %v5080 = vld [vmem:[%s212 + $0x30] sm:$0xf]
      %v5081 = vld [vmem:[%s212 + $0x34] sm:$0xf]
      %v5082 = vld [vmem:[%s212 + $0x38] sm:$0xf]
      %v5083 = vld [vmem:[%s212 + $0x3c] sm:$0xf]
      %v5084 = vld [vmem:[%s212 + $0x40] sm:$0xf]
      %v5085 = vld [vmem:[%s212 + $0x44] sm:$0xf]
      %v5086 = vld [vmem:[%s212 + $0x48] sm:$0xf]
      %v5087 = vld [vmem:[%s212 + $0x4c] sm:$0xf]
      %v5088 = vld [vmem:[%s212 + $0x50] sm:$0xf]
      %v5089 = vld [vmem:[%s212 + $0x54] sm:$0xf]
      %v5090 = vld [vmem:[%s212 + $0x58] sm:$0xf]
      %v5091 = vld [vmem:[%s212 + $0x5c] sm:$0xf]
      %v5092 = vld [vmem:[%s212 + $0x60] sm:$0xf]
      %v5093 = vld [vmem:[%s212 + $0x64] sm:$0xf]
      %v5094 = vld [vmem:[%s212 + $0x68] sm:$0xf]
      %v5095 = vld [vmem:[%s212 + $0x6c] sm:$0xf]
      %v5096 = vld [vmem:[%s212 + $0x70] sm:$0xf]
      %v5097 = vld [vmem:[%s212 + $0x74] sm:$0xf]
      %v5098 = vld [vmem:[%s212 + $0x78] sm:$0xf]
      %v5099 = vld [vmem:[%s212 + $0x7c] sm:$0xf]
      %v5100 = vunpack.c.l.bf16 %v5068
      %v5101 = vunpack.c.l.bf16 %v5069
      %v5102 = vunpack.c.l.bf16 %v5070
      %v5103 = vunpack.c.l.bf16 %v5071
      %v5104 = vunpack.c.l.bf16 %v5072
      %v5105 = vunpack.c.l.bf16 %v5073
      %v5106 = vunpack.c.l.bf16 %v5074
      %v5107 = vunpack.c.l.bf16 %v5075
      %v5108 = vunpack.c.l.bf16 %v5076
      %v5109 = vunpack.c.l.bf16 %v5077
      %v5110 = vunpack.c.l.bf16 %v5078
      %v5111 = vunpack.c.l.bf16 %v5079
      %v5112 = vunpack.c.l.bf16 %v5080
      %v5113 = vunpack.c.l.bf16 %v5081
      %v5114 = vunpack.c.l.bf16 %v5082
      %v5115 = vunpack.c.l.bf16 %v5083
      %v5116 = vunpack.c.l.bf16 %v5084
      %v5117 = vunpack.c.l.bf16 %v5085
      %v5118 = vunpack.c.l.bf16 %v5086
      %v5119 = vunpack.c.l.bf16 %v5087
      %v5120 = vunpack.c.l.bf16 %v5088
      %v5121 = vunpack.c.l.bf16 %v5089
      %v5122 = vunpack.c.l.bf16 %v5090
      %v5123 = vunpack.c.l.bf16 %v5091
      %v5124 = vunpack.c.l.bf16 %v5092
      %v5125 = vunpack.c.l.bf16 %v5093
      %v5126 = vunpack.c.l.bf16 %v5094
      %v5127 = vunpack.c.l.bf16 %v5095
      %v5128 = vunpack.c.l.bf16 %v5096
      %v5129 = vunpack.c.l.bf16 %v5097
      %v5130 = vunpack.c.l.bf16 %v5098
      %v5131 = vunpack.c.l.bf16 %v5099
      %v5132 = vadd.f32 %v5036, %v5100
      %v5133 = vadd.f32 %v5037, %v5101
      %v5134 = vadd.f32 %v5038, %v5102
      %v5135 = vadd.f32 %v5039, %v5103
      %v5136 = vadd.f32 %v5040, %v5104
      %v5137 = vadd.f32 %v5041, %v5105
      %v5138 = vadd.f32 %v5042, %v5106
      %v5139 = vadd.f32 %v5043, %v5107
      %v5140 = vadd.f32 %v5044, %v5108
      %v5141 = vadd.f32 %v5045, %v5109
      %v5142 = vadd.f32 %v5046, %v5110
      %v5143 = vadd.f32 %v5047, %v5111
      %v5144 = vadd.f32 %v5048, %v5112
      %v5145 = vadd.f32 %v5049, %v5113
      %v5146 = vadd.f32 %v5050, %v5114
      %v5147 = vadd.f32 %v5051, %v5115
      %v5148 = vadd.f32 %v5052, %v5116
      %v5149 = vadd.f32 %v5053, %v5117
      %v5150 = vadd.f32 %v5054, %v5118
      %v5151 = vadd.f32 %v5055, %v5119
      %v5152 = vadd.f32 %v5056, %v5120
      %v5153 = vadd.f32 %v5057, %v5121
      %v5154 = vadd.f32 %v5058, %v5122
      %v5155 = vadd.f32 %v5059, %v5123
      %v5156 = vadd.f32 %v5060, %v5124
      %v5157 = vadd.f32 %v5061, %v5125
      %v5158 = vadd.f32 %v5062, %v5126
      %v5159 = vadd.f32 %v5063, %v5127
      %v5160 = vadd.f32 %v5064, %v5128
      %v5161 = vadd.f32 %v5065, %v5129
      %v5162 = vadd.f32 %v5066, %v5130
      %v5163 = vadd.f32 %v5067, %v5131
      %v5164 = vmax.f32 %v5132, 0.0
      %v5165 = vmax.f32 %v5133, 0.0
      %v5166 = vmax.f32 %v5134, 0.0
      %v5167 = vmax.f32 %v5135, 0.0
      %v5168 = vmax.f32 %v5136, 0.0
      %v5169 = vmax.f32 %v5137, 0.0
      %v5170 = vmax.f32 %v5138, 0.0
      %v5171 = vmax.f32 %v5139, 0.0
      %v5172 = vmax.f32 %v5140, 0.0
      %v5173 = vmax.f32 %v5141, 0.0
      %v5174 = vmax.f32 %v5142, 0.0
      %v5175 = vmax.f32 %v5143, 0.0
      %v5176 = vmax.f32 %v5144, 0.0
      %v5177 = vmax.f32 %v5145, 0.0
      %v5178 = vmax.f32 %v5146, 0.0
      %v5179 = vmax.f32 %v5147, 0.0
      %v5180 = vmax.f32 %v5148, 0.0
      %v5181 = vmax.f32 %v5149, 0.0
      %v5182 = vmax.f32 %v5150, 0.0
      %v5183 = vmax.f32 %v5151, 0.0
      %v5184 = vmax.f32 %v5152, 0.0
      %v5185 = vmax.f32 %v5153, 0.0
      %v5186 = vmax.f32 %v5154, 0.0
      %v5187 = vmax.f32 %v5155, 0.0
      %v5188 = vmax.f32 %v5156, 0.0
      %v5189 = vmax.f32 %v5157, 0.0
      %v5190 = vmax.f32 %v5158, 0.0
      %v5191 = vmax.f32 %v5159, 0.0
      %v5192 = vmax.f32 %v5160, 0.0
      %v5193 = vmax.f32 %v5161, 0.0
      %v5194 = vmax.f32 %v5162, 0.0
      %v5195 = vmax.f32 %v5163, 0.0
      %v5196 = vpack.c.bf16 %v5165, %v5164
      %v5197 = vpack.c.bf16 %v5167, %v5166
      %v5198 = vpack.c.bf16 %v5169, %v5168
      %v5199 = vpack.c.bf16 %v5171, %v5170
      %v5200 = vpack.c.bf16 %v5173, %v5172
      %v5201 = vpack.c.bf16 %v5175, %v5174
      %v5202 = vpack.c.bf16 %v5177, %v5176
      %v5203 = vpack.c.bf16 %v5179, %v5178
      %v5204 = vpack.c.bf16 %v5181, %v5180
      %v5205 = vpack.c.bf16 %v5183, %v5182
      %v5206 = vpack.c.bf16 %v5185, %v5184
      %v5207 = vpack.c.bf16 %v5187, %v5186
      %v5208 = vpack.c.bf16 %v5189, %v5188
      %v5209 = vpack.c.bf16 %v5191, %v5190
      %v5210 = vpack.c.bf16 %v5193, %v5192
      %v5211 = vpack.c.bf16 %v5195, %v5194
      %v5228 = vunpack.c.l.b16 %v5196
      %v5229 = vunpack.c.h.b16 %v5196
      %v5230 = vunpack.c.l.b16 %v5197
      %v5231 = vunpack.c.h.b16 %v5197
      %v5232 = vunpack.c.l.b16 %v5198
      %v5233 = vunpack.c.h.b16 %v5198
      %v5234 = vunpack.c.l.b16 %v5199
      %v5235 = vunpack.c.h.b16 %v5199
      %v5236 = vunpack.c.l.b16 %v5200
      %v5237 = vunpack.c.h.b16 %v5200
      %v5238 = vunpack.c.l.b16 %v5201
      %v5239 = vunpack.c.h.b16 %v5201
      %v5240 = vunpack.c.l.b16 %v5202
      %v5241 = vunpack.c.h.b16 %v5202
      %v5242 = vunpack.c.l.b16 %v5203
      %v5243 = vunpack.c.h.b16 %v5203
      %v5244 = vunpack.c.l.b16 %v5204
      %v5245 = vunpack.c.h.b16 %v5204
      %v5246 = vunpack.c.l.b16 %v5205
      %v5247 = vunpack.c.h.b16 %v5205
      %v5248 = vunpack.c.l.b16 %v5206
      %v5249 = vunpack.c.h.b16 %v5206
      %v5250 = vunpack.c.l.b16 %v5207
      %v5251 = vunpack.c.h.b16 %v5207
      %v5252 = vunpack.c.l.b16 %v5208
      %v5253 = vunpack.c.h.b16 %v5208
      %v5254 = vunpack.c.l.b16 %v5209
      %v5255 = vunpack.c.h.b16 %v5209
      %v5256 = vunpack.c.l.b16 %v5210
      %v5257 = vunpack.c.h.b16 %v5210
      %v5258 = vunpack.c.l.b16 %v5211
      %v5259 = vunpack.c.h.b16 %v5211
      %v5260 = vpack.c.b16 %v5228, %v5228
      %v5261 = vpack.c.b16 %v5229, %v5229
      %v5262 = vpack.c.b16 %v5230, %v5230
      %v5263 = vpack.c.b16 %v5231, %v5231
      %v5264 = vpack.c.b16 %v5232, %v5232
      %v5265 = vpack.c.b16 %v5233, %v5233
      %v5266 = vpack.c.b16 %v5234, %v5234
      %v5267 = vpack.c.b16 %v5235, %v5235
      %v5268 = vpack.c.b16 %v5236, %v5236
      %v5269 = vpack.c.b16 %v5237, %v5237
      %v5270 = vpack.c.b16 %v5238, %v5238
      %v5271 = vpack.c.b16 %v5239, %v5239
      %v5272 = vpack.c.b16 %v5240, %v5240
      %v5273 = vpack.c.b16 %v5241, %v5241
      %v5274 = vpack.c.b16 %v5242, %v5242
      %v5275 = vpack.c.b16 %v5243, %v5243
      %v5276 = vpack.c.b16 %v5244, %v5244
      %v5277 = vpack.c.b16 %v5245, %v5245
      %v5278 = vpack.c.b16 %v5246, %v5246
      %v5279 = vpack.c.b16 %v5247, %v5247
      %v5280 = vpack.c.b16 %v5248, %v5248
      %v5281 = vpack.c.b16 %v5249, %v5249
      %v5282 = vpack.c.b16 %v5250, %v5250
      %v5283 = vpack.c.b16 %v5251, %v5251
      %v5284 = vpack.c.b16 %v5252, %v5252
      %v5285 = vpack.c.b16 %v5253, %v5253
      %v5286 = vpack.c.b16 %v5254, %v5254
      %v5287 = vpack.c.b16 %v5255, %v5255
      %v5288 = vpack.c.b16 %v5256, %v5256
      %v5289 = vpack.c.b16 %v5257, %v5257
      %v5290 = vpack.c.b16 %v5258, %v5258
      %v5291 = vpack.c.b16 %v5259, %v5259
      %vm5324 = vcmask 519168
      %5325 = vst.msk [vmem:[%s217] sm:$0xf] %vm5324, %v5260
      %5326 = vst.msk [vmem:[%s217 + $0x4] sm:$0xf] %vm5324, %v5261
      %5327 = vst.msk [vmem:[%s217 + $0x8] sm:$0xf] %vm5324, %v5262
      %5328 = vst.msk [vmem:[%s217 + $0xc] sm:$0xf] %vm5324, %v5263
      %5329 = vst.msk [vmem:[%s217 + $0x10] sm:$0xf] %vm5324, %v5264
      %5330 = vst.msk [vmem:[%s217 + $0x14] sm:$0xf] %vm5324, %v5265
      %5331 = vst.msk [vmem:[%s217 + $0x18] sm:$0xf] %vm5324, %v5266
      %5332 = vst.msk [vmem:[%s217 + $0x1c] sm:$0xf] %vm5324, %v5267
      %5333 = vst.msk [vmem:[%s217 + $0x20] sm:$0xf] %vm5324, %v5268
      %5334 = vst.msk [vmem:[%s217 + $0x24] sm:$0xf] %vm5324, %v5269
      %5335 = vst.msk [vmem:[%s217 + $0x28] sm:$0xf] %vm5324, %v5270
      %5336 = vst.msk [vmem:[%s217 + $0x2c] sm:$0xf] %vm5324, %v5271
      %5337 = vst.msk [vmem:[%s217 + $0x30] sm:$0xf] %vm5324, %v5272
      %5338 = vst.msk [vmem:[%s217 + $0x34] sm:$0xf] %vm5324, %v5273
      %5339 = vst.msk [vmem:[%s217 + $0x38] sm:$0xf] %vm5324, %v5274
      %5340 = vst.msk [vmem:[%s217 + $0x3c] sm:$0xf] %vm5324, %v5275
      %5341 = vst.msk [vmem:[%s217 + $0x40] sm:$0xf] %vm5324, %v5276
      %5342 = vst.msk [vmem:[%s217 + $0x44] sm:$0xf] %vm5324, %v5277
      %5343 = vst.msk [vmem:[%s217 + $0x48] sm:$0xf] %vm5324, %v5278
      %5344 = vst.msk [vmem:[%s217 + $0x4c] sm:$0xf] %vm5324, %v5279
      %5345 = vst.msk [vmem:[%s217 + $0x50] sm:$0xf] %vm5324, %v5280
      %5346 = vst.msk [vmem:[%s217 + $0x54] sm:$0xf] %vm5324, %v5281
      %5347 = vst.msk [vmem:[%s217 + $0x58] sm:$0xf] %vm5324, %v5282
      %5348 = vst.msk [vmem:[%s217 + $0x5c] sm:$0xf] %vm5324, %v5283
      %5349 = vst.msk [vmem:[%s217 + $0x60] sm:$0xf] %vm5324, %v5284
      %5350 = vst.msk [vmem:[%s217 + $0x64] sm:$0xf] %vm5324, %v5285
      %5351 = vst.msk [vmem:[%s217 + $0x68] sm:$0xf] %vm5324, %v5286
      %5352 = vst.msk [vmem:[%s217 + $0x6c] sm:$0xf] %vm5324, %v5287
      %5353 = vst.msk [vmem:[%s217 + $0x70] sm:$0xf] %vm5324, %v5288
      %5354 = vst.msk [vmem:[%s217 + $0x74] sm:$0xf] %vm5324, %v5289
      %5355 = vst.msk [vmem:[%s217 + $0x78] sm:$0xf] %vm5324, %v5290
      %5356 = vst.msk [vmem:[%s217 + $0x7c] sm:$0xf] %vm5324, %v5291
      %p5357 = scmp.lt.s32.totalorder %s15, 1
      %s5358 = scalar_select %p5357, %s15, 1
      %s5359 = smul.addr %s5358, 32
      %s5360 = smul.addr %s5359, 4
      %s5361 = scalar_lea.vmem %s4, %s5360
      // Predicated region
      $region37: #{ncgm_forward.10} parent=35 // pred_check
        %p5362 = pneg %p127
      $region38: #{ncgm_forward.10} parent=35 // pred_check_branch
        %5364 = sbr.rel (%p5362) target = $region40
      $region39: #{ncgm_forward.10} parent=35 // pred_region
        _
      $region40: #{ncgm_forward.10} parent=35 // pred_fallthru
        _
    $region36: #{ncgm_forward.10} parent=5 // pred_fallthru
      _
    %p5365 = scmp.le.s32.totalorder 2, %s10
    // Predicated region
    $region41: #{ncgm_forward.10} parent=5 // pred_check
      %p5366 = pneg %p5365
    $region42: #{ncgm_forward.10} parent=5 // pred_check_branch
      %5368 = sbr.rel (%p5366) target = $region44
    $region43: #{ncgm_forward.10} parent=5 // pred_region
      %s5369 = ssub.s32 %s10, 2
      // Predicated region
      $region45: #{ncgm_forward.10} parent=43 // pred_check
        %p5370 = pneg %p133
      $region46: #{ncgm_forward.10} parent=43 // pred_check_branch
        %5372 = sbr.rel (%p5370) target = $region48
      $region47: #{ncgm_forward.10} parent=43 // pred_region
        %p5373 = scmp.lt.s32.totalorder %s16, 1
        %s5374 = scalar_select %p5373, %s16, 1
        %s5375 = smul.addr %s5374, 32
        %s5376 = smul.addr %s5375, 4
        %s5377 = scalar_lea.vmem %s4, %s5376
      $region48: #{ncgm_forward.10} parent=43 // pred_fallthru
        _
    $region44: #{ncgm_forward.10} parent=5 // pred_fallthru
      _
  $region6: #{ncgm_forward.10} parent=0 // loop_footer
    %s14 = sadd.s32 1, %s10
  $region7: #{ncgm_forward.10} parent=0 // loop_footer_branch
    %9 = sbr.rel target = $region3
  $region8: #{ncgm_forward.10} parent=0 // loop_exit
    _

</llo_original>
